<compile_context>
chip_gen: v7x
topology: tpu7x:2x2x1
jax: 0.10.0
libtpu: 0.0.40
codegen_flags: <defaults>
</compile_context>

<pallas_src>
import functools

import jax
import jax.numpy as jnp
from jax.experimental import pallas as pl
from jax.experimental.pallas import tpu as pltpu


# ----------------------------- helpers ------------------------------------- #

def _gelu_exact(x):
    # matches torch.nn.GELU() / F.gelu default (erf-based, exact)
    return 0.5 * x * (1.0 + jax.lax.erf(x * 0.7071067811865475))


def _next_power_of_2(x: int) -> int:
    return 1 if x == 0 else 2 ** ((x - 1).bit_length())


def _round_up(x: int, m: int) -> int:
    return ((x + m - 1) // m) * m


def _row_tile(rows: int, max_rows: int) -> int:
    """Row tile (multiple of 8).  If everything would fit in one grid step,
    split into two so a 'parallel' grid axis has >=2 steps (v7x: 2 TCs)."""
    r8 = _round_up(rows, 8)
    if r8 <= max_rows:
        if rows > 8:
            return _round_up((rows + 1) // 2, 8)
        return r8
    return max_rows


_VMEM_LIMIT_CACHE = []


def _vmem_limit_bytes() -> int:
    """Generation-aware scoped-VMEM budget (v7x: 64 MiB phys, v5e/v6e: 128 MiB)."""
    if not _VMEM_LIMIT_CACHE:
        try:
            cap = int(pltpu.get_tpu_info().vmem_capacity_bytes)
        except Exception:
            cap = 64 * 1024 * 1024
        _VMEM_LIMIT_CACHE.append(min((cap * 3) // 4, 100 * 1024 * 1024))
    return _VMEM_LIMIT_CACHE[0]


def _cparams(n_axes: int = 1):
    return pltpu.CompilerParams(
        dimension_semantics=("parallel",) * n_axes,
        vmem_limit_bytes=_vmem_limit_bytes())


# ----------------------------- Pallas kernels ------------------------------ #

def _mlp_tail_kernel(x_ref, w2_ref, b2_ref, w3_ref, b3_ref, o_ref):
    """Embedding tail: x (bf16, already GELU'd layer-1 act) -> L2 -> GELU -> L3."""
    x = x_ref[...].astype(jnp.bfloat16)
    h = jnp.dot(x, w2_ref[...], preferred_element_type=jnp.float32) + b2_ref[...]
    h = _gelu_exact(h).astype(jnp.bfloat16)
    o = jnp.dot(h, w3_ref[...], preferred_element_type=jnp.float32) + b3_ref[...]
    o_ref[...] = o.astype(o_ref.dtype)


def _mlp3_kernel(x_ref, w1_ref, b1_ref, w2_ref, b2_ref, w3_ref, b3_ref, o_ref):
    """Fused 3-layer per-pixel MLP (decoder): Linear+GELU, Linear+GELU, Linear."""
    x = x_ref[...].astype(jnp.bfloat16)
    h = jnp.dot(x, w1_ref[...], preferred_element_type=jnp.float32) + b1_ref[...]
    h = _gelu_exact(h).astype(jnp.bfloat16)
    h = jnp.dot(h, w2_ref[...], preferred_element_type=jnp.float32) + b2_ref[...]
    h = _gelu_exact(h).astype(jnp.bfloat16)
    o = jnp.dot(h, w3_ref[...], preferred_element_type=jnp.float32) + b3_ref[...]
    o_ref[...] = o.astype(o_ref.dtype)


def _fno_mix_kernel(x_ref, w_ref, b_ref, s_ref, o_ref, *, apply_gelu: bool):
    """out = (1x1conv(x) + spectral_out) [+ GELU] on pixel-packed 128-lane rows."""
    x = x_ref[...].astype(jnp.bfloat16)
    y = jnp.dot(x, w_ref[...], preferred_element_type=jnp.float32)
    y = y + b_ref[...] + s_ref[...]
    if apply_gelu:
        y = _gelu_exact(y)
    o_ref[...] = y.astype(o_ref.dtype)


def _spectral_mul_kernel(x_ref, w_ref, o_ref):
    """Packed complex channel mixing.  Rows hold `pp` Fourier modes, each as
    [xr|xi]; the weight is the matching block-diagonal [[wr,wi],[-wi,wr]]."""
    x = x_ref[...].astype(jnp.bfloat16)
    o = jnp.einsum('mnk,mkl->mnl', x, w_ref[...],
                   preferred_element_type=jnp.float32)
    o_ref[...] = o.astype(o_ref.dtype)


# ----------------------------- Pallas wrappers ------------------------------ #

def mlp_tail(x, w2, b2, w3, b3, *, max_rows=1024):
    """x: [P, 128] bf16 -> [P, E] bf16 (Linear 128->256, GELU, Linear 256->E)."""
    P, Cin = x.shape
    Cout = w3.shape[1]
    tile = _row_tile(P, max_rows)
    return pl.pallas_call(
        _mlp_tail_kernel,
        grid=(pl.cdiv(P, tile),),
        in_specs=[
            pl.BlockSpec((tile, Cin), lambda i: (i, 0)),
            pl.BlockSpec(w2.shape, lambda i: (0, 0)),
            pl.BlockSpec(b2.shape, lambda i: (0, 0)),
            pl.BlockSpec(w3.shape, lambda i: (0, 0)),
            pl.BlockSpec(b3.shape, lambda i: (0, 0)),
        ],
        out_specs=pl.BlockSpec((tile, Cout), lambda i: (i, 0)),
        out_shape=jax.ShapeDtypeStruct((P, Cout), jnp.bfloat16),
        compiler_params=_cparams(),
    )(x, w2, b2, w3, b3)


def mlp3(x, w1, b1, w2, b2, w3, b3, *, out_dtype=jnp.float32, max_rows=1024):
    """x: [P, Cin] -> [P, Cout]; fused 3-layer per-pixel MLP (decoder)."""
    P, Cin = x.shape
    Cout = w3.shape[1]
    tile = _row_tile(P, max_rows)
    return pl.pallas_call(
        _mlp3_kernel,
        grid=(pl.cdiv(P, tile),),
        in_specs=[
            pl.BlockSpec((tile, Cin), lambda i: (i, 0)),
            pl.BlockSpec(w1.shape, lambda i: (0, 0)),
            pl.BlockSpec(b1.shape, lambda i: (0, 0)),
            pl.BlockSpec(w2.shape, lambda i: (0, 0)),
            pl.BlockSpec(b2.shape, lambda i: (0, 0)),
            pl.BlockSpec(w3.shape, lambda i: (0, 0)),
            pl.BlockSpec(b3.shape, lambda i: (0, 0)),
        ],
        out_specs=pl.BlockSpec((tile, Cout), lambda i: (i, 0)),
        out_shape=jax.ShapeDtypeStruct((P, Cout), out_dtype),
        compiler_params=_cparams(),
    )(x, w1, b1, w2, b2, w3, b3)


def fno_mix(x, w, b, spectral, pack, apply_gelu, *, max_rows=1024):
    """x (bf16) / spectral (f32): [P, E] -> [P, E] bf16.
    Rows are pixel-packed (pack*E = 128 lanes); `w`/`b` are pre-packed (bf16
    block-diagonal weight + tiled bias) from prepare_params()."""
    P, E = x.shape
    assert P % pack == 0
    G = P // pack
    Ew = pack * E
    xg = x.reshape(G, Ew)
    sg = spectral.reshape(G, Ew)
    tile = _row_tile(G, max_rows)

    out = pl.pallas_call(
        functools.partial(_fno_mix_kernel, apply_gelu=apply_gelu),
        grid=(pl.cdiv(G, tile),),
        in_specs=[
            pl.BlockSpec((tile, Ew), lambda i: (i, 0)),
            pl.BlockSpec(w.shape, lambda i: (0, 0)),
            pl.BlockSpec(b.shape, lambda i: (0, 0)),
            pl.BlockSpec((tile, Ew), lambda i: (i, 0)),
        ],
        out_specs=pl.BlockSpec((tile, Ew), lambda i: (i, 0)),
        out_shape=jax.ShapeDtypeStruct((G, Ew), jnp.bfloat16),
        compiler_params=_cparams(),
    )(xg, w, b, sg)
    return out.reshape(P, E)


def spectral_mul(x_re, x_im, w_packed, pp):
    """Complex channel mixing 'nihw,iohw->nohw' as real matmuls on packed rows.
      x_re/x_im: [N, Hm2, Wm, E] (pos+neg freq blocks already concatenated)
      w_packed:  [Mp, L, L] bf16 block-diagonal, L = pp*2E, Mp = Hm2*Wm/pp.
    Returns (out_re, out_im): [N, Hm2, Wm, E] f32."""
    N, Hm2, Wm, E = x_re.shape
    Mp, L, _ = w_packed.shape
    assert Mp * pp == Hm2 * Wm and L == pp * 2 * E

    x_pk = jnp.concatenate([x_re, x_im], axis=-1)        # [N, Hm2, Wm, 2E]
    x_pk = x_pk.reshape(N, Mp, L).transpose(1, 0, 2)     # [Mp, N, L]

    g = 2 if (Mp >= 2 and Mp % 2 == 0) else 1
    mc = Mp // g

    out = pl.pallas_call(
        _spectral_mul_kernel,
        grid=(g,),
        in_specs=[
            pl.BlockSpec((mc, N, L), lambda i: (i, 0, 0)),
            pl.BlockSpec((mc, L, L), lambda i: (i, 0, 0)),
        ],
        out_specs=pl.BlockSpec((mc, N, L), lambda i: (i, 0, 0)),
        out_shape=jax.ShapeDtypeStruct((Mp, N, L), jnp.float32),
        compiler_params=_cparams(),
    )(x_pk, w_packed)

    out = out.transpose(1, 0, 2).reshape(N, Hm2, Wm, 2 * E)
    return out[..., :E], out[..., E:]


# ----------------------------- SpectralConv2d ------------------------------- #

def spectral_conv2d(x, w_packed, pp, n_hmodes, n_wmodes):
    """Channel-last spectral conv.  x: [N, H, W, E] -> [N, H, W, E] f32.
    Matches torch: pad to next pow2, rfft2(norm='ortho'), keep +/- H-mode blocks
    and the first n_wmodes W-modes, irfft2(s=(H, W), norm='ortho')."""
    N, H, W, E = x.shape
    pH, pW = _next_power_of_2(H), _next_power_of_2(W)
    xp = jnp.pad(x.astype(jnp.float32),
                 ((0, 0), (0, pH - H), (0, pW - W), (0, 0)))

    # TODO(synk): rfft2 / irfft2 have no Pallas TPU primitive; done in plain JAX.
    fc = jnp.fft.rfft2(xp, axes=(1, 2), norm='ortho')    # [N, pH, pW//2+1, E]

    Wc = W // 2 + 1
    hm = n_hmodes
    wm = min(n_wmodes, Wc)   # columns >= W//2+1 are dropped by irfft2(s=(H, W))

    # positive block rows [0:hm], negative block rows [pH-hm:pH] — one Pallas call.
    blk = jnp.concatenate([fc[:, :hm, :wm, :], fc[:, pH - hm:, :wm, :]], axis=1)
    o_r, o_i = spectral_mul(jnp.real(blk), jnp.imag(blk), w_packed, pp)

    # Truncated half-spectrum [N, H, Wc, E]; matches the reference which writes an
    # HxW slab and lets irfft2(s=(H, W)) trim to the first W//2+1 columns.
    spec = jnp.zeros((N, H, Wc, E), jnp.complex64)
    spec = spec.at[:, :hm, :wm, :].set(o_r[:, :hm] + 1j * o_i[:, :hm])
    spec = spec.at[:, H - hm:, :wm, :].set(o_r[:, hm:] + 1j * o_i[:, hm:])

    out = jnp.fft.irfft2(spec, s=(H, W), axes=(1, 2), norm='ortho')
    return out.astype(jnp.float32)


# ----------------------------- parameter preparation ------------------------ #

def _pack_spectral_weights(w_real, w_imag, wm):
    """[2, E, E, hm, n_wmodes] real/imag -> ([Mp, L, L] bf16 block-diag, pp).
    Per mode m: [or|oi] = [xr|xi] @ [[wr, wi], [-wi, wr]]; pp modes per 128-lane row."""
    wr = w_real[..., :wm]
    wi = w_imag[..., :wm]
    E = wr.shape[1]
    wr = wr.transpose(0, 3, 4, 1, 2).reshape(-1, E, E)    # [M, E_in, E_out]
    wi = wi.transpose(0, 3, 4, 1, 2).reshape(-1, E, E)
    w2 = jnp.concatenate(
        [jnp.concatenate([wr, wi], axis=2),
         jnp.concatenate([-wi, wr], axis=2)], axis=1)     # [M, 2E, 2E]
    M = w2.shape[0]

    pp = 128 // (2 * E) if (0 < 2 * E < 128 and 128 % (2 * E) == 0) else 1
    while pp > 1 and M % pp != 0:
        pp //= 2

    if pp > 1:
        Mp = M // pp
        blocks = w2.reshape(Mp, pp, 2 * E, 2 * E)
        eye = jnp.eye(pp, dtype=w2.dtype)
        wp = jnp.einsum('mpab,pq->mpaqb', blocks, eye)
        wp = wp.reshape(Mp, pp * 2 * E, pp * 2 * E)
    else:
        wp = w2
    return wp.astype(jnp.bfloat16), pp


def prepare_params(params, out_resolution, n_hmodes, n_wmodes):
    """One-time weight preparation: bf16 casts, packed spectral weights,
    block-diagonal 1x1-conv weights.  Called once outside the hot path."""
    oH, oW = out_resolution
    w1, b1, w2, b2, w3, b3 = params['embedding']
    E = w3.shape[1]

    pack = 128 // E if (0 < E < 128 and 128 % E == 0) else 1
    while pack > 1 and (oH * oW) % pack != 0:
        pack //= 2

    dw1, db1, dw2, db2, dw3, db3 = params['decoder']

    wm = min(n_wmodes, oW // 2 + 1)
    layers = []
    for (sw_r, sw_i, cw, cb) in params['fno_layers']:
        sp_w, pp = _pack_spectral_weights(sw_r, sw_i, wm)
        if pack > 1:
            cwp = jnp.kron(jnp.eye(pack, dtype=cw.dtype), cw).astype(jnp.bfloat16)
            cbp = jnp.tile(cb, (1, pack))
        else:
            cwp, cbp = cw.astype(jnp.bfloat16), cb
        layers.append({'spectral_w': sp_w, 'pp': pp, 'conv_w': cwp, 'conv_b': cbp})

    return {
        'E': E,
        'pack': pack,
        'emb_l1': (w1, b1),                               # stays f32 (XLA einsum)
        'emb_tail': (w2.astype(jnp.bfloat16), b2,
                     w3.astype(jnp.bfloat16), b3),
        'decoder': (dw1.astype(jnp.bfloat16), db1,
                    dw2.astype(jnp.bfloat16), db2,
                    dw3.astype(jnp.bfloat16), db3),
        'fno_layers': layers,
    }


# ----------------------------- full model ----------------------------------- #

def fno_branch_net_forward(prepared, sensor_values, out_resolution,
                           n_hmodes, n_wmodes):
    B, T, C, H, W = sensor_values.shape
    N = B * T
    E = prepared['E']
    pack = prepared['pack']

    x = sensor_values.reshape(N, C, H, W)

    # Embedding layer 1 (C=4 -> 128) as a plain XLA einsum fused with the
    # NCHW->NHWC transpose (avoids a lane-sparse K=4 MXU dot in Pallas).
    w1, b1 = prepared['emb_l1']
    h1 = jnp.einsum('nchw,ce->nhwe', x, w1) + b1
    h1 = _gelu_exact(h1).astype(jnp.bfloat16)             # [N, H, W, 128]

    # Embedding tail (128 -> 256 -> E) in Pallas on lane-dense rows.
    emb = mlp_tail(h1.reshape(N * H * W, 128), *prepared['emb_tail'])
    output = emb.reshape(N, H, W, E)                       # bf16, channel-last

    oH, oW = out_resolution
    if (oH, oW) != (H, W):
        # F.interpolate default mode='nearest'
        hi = (jnp.arange(oH) * H) // oH
        wi = (jnp.arange(oW) * W) // oW
        output = output[:, hi, :, :][:, :, wi, :]

    n_layers = len(prepared['fno_layers'])
    for i, layer in enumerate(prepared['fno_layers']):
        out1 = spectral_conv2d(output, layer['spectral_w'], layer['pp'],
                               n_hmodes, n_wmodes)         # [N, oH, oW, E] f32
        y = fno_mix(output.reshape(-1, E), layer['conv_w'], layer['conv_b'],
                    out1.reshape(-1, E), pack,
                    apply_gelu=(i < n_layers - 1))         # bf16
        output = y.reshape(N, oH, oW, E)

    # decoder MLP (per pixel), f32 final output
    dec = mlp3(output.reshape(-1, E), *prepared['decoder'],
               out_dtype=jnp.float32)                      # [P, C]
    out = dec.reshape(N, oH, oW, C).transpose(0, 3, 1, 2)  # back to NCHW
    return out.reshape(B, T, C, oH, oW)


# ----------------------------- parameter init ------------------------------- #

def init_params(key, n_channels, embedding_dim, n_hmodes, n_wmodes, n_fno_layers):
    scale = 0.02
    keys = iter(jax.random.split(key, 64))

    def rnd(shape):
        return scale * jax.random.normal(next(keys), shape, jnp.float32)

    embedding = (
        rnd((n_channels, 128)), rnd((1, 128)),
        rnd((128, 256)),        rnd((1, 256)),
        rnd((256, embedding_dim)), rnd((1, embedding_dim)),
    )
    fno_layers = []
    for _ in range(n_fno_layers):
        sw_r = rnd((2, embedding_dim, embedding_dim, n_hmodes, n_wmodes))
        sw_i = rnd((2, embedding_dim, embedding_dim, n_hmodes, n_wmodes))
        cw = rnd((embedding_dim, embedding_dim))   # 1x1 conv weight, [in, out]
        cb = rnd((1, embedding_dim))
        fno_layers.append((sw_r, sw_i, cw, cb))
    decoder = (
        rnd((embedding_dim, 128)), rnd((1, 128)),
        rnd((128, 128)),           rnd((1, 128)),
        rnd((128, n_channels)),    rnd((1, n_channels)),
    )
    return {'embedding': embedding, 'fno_layers': fno_layers, 'decoder': decoder}


# ----------------------------- main ----------------------------------------- #

if __name__ == "__main__":
    B, T, C, H, W = 2, 2, 4, 16, 16
    E, n_hmodes, n_wmodes, n_fno_layers = 32, 4, 4, 2

    key = jax.random.PRNGKey(0)
    k_params, k_input = jax.random.split(key)
    params = init_params(k_params, C, E, n_hmodes, n_wmodes, n_fno_layers)
    sensor_values = jax.random.normal(k_input, (B, T, C, H, W), jnp.float32)

    # One-time weight preparation (hoisted out of the forward hot path).
    prepared = prepare_params(params, (H, W), n_hmodes, n_wmodes)

    fwd = jax.jit(lambda sv: fno_branch_net_forward(
        prepared, sv, (H, W), n_hmodes, n_wmodes))

    out = jax.block_until_ready(fwd(sensor_values))
    assert out.shape == (B, T, C, H, W), out.shape
    print("KERNEL_OK")
</pallas_src>

<mosaic_0001>
module attributes {stable_mosaic.version = 11 : i64} {
  func.func @_mlp_tail_kernel(%arg0: i32, %arg1: memref<512x128xbf16, #tpu.memory_space<vmem>>, %arg2: memref<128x256xbf16, #tpu.memory_space<vmem>>, %arg3: memref<1x256xf32, #tpu.memory_space<vmem>>, %arg4: memref<256x32xbf16, #tpu.memory_space<vmem>>, %arg5: memref<1x32xf32, #tpu.memory_space<vmem>>, %arg6: memref<512x32xbf16, #tpu.memory_space<vmem>>) attributes {dimension_semantics = [#tpu.dimension_semantics<parallel>], iteration_bounds = array<i64: 2>, scalar_prefetch = 0 : i64, scratch_operands = 0 : i64, tpu.core_type = #tpu.core_type<tc>, window_params = [{transform_indices = @transform_0, window_bounds = array<i64: 512, 128>}, {pipeline_mode = #tpu.pipeline_mode<synchronous>, transform_indices = @transform_1, window_bounds = array<i64: 128, 256>}, {pipeline_mode = #tpu.pipeline_mode<synchronous>, transform_indices = @transform_2, window_bounds = array<i64: 1, 256>}, {pipeline_mode = #tpu.pipeline_mode<synchronous>, transform_indices = @transform_3, window_bounds = array<i64: 256, 32>}, {pipeline_mode = #tpu.pipeline_mode<synchronous>, transform_indices = @transform_4, window_bounds = array<i64: 1, 32>}, {transform_indices = @transform_5, window_bounds = array<i64: 512, 32>}]} {
    %c0 = arith.constant 0 : index
    %c0_0 = arith.constant 0 : index
    %0 = vector.load %arg1[%c0, %c0_0] : memref<512x128xbf16, #tpu.memory_space<vmem>>, vector<512x128xbf16>
    %c0_1 = arith.constant 0 : index
    %c0_2 = arith.constant 0 : index
    %1 = vector.load %arg2[%c0_1, %c0_2] : memref<128x256xbf16, #tpu.memory_space<vmem>>, vector<128x256xbf16>
    %cst = arith.constant dense<0.000000e+00> : vector<512x256xf32>
    %2 = tpu.matmul %0, %1, %cst {dimension_numbers = #tpu.dot_dimension_numbers<[1], [0], [0], [1], [0, 0, 1, 1], [], []>} : vector<512x128xbf16>, vector<128x256xbf16>, vector<512x256xf32> -> vector<512x256xf32>
    %c0_3 = arith.constant 0 : index
    %c0_4 = arith.constant 0 : index
    %3 = vector.load %arg3[%c0_3, %c0_4] : memref<1x256xf32, #tpu.memory_space<vmem>>, vector<1x256xf32>
    %4 = vector.broadcast %3 : vector<1x256xf32> to vector<512x256xf32>
    %5 = arith.addf %2, %4 : vector<512x256xf32>
    %cst_5 = arith.constant 5.000000e-01 : f32
    %6 = vector.broadcast %cst_5 : f32 to vector<512x256xf32>
    %7 = arith.mulf %6, %5 : vector<512x256xf32>
    %cst_6 = arith.constant 0.707106769 : f32
    %8 = vector.broadcast %cst_6 : f32 to vector<512x256xf32>
    %9 = arith.mulf %5, %8 : vector<512x256xf32>
    %10 = math.erf %9 : vector<512x256xf32>
    %cst_7 = arith.constant 1.000000e+00 : f32
    %11 = vector.broadcast %cst_7 : f32 to vector<512x256xf32>
    %12 = arith.addf %11, %10 : vector<512x256xf32>
    %13 = arith.mulf %7, %12 : vector<512x256xf32>
    %14 = arith.truncf %13 : vector<512x256xf32> to vector<512x256xbf16>
    %c0_8 = arith.constant 0 : index
    %c0_9 = arith.constant 0 : index
    %15 = vector.load %arg4[%c0_8, %c0_9] : memref<256x32xbf16, #tpu.memory_space<vmem>>, vector<256x32xbf16>
    %cst_10 = arith.constant dense<0.000000e+00> : vector<512x32xf32>
    %16 = tpu.matmul %14, %15, %cst_10 {dimension_numbers = #tpu.dot_dimension_numbers<[1], [0], [0], [1], [0, 0, 1, 1], [], []>} : vector<512x256xbf16>, vector<256x32xbf16>, vector<512x32xf32> -> vector<512x32xf32>
    %c0_11 = arith.constant 0 : index
    %c0_12 = arith.constant 0 : index
    %17 = vector.load %arg5[%c0_11, %c0_12] : memref<1x32xf32, #tpu.memory_space<vmem>>, vector<1x32xf32>
    %18 = vector.broadcast %17 : vector<1x32xf32> to vector<512x32xf32>
    %19 = arith.addf %16, %18 : vector<512x32xf32>
    %20 = arith.truncf %19 : vector<512x32xf32> to vector<512x32xbf16>
    %c0_13 = arith.constant 0 : index
    %c0_14 = arith.constant 0 : index
    %21 = vector.load %arg6[%c0_13, %c0_14] : memref<512x32xbf16, #tpu.memory_space<vmem>>, vector<512x32xbf16>
    tpu.vector_store %arg6[%c0_13, %c0_14], %20 {strides = array<i32>} : memref<512x32xbf16, #tpu.memory_space<vmem>>, vector<512x32xbf16>,
    return
  }
  func.func @transform_0(%arg0: i32) -> (i32, i32) {
    %c0_i32 = arith.constant 0 : i32
    %c0_i32_0 = arith.constant 0 : i32
    return %arg0, %c0_i32 : i32, i32
  }
  func.func @transform_1(%arg0: i32) -> (i32, i32) {
    %c0_i32 = arith.constant 0 : i32
    %c0_i32_0 = arith.constant 0 : i32
    %c0_i32_1 = arith.constant 0 : i32
    return %c0_i32, %c0_i32_0 : i32, i32
  }
  func.func @transform_2(%arg0: i32) -> (i32, i32) {
    %c0_i32 = arith.constant 0 : i32
    %c0_i32_0 = arith.constant 0 : i32
    %c0_i32_1 = arith.constant 0 : i32
    return %c0_i32, %c0_i32_0 : i32, i32
  }
  func.func @transform_3(%arg0: i32) -> (i32, i32) {
    %c0_i32 = arith.constant 0 : i32
    %c0_i32_0 = arith.constant 0 : i32
    %c0_i32_1 = arith.constant 0 : i32
    return %c0_i32, %c0_i32_0 : i32, i32
  }
  func.func @transform_4(%arg0: i32) -> (i32, i32) {
    %c0_i32 = arith.constant 0 : i32
    %c0_i32_0 = arith.constant 0 : i32
    %c0_i32_1 = arith.constant 0 : i32
    return %c0_i32, %c0_i32_0 : i32, i32
  }
  func.func @transform_5(%arg0: i32) -> (i32, i32) {
    %c0_i32 = arith.constant 0 : i32
    %c0_i32_0 = arith.constant 0 : i32
    return %arg0, %c0_i32 : i32, i32
  }
}

module attributes {stable_mosaic.version = 11 : i64} {
  func.func @_spectral_mul_kernel(%arg0: i32, %arg1: memref<8x4x128xf32, #tpu.memory_space<vmem>>, %arg2: memref<8x128x128xbf16, #tpu.memory_space<vmem>>, %arg3: memref<8x4x128xf32, #tpu.memory_space<vmem>>) attributes {dimension_semantics = [#tpu.dimension_semantics<parallel>], iteration_bounds = array<i64: 2>, scalar_prefetch = 0 : i64, scratch_operands = 0 : i64, tpu.core_type = #tpu.core_type<tc>, window_params = [{transform_indices = @transform_0, window_bounds = array<i64: 8, 4, 128>}, {transform_indices = @transform_1, window_bounds = array<i64: 8, 128, 128>}, {transform_indices = @transform_2, window_bounds = array<i64: 8, 4, 128>}]} {
    %c0 = arith.constant 0 : index
    %c0_0 = arith.constant 0 : index
    %c0_1 = arith.constant 0 : index
    %0 = vector.load %arg1[%c0, %c0_0, %c0_1] : memref<8x4x128xf32, #tpu.memory_space<vmem>>, vector<8x4x128xf32>
    %1 = arith.truncf %0 : vector<8x4x128xf32> to vector<8x4x128xbf16>
    %c0_2 = arith.constant 0 : index
    %c0_3 = arith.constant 0 : index
    %c0_4 = arith.constant 0 : index
    %2 = vector.load %arg2[%c0_2, %c0_3, %c0_4] : memref<8x128x128xbf16, #tpu.memory_space<vmem>>, vector<8x128x128xbf16>
    "tpu.trace_start"() <{level = 10 : i32, message = "mnk,mkl->mnl"}> : () -> ()
    %cst = arith.constant dense<0.000000e+00> : vector<8x4x128xf32>
    %3 = tpu.matmul %1, %2, %cst {dimension_numbers = #tpu.dot_dimension_numbers<[2], [1], [1], [2], [0, 0, 0, 1, 1, 2], [0], [0]>} : vector<8x4x128xbf16>, vector<8x128x128xbf16>, vector<8x4x128xf32> -> vector<8x4x128xf32>
    "tpu.trace_stop"() : () -> ()
    %c0_5 = arith.constant 0 : index
    %c0_6 = arith.constant 0 : index
    %c0_7 = arith.constant 0 : index
    %4 = vector.load %arg3[%c0_5, %c0_6, %c0_7] : memref<8x4x128xf32, #tpu.memory_space<vmem>>, vector<8x4x128xf32>
    tpu.vector_store %arg3[%c0_5, %c0_6, %c0_7], %3 {strides = array<i32>} : memref<8x4x128xf32, #tpu.memory_space<vmem>>, vector<8x4x128xf32>,
    return
  }
  func.func @transform_0(%arg0: i32) -> (i32, i32, i32) {
    %c0_i32 = arith.constant 0 : i32
    %c0_i32_0 = arith.constant 0 : i32
    %c0_i32_1 = arith.constant 0 : i32
    return %arg0, %c0_i32, %c0_i32_0 : i32, i32, i32
  }
  func.func @transform_1(%arg0: i32) -> (i32, i32, i32) {
    %c0_i32 = arith.constant 0 : i32
    %c0_i32_0 = arith.constant 0 : i32
    %c0_i32_1 = arith.constant 0 : i32
    return %arg0, %c0_i32, %c0_i32_0 : i32, i32, i32
  }
  func.func @transform_2(%arg0: i32) -> (i32, i32, i32) {
    %c0_i32 = arith.constant 0 : i32
    %c0_i32_0 = arith.constant 0 : i32
    %c0_i32_1 = arith.constant 0 : i32
    return %arg0, %c0_i32, %c0_i32_0 : i32, i32, i32
  }
}

module attributes {stable_mosaic.version = 11 : i64} {
  func.func @_fno_mix_kernel(%arg0: i32, %arg1: memref<128x128xbf16, #tpu.memory_space<vmem>>, %arg2: memref<128x128xbf16, #tpu.memory_space<vmem>>, %arg3: memref<1x128xf32, #tpu.memory_space<vmem>>, %arg4: memref<128x128xf32, #tpu.memory_space<vmem>>, %arg5: memref<128x128xbf16, #tpu.memory_space<vmem>>) attributes {dimension_semantics = [#tpu.dimension_semantics<parallel>], iteration_bounds = array<i64: 2>, scalar_prefetch = 0 : i64, scratch_operands = 0 : i64, tpu.core_type = #tpu.core_type<tc>, window_params = [{transform_indices = @transform_0, window_bounds = array<i64: 128, 128>}, {pipeline_mode = #tpu.pipeline_mode<synchronous>, transform_indices = @transform_1, window_bounds = array<i64: 128, 128>}, {pipeline_mode = #tpu.pipeline_mode<synchronous>, transform_indices = @transform_2, window_bounds = array<i64: 1, 128>}, {transform_indices = @transform_3, window_bounds = array<i64: 128, 128>}, {transform_indices = @transform_4, window_bounds = array<i64: 128, 128>}]} {
    %c0 = arith.constant 0 : index
    %c0_0 = arith.constant 0 : index
    %0 = vector.load %arg1[%c0, %c0_0] : memref<128x128xbf16, #tpu.memory_space<vmem>>, vector<128x128xbf16>
    %c0_1 = arith.constant 0 : index
    %c0_2 = arith.constant 0 : index
    %1 = vector.load %arg2[%c0_1, %c0_2] : memref<128x128xbf16, #tpu.memory_space<vmem>>, vector<128x128xbf16>
    %cst = arith.constant dense<0.000000e+00> : vector<128x128xf32>
    %2 = tpu.matmul %0, %1, %cst {dimension_numbers = #tpu.dot_dimension_numbers<[1], [0], [0], [1], [0, 0, 1, 1], [], []>} : vector<128x128xbf16>, vector<128x128xbf16>, vector<128x128xf32> -> vector<128x128xf32>
    %c0_3 = arith.constant 0 : index
    %c0_4 = arith.constant 0 : index
    %3 = vector.load %arg3[%c0_3, %c0_4] : memref<1x128xf32, #tpu.memory_space<vmem>>, vector<1x128xf32>
    %4 = vector.broadcast %3 : vector<1x128xf32> to vector<128x128xf32>
    %5 = arith.addf %2, %4 : vector<128x128xf32>
    %c0_5 = arith.constant 0 : index
    %c0_6 = arith.constant 0 : index
    %6 = vector.load %arg4[%c0_5, %c0_6] : memref<128x128xf32, #tpu.memory_space<vmem>>, vector<128x128xf32>
    %7 = arith.addf %5, %6 : vector<128x128xf32>
    %cst_7 = arith.constant 5.000000e-01 : f32
    %8 = vector.broadcast %cst_7 : f32 to vector<128x128xf32>
    %9 = arith.mulf %8, %7 : vector<128x128xf32>
    %cst_8 = arith.constant 0.707106769 : f32
    %10 = vector.broadcast %cst_8 : f32 to vector<128x128xf32>
    %11 = arith.mulf %7, %10 : vector<128x128xf32>
    %12 = math.erf %11 : vector<128x128xf32>
    %cst_9 = arith.constant 1.000000e+00 : f32
    %13 = vector.broadcast %cst_9 : f32 to vector<128x128xf32>
    %14 = arith.addf %13, %12 : vector<128x128xf32>
    %15 = arith.mulf %9, %14 : vector<128x128xf32>
    %16 = arith.truncf %15 : vector<128x128xf32> to vector<128x128xbf16>
    %c0_10 = arith.constant 0 : index
    %c0_11 = arith.constant 0 : index
    %17 = vector.load %arg5[%c0_10, %c0_11] : memref<128x128xbf16, #tpu.memory_space<vmem>>, vector<128x128xbf16>
    tpu.vector_store %arg5[%c0_10, %c0_11], %16 {strides = array<i32>} : memref<128x128xbf16, #tpu.memory_space<vmem>>, vector<128x128xbf16>,
    return
  }
  func.func @transform_0(%arg0: i32) -> (i32, i32) {
    %c0_i32 = arith.constant 0 : i32
    %c0_i32_0 = arith.constant 0 : i32
    return %arg0, %c0_i32 : i32, i32
  }
  func.func @transform_1(%arg0: i32) -> (i32, i32) {
    %c0_i32 = arith.constant 0 : i32
    %c0_i32_0 = arith.constant 0 : i32
    %c0_i32_1 = arith.constant 0 : i32
    return %c0_i32, %c0_i32_0 : i32, i32
  }
  func.func @transform_2(%arg0: i32) -> (i32, i32) {
    %c0_i32 = arith.constant 0 : i32
    %c0_i32_0 = arith.constant 0 : i32
    %c0_i32_1 = arith.constant 0 : i32
    return %c0_i32, %c0_i32_0 : i32, i32
  }
  func.func @transform_3(%arg0: i32) -> (i32, i32) {
    %c0_i32 = arith.constant 0 : i32
    %c0_i32_0 = arith.constant 0 : i32
    return %arg0, %c0_i32 : i32, i32
  }
  func.func @transform_4(%arg0: i32) -> (i32, i32) {
    %c0_i32 = arith.constant 0 : i32
    %c0_i32_0 = arith.constant 0 : i32
    return %arg0, %c0_i32 : i32, i32
  }
}

module attributes {stable_mosaic.version = 11 : i64} {
  func.func @_fno_mix_kernel(%arg0: i32, %arg1: memref<128x128xbf16, #tpu.memory_space<vmem>>, %arg2: memref<128x128xbf16, #tpu.memory_space<vmem>>, %arg3: memref<1x128xf32, #tpu.memory_space<vmem>>, %arg4: memref<128x128xf32, #tpu.memory_space<vmem>>, %arg5: memref<128x128xbf16, #tpu.memory_space<vmem>>) attributes {dimension_semantics = [#tpu.dimension_semantics<parallel>], iteration_bounds = array<i64: 2>, scalar_prefetch = 0 : i64, scratch_operands = 0 : i64, tpu.core_type = #tpu.core_type<tc>, window_params = [{transform_indices = @transform_0, window_bounds = array<i64: 128, 128>}, {pipeline_mode = #tpu.pipeline_mode<synchronous>, transform_indices = @transform_1, window_bounds = array<i64: 128, 128>}, {pipeline_mode = #tpu.pipeline_mode<synchronous>, transform_indices = @transform_2, window_bounds = array<i64: 1, 128>}, {transform_indices = @transform_3, window_bounds = array<i64: 128, 128>}, {transform_indices = @transform_4, window_bounds = array<i64: 128, 128>}]} {
    %c0 = arith.constant 0 : index
    %c0_0 = arith.constant 0 : index
    %0 = vector.load %arg1[%c0, %c0_0] : memref<128x128xbf16, #tpu.memory_space<vmem>>, vector<128x128xbf16>
    %c0_1 = arith.constant 0 : index
    %c0_2 = arith.constant 0 : index
    %1 = vector.load %arg2[%c0_1, %c0_2] : memref<128x128xbf16, #tpu.memory_space<vmem>>, vector<128x128xbf16>
    %cst = arith.constant dense<0.000000e+00> : vector<128x128xf32>
    %2 = tpu.matmul %0, %1, %cst {dimension_numbers = #tpu.dot_dimension_numbers<[1], [0], [0], [1], [0, 0, 1, 1], [], []>} : vector<128x128xbf16>, vector<128x128xbf16>, vector<128x128xf32> -> vector<128x128xf32>
    %c0_3 = arith.constant 0 : index
    %c0_4 = arith.constant 0 : index
    %3 = vector.load %arg3[%c0_3, %c0_4] : memref<1x128xf32, #tpu.memory_space<vmem>>, vector<1x128xf32>
    %4 = vector.broadcast %3 : vector<1x128xf32> to vector<128x128xf32>
    %5 = arith.addf %2, %4 : vector<128x128xf32>
    %c0_5 = arith.constant 0 : index
    %c0_6 = arith.constant 0 : index
    %6 = vector.load %arg4[%c0_5, %c0_6] : memref<128x128xf32, #tpu.memory_space<vmem>>, vector<128x128xf32>
    %7 = arith.addf %5, %6 : vector<128x128xf32>
    %8 = arith.truncf %7 : vector<128x128xf32> to vector<128x128xbf16>
    %c0_7 = arith.constant 0 : index
    %c0_8 = arith.constant 0 : index
    %9 = vector.load %arg5[%c0_7, %c0_8] : memref<128x128xbf16, #tpu.memory_space<vmem>>, vector<128x128xbf16>
    tpu.vector_store %arg5[%c0_7, %c0_8], %8 {strides = array<i32>} : memref<128x128xbf16, #tpu.memory_space<vmem>>, vector<128x128xbf16>,
    return
  }
  func.func @transform_0(%arg0: i32) -> (i32, i32) {
    %c0_i32 = arith.constant 0 : i32
    %c0_i32_0 = arith.constant 0 : i32
    return %arg0, %c0_i32 : i32, i32
  }
  func.func @transform_1(%arg0: i32) -> (i32, i32) {
    %c0_i32 = arith.constant 0 : i32
    %c0_i32_0 = arith.constant 0 : i32
    %c0_i32_1 = arith.constant 0 : i32
    return %c0_i32, %c0_i32_0 : i32, i32
  }
  func.func @transform_2(%arg0: i32) -> (i32, i32) {
    %c0_i32 = arith.constant 0 : i32
    %c0_i32_0 = arith.constant 0 : i32
    %c0_i32_1 = arith.constant 0 : i32
    return %c0_i32, %c0_i32_0 : i32, i32
  }
  func.func @transform_3(%arg0: i32) -> (i32, i32) {
    %c0_i32 = arith.constant 0 : i32
    %c0_i32_0 = arith.constant 0 : i32
    return %arg0, %c0_i32 : i32, i32
  }
  func.func @transform_4(%arg0: i32) -> (i32, i32) {
    %c0_i32 = arith.constant 0 : i32
    %c0_i32_0 = arith.constant 0 : i32
    return %arg0, %c0_i32 : i32, i32
  }
}

module attributes {stable_mosaic.version = 11 : i64} {
  func.func @_mlp3_kernel(%arg0: i32, %arg1: memref<512x32xbf16, #tpu.memory_space<vmem>>, %arg2: memref<32x128xbf16, #tpu.memory_space<vmem>>, %arg3: memref<1x128xf32, #tpu.memory_space<vmem>>, %arg4: memref<128x128xbf16, #tpu.memory_space<vmem>>, %arg5: memref<1x128xf32, #tpu.memory_space<vmem>>, %arg6: memref<128x4xbf16, #tpu.memory_space<vmem>>, %arg7: memref<1x4xf32, #tpu.memory_space<vmem>>, %arg8: memref<512x4xf32, #tpu.memory_space<vmem>>) attributes {dimension_semantics = [#tpu.dimension_semantics<parallel>], iteration_bounds = array<i64: 2>, scalar_prefetch = 0 : i64, scratch_operands = 0 : i64, tpu.core_type = #tpu.core_type<tc>, window_params = [{transform_indices = @transform_0, window_bounds = array<i64: 512, 32>}, {pipeline_mode = #tpu.pipeline_mode<synchronous>, transform_indices = @transform_1, window_bounds = array<i64: 32, 128>}, {pipeline_mode = #tpu.pipeline_mode<synchronous>, transform_indices = @transform_2, window_bounds = array<i64: 1, 128>}, {pipeline_mode = #tpu.pipeline_mode<synchronous>, transform_indices = @transform_3, window_bounds = array<i64: 128, 128>}, {pipeline_mode = #tpu.pipeline_mode<synchronous>, transform_indices = @transform_4, window_bounds = array<i64: 1, 128>}, {pipeline_mode = #tpu.pipeline_mode<synchronous>, transform_indices = @transform_5, window_bounds = array<i64: 128, 4>}, {pipeline_mode = #tpu.pipeline_mode<synchronous>, transform_indices = @transform_6, window_bounds = array<i64: 1, 4>}, {transform_indices = @transform_7, window_bounds = array<i64: 512, 4>}]} {
    %c0 = arith.constant 0 : index
    %c0_0 = arith.constant 0 : index
    %0 = vector.load %arg1[%c0, %c0_0] : memref<512x32xbf16, #tpu.memory_space<vmem>>, vector<512x32xbf16>
    %c0_1 = arith.constant 0 : index
    %c0_2 = arith.constant 0 : index
    %1 = vector.load %arg2[%c0_1, %c0_2] : memref<32x128xbf16, #tpu.memory_space<vmem>>, vector<32x128xbf16>
    %cst = arith.constant dense<0.000000e+00> : vector<512x128xf32>
    %2 = tpu.matmul %0, %1, %cst {dimension_numbers = #tpu.dot_dimension_numbers<[1], [0], [0], [1], [0, 0, 1, 1], [], []>} : vector<512x32xbf16>, vector<32x128xbf16>, vector<512x128xf32> -> vector<512x128xf32>
    %c0_3 = arith.constant 0 : index
    %c0_4 = arith.constant 0 : index
    %3 = vector.load %arg3[%c0_3, %c0_4] : memref<1x128xf32, #tpu.memory_space<vmem>>, vector<1x128xf32>
    %4 = vector.broadcast %3 : vector<1x128xf32> to vector<512x128xf32>
    %5 = arith.addf %2, %4 : vector<512x128xf32>
    %cst_5 = arith.constant 5.000000e-01 : f32
    %6 = vector.broadcast %cst_5 : f32 to vector<512x128xf32>
    %7 = arith.mulf %6, %5 : vector<512x128xf32>
    %cst_6 = arith.constant 0.707106769 : f32
    %8 = vector.broadcast %cst_6 : f32 to vector<512x128xf32>
    %9 = arith.mulf %5, %8 : vector<512x128xf32>
    %10 = math.erf %9 : vector<512x128xf32>
    %cst_7 = arith.constant 1.000000e+00 : f32
    %11 = vector.broadcast %cst_7 : f32 to vector<512x128xf32>
    %12 = arith.addf %11, %10 : vector<512x128xf32>
    %13 = arith.mulf %7, %12 : vector<512x128xf32>
    %14 = arith.truncf %13 : vector<512x128xf32> to vector<512x128xbf16>
    %c0_8 = arith.constant 0 : index
    %c0_9 = arith.constant 0 : index
    %15 = vector.load %arg4[%c0_8, %c0_9] : memref<128x128xbf16, #tpu.memory_space<vmem>>, vector<128x128xbf16>
    %cst_10 = arith.constant dense<0.000000e+00> : vector<512x128xf32>
    %16 = tpu.matmul %14, %15, %cst_10 {dimension_numbers = #tpu.dot_dimension_numbers<[1], [0], [0], [1], [0, 0, 1, 1], [], []>} : vector<512x128xbf16>, vector<128x128xbf16>, vector<512x128xf32> -> vector<512x128xf32>
    %c0_11 = arith.constant 0 : index
    %c0_12 = arith.constant 0 : index
    %17 = vector.load %arg5[%c0_11, %c0_12] : memref<1x128xf32, #tpu.memory_space<vmem>>, vector<1x128xf32>
    %18 = vector.broadcast %17 : vector<1x128xf32> to vector<512x128xf32>
    %19 = arith.addf %16, %18 : vector<512x128xf32>
    %cst_13 = arith.constant 5.000000e-01 : f32
    %20 = vector.broadcast %cst_13 : f32 to vector<512x128xf32>
    %21 = arith.mulf %20, %19 : vector<512x128xf32>
    %cst_14 = arith.constant 0.707106769 : f32
    %22 = vector.broadcast %cst_14 : f32 to vector<512x128xf32>
    %23 = arith.mulf %19, %22 : vector<512x128xf32>
    %24 = math.erf %23 : vector<512x128xf32>
    %cst_15 = arith.constant 1.000000e+00 : f32
    %25 = vector.broadcast %cst_15 : f32 to vector<512x128xf32>
    %26 = arith.addf %25, %24 : vector<512x128xf32>
    %27 = arith.mulf %21, %26 : vector<512x128xf32>
    %28 = arith.truncf %27 : vector<512x128xf32> to vector<512x128xbf16>
    %c0_16 = arith.constant 0 : index
    %c0_17 = arith.constant 0 : index
    %29 = vector.load %arg6[%c0_16, %c0_17] : memref<128x4xbf16, #tpu.memory_space<vmem>>, vector<128x4xbf16>
    %cst_18 = arith.constant dense<0.000000e+00> : vector<512x4xf32>
    %30 = tpu.matmul %28, %29, %cst_18 {dimension_numbers = #tpu.dot_dimension_numbers<[1], [0], [0], [1], [0, 0, 1, 1], [], []>} : vector<512x128xbf16>, vector<128x4xbf16>, vector<512x4xf32> -> vector<512x4xf32>
    %c0_19 = arith.constant 0 : index
    %c0_20 = arith.constant 0 : index
    %31 = vector.load %arg7[%c0_19, %c0_20] : memref<1x4xf32, #tpu.memory_space<vmem>>, vector<1x4xf32>
    %32 = vector.broadcast %31 : vector<1x4xf32> to vector<512x4xf32>
    %33 = arith.addf %30, %32 : vector<512x4xf32>
    %c0_21 = arith.constant 0 : index
    %c0_22 = arith.constant 0 : index
    %34 = vector.load %arg8[%c0_21, %c0_22] : memref<512x4xf32, #tpu.memory_space<vmem>>, vector<512x4xf32>
    tpu.vector_store %arg8[%c0_21, %c0_22], %33 {strides = array<i32>} : memref<512x4xf32, #tpu.memory_space<vmem>>, vector<512x4xf32>,
    return
  }
  func.func @transform_0(%arg0: i32) -> (i32, i32) {
    %c0_i32 = arith.constant 0 : i32
    %c0_i32_0 = arith.constant 0 : i32
    return %arg0, %c0_i32 : i32, i32
  }
  func.func @transform_1(%arg0: i32) -> (i32, i32) {
    %c0_i32 = arith.constant 0 : i32
    %c0_i32_0 = arith.constant 0 : i32
    %c0_i32_1 = arith.constant 0 : i32
    return %c0_i32, %c0_i32_0 : i32, i32
  }
  func.func @transform_2(%arg0: i32) -> (i32, i32) {
    %c0_i32 = arith.constant 0 : i32
    %c0_i32_0 = arith.constant 0 : i32
    %c0_i32_1 = arith.constant 0 : i32
    return %c0_i32, %c0_i32_0 : i32, i32
  }
  func.func @transform_3(%arg0: i32) -> (i32, i32) {
    %c0_i32 = arith.constant 0 : i32
    %c0_i32_0 = arith.constant 0 : i32
    %c0_i32_1 = arith.constant 0 : i32
    return %c0_i32, %c0_i32_0 : i32, i32
  }
  func.func @transform_4(%arg0: i32) -> (i32, i32) {
    %c0_i32 = arith.constant 0 : i32
    %c0_i32_0 = arith.constant 0 : i32
    %c0_i32_1 = arith.constant 0 : i32
    return %c0_i32, %c0_i32_0 : i32, i32
  }
  func.func @transform_5(%arg0: i32) -> (i32, i32) {
    %c0_i32 = arith.constant 0 : i32
    %c0_i32_0 = arith.constant 0 : i32
    %c0_i32_1 = arith.constant 0 : i32
    return %c0_i32, %c0_i32_0 : i32, i32
  }
  func.func @transform_6(%arg0: i32) -> (i32, i32) {
    %c0_i32 = arith.constant 0 : i32
    %c0_i32_0 = arith.constant 0 : i32
    %c0_i32_1 = arith.constant 0 : i32
    return %c0_i32, %c0_i32_0 : i32, i32
  }
  func.func @transform_7(%arg0: i32) -> (i32, i32) {
    %c0_i32 = arith.constant 0 : i32
    %c0_i32_0 = arith.constant 0 : i32
    return %arg0, %c0_i32 : i32, i32
  }
}

</mosaic_0001>

<llo_original>
// kernel: _lambda_.6
$region0: #{_lambda_.6}
  #allocation0 [shape = 'u32[]', space=smem, size = 0x4, offset = 0x4, fixed_abs, tag = 'smem constant byte address 0x4 - core index']
  #allocation1 [shape = 'u32[144,128]{1,0:T(1,128)}', space=vmem, size = 0x12000, scoped, tag = 'internal scratch']
  %s0 = inlined_call_operand.vmem [shape: bf16[1024,128], index: 0, kind: input, shape index: {}]
  %s1 = inlined_call_operand.vmem [shape: bf16[128,256], index: 1, kind: input, shape index: {}]
  %s2 = inlined_call_operand.vmem [shape: f32[1,256], index: 2, kind: input, shape index: {}]
  %s3 = inlined_call_operand.vmem [shape: bf16[256,32], index: 3, kind: input, shape index: {}]
  %s4 = inlined_call_operand.vmem [shape: f32[1,32], index: 4, kind: input, shape index: {}]
  %s5 = inlined_call_operand.vmem [shape: bf16[1024,32], index: 5, kind: output, shape index: {}]
  %s6 = sld [smem:[#allocation0]]
  $region53: #{_lambda_.6} parent=0
    _
  %s8 = ssub.s32 1, %s6
  %s9 = scalar_select 0, %s8, %s6
  loop: start=0, step=1, limit=4
  $region2: #{_lambda_.6} parent=0 // loop_pre_header
    _
  $region3: #{_lambda_.6} parent=0 // loop_header
    %s11 = sphi 0, %s15
    %p12 = scmp.ge.s32.totalorder %s11, 4
    %s21 = sphi 0, %s23
    %s24 = sphi 0, %s21
    %s25 = sphi 0, %s24
    %s41 = sphi 0, %s25
    %s45 = sphi 0, %s45
    %s47 = sphi 0, %s45
    %s48 = sphi 0, %s47
    %s62 = sphi 0, %s48
    %s66 = sphi 0, %s66
    %s68 = sphi 0, %s66
    %s69 = sphi 0, %s68
    %s83 = sphi 0, %s69
    %s87 = sphi 0, %s87
    %s89 = sphi 0, %s87
    %s90 = sphi 0, %s89
    %s104 = sphi 0, %s90
    %s108 = sphi 0, %s108
    %s110 = sphi 0, %s108
    %s111 = sphi 0, %s110
    %s125 = sphi 0, %s111
    %s131 = sphi 0, %s133
    %s134 = sphi 0, %s131
    %s135 = sphi 0, %s134
    %s151 = sphi 0, %s135
  $region4: #{_lambda_.6} parent=0 // loop_header_branch
    %14 = sbr.rel (%p12) target = $region8
  $region5: #{_lambda_.6} parent=0 // loop_body
    %s16 = ssub.s32 %s11, 1
    %s17 = ssub.s32 %s11, 2
    %s18 = sadd.s32 %s11, 1
    %s19 = ssub.s32 %s11, %s18
    %p20 = scmp.eq.s32.totalorder %s19, 0
    %s22 = sadd.s32 %s21, 1
    %s23 = scalar_select %p20, %s21, %s22
    %p26 = pneg %p20
    %p27 = scmp.eq.s32.totalorder %s11, 1
    %p28 = por %p26, %p27
    %p29 = scmp.ne.s32.totalorder %s21, %s24
    %p30 = scmp.eq.s32.totalorder %s11, 0
    %p31 = por %p29, %p30
    %p32 = scmp.ne.s32.totalorder %s21, %s24
    %p33 = scmp.eq.s32.totalorder %s16, 1
    %p34 = por %p32, %p33
    %p35 = scmp.ne.s32.totalorder %s24, %s25
    %p36 = scmp.eq.s32.totalorder %s16, 0
    %p37 = por %p35, %p36
    %p38 = scmp.ne.s32.totalorder %s24, %s25
    %p39 = scmp.eq.s32.totalorder %s17, 1
    %p40 = por %p38, %p39
    %p42 = scmp.ne.s32.totalorder %s25, %s41
    %p43 = scmp.eq.s32.totalorder %s17, 0
    %p44 = por %p42, %p43
    %s46 = sadd.s32 %s45, 1
    %p49 = scmp.eq.s32.totalorder %s11, 1
    %p50 = scmp.ne.s32.totalorder %s45, %s47
    %p51 = scmp.eq.s32.totalorder %s11, 0
    %p52 = por %p50, %p51
    %p53 = scmp.ne.s32.totalorder %s45, %s47
    %p54 = scmp.eq.s32.totalorder %s16, 1
    %p55 = por %p53, %p54
    %p56 = scmp.ne.s32.totalorder %s47, %s48
    %p57 = scmp.eq.s32.totalorder %s16, 0
    %p58 = por %p56, %p57
    %p59 = scmp.ne.s32.totalorder %s47, %s48
    %p60 = scmp.eq.s32.totalorder %s17, 1
    %p61 = por %p59, %p60
    %p63 = scmp.ne.s32.totalorder %s48, %s62
    %p64 = scmp.eq.s32.totalorder %s17, 0
    %p65 = por %p63, %p64
    %s67 = sadd.s32 %s66, 1
    %p70 = scmp.eq.s32.totalorder %s11, 1
    %p71 = scmp.ne.s32.totalorder %s66, %s68
    %p72 = scmp.eq.s32.totalorder %s11, 0
    %p73 = por %p71, %p72
    %p74 = scmp.ne.s32.totalorder %s66, %s68
    %p75 = scmp.eq.s32.totalorder %s16, 1
    %p76 = por %p74, %p75
    %p77 = scmp.ne.s32.totalorder %s68, %s69
    %p78 = scmp.eq.s32.totalorder %s16, 0
    %p79 = por %p77, %p78
    %p80 = scmp.ne.s32.totalorder %s68, %s69
    %p81 = scmp.eq.s32.totalorder %s17, 1
    %p82 = por %p80, %p81
    %p84 = scmp.ne.s32.totalorder %s69, %s83
    %p85 = scmp.eq.s32.totalorder %s17, 0
    %p86 = por %p84, %p85
    %s88 = sadd.s32 %s87, 1
    %p91 = scmp.eq.s32.totalorder %s11, 1
    %p92 = scmp.ne.s32.totalorder %s87, %s89
    %p93 = scmp.eq.s32.totalorder %s11, 0
    %p94 = por %p92, %p93
    %p95 = scmp.ne.s32.totalorder %s87, %s89
    %p96 = scmp.eq.s32.totalorder %s16, 1
    %p97 = por %p95, %p96
    %p98 = scmp.ne.s32.totalorder %s89, %s90
    %p99 = scmp.eq.s32.totalorder %s16, 0
    %p100 = por %p98, %p99
    %p101 = scmp.ne.s32.totalorder %s89, %s90
    %p102 = scmp.eq.s32.totalorder %s17, 1
    %p103 = por %p101, %p102
    %p105 = scmp.ne.s32.totalorder %s90, %s104
    %p106 = scmp.eq.s32.totalorder %s17, 0
    %p107 = por %p105, %p106
    %s109 = sadd.s32 %s108, 1
    %p112 = scmp.eq.s32.totalorder %s11, 1
    %p113 = scmp.ne.s32.totalorder %s108, %s110
    %p114 = scmp.eq.s32.totalorder %s11, 0
    %p115 = por %p113, %p114
    %p116 = scmp.ne.s32.totalorder %s108, %s110
    %p117 = scmp.eq.s32.totalorder %s16, 1
    %p118 = por %p116, %p117
    %p119 = scmp.ne.s32.totalorder %s110, %s111
    %p120 = scmp.eq.s32.totalorder %s16, 0
    %p121 = por %p119, %p120
    %p122 = scmp.ne.s32.totalorder %s110, %s111
    %p123 = scmp.eq.s32.totalorder %s17, 1
    %p124 = por %p122, %p123
    %p126 = scmp.ne.s32.totalorder %s111, %s125
    %p127 = scmp.eq.s32.totalorder %s17, 0
    %p128 = por %p126, %p127
    %s129 = ssub.s32 %s11, %s18
    %p130 = scmp.eq.s32.totalorder %s129, 0
    %s132 = sadd.s32 %s131, 1
    %s133 = scalar_select %p130, %s131, %s132
    %p136 = pneg %p130
    %p137 = scmp.eq.s32.totalorder %s11, 1
    %p138 = por %p136, %p137
    %p139 = scmp.ne.s32.totalorder %s131, %s134
    %p140 = scmp.eq.s32.totalorder %s11, 0
    %p141 = por %p139, %p140
    %p142 = scmp.ne.s32.totalorder %s131, %s134
    %p143 = scmp.eq.s32.totalorder %s16, 1
    %p144 = por %p142, %p143
    %p145 = scmp.ne.s32.totalorder %s134, %s135
    %p146 = scmp.eq.s32.totalorder %s16, 0
    %p147 = por %p145, %p146
    %p148 = scmp.ne.s32.totalorder %s134, %s135
    %p149 = scmp.eq.s32.totalorder %s17, 1
    %p150 = por %p148, %p149
    %p152 = scmp.ne.s32.totalorder %s135, %s151
    %p153 = scmp.eq.s32.totalorder %s17, 0
    %p154 = por %p152, %p153
    %p155 = scmp.le.s32.totalorder 1, %s11
    %p156 = scmp.lt.s32.totalorder %s11, 3
    %p157 = pnand %p155, %p156
    %p158 = pneg %p157
    // Predicated region
    $region9: #{_lambda_.6} parent=5 // pred_check
      _
    $region10: #{_lambda_.6} parent=5 // pred_check_branch
      %160 = sbr.rel (%p157) target = $region12
    $region11: #{_lambda_.6} parent=5 // pred_region
      %s161 = ssub.s32 %s11, 1
      // Predicated region
      $region13: #{_lambda_.6} parent=11 // pred_check
        %p162 = pneg %p58
      $region14: #{_lambda_.6} parent=11 // pred_check_branch
        %164 = sbr.rel (%p162) target = $region16
      $region15: #{_lambda_.6} parent=11 // pred_region
        _
      $region16: #{_lambda_.6} parent=11 // pred_fallthru
        _
      // Predicated region
      $region17: #{_lambda_.6} parent=11 // pred_check
        %p165 = pneg %p79
      $region18: #{_lambda_.6} parent=11 // pred_check_branch
        %167 = sbr.rel (%p165) target = $region20
      $region19: #{_lambda_.6} parent=11 // pred_region
        _
      $region20: #{_lambda_.6} parent=11 // pred_fallthru
        _
      // Predicated region
      $region21: #{_lambda_.6} parent=11 // pred_check
        %p168 = pneg %p100
      $region22: #{_lambda_.6} parent=11 // pred_check_branch
        %170 = sbr.rel (%p168) target = $region24
      $region23: #{_lambda_.6} parent=11 // pred_region
        _
      $region24: #{_lambda_.6} parent=11 // pred_fallthru
        _
      // Predicated region
      $region25: #{_lambda_.6} parent=11 // pred_check
        %p171 = pneg %p121
      $region26: #{_lambda_.6} parent=11 // pred_check_branch
        %173 = sbr.rel (%p171) target = $region28
      $region27: #{_lambda_.6} parent=11 // pred_region
        _
      $region28: #{_lambda_.6} parent=11 // pred_fallthru
        _
    $region12: #{_lambda_.6} parent=5 // pred_fallthru
      _
    %p174 = scmp.lt.s32.totalorder %s11, 2
    // Predicated region
    $region29: #{_lambda_.6} parent=5 // pred_check
      %p175 = pneg %p174
    $region30: #{_lambda_.6} parent=5 // pred_check_branch
      %177 = sbr.rel (%p175) target = $region32
    $region31: #{_lambda_.6} parent=5 // pred_region
      // Predicated region
      $region33: #{_lambda_.6} parent=31 // pred_check
        %p178 = pneg %p31
      $region34: #{_lambda_.6} parent=31 // pred_check_branch
        %180 = sbr.rel (%p178) target = $region36
      $region35: #{_lambda_.6} parent=31 // pred_region
        %s181 = smul.u32 64, %s11
        %p182 = scmp.lt.s32.totalorder %s181, 127
        %s183 = scalar_select %p182, %s181, 127
        %s184 = smul.addr %s183, 4
        %s185 = scalar_lea.vmem %s0, %s184
        %s186 = smul.u32 64, %s11
      $region36: #{_lambda_.6} parent=31 // pred_fallthru
        _
    $region32: #{_lambda_.6} parent=5 // pred_fallthru
      _
    %p187 = scmp.le.s32.totalorder 1, %s11
    %p188 = scmp.lt.s32.totalorder %s11, 3
    %p189 = pnand %p187, %p188
    %p190 = pneg %p189
    // Predicated region
    $region37: #{_lambda_.6} parent=5 // pred_check
      _
    $region38: #{_lambda_.6} parent=5 // pred_check_branch
      %192 = sbr.rel (%p189) target = $region40
    $region39: #{_lambda_.6} parent=5 // pred_region
      %s193 = ssub.s32 %s11, 1
      %s194 = smul.u32 64, %s16
      %p195 = scmp.lt.s32.totalorder %s194, 127
      %s196 = scalar_select %p195, %s194, 127
      %s197 = smul.addr %s196, 4
      %s198 = scalar_lea.vmem %s0, %s197
      %p199 = pneg %p37
      %p200 = pneg %p34
      %p201 = pneg %p58
      %p202 = pneg %p55
      %p203 = pneg %p79
      %p204 = pneg %p76
      %p205 = pneg %p100
      %p206 = pneg %p97
      %p207 = pneg %p121
      %p208 = pneg %p118
      %p209 = pneg %p147
      %p210 = pneg %p144
      %s211 = smul.u32 64, %s16
      %p212 = scmp.lt.s32.totalorder %s211, 127
      %s213 = scalar_select %p212, %s211, 127
      %s214 = smul.addr %s213, 4
      %s215 = scalar_lea.vmem %s5, %s214
      %s216 = smul.u32 64, %s16
      %p217 = scmp.lt.s32.totalorder %s216, 127
      %s218 = scalar_select %p217, %s216, 127
      %s219 = smul.addr %s218, 4
      %s220 = scalar_lea.vmem %s0, %s219
      %s221 = smul.u32 64, %s16
      %s222 = smul.u32 64, %s16
      %p223 = scmp.lt.s32.totalorder %s222, 127
      %s224 = scalar_select %p223, %s222, 127
      %s225 = smul.addr %s224, 4
      %s226 = scalar_lea.vmem %s5, %s225
      %s227 = smul.u32 64, %s16
      %v229 = vld [vmem:[%s220] sm:$0xf]
      %v230 = vld [vmem:[%s220 + $0x4] sm:$0xf]
      %v231 = vld [vmem:[%s220 + $0x8] sm:$0xf]
      %v232 = vld [vmem:[%s220 + $0xc] sm:$0xf]
      %v233 = vld [vmem:[%s220 + $0x10] sm:$0xf]
      %v234 = vld [vmem:[%s220 + $0x14] sm:$0xf]
      %v235 = vld [vmem:[%s220 + $0x18] sm:$0xf]
      %v236 = vld [vmem:[%s220 + $0x1c] sm:$0xf]
      %v237 = vld [vmem:[%s220 + $0x20] sm:$0xf]
      %v238 = vld [vmem:[%s220 + $0x24] sm:$0xf]
      %v239 = vld [vmem:[%s220 + $0x28] sm:$0xf]
      %v240 = vld [vmem:[%s220 + $0x2c] sm:$0xf]
      %v241 = vld [vmem:[%s220 + $0x30] sm:$0xf]
      %v242 = vld [vmem:[%s220 + $0x34] sm:$0xf]
      %v243 = vld [vmem:[%s220 + $0x38] sm:$0xf]
      %v244 = vld [vmem:[%s220 + $0x3c] sm:$0xf]
      %v245 = vld [vmem:[%s220 + $0x40] sm:$0xf]
      %v246 = vld [vmem:[%s220 + $0x44] sm:$0xf]
      %v247 = vld [vmem:[%s220 + $0x48] sm:$0xf]
      %v248 = vld [vmem:[%s220 + $0x4c] sm:$0xf]
      %v249 = vld [vmem:[%s220 + $0x50] sm:$0xf]
      %v250 = vld [vmem:[%s220 + $0x54] sm:$0xf]
      %v251 = vld [vmem:[%s220 + $0x58] sm:$0xf]
      %v252 = vld [vmem:[%s220 + $0x5c] sm:$0xf]
      %v253 = vld [vmem:[%s220 + $0x60] sm:$0xf]
      %v254 = vld [vmem:[%s220 + $0x64] sm:$0xf]
      %v255 = vld [vmem:[%s220 + $0x68] sm:$0xf]
      %v256 = vld [vmem:[%s220 + $0x6c] sm:$0xf]
      %v257 = vld [vmem:[%s220 + $0x70] sm:$0xf]
      %v258 = vld [vmem:[%s220 + $0x74] sm:$0xf]
      %v259 = vld [vmem:[%s220 + $0x78] sm:$0xf]
      %v260 = vld [vmem:[%s220 + $0x7c] sm:$0xf]
      %v261 = vld [vmem:[%s220 + $0x80] sm:$0xf]
      %v262 = vld [vmem:[%s220 + $0x84] sm:$0xf]
      %v263 = vld [vmem:[%s220 + $0x88] sm:$0xf]
      %v264 = vld [vmem:[%s220 + $0x8c] sm:$0xf]
      %v265 = vld [vmem:[%s220 + $0x90] sm:$0xf]
      %v266 = vld [vmem:[%s220 + $0x94] sm:$0xf]
      %v267 = vld [vmem:[%s220 + $0x98] sm:$0xf]
      %v268 = vld [vmem:[%s220 + $0x9c] sm:$0xf]
      %v269 = vld [vmem:[%s220 + $0xa0] sm:$0xf]
      %v270 = vld [vmem:[%s220 + $0xa4] sm:$0xf]
      %v271 = vld [vmem:[%s220 + $0xa8] sm:$0xf]
      %v272 = vld [vmem:[%s220 + $0xac] sm:$0xf]
      %v273 = vld [vmem:[%s220 + $0xb0] sm:$0xf]
      %v274 = vld [vmem:[%s220 + $0xb4] sm:$0xf]
      %v275 = vld [vmem:[%s220 + $0xb8] sm:$0xf]
      %v276 = vld [vmem:[%s220 + $0xbc] sm:$0xf]
      %v277 = vld [vmem:[%s220 + $0xc0] sm:$0xf]
      %v278 = vld [vmem:[%s220 + $0xc4] sm:$0xf]
      %v279 = vld [vmem:[%s220 + $0xc8] sm:$0xf]
      %v280 = vld [vmem:[%s220 + $0xcc] sm:$0xf]
      %v281 = vld [vmem:[%s220 + $0xd0] sm:$0xf]
      %v282 = vld [vmem:[%s220 + $0xd4] sm:$0xf]
      %v283 = vld [vmem:[%s220 + $0xd8] sm:$0xf]
      %v284 = vld [vmem:[%s220 + $0xdc] sm:$0xf]
      %v285 = vld [vmem:[%s220 + $0xe0] sm:$0xf]
      %v286 = vld [vmem:[%s220 + $0xe4] sm:$0xf]
      %v287 = vld [vmem:[%s220 + $0xe8] sm:$0xf]
      %v288 = vld [vmem:[%s220 + $0xec] sm:$0xf]
      %v289 = vld [vmem:[%s220 + $0xf0] sm:$0xf]
      %v290 = vld [vmem:[%s220 + $0xf4] sm:$0xf]
      %v291 = vld [vmem:[%s220 + $0xf8] sm:$0xf]
      %v292 = vld [vmem:[%s220 + $0xfc] sm:$0xf]
      %v293 = vld [vmem:[%s1] sm:$0xff]
      %v294 = vld [vmem:[%s1 + $0x8] sm:$0xff]
      %v295 = vld [vmem:[%s1 + $0x10] sm:$0xff]
      %v296 = vld [vmem:[%s1 + $0x18] sm:$0xff]
      %v297 = vld [vmem:[%s1 + $0x20] sm:$0xff]
      %v298 = vld [vmem:[%s1 + $0x28] sm:$0xff]
      %v299 = vld [vmem:[%s1 + $0x30] sm:$0xff]
      %v300 = vld [vmem:[%s1 + $0x38] sm:$0xff]
      %v301 = vld [vmem:[%s1 + $0x40] sm:$0xff]
      %v302 = vld [vmem:[%s1 + $0x48] sm:$0xff]
      %v303 = vld [vmem:[%s1 + $0x50] sm:$0xff]
      %v304 = vld [vmem:[%s1 + $0x58] sm:$0xff]
      %v305 = vld [vmem:[%s1 + $0x60] sm:$0xff]
      %v306 = vld [vmem:[%s1 + $0x68] sm:$0xff]
      %v307 = vld [vmem:[%s1 + $0x70] sm:$0xff]
      %v308 = vld [vmem:[%s1 + $0x78] sm:$0xff]
      %v309 = vld [vmem:[%s2] sm:$0x3]
      %v311 = vlaneseq
      %v312 = vshrl.u32 %v311, 7
      %v313 = vsub.s32 0, %v312
      %v314 = vrot.slane %v309, %v313
      %v315 = vlaneseq
      %v316 = vshrl.u32 %v315, 7
      %v317 = vsub.s32 1, %v316
      %v318 = vrot.slane %v309, %v317
      %v385 = vunpack.c.l.b16 %v229
      %v386 = vunpack.c.l.b16 %v230
      %v387 = vunpack.c.l.b16 %v231
      %v388 = vunpack.c.l.b16 %v232
      %v389 = vunpack.c.l.b16 %v233
      %v390 = vunpack.c.l.b16 %v234
      %v391 = vunpack.c.l.b16 %v235
      %v392 = vunpack.c.l.b16 %v236
      %v393 = vunpack.c.l.b16 %v237
      %v394 = vunpack.c.l.b16 %v238
      %v395 = vunpack.c.l.b16 %v239
      %v396 = vunpack.c.l.b16 %v240
      %v397 = vunpack.c.l.b16 %v241
      %v398 = vunpack.c.l.b16 %v242
      %v399 = vunpack.c.l.b16 %v243
      %v400 = vunpack.c.l.b16 %v244
      %v401 = vunpack.c.l.b16 %v245
      %v402 = vunpack.c.l.b16 %v246
      %v403 = vunpack.c.l.b16 %v247
      %v404 = vunpack.c.l.b16 %v248
      %v405 = vunpack.c.l.b16 %v249
      %v406 = vunpack.c.l.b16 %v250
      %v407 = vunpack.c.l.b16 %v251
      %v408 = vunpack.c.l.b16 %v252
      %v409 = vunpack.c.l.b16 %v253
      %v410 = vunpack.c.l.b16 %v254
      %v411 = vunpack.c.l.b16 %v255
      %v412 = vunpack.c.l.b16 %v256
      %v413 = vunpack.c.l.b16 %v257
      %v414 = vunpack.c.l.b16 %v258
      %v415 = vunpack.c.l.b16 %v259
      %v416 = vunpack.c.l.b16 %v260
      %v417 = vunpack.c.l.b16 %v261
      %v418 = vunpack.c.l.b16 %v262
      %v419 = vunpack.c.l.b16 %v263
      %v420 = vunpack.c.l.b16 %v264
      %v421 = vunpack.c.l.b16 %v265
      %v422 = vunpack.c.l.b16 %v266
      %v423 = vunpack.c.l.b16 %v267
      %v424 = vunpack.c.l.b16 %v268
      %v425 = vunpack.c.l.b16 %v269
      %v426 = vunpack.c.l.b16 %v270
      %v427 = vunpack.c.l.b16 %v271
      %v428 = vunpack.c.l.b16 %v272
      %v429 = vunpack.c.l.b16 %v273
      %v430 = vunpack.c.l.b16 %v274
      %v431 = vunpack.c.l.b16 %v275
      %v432 = vunpack.c.l.b16 %v276
      %v433 = vunpack.c.l.b16 %v277
      %v434 = vunpack.c.l.b16 %v278
      %v435 = vunpack.c.l.b16 %v279
      %v436 = vunpack.c.l.b16 %v280
      %v437 = vunpack.c.l.b16 %v281
      %v438 = vunpack.c.l.b16 %v282
      %v439 = vunpack.c.l.b16 %v283
      %v440 = vunpack.c.l.b16 %v284
      %v441 = vunpack.c.l.b16 %v285
      %v442 = vunpack.c.l.b16 %v286
      %v443 = vunpack.c.l.b16 %v287
      %v444 = vunpack.c.l.b16 %v288
      %v445 = vunpack.c.l.b16 %v289
      %v446 = vunpack.c.l.b16 %v290
      %v447 = vunpack.c.l.b16 %v291
      %v448 = vunpack.c.l.b16 %v292
      %v449 = vpack.c.b16 %v386, %v385
      %v450 = vpack.c.b16 %v388, %v387
      %v451 = vpack.c.b16 %v390, %v389
      %v452 = vpack.c.b16 %v392, %v391
      %v453 = vpack.c.b16 %v394, %v393
      %v454 = vpack.c.b16 %v396, %v395
      %v455 = vpack.c.b16 %v398, %v397
      %v456 = vpack.c.b16 %v400, %v399
      %v457 = vpack.c.b16 %v402, %v401
      %v458 = vpack.c.b16 %v404, %v403
      %v459 = vpack.c.b16 %v406, %v405
      %v460 = vpack.c.b16 %v408, %v407
      %v461 = vpack.c.b16 %v410, %v409
      %v462 = vpack.c.b16 %v412, %v411
      %v463 = vpack.c.b16 %v414, %v413
      %v464 = vpack.c.b16 %v416, %v415
      %v465 = vpack.c.b16 %v418, %v417
      %v466 = vpack.c.b16 %v420, %v419
      %v467 = vpack.c.b16 %v422, %v421
      %v468 = vpack.c.b16 %v424, %v423
      %v469 = vpack.c.b16 %v426, %v425
      %v470 = vpack.c.b16 %v428, %v427
      %v471 = vpack.c.b16 %v430, %v429
      %v472 = vpack.c.b16 %v432, %v431
      %v473 = vpack.c.b16 %v434, %v433
      %v474 = vpack.c.b16 %v436, %v435
      %v475 = vpack.c.b16 %v438, %v437
      %v476 = vpack.c.b16 %v440, %v439
      %v477 = vpack.c.b16 %v442, %v441
      %v478 = vpack.c.b16 %v444, %v443
      %v479 = vpack.c.b16 %v446, %v445
      %v480 = vpack.c.b16 %v448, %v447
      %v529 = vunpack.c.l.b16 %v293
      %v530 = vunpack.c.h.b16 %v293
      %v531 = vunpack.c.l.b16 %v294
      %v532 = vunpack.c.h.b16 %v294
      %v533 = vunpack.c.l.b16 %v295
      %v534 = vunpack.c.h.b16 %v295
      %v535 = vunpack.c.l.b16 %v296
      %v536 = vunpack.c.h.b16 %v296
      %v537 = vunpack.c.l.b16 %v297
      %v538 = vunpack.c.h.b16 %v297
      %v539 = vunpack.c.l.b16 %v298
      %v540 = vunpack.c.h.b16 %v298
      %v541 = vunpack.c.l.b16 %v299
      %v542 = vunpack.c.h.b16 %v299
      %v543 = vunpack.c.l.b16 %v300
      %v544 = vunpack.c.h.b16 %v300
      %v545 = vunpack.c.l.b16 %v301
      %v546 = vunpack.c.h.b16 %v301
      %v547 = vunpack.c.l.b16 %v302
      %v548 = vunpack.c.h.b16 %v302
      %v549 = vunpack.c.l.b16 %v303
      %v550 = vunpack.c.h.b16 %v303
      %v551 = vunpack.c.l.b16 %v304
      %v552 = vunpack.c.h.b16 %v304
      %v553 = vunpack.c.l.b16 %v305
      %v554 = vunpack.c.h.b16 %v305
      %v555 = vunpack.c.l.b16 %v306
      %v556 = vunpack.c.h.b16 %v306
      %v557 = vunpack.c.l.b16 %v307
      %v558 = vunpack.c.h.b16 %v307
      %v559 = vunpack.c.l.b16 %v308
      %v560 = vunpack.c.h.b16 %v308
      %v561 = vpack.c.b16 %v531, %v529
      %v562 = vpack.c.b16 %v532, %v530
      %v563 = vpack.c.b16 %v535, %v533
      %v564 = vpack.c.b16 %v536, %v534
      %v565 = vpack.c.b16 %v539, %v537
      %v566 = vpack.c.b16 %v540, %v538
      %v567 = vpack.c.b16 %v543, %v541
      %v568 = vpack.c.b16 %v544, %v542
      %v569 = vpack.c.b16 %v547, %v545
      %v570 = vpack.c.b16 %v548, %v546
      %v571 = vpack.c.b16 %v551, %v549
      %v572 = vpack.c.b16 %v552, %v550
      %v573 = vpack.c.b16 %v555, %v553
      %v574 = vpack.c.b16 %v556, %v554
      %v575 = vpack.c.b16 %v559, %v557
      %v576 = vpack.c.b16 %v560, %v558
      %593 = vmatprep.subr.bf16.mxu0 %v562
      %594 = vmatpush1.bf16.msra.mxu0 %v561
      %595 = vmatprep.subr.bf16.mxu0 %v564
      %596 = vmatpush1.bf16.msra.mxu0 %v563
      %597 = vmatprep.subr.bf16.mxu0 %v566
      %598 = vmatpush1.bf16.msra.mxu0 %v565
      %599 = vmatprep.subr.bf16.mxu0 %v568
      %600 = vmatpush1.bf16.msra.mxu0 %v567
      %601 = vmatprep.subr.bf16.mxu0 %v570
      %602 = vmatpush1.bf16.msra.mxu0 %v569
      %603 = vmatprep.subr.bf16.mxu0 %v572
      %604 = vmatpush1.bf16.msra.mxu0 %v571
      %605 = vmatprep.subr.bf16.mxu0 %v574
      %606 = vmatpush1.bf16.msra.mxu0 %v573
      %607 = vmatprep.subr.bf16.mxu0 %v576
      %608 = vmatpush1.bf16.msra.mxu0 %v575
      %609 = vmatprep.subr.bf16.mxu0 0
      %610 = vmatpush1.bf16.msra.mxu0 0
      %611 = vmatprep.subr.bf16.mxu0 0
      %612 = vmatpush1.bf16.msra.mxu0 0
      %613 = vmatprep.subr.bf16.mxu0 0
      %614 = vmatpush1.bf16.msra.mxu0 0
      %615 = vmatprep.subr.bf16.mxu0 0
      %616 = vmatpush1.bf16.msra.mxu0 0
      %617 = vmatprep.subr.bf16.mxu0 0
      %618 = vmatpush1.bf16.msra.mxu0 0
      %619 = vmatprep.subr.bf16.mxu0 0
      %620 = vmatpush1.bf16.msra.mxu0 0
      %621 = vmatprep.subr.bf16.mxu0 0
      %622 = vmatpush1.bf16.msra.mxu0 0
      %623 = vmatprep.subr.bf16.mxu0 0
      %624 = vmatpush1.bf16.msra.mxu0 0
      %625 = vmatprep.mubr.bf16.mxu0 0
      %626 = vmatmul.mubr.bf16.gmra.mrb[0].mxu0 %v449
      %v627 = vpop.f32.mrb[0].mxu0
      %v628 = vadd.f32 %v314, %v627
      %v629 = vpop.f32.mrb[0].mxu0
      %v630 = vadd.f32 %v318, %v629
      %v631 = vpop.f32.mrb[0].mxu0
      %v632 = vadd.f32 %v314, %v631
      %v633 = vpop.f32.mrb[0].mxu0
      %v634 = vadd.f32 %v318, %v633
      %635 = vmatprep.mubr.bf16.mxu0 0
      %636 = vmatmul.mubr.bf16.gmra.mrb[0].mxu0 %v450
      %v637 = vpop.f32.mrb[0].mxu0
      %v638 = vadd.f32 %v314, %v637
      %v639 = vpop.f32.mrb[0].mxu0
      %v640 = vadd.f32 %v318, %v639
      %v641 = vpop.f32.mrb[0].mxu0
      %v642 = vadd.f32 %v314, %v641
      %v643 = vpop.f32.mrb[0].mxu0
      %v644 = vadd.f32 %v318, %v643
      %645 = vmatprep.mubr.bf16.mxu0 0
      %646 = vmatmul.mubr.bf16.gmra.mrb[0].mxu0 %v451
      %v647 = vpop.f32.mrb[0].mxu0
      %v648 = vadd.f32 %v314, %v647
      %v649 = vpop.f32.mrb[0].mxu0
      %v650 = vadd.f32 %v318, %v649
      %v651 = vpop.f32.mrb[0].mxu0
      %v652 = vadd.f32 %v314, %v651
      %v653 = vpop.f32.mrb[0].mxu0
      %v654 = vadd.f32 %v318, %v653
      %655 = vmatprep.mubr.bf16.mxu0 0
      %656 = vmatmul.mubr.bf16.gmra.mrb[0].mxu0 %v452
      %v657 = vpop.f32.mrb[0].mxu0
      %v658 = vadd.f32 %v314, %v657
      %v659 = vpop.f32.mrb[0].mxu0
      %v660 = vadd.f32 %v318, %v659
      %v661 = vpop.f32.mrb[0].mxu0
      %v662 = vadd.f32 %v314, %v661
      %v663 = vpop.f32.mrb[0].mxu0
      %v664 = vadd.f32 %v318, %v663
      %665 = vmatprep.mubr.bf16.mxu0 0
      %666 = vmatmul.mubr.bf16.gmra.mrb[0].mxu0 %v453
      %v667 = vpop.f32.mrb[0].mxu0
      %v668 = vadd.f32 %v314, %v667
      %v669 = vpop.f32.mrb[0].mxu0
      %v670 = vadd.f32 %v318, %v669
      %v671 = vpop.f32.mrb[0].mxu0
      %v672 = vadd.f32 %v314, %v671
      %v673 = vpop.f32.mrb[0].mxu0
      %v674 = vadd.f32 %v318, %v673
      %675 = vmatprep.mubr.bf16.mxu0 0
      %676 = vmatmul.mubr.bf16.gmra.mrb[0].mxu0 %v454
      %v677 = vpop.f32.mrb[0].mxu0
      %v678 = vadd.f32 %v314, %v677
      %v679 = vpop.f32.mrb[0].mxu0
      %v680 = vadd.f32 %v318, %v679
      %v681 = vpop.f32.mrb[0].mxu0
      %v682 = vadd.f32 %v314, %v681
      %v683 = vpop.f32.mrb[0].mxu0
      %v684 = vadd.f32 %v318, %v683
      %685 = vmatprep.mubr.bf16.mxu0 0
      %686 = vmatmul.mubr.bf16.gmra.mrb[0].mxu0 %v455
      %v687 = vpop.f32.mrb[0].mxu0
      %v688 = vadd.f32 %v314, %v687
      %v689 = vpop.f32.mrb[0].mxu0
      %v690 = vadd.f32 %v318, %v689
      %v691 = vpop.f32.mrb[0].mxu0
      %v692 = vadd.f32 %v314, %v691
      %v693 = vpop.f32.mrb[0].mxu0
      %v694 = vadd.f32 %v318, %v693
      %695 = vmatprep.mubr.bf16.mxu0 0
      %696 = vmatmul.mubr.bf16.gmra.mrb[0].mxu0 %v456
      %v697 = vpop.f32.mrb[0].mxu0
      %v698 = vadd.f32 %v314, %v697
      %v699 = vpop.f32.mrb[0].mxu0
      %v700 = vadd.f32 %v318, %v699
      %v701 = vpop.f32.mrb[0].mxu0
      %v702 = vadd.f32 %v314, %v701
      %v703 = vpop.f32.mrb[0].mxu0
      %v704 = vadd.f32 %v318, %v703
      %705 = vmatprep.mubr.bf16.mxu0 0
      %706 = vmatmul.mubr.bf16.gmra.mrb[0].mxu0 %v457
      %v707 = vpop.f32.mrb[0].mxu0
      %v708 = vadd.f32 %v314, %v707
      %v709 = vpop.f32.mrb[0].mxu0
      %v710 = vadd.f32 %v318, %v709
      %v711 = vpop.f32.mrb[0].mxu0
      %v712 = vadd.f32 %v314, %v711
      %v713 = vpop.f32.mrb[0].mxu0
      %v714 = vadd.f32 %v318, %v713
      %715 = vmatprep.mubr.bf16.mxu0 0
      %716 = vmatmul.mubr.bf16.gmra.mrb[0].mxu0 %v458
      %v717 = vpop.f32.mrb[0].mxu0
      %v718 = vadd.f32 %v314, %v717
      %v719 = vpop.f32.mrb[0].mxu0
      %v720 = vadd.f32 %v318, %v719
      %v721 = vpop.f32.mrb[0].mxu0
      %v722 = vadd.f32 %v314, %v721
      %v723 = vpop.f32.mrb[0].mxu0
      %v724 = vadd.f32 %v318, %v723
      %725 = vmatprep.mubr.bf16.mxu0 0
      %726 = vmatmul.mubr.bf16.gmra.mrb[0].mxu0 %v459
      %v727 = vpop.f32.mrb[0].mxu0
      %v728 = vadd.f32 %v314, %v727
      %v729 = vpop.f32.mrb[0].mxu0
      %v730 = vadd.f32 %v318, %v729
      %v731 = vpop.f32.mrb[0].mxu0
      %v732 = vadd.f32 %v314, %v731
      %v733 = vpop.f32.mrb[0].mxu0
      %v734 = vadd.f32 %v318, %v733
      %735 = vmatprep.mubr.bf16.mxu0 0
      %736 = vmatmul.mubr.bf16.gmra.mrb[0].mxu0 %v460
      %v737 = vpop.f32.mrb[0].mxu0
      %v738 = vadd.f32 %v314, %v737
      %v739 = vpop.f32.mrb[0].mxu0
      %v740 = vadd.f32 %v318, %v739
      %v741 = vpop.f32.mrb[0].mxu0
      %v742 = vadd.f32 %v314, %v741
      %v743 = vpop.f32.mrb[0].mxu0
      %v744 = vadd.f32 %v318, %v743
      %745 = vmatprep.mubr.bf16.mxu0 0
      %746 = vmatmul.mubr.bf16.gmra.mrb[0].mxu0 %v461
      %v747 = vpop.f32.mrb[0].mxu0
      %v748 = vadd.f32 %v314, %v747
      %v749 = vpop.f32.mrb[0].mxu0
      %v750 = vadd.f32 %v318, %v749
      %v751 = vpop.f32.mrb[0].mxu0
      %v752 = vadd.f32 %v314, %v751
      %v753 = vpop.f32.mrb[0].mxu0
      %v754 = vadd.f32 %v318, %v753
      %755 = vmatprep.mubr.bf16.mxu0 0
      %756 = vmatmul.mubr.bf16.gmra.mrb[0].mxu0 %v462
      %v757 = vpop.f32.mrb[0].mxu0
      %v758 = vadd.f32 %v314, %v757
      %v759 = vpop.f32.mrb[0].mxu0
      %v760 = vadd.f32 %v318, %v759
      %v761 = vpop.f32.mrb[0].mxu0
      %v762 = vadd.f32 %v314, %v761
      %v763 = vpop.f32.mrb[0].mxu0
      %v764 = vadd.f32 %v318, %v763
      %765 = vmatprep.mubr.bf16.mxu0 0
      %766 = vmatmul.mubr.bf16.gmra.mrb[0].mxu0 %v463
      %v767 = vpop.f32.mrb[0].mxu0
      %v768 = vadd.f32 %v314, %v767
      %v769 = vpop.f32.mrb[0].mxu0
      %v770 = vadd.f32 %v318, %v769
      %v771 = vpop.f32.mrb[0].mxu0
      %v772 = vadd.f32 %v314, %v771
      %v773 = vpop.f32.mrb[0].mxu0
      %v774 = vadd.f32 %v318, %v773
      %775 = vmatprep.mubr.bf16.mxu0 0
      %776 = vmatmul.mubr.bf16.gmra.mrb[0].mxu0 %v464
      %v777 = vpop.f32.mrb[0].mxu0
      %v778 = vadd.f32 %v314, %v777
      %v779 = vpop.f32.mrb[0].mxu0
      %v780 = vadd.f32 %v318, %v779
      %v781 = vpop.f32.mrb[0].mxu0
      %v782 = vadd.f32 %v314, %v781
      %v783 = vpop.f32.mrb[0].mxu0
      %v784 = vadd.f32 %v318, %v783
      %785 = vmatprep.mubr.bf16.mxu0 0
      %786 = vmatmul.mubr.bf16.gmra.mrb[0].mxu0 %v465
      %v787 = vpop.f32.mrb[0].mxu0
      %v788 = vadd.f32 %v314, %v787
      %v789 = vpop.f32.mrb[0].mxu0
      %v790 = vadd.f32 %v318, %v789
      %v791 = vpop.f32.mrb[0].mxu0
      %v792 = vadd.f32 %v314, %v791
      %v793 = vpop.f32.mrb[0].mxu0
      %v794 = vadd.f32 %v318, %v793
      %795 = vmatprep.mubr.bf16.mxu0 0
      %796 = vmatmul.mubr.bf16.gmra.mrb[0].mxu0 %v466
      %v797 = vpop.f32.mrb[0].mxu0
      %v798 = vadd.f32 %v314, %v797
      %v799 = vpop.f32.mrb[0].mxu0
      %v800 = vadd.f32 %v318, %v799
      %v801 = vpop.f32.mrb[0].mxu0
      %v802 = vadd.f32 %v314, %v801
      %v803 = vpop.f32.mrb[0].mxu0
      %v804 = vadd.f32 %v318, %v803
      %805 = vmatprep.mubr.bf16.mxu0 0
      %806 = vmatmul.mubr.bf16.gmra.mrb[0].mxu0 %v467
      %v807 = vpop.f32.mrb[0].mxu0
      %v808 = vadd.f32 %v314, %v807
      %v809 = vpop.f32.mrb[0].mxu0
      %v810 = vadd.f32 %v318, %v809
      %v811 = vpop.f32.mrb[0].mxu0
      %v812 = vadd.f32 %v314, %v811
      %v813 = vpop.f32.mrb[0].mxu0
      %v814 = vadd.f32 %v318, %v813
      %815 = vmatprep.mubr.bf16.mxu0 0
      %816 = vmatmul.mubr.bf16.gmra.mrb[0].mxu0 %v468
      %v817 = vpop.f32.mrb[0].mxu0
      %v818 = vadd.f32 %v314, %v817
      %v819 = vpop.f32.mrb[0].mxu0
      %v820 = vadd.f32 %v318, %v819
      %v821 = vpop.f32.mrb[0].mxu0
      %v822 = vadd.f32 %v314, %v821
      %v823 = vpop.f32.mrb[0].mxu0
      %v824 = vadd.f32 %v318, %v823
      %825 = vmatprep.mubr.bf16.mxu0 0
      %826 = vmatmul.mubr.bf16.gmra.mrb[0].mxu0 %v469
      %v827 = vpop.f32.mrb[0].mxu0
      %v828 = vadd.f32 %v314, %v827
      %v829 = vpop.f32.mrb[0].mxu0
      %v830 = vadd.f32 %v318, %v829
      %v831 = vpop.f32.mrb[0].mxu0
      %v832 = vadd.f32 %v314, %v831
      %v833 = vpop.f32.mrb[0].mxu0
      %v834 = vadd.f32 %v318, %v833
      %835 = vmatprep.mubr.bf16.mxu0 0
      %836 = vmatmul.mubr.bf16.gmra.mrb[0].mxu0 %v470
      %v837 = vpop.f32.mrb[0].mxu0
      %v838 = vadd.f32 %v314, %v837
      %v839 = vpop.f32.mrb[0].mxu0
      %v840 = vadd.f32 %v318, %v839
      %v841 = vpop.f32.mrb[0].mxu0
      %v842 = vadd.f32 %v314, %v841
      %v843 = vpop.f32.mrb[0].mxu0
      %v844 = vadd.f32 %v318, %v843
      %845 = vmatprep.mubr.bf16.mxu0 0
      %846 = vmatmul.mubr.bf16.gmra.mrb[0].mxu0 %v471
      %v847 = vpop.f32.mrb[0].mxu0
      %v848 = vadd.f32 %v314, %v847
      %v849 = vpop.f32.mrb[0].mxu0
      %v850 = vadd.f32 %v318, %v849
      %v851 = vpop.f32.mrb[0].mxu0
      %v852 = vadd.f32 %v314, %v851
      %v853 = vpop.f32.mrb[0].mxu0
      %v854 = vadd.f32 %v318, %v853
      %855 = vmatprep.mubr.bf16.mxu0 0
      %856 = vmatmul.mubr.bf16.gmra.mrb[0].mxu0 %v472
      %v857 = vpop.f32.mrb[0].mxu0
      %v858 = vadd.f32 %v314, %v857
      %v859 = vpop.f32.mrb[0].mxu0
      %v860 = vadd.f32 %v318, %v859
      %v861 = vpop.f32.mrb[0].mxu0
      %v862 = vadd.f32 %v314, %v861
      %v863 = vpop.f32.mrb[0].mxu0
      %v864 = vadd.f32 %v318, %v863
      %865 = vmatprep.mubr.bf16.mxu0 0
      %866 = vmatmul.mubr.bf16.gmra.mrb[0].mxu0 %v473
      %v867 = vpop.f32.mrb[0].mxu0
      %v868 = vadd.f32 %v314, %v867
      %v869 = vpop.f32.mrb[0].mxu0
      %v870 = vadd.f32 %v318, %v869
      %v871 = vpop.f32.mrb[0].mxu0
      %v872 = vadd.f32 %v314, %v871
      %v873 = vpop.f32.mrb[0].mxu0
      %v874 = vadd.f32 %v318, %v873
      %875 = vmatprep.mubr.bf16.mxu0 0
      %876 = vmatmul.mubr.bf16.gmra.mrb[0].mxu0 %v474
      %v877 = vpop.f32.mrb[0].mxu0
      %v878 = vadd.f32 %v314, %v877
      %v879 = vpop.f32.mrb[0].mxu0
      %v880 = vadd.f32 %v318, %v879
      %v881 = vpop.f32.mrb[0].mxu0
      %v882 = vadd.f32 %v314, %v881
      %v883 = vpop.f32.mrb[0].mxu0
      %v884 = vadd.f32 %v318, %v883
      %885 = vmatprep.mubr.bf16.mxu0 0
      %886 = vmatmul.mubr.bf16.gmra.mrb[0].mxu0 %v475
      %v887 = vpop.f32.mrb[0].mxu0
      %v888 = vadd.f32 %v314, %v887
      %v889 = vpop.f32.mrb[0].mxu0
      %v890 = vadd.f32 %v318, %v889
      %v891 = vpop.f32.mrb[0].mxu0
      %v892 = vadd.f32 %v314, %v891
      %v893 = vpop.f32.mrb[0].mxu0
      %v894 = vadd.f32 %v318, %v893
      %895 = vmatprep.mubr.bf16.mxu0 0
      %896 = vmatmul.mubr.bf16.gmra.mrb[0].mxu0 %v476
      %v897 = vpop.f32.mrb[0].mxu0
      %v898 = vadd.f32 %v314, %v897
      %v899 = vpop.f32.mrb[0].mxu0
      %v900 = vadd.f32 %v318, %v899
      %v901 = vpop.f32.mrb[0].mxu0
      %v902 = vadd.f32 %v314, %v901
      %v903 = vpop.f32.mrb[0].mxu0
      %v904 = vadd.f32 %v318, %v903
      %905 = vmatprep.mubr.bf16.mxu0 0
      %906 = vmatmul.mubr.bf16.gmra.mrb[0].mxu0 %v477
      %v907 = vpop.f32.mrb[0].mxu0
      %v908 = vadd.f32 %v314, %v907
      %v909 = vpop.f32.mrb[0].mxu0
      %v910 = vadd.f32 %v318, %v909
      %v911 = vpop.f32.mrb[0].mxu0
      %v912 = vadd.f32 %v314, %v911
      %v913 = vpop.f32.mrb[0].mxu0
      %v914 = vadd.f32 %v318, %v913
      %915 = vmatprep.mubr.bf16.mxu0 0
      %916 = vmatmul.mubr.bf16.gmra.mrb[0].mxu0 %v478
      %v917 = vpop.f32.mrb[0].mxu0
      %v918 = vadd.f32 %v314, %v917
      %v919 = vpop.f32.mrb[0].mxu0
      %v920 = vadd.f32 %v318, %v919
      %v921 = vpop.f32.mrb[0].mxu0
      %v922 = vadd.f32 %v314, %v921
      %v923 = vpop.f32.mrb[0].mxu0
      %v924 = vadd.f32 %v318, %v923
      %925 = vmatprep.mubr.bf16.mxu0 0
      %926 = vmatmul.mubr.bf16.gmra.mrb[0].mxu0 %v479
      %v927 = vpop.f32.mrb[0].mxu0
      %v928 = vadd.f32 %v314, %v927
      %v929 = vpop.f32.mrb[0].mxu0
      %v930 = vadd.f32 %v318, %v929
      %v931 = vpop.f32.mrb[0].mxu0
      %v932 = vadd.f32 %v314, %v931
      %v933 = vpop.f32.mrb[0].mxu0
      %v934 = vadd.f32 %v318, %v933
      %935 = vmatprep.mubr.bf16.mxu0 0
      %936 = vmatmul.mubr.bf16.gmra.mrb[0].mxu0 %v480
      %v937 = vpop.f32.mrb[0].mxu0
      %v938 = vadd.f32 %v314, %v937
      %v939 = vpop.f32.mrb[0].mxu0
      %v940 = vadd.f32 %v318, %v939
      %v941 = vpop.f32.mrb[0].mxu0
      %v942 = vadd.f32 %v314, %v941
      %v943 = vpop.f32.mrb[0].mxu0
      %v944 = vadd.f32 %v318, %v943
      %945 = vdwg.mxu0
      %v946 = vmul.f32 %v628, 0.5
      %v947 = vmul.f32 %v630, 0.5
      %v948 = vmul.f32 %v632, 0.5
      %v949 = vmul.f32 %v634, 0.5
      %v950 = vmul.f32 %v638, 0.5
      %v951 = vmul.f32 %v640, 0.5
      %v952 = vmul.f32 %v642, 0.5
      %v953 = vmul.f32 %v644, 0.5
      %v954 = vmul.f32 %v648, 0.5
      %v955 = vmul.f32 %v650, 0.5
      %v956 = vmul.f32 %v652, 0.5
      %v957 = vmul.f32 %v654, 0.5
      %v958 = vmul.f32 %v658, 0.5
      %v959 = vmul.f32 %v660, 0.5
      %v960 = vmul.f32 %v662, 0.5
      %v961 = vmul.f32 %v664, 0.5
      %v962 = vmul.f32 %v668, 0.5
      %v963 = vmul.f32 %v670, 0.5
      %v964 = vmul.f32 %v672, 0.5
      %v965 = vmul.f32 %v674, 0.5
      %v966 = vmul.f32 %v678, 0.5
      %v967 = vmul.f32 %v680, 0.5
      %v968 = vmul.f32 %v682, 0.5
      %v969 = vmul.f32 %v684, 0.5
      %v970 = vmul.f32 %v688, 0.5
      %v971 = vmul.f32 %v690, 0.5
      %v972 = vmul.f32 %v692, 0.5
      %v973 = vmul.f32 %v694, 0.5
      %v974 = vmul.f32 %v698, 0.5
      %v975 = vmul.f32 %v700, 0.5
      %v976 = vmul.f32 %v702, 0.5
      %v977 = vmul.f32 %v704, 0.5
      %v978 = vmul.f32 %v708, 0.5
      %v979 = vmul.f32 %v710, 0.5
      %v980 = vmul.f32 %v712, 0.5
      %v981 = vmul.f32 %v714, 0.5
      %v982 = vmul.f32 %v718, 0.5
      %v983 = vmul.f32 %v720, 0.5
      %v984 = vmul.f32 %v722, 0.5
      %v985 = vmul.f32 %v724, 0.5
      %v986 = vmul.f32 %v728, 0.5
      %v987 = vmul.f32 %v730, 0.5
      %v988 = vmul.f32 %v732, 0.5
      %v989 = vmul.f32 %v734, 0.5
      %v990 = vmul.f32 %v738, 0.5
      %v991 = vmul.f32 %v740, 0.5
      %v992 = vmul.f32 %v742, 0.5
      %v993 = vmul.f32 %v744, 0.5
      %v994 = vmul.f32 %v748, 0.5
      %v995 = vmul.f32 %v750, 0.5
      %v996 = vmul.f32 %v752, 0.5
      %v997 = vmul.f32 %v754, 0.5
      %v998 = vmul.f32 %v758, 0.5
      %v999 = vmul.f32 %v760, 0.5
      %v1000 = vmul.f32 %v762, 0.5
      %v1001 = vmul.f32 %v764, 0.5
      %v1002 = vmul.f32 %v768, 0.5
      %v1003 = vmul.f32 %v770, 0.5
      %v1004 = vmul.f32 %v772, 0.5
      %v1005 = vmul.f32 %v774, 0.5
      %v1006 = vmul.f32 %v778, 0.5
      %v1007 = vmul.f32 %v780, 0.5
      %v1008 = vmul.f32 %v782, 0.5
      %v1009 = vmul.f32 %v784, 0.5
      %v1010 = vmul.f32 %v788, 0.5
      %v1011 = vmul.f32 %v790, 0.5
      %v1012 = vmul.f32 %v792, 0.5
      %v1013 = vmul.f32 %v794, 0.5
      %v1014 = vmul.f32 %v798, 0.5
      %v1015 = vmul.f32 %v800, 0.5
      %v1016 = vmul.f32 %v802, 0.5
      %v1017 = vmul.f32 %v804, 0.5
      %v1018 = vmul.f32 %v808, 0.5
      %v1019 = vmul.f32 %v810, 0.5
      %v1020 = vmul.f32 %v812, 0.5
      %v1021 = vmul.f32 %v814, 0.5
      %v1022 = vmul.f32 %v818, 0.5
      %v1023 = vmul.f32 %v820, 0.5
      %v1024 = vmul.f32 %v822, 0.5
      %v1025 = vmul.f32 %v824, 0.5
      %v1026 = vmul.f32 %v828, 0.5
      %v1027 = vmul.f32 %v830, 0.5
      %v1028 = vmul.f32 %v832, 0.5
      %v1029 = vmul.f32 %v834, 0.5
      %v1030 = vmul.f32 %v838, 0.5
      %v1031 = vmul.f32 %v840, 0.5
      %v1032 = vmul.f32 %v842, 0.5
      %v1033 = vmul.f32 %v844, 0.5
      %v1034 = vmul.f32 %v848, 0.5
      %v1035 = vmul.f32 %v850, 0.5
      %v1036 = vmul.f32 %v852, 0.5
      %v1037 = vmul.f32 %v854, 0.5
      %v1038 = vmul.f32 %v858, 0.5
      %v1039 = vmul.f32 %v860, 0.5
      %v1040 = vmul.f32 %v862, 0.5
      %v1041 = vmul.f32 %v864, 0.5
      %v1042 = vmul.f32 %v868, 0.5
      %v1043 = vmul.f32 %v870, 0.5
      %v1044 = vmul.f32 %v872, 0.5
      %v1045 = vmul.f32 %v874, 0.5
      %v1046 = vmul.f32 %v878, 0.5
      %v1047 = vmul.f32 %v880, 0.5
      %v1048 = vmul.f32 %v882, 0.5
      %v1049 = vmul.f32 %v884, 0.5
      %v1050 = vmul.f32 %v888, 0.5
      %v1051 = vmul.f32 %v890, 0.5
      %v1052 = vmul.f32 %v892, 0.5
      %v1053 = vmul.f32 %v894, 0.5
      %v1054 = vmul.f32 %v898, 0.5
      %v1055 = vmul.f32 %v900, 0.5
      %v1056 = vmul.f32 %v902, 0.5
      %v1057 = vmul.f32 %v904, 0.5
      %v1058 = vmul.f32 %v908, 0.5
      %v1059 = vmul.f32 %v910, 0.5
      %v1060 = vmul.f32 %v912, 0.5
      %v1061 = vmul.f32 %v914, 0.5
      %v1062 = vmul.f32 %v918, 0.5
      %v1063 = vmul.f32 %v920, 0.5
      %v1064 = vmul.f32 %v922, 0.5
      %v1065 = vmul.f32 %v924, 0.5
      %v1066 = vmul.f32 %v928, 0.5
      %v1067 = vmul.f32 %v930, 0.5
      %v1068 = vmul.f32 %v932, 0.5
      %v1069 = vmul.f32 %v934, 0.5
      %v1070 = vmul.f32 %v938, 0.5
      %v1071 = vmul.f32 %v940, 0.5
      %v1072 = vmul.f32 %v942, 0.5
      %v1073 = vmul.f32 %v944, 0.5
      %v1074 = vmul.f32 %v628, 0.70710677
      %v1075 = vmul.f32 %v630, 0.70710677
      %v1076 = vmul.f32 %v632, 0.70710677
      %v1077 = vmul.f32 %v634, 0.70710677
      %v1078 = vmul.f32 %v638, 0.70710677
      %v1079 = vmul.f32 %v640, 0.70710677
      %v1080 = vmul.f32 %v642, 0.70710677
      %v1081 = vmul.f32 %v644, 0.70710677
      %v1082 = vmul.f32 %v648, 0.70710677
      %v1083 = vmul.f32 %v650, 0.70710677
      %v1084 = vmul.f32 %v652, 0.70710677
      %v1085 = vmul.f32 %v654, 0.70710677
      %v1086 = vmul.f32 %v658, 0.70710677
      %v1087 = vmul.f32 %v660, 0.70710677
      %v1088 = vmul.f32 %v662, 0.70710677
      %v1089 = vmul.f32 %v664, 0.70710677
      %v1090 = vmul.f32 %v668, 0.70710677
      %v1091 = vmul.f32 %v670, 0.70710677
      %v1092 = vmul.f32 %v672, 0.70710677
      %v1093 = vmul.f32 %v674, 0.70710677
      %v1094 = vmul.f32 %v678, 0.70710677
      %v1095 = vmul.f32 %v680, 0.70710677
      %v1096 = vmul.f32 %v682, 0.70710677
      %v1097 = vmul.f32 %v684, 0.70710677
      %v1098 = vmul.f32 %v688, 0.70710677
      %v1099 = vmul.f32 %v690, 0.70710677
      %v1100 = vmul.f32 %v692, 0.70710677
      %v1101 = vmul.f32 %v694, 0.70710677
      %v1102 = vmul.f32 %v698, 0.70710677
      %v1103 = vmul.f32 %v700, 0.70710677
      %v1104 = vmul.f32 %v702, 0.70710677
      %v1105 = vmul.f32 %v704, 0.70710677
      %v1106 = vmul.f32 %v708, 0.70710677
      %v1107 = vmul.f32 %v710, 0.70710677
      %v1108 = vmul.f32 %v712, 0.70710677
      %v1109 = vmul.f32 %v714, 0.70710677
      %v1110 = vmul.f32 %v718, 0.70710677
      %v1111 = vmul.f32 %v720, 0.70710677
      %v1112 = vmul.f32 %v722, 0.70710677
      %v1113 = vmul.f32 %v724, 0.70710677
      %v1114 = vmul.f32 %v728, 0.70710677
      %v1115 = vmul.f32 %v730, 0.70710677
      %v1116 = vmul.f32 %v732, 0.70710677
      %v1117 = vmul.f32 %v734, 0.70710677
      %v1118 = vmul.f32 %v738, 0.70710677
      %v1119 = vmul.f32 %v740, 0.70710677
      %v1120 = vmul.f32 %v742, 0.70710677
      %v1121 = vmul.f32 %v744, 0.70710677
      %v1122 = vmul.f32 %v748, 0.70710677
      %v1123 = vmul.f32 %v750, 0.70710677
      %v1124 = vmul.f32 %v752, 0.70710677
      %v1125 = vmul.f32 %v754, 0.70710677
      %v1126 = vmul.f32 %v758, 0.70710677
      %v1127 = vmul.f32 %v760, 0.70710677
      %v1128 = vmul.f32 %v762, 0.70710677
      %v1129 = vmul.f32 %v764, 0.70710677
      %v1130 = vmul.f32 %v768, 0.70710677
      %v1131 = vmul.f32 %v770, 0.70710677
      %v1132 = vmul.f32 %v772, 0.70710677
      %v1133 = vmul.f32 %v774, 0.70710677
      %v1134 = vmul.f32 %v778, 0.70710677
      %v1135 = vmul.f32 %v780, 0.70710677
      %v1136 = vmul.f32 %v782, 0.70710677
      %v1137 = vmul.f32 %v784, 0.70710677
      %v1138 = vmul.f32 %v788, 0.70710677
      %v1139 = vmul.f32 %v790, 0.70710677
      %v1140 = vmul.f32 %v792, 0.70710677
      %v1141 = vmul.f32 %v794, 0.70710677
      %v1142 = vmul.f32 %v798, 0.70710677
      %v1143 = vmul.f32 %v800, 0.70710677
      %v1144 = vmul.f32 %v802, 0.70710677
      %v1145 = vmul.f32 %v804, 0.70710677
      %v1146 = vmul.f32 %v808, 0.70710677
      %v1147 = vmul.f32 %v810, 0.70710677
      %v1148 = vmul.f32 %v812, 0.70710677
      %v1149 = vmul.f32 %v814, 0.70710677
      %v1150 = vmul.f32 %v818, 0.70710677
      %v1151 = vmul.f32 %v820, 0.70710677
      %v1152 = vmul.f32 %v822, 0.70710677
      %v1153 = vmul.f32 %v824, 0.70710677
      %v1154 = vmul.f32 %v828, 0.70710677
      %v1155 = vmul.f32 %v830, 0.70710677
      %v1156 = vmul.f32 %v832, 0.70710677
      %v1157 = vmul.f32 %v834, 0.70710677
      %v1158 = vmul.f32 %v838, 0.70710677
      %v1159 = vmul.f32 %v840, 0.70710677
      %v1160 = vmul.f32 %v842, 0.70710677
      %v1161 = vmul.f32 %v844, 0.70710677
      %v1162 = vmul.f32 %v848, 0.70710677
      %v1163 = vmul.f32 %v850, 0.70710677
      %v1164 = vmul.f32 %v852, 0.70710677
      %v1165 = vmul.f32 %v854, 0.70710677
      %v1166 = vmul.f32 %v858, 0.70710677
      %v1167 = vmul.f32 %v860, 0.70710677
      %v1168 = vmul.f32 %v862, 0.70710677
      %v1169 = vmul.f32 %v864, 0.70710677
      %v1170 = vmul.f32 %v868, 0.70710677
      %v1171 = vmul.f32 %v870, 0.70710677
      %v1172 = vmul.f32 %v872, 0.70710677
      %v1173 = vmul.f32 %v874, 0.70710677
      %v1174 = vmul.f32 %v878, 0.70710677
      %v1175 = vmul.f32 %v880, 0.70710677
      %v1176 = vmul.f32 %v882, 0.70710677
      %v1177 = vmul.f32 %v884, 0.70710677
      %v1178 = vmul.f32 %v888, 0.70710677
      %v1179 = vmul.f32 %v890, 0.70710677
      %v1180 = vmul.f32 %v892, 0.70710677
      %v1181 = vmul.f32 %v894, 0.70710677
      %v1182 = vmul.f32 %v898, 0.70710677
      %v1183 = vmul.f32 %v900, 0.70710677
      %v1184 = vmul.f32 %v902, 0.70710677
      %v1185 = vmul.f32 %v904, 0.70710677
      %v1186 = vmul.f32 %v908, 0.70710677
      %v1187 = vmul.f32 %v910, 0.70710677
      %v1188 = vmul.f32 %v912, 0.70710677
      %v1189 = vmul.f32 %v914, 0.70710677
      %v1190 = vmul.f32 %v918, 0.70710677
      %v1191 = vmul.f32 %v920, 0.70710677
      %v1192 = vmul.f32 %v922, 0.70710677
      %v1193 = vmul.f32 %v924, 0.70710677
      %v1194 = vmul.f32 %v928, 0.70710677
      %v1195 = vmul.f32 %v930, 0.70710677
      %v1196 = vmul.f32 %v932, 0.70710677
      %v1197 = vmul.f32 %v934, 0.70710677
      %v1198 = vmul.f32 %v938, 0.70710677
      %v1199 = vmul.f32 %v940, 0.70710677
      %v1200 = vmul.f32 %v942, 0.70710677
      %v1201 = vmul.f32 %v944, 0.70710677
      %v1202 = verf.f32.pop %v1074
      %v1203 = verf.f32.pop %v1075
      %v1204 = verf.f32.pop %v1076
      %v1205 = verf.f32.pop %v1077
      %v1206 = verf.f32.pop %v1078
      %v1207 = verf.f32.pop %v1079
      %v1208 = verf.f32.pop %v1080
      %v1209 = verf.f32.pop %v1081
      %v1210 = verf.f32.pop %v1082
      %v1211 = verf.f32.pop %v1083
      %v1212 = verf.f32.pop %v1084
      %v1213 = verf.f32.pop %v1085
      %v1214 = verf.f32.pop %v1086
      %v1215 = verf.f32.pop %v1087
      %v1216 = verf.f32.pop %v1088
      %v1217 = verf.f32.pop %v1089
      %v1218 = verf.f32.pop %v1090
      %v1219 = verf.f32.pop %v1091
      %v1220 = verf.f32.pop %v1092
      %v1221 = verf.f32.pop %v1093
      %v1222 = verf.f32.pop %v1094
      %v1223 = verf.f32.pop %v1095
      %v1224 = verf.f32.pop %v1096
      %v1225 = verf.f32.pop %v1097
      %v1226 = verf.f32.pop %v1098
      %v1227 = verf.f32.pop %v1099
      %v1228 = verf.f32.pop %v1100
      %v1229 = verf.f32.pop %v1101
      %v1230 = verf.f32.pop %v1102
      %v1231 = verf.f32.pop %v1103
      %v1232 = verf.f32.pop %v1104
      %v1233 = verf.f32.pop %v1105
      %v1234 = verf.f32.pop %v1106
      %v1235 = verf.f32.pop %v1107
      %v1236 = verf.f32.pop %v1108
      %v1237 = verf.f32.pop %v1109
      %v1238 = verf.f32.pop %v1110
      %v1239 = verf.f32.pop %v1111
      %v1240 = verf.f32.pop %v1112
      %v1241 = verf.f32.pop %v1113
      %v1242 = verf.f32.pop %v1114
      %v1243 = verf.f32.pop %v1115
      %v1244 = verf.f32.pop %v1116
      %v1245 = verf.f32.pop %v1117
      %v1246 = verf.f32.pop %v1118
      %v1247 = verf.f32.pop %v1119
      %v1248 = verf.f32.pop %v1120
      %v1249 = verf.f32.pop %v1121
      %v1250 = verf.f32.pop %v1122
      %v1251 = verf.f32.pop %v1123
      %v1252 = verf.f32.pop %v1124
      %v1253 = verf.f32.pop %v1125
      %v1254 = verf.f32.pop %v1126
      %v1255 = verf.f32.pop %v1127
      %v1256 = verf.f32.pop %v1128
      %v1257 = verf.f32.pop %v1129
      %v1258 = verf.f32.pop %v1130
      %v1259 = verf.f32.pop %v1131
      %v1260 = verf.f32.pop %v1132
      %v1261 = verf.f32.pop %v1133
      %v1262 = verf.f32.pop %v1134
      %v1263 = verf.f32.pop %v1135
      %v1264 = verf.f32.pop %v1136
      %v1265 = verf.f32.pop %v1137
      %v1266 = verf.f32.pop %v1138
      %v1267 = verf.f32.pop %v1139
      %v1268 = verf.f32.pop %v1140
      %v1269 = verf.f32.pop %v1141
      %v1270 = verf.f32.pop %v1142
      %v1271 = verf.f32.pop %v1143
      %v1272 = verf.f32.pop %v1144
      %v1273 = verf.f32.pop %v1145
      %v1274 = verf.f32.pop %v1146
      %v1275 = verf.f32.pop %v1147
      %v1276 = verf.f32.pop %v1148
      %v1277 = verf.f32.pop %v1149
      %v1278 = verf.f32.pop %v1150
      %v1279 = verf.f32.pop %v1151
      %v1280 = verf.f32.pop %v1152
      %v1281 = verf.f32.pop %v1153
      %v1282 = verf.f32.pop %v1154
      %v1283 = verf.f32.pop %v1155
      %v1284 = verf.f32.pop %v1156
      %v1285 = verf.f32.pop %v1157
      %v1286 = verf.f32.pop %v1158
      %v1287 = verf.f32.pop %v1159
      %v1288 = verf.f32.pop %v1160
      %v1289 = verf.f32.pop %v1161
      %v1290 = verf.f32.pop %v1162
      %v1291 = verf.f32.pop %v1163
      %v1292 = verf.f32.pop %v1164
      %v1293 = verf.f32.pop %v1165
      %v1294 = verf.f32.pop %v1166
      %v1295 = verf.f32.pop %v1167
      %v1296 = verf.f32.pop %v1168
      %v1297 = verf.f32.pop %v1169
      %v1298 = verf.f32.pop %v1170
      %v1299 = verf.f32.pop %v1171
      %v1300 = verf.f32.pop %v1172
      %v1301 = verf.f32.pop %v1173
      %v1302 = verf.f32.pop %v1174
      %v1303 = verf.f32.pop %v1175
      %v1304 = verf.f32.pop %v1176
      %v1305 = verf.f32.pop %v1177
      %v1306 = verf.f32.pop %v1178
      %v1307 = verf.f32.pop %v1179
      %v1308 = verf.f32.pop %v1180
      %v1309 = verf.f32.pop %v1181
      %v1310 = verf.f32.pop %v1182
      %v1311 = verf.f32.pop %v1183
      %v1312 = verf.f32.pop %v1184
      %v1313 = verf.f32.pop %v1185
      %v1314 = verf.f32.pop %v1186
      %v1315 = verf.f32.pop %v1187
      %v1316 = verf.f32.pop %v1188
      %v1317 = verf.f32.pop %v1189
      %v1318 = verf.f32.pop %v1190
      %v1319 = verf.f32.pop %v1191
      %v1320 = verf.f32.pop %v1192
      %v1321 = verf.f32.pop %v1193
      %v1322 = verf.f32.pop %v1194
      %v1323 = verf.f32.pop %v1195
      %v1324 = verf.f32.pop %v1196
      %v1325 = verf.f32.pop %v1197
      %v1326 = verf.f32.pop %v1198
      %v1327 = verf.f32.pop %v1199
      %v1328 = verf.f32.pop %v1200
      %v1329 = verf.f32.pop %v1201
      %v1330 = vadd.f32 %v1202, 1.0
      %v1331 = vadd.f32 %v1203, 1.0
      %v1332 = vadd.f32 %v1204, 1.0
      %v1333 = vadd.f32 %v1205, 1.0
      %v1334 = vadd.f32 %v1206, 1.0
      %v1335 = vadd.f32 %v1207, 1.0
      %v1336 = vadd.f32 %v1208, 1.0
      %v1337 = vadd.f32 %v1209, 1.0
      %v1338 = vadd.f32 %v1210, 1.0
      %v1339 = vadd.f32 %v1211, 1.0
      %v1340 = vadd.f32 %v1212, 1.0
      %v1341 = vadd.f32 %v1213, 1.0
      %v1342 = vadd.f32 %v1214, 1.0
      %v1343 = vadd.f32 %v1215, 1.0
      %v1344 = vadd.f32 %v1216, 1.0
      %v1345 = vadd.f32 %v1217, 1.0
      %v1346 = vadd.f32 %v1218, 1.0
      %v1347 = vadd.f32 %v1219, 1.0
      %v1348 = vadd.f32 %v1220, 1.0
      %v1349 = vadd.f32 %v1221, 1.0
      %v1350 = vadd.f32 %v1222, 1.0
      %v1351 = vadd.f32 %v1223, 1.0
      %v1352 = vadd.f32 %v1224, 1.0
      %v1353 = vadd.f32 %v1225, 1.0
      %v1354 = vadd.f32 %v1226, 1.0
      %v1355 = vadd.f32 %v1227, 1.0
      %v1356 = vadd.f32 %v1228, 1.0
      %v1357 = vadd.f32 %v1229, 1.0
      %v1358 = vadd.f32 %v1230, 1.0
      %v1359 = vadd.f32 %v1231, 1.0
      %v1360 = vadd.f32 %v1232, 1.0
      %v1361 = vadd.f32 %v1233, 1.0
      %v1362 = vadd.f32 %v1234, 1.0
      %v1363 = vadd.f32 %v1235, 1.0
      %v1364 = vadd.f32 %v1236, 1.0
      %v1365 = vadd.f32 %v1237, 1.0
      %v1366 = vadd.f32 %v1238, 1.0
      %v1367 = vadd.f32 %v1239, 1.0
      %v1368 = vadd.f32 %v1240, 1.0
      %v1369 = vadd.f32 %v1241, 1.0
      %v1370 = vadd.f32 %v1242, 1.0
      %v1371 = vadd.f32 %v1243, 1.0
      %v1372 = vadd.f32 %v1244, 1.0
      %v1373 = vadd.f32 %v1245, 1.0
      %v1374 = vadd.f32 %v1246, 1.0
      %v1375 = vadd.f32 %v1247, 1.0
      %v1376 = vadd.f32 %v1248, 1.0
      %v1377 = vadd.f32 %v1249, 1.0
      %v1378 = vadd.f32 %v1250, 1.0
      %v1379 = vadd.f32 %v1251, 1.0
      %v1380 = vadd.f32 %v1252, 1.0
      %v1381 = vadd.f32 %v1253, 1.0
      %v1382 = vadd.f32 %v1254, 1.0
      %v1383 = vadd.f32 %v1255, 1.0
      %v1384 = vadd.f32 %v1256, 1.0
      %v1385 = vadd.f32 %v1257, 1.0
      %v1386 = vadd.f32 %v1258, 1.0
      %v1387 = vadd.f32 %v1259, 1.0
      %v1388 = vadd.f32 %v1260, 1.0
      %v1389 = vadd.f32 %v1261, 1.0
      %v1390 = vadd.f32 %v1262, 1.0
      %v1391 = vadd.f32 %v1263, 1.0
      %v1392 = vadd.f32 %v1264, 1.0
      %v1393 = vadd.f32 %v1265, 1.0
      %v1394 = vadd.f32 %v1266, 1.0
      %v1395 = vadd.f32 %v1267, 1.0
      %v1396 = vadd.f32 %v1268, 1.0
      %v1397 = vadd.f32 %v1269, 1.0
      %v1398 = vadd.f32 %v1270, 1.0
      %v1399 = vadd.f32 %v1271, 1.0
      %v1400 = vadd.f32 %v1272, 1.0
      %v1401 = vadd.f32 %v1273, 1.0
      %v1402 = vadd.f32 %v1274, 1.0
      %v1403 = vadd.f32 %v1275, 1.0
      %v1404 = vadd.f32 %v1276, 1.0
      %v1405 = vadd.f32 %v1277, 1.0
      %v1406 = vadd.f32 %v1278, 1.0
      %v1407 = vadd.f32 %v1279, 1.0
      %v1408 = vadd.f32 %v1280, 1.0
      %v1409 = vadd.f32 %v1281, 1.0
      %v1410 = vadd.f32 %v1282, 1.0
      %v1411 = vadd.f32 %v1283, 1.0
      %v1412 = vadd.f32 %v1284, 1.0
      %v1413 = vadd.f32 %v1285, 1.0
      %v1414 = vadd.f32 %v1286, 1.0
      %v1415 = vadd.f32 %v1287, 1.0
      %v1416 = vadd.f32 %v1288, 1.0
      %v1417 = vadd.f32 %v1289, 1.0
      %v1418 = vadd.f32 %v1290, 1.0
      %v1419 = vadd.f32 %v1291, 1.0
      %v1420 = vadd.f32 %v1292, 1.0
      %v1421 = vadd.f32 %v1293, 1.0
      %v1422 = vadd.f32 %v1294, 1.0
      %v1423 = vadd.f32 %v1295, 1.0
      %v1424 = vadd.f32 %v1296, 1.0
      %v1425 = vadd.f32 %v1297, 1.0
      %v1426 = vadd.f32 %v1298, 1.0
      %v1427 = vadd.f32 %v1299, 1.0
      %v1428 = vadd.f32 %v1300, 1.0
      %v1429 = vadd.f32 %v1301, 1.0
      %v1430 = vadd.f32 %v1302, 1.0
      %v1431 = vadd.f32 %v1303, 1.0
      %v1432 = vadd.f32 %v1304, 1.0
      %v1433 = vadd.f32 %v1305, 1.0
      %v1434 = vadd.f32 %v1306, 1.0
      %v1435 = vadd.f32 %v1307, 1.0
      %v1436 = vadd.f32 %v1308, 1.0
      %v1437 = vadd.f32 %v1309, 1.0
      %v1438 = vadd.f32 %v1310, 1.0
      %v1439 = vadd.f32 %v1311, 1.0
      %v1440 = vadd.f32 %v1312, 1.0
      %v1441 = vadd.f32 %v1313, 1.0
      %v1442 = vadd.f32 %v1314, 1.0
      %v1443 = vadd.f32 %v1315, 1.0
      %v1444 = vadd.f32 %v1316, 1.0
      %v1445 = vadd.f32 %v1317, 1.0
      %v1446 = vadd.f32 %v1318, 1.0
      %v1447 = vadd.f32 %v1319, 1.0
      %v1448 = vadd.f32 %v1320, 1.0
      %v1449 = vadd.f32 %v1321, 1.0
      %v1450 = vadd.f32 %v1322, 1.0
      %v1451 = vadd.f32 %v1323, 1.0
      %v1452 = vadd.f32 %v1324, 1.0
      %v1453 = vadd.f32 %v1325, 1.0
      %v1454 = vadd.f32 %v1326, 1.0
      %v1455 = vadd.f32 %v1327, 1.0
      %v1456 = vadd.f32 %v1328, 1.0
      %v1457 = vadd.f32 %v1329, 1.0
      %v1458 = vmul.f32 %v946, %v1330
      %v1459 = vmul.f32 %v947, %v1331
      %v1460 = vmul.f32 %v948, %v1332
      %v1461 = vmul.f32 %v949, %v1333
      %v1462 = vmul.f32 %v950, %v1334
      %v1463 = vmul.f32 %v951, %v1335
      %v1464 = vmul.f32 %v952, %v1336
      %v1465 = vmul.f32 %v953, %v1337
      %v1466 = vmul.f32 %v954, %v1338
      %v1467 = vmul.f32 %v955, %v1339
      %v1468 = vmul.f32 %v956, %v1340
      %v1469 = vmul.f32 %v957, %v1341
      %v1470 = vmul.f32 %v958, %v1342
      %v1471 = vmul.f32 %v959, %v1343
      %v1472 = vmul.f32 %v960, %v1344
      %v1473 = vmul.f32 %v961, %v1345
      %v1474 = vmul.f32 %v962, %v1346
      %v1475 = vmul.f32 %v963, %v1347
      %v1476 = vmul.f32 %v964, %v1348
      %v1477 = vmul.f32 %v965, %v1349
      %v1478 = vmul.f32 %v966, %v1350
      %v1479 = vmul.f32 %v967, %v1351
      %v1480 = vmul.f32 %v968, %v1352
      %v1481 = vmul.f32 %v969, %v1353
      %v1482 = vmul.f32 %v970, %v1354
      %v1483 = vmul.f32 %v971, %v1355
      %v1484 = vmul.f32 %v972, %v1356
      %v1485 = vmul.f32 %v973, %v1357
      %v1486 = vmul.f32 %v974, %v1358
      %v1487 = vmul.f32 %v975, %v1359
      %v1488 = vmul.f32 %v976, %v1360
      %v1489 = vmul.f32 %v977, %v1361
      %v1490 = vmul.f32 %v978, %v1362
      %v1491 = vmul.f32 %v979, %v1363
      %v1492 = vmul.f32 %v980, %v1364
      %v1493 = vmul.f32 %v981, %v1365
      %v1494 = vmul.f32 %v982, %v1366
      %v1495 = vmul.f32 %v983, %v1367
      %v1496 = vmul.f32 %v984, %v1368
      %v1497 = vmul.f32 %v985, %v1369
      %v1498 = vmul.f32 %v986, %v1370
      %v1499 = vmul.f32 %v987, %v1371
      %v1500 = vmul.f32 %v988, %v1372
      %v1501 = vmul.f32 %v989, %v1373
      %v1502 = vmul.f32 %v990, %v1374
      %v1503 = vmul.f32 %v991, %v1375
      %v1504 = vmul.f32 %v992, %v1376
      %v1505 = vmul.f32 %v993, %v1377
      %v1506 = vmul.f32 %v994, %v1378
      %v1507 = vmul.f32 %v995, %v1379
      %v1508 = vmul.f32 %v996, %v1380
      %v1509 = vmul.f32 %v997, %v1381
      %v1510 = vmul.f32 %v998, %v1382
      %v1511 = vmul.f32 %v999, %v1383
      %v1512 = vmul.f32 %v1000, %v1384
      %v1513 = vmul.f32 %v1001, %v1385
      %v1514 = vmul.f32 %v1002, %v1386
      %v1515 = vmul.f32 %v1003, %v1387
      %v1516 = vmul.f32 %v1004, %v1388
      %v1517 = vmul.f32 %v1005, %v1389
      %v1518 = vmul.f32 %v1006, %v1390
      %v1519 = vmul.f32 %v1007, %v1391
      %v1520 = vmul.f32 %v1008, %v1392
      %v1521 = vmul.f32 %v1009, %v1393
      %v1522 = vmul.f32 %v1010, %v1394
      %v1523 = vmul.f32 %v1011, %v1395
      %v1524 = vmul.f32 %v1012, %v1396
      %v1525 = vmul.f32 %v1013, %v1397
      %v1526 = vmul.f32 %v1014, %v1398
      %v1527 = vmul.f32 %v1015, %v1399
      %v1528 = vmul.f32 %v1016, %v1400
      %v1529 = vmul.f32 %v1017, %v1401
      %v1530 = vmul.f32 %v1018, %v1402
      %v1531 = vmul.f32 %v1019, %v1403
      %v1532 = vmul.f32 %v1020, %v1404
      %v1533 = vmul.f32 %v1021, %v1405
      %v1534 = vmul.f32 %v1022, %v1406
      %v1535 = vmul.f32 %v1023, %v1407
      %v1536 = vmul.f32 %v1024, %v1408
      %v1537 = vmul.f32 %v1025, %v1409
      %v1538 = vmul.f32 %v1026, %v1410
      %v1539 = vmul.f32 %v1027, %v1411
      %v1540 = vmul.f32 %v1028, %v1412
      %v1541 = vmul.f32 %v1029, %v1413
      %v1542 = vmul.f32 %v1030, %v1414
      %v1543 = vmul.f32 %v1031, %v1415
      %v1544 = vmul.f32 %v1032, %v1416
      %v1545 = vmul.f32 %v1033, %v1417
      %v1546 = vmul.f32 %v1034, %v1418
      %v1547 = vmul.f32 %v1035, %v1419
      %v1548 = vmul.f32 %v1036, %v1420
      %v1549 = vmul.f32 %v1037, %v1421
      %v1550 = vmul.f32 %v1038, %v1422
      %v1551 = vmul.f32 %v1039, %v1423
      %v1552 = vmul.f32 %v1040, %v1424
      %v1553 = vmul.f32 %v1041, %v1425
      %v1554 = vmul.f32 %v1042, %v1426
      %v1555 = vmul.f32 %v1043, %v1427
      %v1556 = vmul.f32 %v1044, %v1428
      %v1557 = vmul.f32 %v1045, %v1429
      %v1558 = vmul.f32 %v1046, %v1430
      %v1559 = vmul.f32 %v1047, %v1431
      %v1560 = vmul.f32 %v1048, %v1432
      %v1561 = vmul.f32 %v1049, %v1433
      %v1562 = vmul.f32 %v1050, %v1434
      %v1563 = vmul.f32 %v1051, %v1435
      %v1564 = vmul.f32 %v1052, %v1436
      %v1565 = vmul.f32 %v1053, %v1437
      %v1566 = vmul.f32 %v1054, %v1438
      %v1567 = vmul.f32 %v1055, %v1439
      %v1568 = vmul.f32 %v1056, %v1440
      %v1569 = vmul.f32 %v1057, %v1441
      %v1570 = vmul.f32 %v1058, %v1442
      %v1571 = vmul.f32 %v1059, %v1443
      %v1572 = vmul.f32 %v1060, %v1444
      %v1573 = vmul.f32 %v1061, %v1445
      %v1574 = vmul.f32 %v1062, %v1446
      %v1575 = vmul.f32 %v1063, %v1447
      %v1576 = vmul.f32 %v1064, %v1448
      %v1577 = vmul.f32 %v1065, %v1449
      %v1578 = vmul.f32 %v1066, %v1450
      %v1579 = vmul.f32 %v1067, %v1451
      %v1580 = vmul.f32 %v1068, %v1452
      %v1581 = vmul.f32 %v1069, %v1453
      %v1582 = vmul.f32 %v1070, %v1454
      %v1583 = vmul.f32 %v1071, %v1455
      %v1584 = vmul.f32 %v1072, %v1456
      %v1585 = vmul.f32 %v1073, %v1457
      %v1586 = vpack.c.bf16 %v1460, %v1458
      %v1587 = vpack.c.bf16 %v1461, %v1459
      %v1588 = vpack.c.bf16 %v1464, %v1462
      %v1589 = vpack.c.bf16 %v1465, %v1463
      %v1590 = vpack.c.bf16 %v1468, %v1466
      %v1591 = vpack.c.bf16 %v1469, %v1467
      %v1592 = vpack.c.bf16 %v1472, %v1470
      %v1593 = vpack.c.bf16 %v1473, %v1471
      %v1594 = vpack.c.bf16 %v1476, %v1474
      %v1595 = vpack.c.bf16 %v1477, %v1475
      %v1596 = vpack.c.bf16 %v1480, %v1478
      %v1597 = vpack.c.bf16 %v1481, %v1479
      %v1598 = vpack.c.bf16 %v1484, %v1482
      %v1599 = vpack.c.bf16 %v1485, %v1483
      %v1600 = vpack.c.bf16 %v1488, %v1486
      %v1601 = vpack.c.bf16 %v1489, %v1487
      %v1602 = vpack.c.bf16 %v1492, %v1490
      %v1603 = vpack.c.bf16 %v1493, %v1491
      %v1604 = vpack.c.bf16 %v1496, %v1494
      %v1605 = vpack.c.bf16 %v1497, %v1495
      %v1606 = vpack.c.bf16 %v1500, %v1498
      %v1607 = vpack.c.bf16 %v1501, %v1499
      %v1608 = vpack.c.bf16 %v1504, %v1502
      %v1609 = vpack.c.bf16 %v1505, %v1503
      %v1610 = vpack.c.bf16 %v1508, %v1506
      %v1611 = vpack.c.bf16 %v1509, %v1507
      %v1612 = vpack.c.bf16 %v1512, %v1510
      %v1613 = vpack.c.bf16 %v1513, %v1511
      %v1614 = vpack.c.bf16 %v1516, %v1514
      %v1615 = vpack.c.bf16 %v1517, %v1515
      %v1616 = vpack.c.bf16 %v1520, %v1518
      %v1617 = vpack.c.bf16 %v1521, %v1519
      %v1618 = vpack.c.bf16 %v1524, %v1522
      %v1619 = vpack.c.bf16 %v1525, %v1523
      %v1620 = vpack.c.bf16 %v1528, %v1526
      %v1621 = vpack.c.bf16 %v1529, %v1527
      %v1622 = vpack.c.bf16 %v1532, %v1530
      %v1623 = vpack.c.bf16 %v1533, %v1531
      %v1624 = vpack.c.bf16 %v1536, %v1534
      %v1625 = vpack.c.bf16 %v1537, %v1535
      %v1626 = vpack.c.bf16 %v1540, %v1538
      %v1627 = vpack.c.bf16 %v1541, %v1539
      %v1628 = vpack.c.bf16 %v1544, %v1542
      %v1629 = vpack.c.bf16 %v1545, %v1543
      %v1630 = vpack.c.bf16 %v1548, %v1546
      %v1631 = vpack.c.bf16 %v1549, %v1547
      %v1632 = vpack.c.bf16 %v1552, %v1550
      %v1633 = vpack.c.bf16 %v1553, %v1551
      %v1634 = vpack.c.bf16 %v1556, %v1554
      %v1635 = vpack.c.bf16 %v1557, %v1555
      %v1636 = vpack.c.bf16 %v1560, %v1558
      %v1637 = vpack.c.bf16 %v1561, %v1559
      %v1638 = vpack.c.bf16 %v1564, %v1562
      %v1639 = vpack.c.bf16 %v1565, %v1563
      %v1640 = vpack.c.bf16 %v1568, %v1566
      %v1641 = vpack.c.bf16 %v1569, %v1567
      %v1642 = vpack.c.bf16 %v1572, %v1570
      %v1643 = vpack.c.bf16 %v1573, %v1571
      %v1644 = vpack.c.bf16 %v1576, %v1574
      %v1645 = vpack.c.bf16 %v1577, %v1575
      %v1646 = vpack.c.bf16 %v1580, %v1578
      %v1647 = vpack.c.bf16 %v1581, %v1579
      %v1648 = vpack.c.bf16 %v1584, %v1582
      %v1649 = vpack.c.bf16 %v1585, %v1583
      %v1650 = vld [vmem:[%s3] sm:$0xf]
      %v1651 = vld [vmem:[%s3 + $0x4] sm:$0xf]
      %v1652 = vld [vmem:[%s3 + $0x8] sm:$0xf]
      %v1653 = vld [vmem:[%s3 + $0xc] sm:$0xf]
      %v1654 = vld [vmem:[%s3 + $0x10] sm:$0xf]
      %v1655 = vld [vmem:[%s3 + $0x14] sm:$0xf]
      %v1656 = vld [vmem:[%s3 + $0x18] sm:$0xf]
      %v1657 = vld [vmem:[%s3 + $0x1c] sm:$0xf]
      %v1658 = vld [vmem:[%s3 + $0x20] sm:$0xf]
      %v1659 = vld [vmem:[%s3 + $0x24] sm:$0xf]
      %v1660 = vld [vmem:[%s3 + $0x28] sm:$0xf]
      %v1661 = vld [vmem:[%s3 + $0x2c] sm:$0xf]
      %v1662 = vld [vmem:[%s3 + $0x30] sm:$0xf]
      %v1663 = vld [vmem:[%s3 + $0x34] sm:$0xf]
      %v1664 = vld [vmem:[%s3 + $0x38] sm:$0xf]
      %v1665 = vld [vmem:[%s3 + $0x3c] sm:$0xf]
      %v1666 = vld [vmem:[%s3 + $0x40] sm:$0xf]
      %v1667 = vld [vmem:[%s3 + $0x44] sm:$0xf]
      %v1668 = vld [vmem:[%s3 + $0x48] sm:$0xf]
      %v1669 = vld [vmem:[%s3 + $0x4c] sm:$0xf]
      %v1670 = vld [vmem:[%s3 + $0x50] sm:$0xf]
      %v1671 = vld [vmem:[%s3 + $0x54] sm:$0xf]
      %v1672 = vld [vmem:[%s3 + $0x58] sm:$0xf]
      %v1673 = vld [vmem:[%s3 + $0x5c] sm:$0xf]
      %v1674 = vld [vmem:[%s3 + $0x60] sm:$0xf]
      %v1675 = vld [vmem:[%s3 + $0x64] sm:$0xf]
      %v1676 = vld [vmem:[%s3 + $0x68] sm:$0xf]
      %v1677 = vld [vmem:[%s3 + $0x6c] sm:$0xf]
      %v1678 = vld [vmem:[%s3 + $0x70] sm:$0xf]
      %v1679 = vld [vmem:[%s3 + $0x74] sm:$0xf]
      %v1680 = vld [vmem:[%s3 + $0x78] sm:$0xf]
      %v1681 = vld [vmem:[%s3 + $0x7c] sm:$0xf]
      %v1682 = vld [vmem:[%s4] sm:$0x1]
      %v1684 = vlaneseq
      %v1685 = vshrl.u32 %v1684, 7
      %v1686 = vsub.s32 0, %v1685
      %v1687 = vrot.slane %v1682, %v1686
      %v1721 = vunpack.c.l.b16 %v1650
      %v1722 = vunpack.c.l.b16 %v1651
      %v1723 = vunpack.c.l.b16 %v1652
      %v1724 = vunpack.c.l.b16 %v1653
      %v1725 = vunpack.c.l.b16 %v1654
      %v1726 = vunpack.c.l.b16 %v1655
      %v1727 = vunpack.c.l.b16 %v1656
      %v1728 = vunpack.c.l.b16 %v1657
      %v1729 = vunpack.c.l.b16 %v1658
      %v1730 = vunpack.c.l.b16 %v1659
      %v1731 = vunpack.c.l.b16 %v1660
      %v1732 = vunpack.c.l.b16 %v1661
      %v1733 = vunpack.c.l.b16 %v1662
      %v1734 = vunpack.c.l.b16 %v1663
      %v1735 = vunpack.c.l.b16 %v1664
      %v1736 = vunpack.c.l.b16 %v1665
      %v1737 = vunpack.c.l.b16 %v1666
      %v1738 = vunpack.c.l.b16 %v1667
      %v1739 = vunpack.c.l.b16 %v1668
      %v1740 = vunpack.c.l.b16 %v1669
      %v1741 = vunpack.c.l.b16 %v1670
      %v1742 = vunpack.c.l.b16 %v1671
      %v1743 = vunpack.c.l.b16 %v1672
      %v1744 = vunpack.c.l.b16 %v1673
      %v1745 = vunpack.c.l.b16 %v1674
      %v1746 = vunpack.c.l.b16 %v1675
      %v1747 = vunpack.c.l.b16 %v1676
      %v1748 = vunpack.c.l.b16 %v1677
      %v1749 = vunpack.c.l.b16 %v1678
      %v1750 = vunpack.c.l.b16 %v1679
      %v1751 = vunpack.c.l.b16 %v1680
      %v1752 = vunpack.c.l.b16 %v1681
      %v1753 = vpack.c.b16 %v1722, %v1721
      %v1754 = vpack.c.b16 %v1724, %v1723
      %v1755 = vpack.c.b16 %v1726, %v1725
      %v1756 = vpack.c.b16 %v1728, %v1727
      %v1757 = vpack.c.b16 %v1730, %v1729
      %v1758 = vpack.c.b16 %v1732, %v1731
      %v1759 = vpack.c.b16 %v1734, %v1733
      %v1760 = vpack.c.b16 %v1736, %v1735
      %v1761 = vpack.c.b16 %v1738, %v1737
      %v1762 = vpack.c.b16 %v1740, %v1739
      %v1763 = vpack.c.b16 %v1742, %v1741
      %v1764 = vpack.c.b16 %v1744, %v1743
      %v1765 = vpack.c.b16 %v1746, %v1745
      %v1766 = vpack.c.b16 %v1748, %v1747
      %v1767 = vpack.c.b16 %v1750, %v1749
      %v1768 = vpack.c.b16 %v1752, %v1751
      %1785 = vmatprep.subr.bf16.mxu0 0
      %1786 = vmatpush1.bf16.msra.mxu0 %v1753
      %1787 = vmatprep.subr.bf16.mxu0 0
      %1788 = vmatpush1.bf16.msra.mxu0 %v1754
      %1789 = vmatprep.subr.bf16.mxu0 0
      %1790 = vmatpush1.bf16.msra.mxu0 %v1755
      %1791 = vmatprep.subr.bf16.mxu0 0
      %1792 = vmatpush1.bf16.msra.mxu0 %v1756
      %1793 = vmatprep.subr.bf16.mxu0 0
      %1794 = vmatpush1.bf16.msra.mxu0 %v1757
      %1795 = vmatprep.subr.bf16.mxu0 0
      %1796 = vmatpush1.bf16.msra.mxu0 %v1758
      %1797 = vmatprep.subr.bf16.mxu0 0
      %1798 = vmatpush1.bf16.msra.mxu0 %v1759
      %1799 = vmatprep.subr.bf16.mxu0 0
      %1800 = vmatpush1.bf16.msra.mxu0 %v1760
      %1801 = vmatprep.subr.bf16.mxu0 0
      %1802 = vmatpush1.bf16.msra.mxu0 %v1761
      %1803 = vmatprep.subr.bf16.mxu0 0
      %1804 = vmatpush1.bf16.msra.mxu0 %v1762
      %1805 = vmatprep.subr.bf16.mxu0 0
      %1806 = vmatpush1.bf16.msra.mxu0 %v1763
      %1807 = vmatprep.subr.bf16.mxu0 0
      %1808 = vmatpush1.bf16.msra.mxu0 %v1764
      %1809 = vmatprep.subr.bf16.mxu0 0
      %1810 = vmatpush1.bf16.msra.mxu0 %v1765
      %1811 = vmatprep.subr.bf16.mxu0 0
      %1812 = vmatpush1.bf16.msra.mxu0 %v1766
      %1813 = vmatprep.subr.bf16.mxu0 0
      %1814 = vmatpush1.bf16.msra.mxu0 %v1767
      %1815 = vmatprep.subr.bf16.mxu0 0
      %1816 = vmatpush1.bf16.msra.mxu0 %v1768
      %1817 = vmatprep.mubr.bf16.mxu0 %v1587
      %1818 = vmatmul.mubr.bf16.gmra.mrb[0].mxu0 %v1586
      %v1819 = vpop.f32.mrb[0].mxu0
      %v1820 = vadd.f32 %v1687, %v1819
      %v1821 = vpop.f32.mrb[0].mxu0
      %v1822 = vpop.f32.mrb[0].mxu0
      %v1823 = vadd.f32 %v1687, %v1822
      %v1824 = vpop.f32.mrb[0].mxu0
      %1825 = vmatprep.mubr.bf16.mxu0 %v1589
      %1826 = vmatmul.mubr.bf16.gmra.mrb[0].mxu0 %v1588
      %v1827 = vpop.f32.mrb[0].mxu0
      %v1828 = vadd.f32 %v1687, %v1827
      %v1829 = vpop.f32.mrb[0].mxu0
      %v1830 = vpop.f32.mrb[0].mxu0
      %v1831 = vadd.f32 %v1687, %v1830
      %v1832 = vpop.f32.mrb[0].mxu0
      %1833 = vmatprep.mubr.bf16.mxu0 %v1591
      %1834 = vmatmul.mubr.bf16.gmra.mrb[0].mxu0 %v1590
      %v1835 = vpop.f32.mrb[0].mxu0
      %v1836 = vadd.f32 %v1687, %v1835
      %v1837 = vpop.f32.mrb[0].mxu0
      %v1838 = vpop.f32.mrb[0].mxu0
      %v1839 = vadd.f32 %v1687, %v1838
      %v1840 = vpop.f32.mrb[0].mxu0
      %1841 = vmatprep.mubr.bf16.mxu0 %v1593
      %1842 = vmatmul.mubr.bf16.gmra.mrb[0].mxu0 %v1592
      %v1843 = vpop.f32.mrb[0].mxu0
      %v1844 = vadd.f32 %v1687, %v1843
      %v1845 = vpop.f32.mrb[0].mxu0
      %v1846 = vpop.f32.mrb[0].mxu0
      %v1847 = vadd.f32 %v1687, %v1846
      %v1848 = vpop.f32.mrb[0].mxu0
      %1849 = vmatprep.mubr.bf16.mxu0 %v1595
      %1850 = vmatmul.mubr.bf16.gmra.mrb[0].mxu0 %v1594
      %v1851 = vpop.f32.mrb[0].mxu0
      %v1852 = vadd.f32 %v1687, %v1851
      %v1853 = vpop.f32.mrb[0].mxu0
      %v1854 = vpop.f32.mrb[0].mxu0
      %v1855 = vadd.f32 %v1687, %v1854
      %v1856 = vpop.f32.mrb[0].mxu0
      %1857 = vmatprep.mubr.bf16.mxu0 %v1597
      %1858 = vmatmul.mubr.bf16.gmra.mrb[0].mxu0 %v1596
      %v1859 = vpop.f32.mrb[0].mxu0
      %v1860 = vadd.f32 %v1687, %v1859
      %v1861 = vpop.f32.mrb[0].mxu0
      %v1862 = vpop.f32.mrb[0].mxu0
      %v1863 = vadd.f32 %v1687, %v1862
      %v1864 = vpop.f32.mrb[0].mxu0
      %1865 = vmatprep.mubr.bf16.mxu0 %v1599
      %1866 = vmatmul.mubr.bf16.gmra.mrb[0].mxu0 %v1598
      %v1867 = vpop.f32.mrb[0].mxu0
      %v1868 = vadd.f32 %v1687, %v1867
      %v1869 = vpop.f32.mrb[0].mxu0
      %v1870 = vpop.f32.mrb[0].mxu0
      %v1871 = vadd.f32 %v1687, %v1870
      %v1872 = vpop.f32.mrb[0].mxu0
      %1873 = vmatprep.mubr.bf16.mxu0 %v1601
      %1874 = vmatmul.mubr.bf16.gmra.mrb[0].mxu0 %v1600
      %v1875 = vpop.f32.mrb[0].mxu0
      %v1876 = vadd.f32 %v1687, %v1875
      %v1877 = vpop.f32.mrb[0].mxu0
      %v1878 = vpop.f32.mrb[0].mxu0
      %v1879 = vadd.f32 %v1687, %v1878
      %v1880 = vpop.f32.mrb[0].mxu0
      %1881 = vmatprep.mubr.bf16.mxu0 %v1603
      %1882 = vmatmul.mubr.bf16.gmra.mrb[0].mxu0 %v1602
      %v1883 = vpop.f32.mrb[0].mxu0
      %v1884 = vadd.f32 %v1687, %v1883
      %v1885 = vpop.f32.mrb[0].mxu0
      %v1886 = vpop.f32.mrb[0].mxu0
      %v1887 = vadd.f32 %v1687, %v1886
      %v1888 = vpop.f32.mrb[0].mxu0
      %1889 = vmatprep.mubr.bf16.mxu0 %v1605
      %1890 = vmatmul.mubr.bf16.gmra.mrb[0].mxu0 %v1604
      %v1891 = vpop.f32.mrb[0].mxu0
      %v1892 = vadd.f32 %v1687, %v1891
      %v1893 = vpop.f32.mrb[0].mxu0
      %v1894 = vpop.f32.mrb[0].mxu0
      %v1895 = vadd.f32 %v1687, %v1894
      %v1896 = vpop.f32.mrb[0].mxu0
      %1897 = vmatprep.mubr.bf16.mxu0 %v1607
      %1898 = vmatmul.mubr.bf16.gmra.mrb[0].mxu0 %v1606
      %v1899 = vpop.f32.mrb[0].mxu0
      %v1900 = vadd.f32 %v1687, %v1899
      %v1901 = vpop.f32.mrb[0].mxu0
      %v1902 = vpop.f32.mrb[0].mxu0
      %v1903 = vadd.f32 %v1687, %v1902
      %v1904 = vpop.f32.mrb[0].mxu0
      %1905 = vmatprep.mubr.bf16.mxu0 %v1609
      %1906 = vmatmul.mubr.bf16.gmra.mrb[0].mxu0 %v1608
      %v1907 = vpop.f32.mrb[0].mxu0
      %v1908 = vadd.f32 %v1687, %v1907
      %v1909 = vpop.f32.mrb[0].mxu0
      %v1910 = vpop.f32.mrb[0].mxu0
      %v1911 = vadd.f32 %v1687, %v1910
      %v1912 = vpop.f32.mrb[0].mxu0
      %1913 = vmatprep.mubr.bf16.mxu0 %v1611
      %1914 = vmatmul.mubr.bf16.gmra.mrb[0].mxu0 %v1610
      %v1915 = vpop.f32.mrb[0].mxu0
      %v1916 = vadd.f32 %v1687, %v1915
      %v1917 = vpop.f32.mrb[0].mxu0
      %v1918 = vpop.f32.mrb[0].mxu0
      %v1919 = vadd.f32 %v1687, %v1918
      %v1920 = vpop.f32.mrb[0].mxu0
      %1921 = vmatprep.mubr.bf16.mxu0 %v1613
      %1922 = vmatmul.mubr.bf16.gmra.mrb[0].mxu0 %v1612
      %v1923 = vpop.f32.mrb[0].mxu0
      %v1924 = vadd.f32 %v1687, %v1923
      %v1925 = vpop.f32.mrb[0].mxu0
      %v1926 = vpop.f32.mrb[0].mxu0
      %v1927 = vadd.f32 %v1687, %v1926
      %v1928 = vpop.f32.mrb[0].mxu0
      %1929 = vmatprep.mubr.bf16.mxu0 %v1615
      %1930 = vmatmul.mubr.bf16.gmra.mrb[0].mxu0 %v1614
      %v1931 = vpop.f32.mrb[0].mxu0
      %v1932 = vadd.f32 %v1687, %v1931
      %v1933 = vpop.f32.mrb[0].mxu0
      %v1934 = vpop.f32.mrb[0].mxu0
      %v1935 = vadd.f32 %v1687, %v1934
      %v1936 = vpop.f32.mrb[0].mxu0
      %1937 = vmatprep.mubr.bf16.mxu0 %v1617
      %1938 = vmatmul.mubr.bf16.gmra.mrb[0].mxu0 %v1616
      %v1939 = vpop.f32.mrb[0].mxu0
      %v1940 = vadd.f32 %v1687, %v1939
      %v1941 = vpop.f32.mrb[0].mxu0
      %v1942 = vpop.f32.mrb[0].mxu0
      %v1943 = vadd.f32 %v1687, %v1942
      %v1944 = vpop.f32.mrb[0].mxu0
      %1945 = vmatprep.mubr.bf16.mxu0 %v1619
      %1946 = vmatmul.mubr.bf16.gmra.mrb[0].mxu0 %v1618
      %v1947 = vpop.f32.mrb[0].mxu0
      %v1948 = vadd.f32 %v1687, %v1947
      %v1949 = vpop.f32.mrb[0].mxu0
      %v1950 = vpop.f32.mrb[0].mxu0
      %v1951 = vadd.f32 %v1687, %v1950
      %v1952 = vpop.f32.mrb[0].mxu0
      %1953 = vmatprep.mubr.bf16.mxu0 %v1621
      %1954 = vmatmul.mubr.bf16.gmra.mrb[0].mxu0 %v1620
      %v1955 = vpop.f32.mrb[0].mxu0
      %v1956 = vadd.f32 %v1687, %v1955
      %v1957 = vpop.f32.mrb[0].mxu0
      %v1958 = vpop.f32.mrb[0].mxu0
      %v1959 = vadd.f32 %v1687, %v1958
      %v1960 = vpop.f32.mrb[0].mxu0
      %1961 = vmatprep.mubr.bf16.mxu0 %v1623
      %1962 = vmatmul.mubr.bf16.gmra.mrb[0].mxu0 %v1622
      %v1963 = vpop.f32.mrb[0].mxu0
      %v1964 = vadd.f32 %v1687, %v1963
      %v1965 = vpop.f32.mrb[0].mxu0
      %v1966 = vpop.f32.mrb[0].mxu0
      %v1967 = vadd.f32 %v1687, %v1966
      %v1968 = vpop.f32.mrb[0].mxu0
      %1969 = vmatprep.mubr.bf16.mxu0 %v1625
      %1970 = vmatmul.mubr.bf16.gmra.mrb[0].mxu0 %v1624
      %v1971 = vpop.f32.mrb[0].mxu0
      %v1972 = vadd.f32 %v1687, %v1971
      %v1973 = vpop.f32.mrb[0].mxu0
      %v1974 = vpop.f32.mrb[0].mxu0
      %v1975 = vadd.f32 %v1687, %v1974
      %v1976 = vpop.f32.mrb[0].mxu0
      %1977 = vmatprep.mubr.bf16.mxu0 %v1627
      %1978 = vmatmul.mubr.bf16.gmra.mrb[0].mxu0 %v1626
      %v1979 = vpop.f32.mrb[0].mxu0
      %v1980 = vadd.f32 %v1687, %v1979
      %v1981 = vpop.f32.mrb[0].mxu0
      %v1982 = vpop.f32.mrb[0].mxu0
      %v1983 = vadd.f32 %v1687, %v1982
      %v1984 = vpop.f32.mrb[0].mxu0
      %1985 = vmatprep.mubr.bf16.mxu0 %v1629
      %1986 = vmatmul.mubr.bf16.gmra.mrb[0].mxu0 %v1628
      %v1987 = vpop.f32.mrb[0].mxu0
      %v1988 = vadd.f32 %v1687, %v1987
      %v1989 = vpop.f32.mrb[0].mxu0
      %v1990 = vpop.f32.mrb[0].mxu0
      %v1991 = vadd.f32 %v1687, %v1990
      %v1992 = vpop.f32.mrb[0].mxu0
      %1993 = vmatprep.mubr.bf16.mxu0 %v1631
      %1994 = vmatmul.mubr.bf16.gmra.mrb[0].mxu0 %v1630
      %v1995 = vpop.f32.mrb[0].mxu0
      %v1996 = vadd.f32 %v1687, %v1995
      %v1997 = vpop.f32.mrb[0].mxu0
      %v1998 = vpop.f32.mrb[0].mxu0
      %v1999 = vadd.f32 %v1687, %v1998
      %v2000 = vpop.f32.mrb[0].mxu0
      %2001 = vmatprep.mubr.bf16.mxu0 %v1633
      %2002 = vmatmul.mubr.bf16.gmra.mrb[0].mxu0 %v1632
      %v2003 = vpop.f32.mrb[0].mxu0
      %v2004 = vadd.f32 %v1687, %v2003
      %v2005 = vpop.f32.mrb[0].mxu0
      %v2006 = vpop.f32.mrb[0].mxu0
      %v2007 = vadd.f32 %v1687, %v2006
      %v2008 = vpop.f32.mrb[0].mxu0
      %2009 = vmatprep.mubr.bf16.mxu0 %v1635
      %2010 = vmatmul.mubr.bf16.gmra.mrb[0].mxu0 %v1634
      %v2011 = vpop.f32.mrb[0].mxu0
      %v2012 = vadd.f32 %v1687, %v2011
      %v2013 = vpop.f32.mrb[0].mxu0
      %v2014 = vpop.f32.mrb[0].mxu0
      %v2015 = vadd.f32 %v1687, %v2014
      %v2016 = vpop.f32.mrb[0].mxu0
      %2017 = vmatprep.mubr.bf16.mxu0 %v1637
      %2018 = vmatmul.mubr.bf16.gmra.mrb[0].mxu0 %v1636
      %v2019 = vpop.f32.mrb[0].mxu0
      %v2020 = vadd.f32 %v1687, %v2019
      %v2021 = vpop.f32.mrb[0].mxu0
      %v2022 = vpop.f32.mrb[0].mxu0
      %v2023 = vadd.f32 %v1687, %v2022
      %v2024 = vpop.f32.mrb[0].mxu0
      %2025 = vmatprep.mubr.bf16.mxu0 %v1639
      %2026 = vmatmul.mubr.bf16.gmra.mrb[0].mxu0 %v1638
      %v2027 = vpop.f32.mrb[0].mxu0
      %v2028 = vadd.f32 %v1687, %v2027
      %v2029 = vpop.f32.mrb[0].mxu0
      %v2030 = vpop.f32.mrb[0].mxu0
      %v2031 = vadd.f32 %v1687, %v2030
      %v2032 = vpop.f32.mrb[0].mxu0
      %2033 = vmatprep.mubr.bf16.mxu0 %v1641
      %2034 = vmatmul.mubr.bf16.gmra.mrb[0].mxu0 %v1640
      %v2035 = vpop.f32.mrb[0].mxu0
      %v2036 = vadd.f32 %v1687, %v2035
      %v2037 = vpop.f32.mrb[0].mxu0
      %v2038 = vpop.f32.mrb[0].mxu0
      %v2039 = vadd.f32 %v1687, %v2038
      %v2040 = vpop.f32.mrb[0].mxu0
      %2041 = vmatprep.mubr.bf16.mxu0 %v1643
      %2042 = vmatmul.mubr.bf16.gmra.mrb[0].mxu0 %v1642
      %v2043 = vpop.f32.mrb[0].mxu0
      %v2044 = vadd.f32 %v1687, %v2043
      %v2045 = vpop.f32.mrb[0].mxu0
      %v2046 = vpop.f32.mrb[0].mxu0
      %v2047 = vadd.f32 %v1687, %v2046
      %v2048 = vpop.f32.mrb[0].mxu0
      %2049 = vmatprep.mubr.bf16.mxu0 %v1645
      %2050 = vmatmul.mubr.bf16.gmra.mrb[0].mxu0 %v1644
      %v2051 = vpop.f32.mrb[0].mxu0
      %v2052 = vadd.f32 %v1687, %v2051
      %v2053 = vpop.f32.mrb[0].mxu0
      %v2054 = vpop.f32.mrb[0].mxu0
      %v2055 = vadd.f32 %v1687, %v2054
      %v2056 = vpop.f32.mrb[0].mxu0
      %2057 = vmatprep.mubr.bf16.mxu0 %v1647
      %2058 = vmatmul.mubr.bf16.gmra.mrb[0].mxu0 %v1646
      %v2059 = vpop.f32.mrb[0].mxu0
      %v2060 = vadd.f32 %v1687, %v2059
      %v2061 = vpop.f32.mrb[0].mxu0
      %v2062 = vpop.f32.mrb[0].mxu0
      %v2063 = vadd.f32 %v1687, %v2062
      %v2064 = vpop.f32.mrb[0].mxu0
      %2065 = vmatprep.mubr.bf16.mxu0 %v1649
      %2066 = vmatmul.mubr.bf16.gmra.mrb[0].mxu0 %v1648
      %v2067 = vpop.f32.mrb[0].mxu0
      %v2068 = vadd.f32 %v1687, %v2067
      %v2069 = vpop.f32.mrb[0].mxu0
      %v2070 = vpop.f32.mrb[0].mxu0
      %v2071 = vadd.f32 %v1687, %v2070
      %v2072 = vpop.f32.mrb[0].mxu0
      %2073 = vdwg.mxu0
      %v2074 = vpack.c.bf16 %v1823, %v1820
      %v2075 = vpack.c.bf16 %v1831, %v1828
      %v2076 = vpack.c.bf16 %v1839, %v1836
      %v2077 = vpack.c.bf16 %v1847, %v1844
      %v2078 = vpack.c.bf16 %v1855, %v1852
      %v2079 = vpack.c.bf16 %v1863, %v1860
      %v2080 = vpack.c.bf16 %v1871, %v1868
      %v2081 = vpack.c.bf16 %v1879, %v1876
      %v2082 = vpack.c.bf16 %v1887, %v1884
      %v2083 = vpack.c.bf16 %v1895, %v1892
      %v2084 = vpack.c.bf16 %v1903, %v1900
      %v2085 = vpack.c.bf16 %v1911, %v1908
      %v2086 = vpack.c.bf16 %v1919, %v1916
      %v2087 = vpack.c.bf16 %v1927, %v1924
      %v2088 = vpack.c.bf16 %v1935, %v1932
      %v2089 = vpack.c.bf16 %v1943, %v1940
      %v2090 = vpack.c.bf16 %v1951, %v1948
      %v2091 = vpack.c.bf16 %v1959, %v1956
      %v2092 = vpack.c.bf16 %v1967, %v1964
      %v2093 = vpack.c.bf16 %v1975, %v1972
      %v2094 = vpack.c.bf16 %v1983, %v1980
      %v2095 = vpack.c.bf16 %v1991, %v1988
      %v2096 = vpack.c.bf16 %v1999, %v1996
      %v2097 = vpack.c.bf16 %v2007, %v2004
      %v2098 = vpack.c.bf16 %v2015, %v2012
      %v2099 = vpack.c.bf16 %v2023, %v2020
      %v2100 = vpack.c.bf16 %v2031, %v2028
      %v2101 = vpack.c.bf16 %v2039, %v2036
      %v2102 = vpack.c.bf16 %v2047, %v2044
      %v2103 = vpack.c.bf16 %v2055, %v2052
      %v2104 = vpack.c.bf16 %v2063, %v2060
      %v2105 = vpack.c.bf16 %v2071, %v2068
      %v2138 = vunpack.c.l.b16 %v2074
      %v2139 = vunpack.c.h.b16 %v2074
      %v2140 = vunpack.c.l.b16 %v2075
      %v2141 = vunpack.c.h.b16 %v2075
      %v2142 = vunpack.c.l.b16 %v2076
      %v2143 = vunpack.c.h.b16 %v2076
      %v2144 = vunpack.c.l.b16 %v2077
      %v2145 = vunpack.c.h.b16 %v2077
      %v2146 = vunpack.c.l.b16 %v2078
      %v2147 = vunpack.c.h.b16 %v2078
      %v2148 = vunpack.c.l.b16 %v2079
      %v2149 = vunpack.c.h.b16 %v2079
      %v2150 = vunpack.c.l.b16 %v2080
      %v2151 = vunpack.c.h.b16 %v2080
      %v2152 = vunpack.c.l.b16 %v2081
      %v2153 = vunpack.c.h.b16 %v2081
      %v2154 = vunpack.c.l.b16 %v2082
      %v2155 = vunpack.c.h.b16 %v2082
      %v2156 = vunpack.c.l.b16 %v2083
      %v2157 = vunpack.c.h.b16 %v2083
      %v2158 = vunpack.c.l.b16 %v2084
      %v2159 = vunpack.c.h.b16 %v2084
      %v2160 = vunpack.c.l.b16 %v2085
      %v2161 = vunpack.c.h.b16 %v2085
      %v2162 = vunpack.c.l.b16 %v2086
      %v2163 = vunpack.c.h.b16 %v2086
      %v2164 = vunpack.c.l.b16 %v2087
      %v2165 = vunpack.c.h.b16 %v2087
      %v2166 = vunpack.c.l.b16 %v2088
      %v2167 = vunpack.c.h.b16 %v2088
      %v2168 = vunpack.c.l.b16 %v2089
      %v2169 = vunpack.c.h.b16 %v2089
      %v2170 = vunpack.c.l.b16 %v2090
      %v2171 = vunpack.c.h.b16 %v2090
      %v2172 = vunpack.c.l.b16 %v2091
      %v2173 = vunpack.c.h.b16 %v2091
      %v2174 = vunpack.c.l.b16 %v2092
      %v2175 = vunpack.c.h.b16 %v2092
      %v2176 = vunpack.c.l.b16 %v2093
      %v2177 = vunpack.c.h.b16 %v2093
      %v2178 = vunpack.c.l.b16 %v2094
      %v2179 = vunpack.c.h.b16 %v2094
      %v2180 = vunpack.c.l.b16 %v2095
      %v2181 = vunpack.c.h.b16 %v2095
      %v2182 = vunpack.c.l.b16 %v2096
      %v2183 = vunpack.c.h.b16 %v2096
      %v2184 = vunpack.c.l.b16 %v2097
      %v2185 = vunpack.c.h.b16 %v2097
      %v2186 = vunpack.c.l.b16 %v2098
      %v2187 = vunpack.c.h.b16 %v2098
      %v2188 = vunpack.c.l.b16 %v2099
      %v2189 = vunpack.c.h.b16 %v2099
      %v2190 = vunpack.c.l.b16 %v2100
      %v2191 = vunpack.c.h.b16 %v2100
      %v2192 = vunpack.c.l.b16 %v2101
      %v2193 = vunpack.c.h.b16 %v2101
      %v2194 = vunpack.c.l.b16 %v2102
      %v2195 = vunpack.c.h.b16 %v2102
      %v2196 = vunpack.c.l.b16 %v2103
      %v2197 = vunpack.c.h.b16 %v2103
      %v2198 = vunpack.c.l.b16 %v2104
      %v2199 = vunpack.c.h.b16 %v2104
      %v2200 = vunpack.c.l.b16 %v2105
      %v2201 = vunpack.c.h.b16 %v2105
      %v2202 = vpack.c.b16 %v2138, %v2138
      %v2203 = vpack.c.b16 %v2139, %v2139
      %v2204 = vpack.c.b16 %v2140, %v2140
      %v2205 = vpack.c.b16 %v2141, %v2141
      %v2206 = vpack.c.b16 %v2142, %v2142
      %v2207 = vpack.c.b16 %v2143, %v2143
      %v2208 = vpack.c.b16 %v2144, %v2144
      %v2209 = vpack.c.b16 %v2145, %v2145
      %v2210 = vpack.c.b16 %v2146, %v2146
      %v2211 = vpack.c.b16 %v2147, %v2147
      %v2212 = vpack.c.b16 %v2148, %v2148
      %v2213 = vpack.c.b16 %v2149, %v2149
      %v2214 = vpack.c.b16 %v2150, %v2150
      %v2215 = vpack.c.b16 %v2151, %v2151
      %v2216 = vpack.c.b16 %v2152, %v2152
      %v2217 = vpack.c.b16 %v2153, %v2153
      %v2218 = vpack.c.b16 %v2154, %v2154
      %v2219 = vpack.c.b16 %v2155, %v2155
      %v2220 = vpack.c.b16 %v2156, %v2156
      %v2221 = vpack.c.b16 %v2157, %v2157
      %v2222 = vpack.c.b16 %v2158, %v2158
      %v2223 = vpack.c.b16 %v2159, %v2159
      %v2224 = vpack.c.b16 %v2160, %v2160
      %v2225 = vpack.c.b16 %v2161, %v2161
      %v2226 = vpack.c.b16 %v2162, %v2162
      %v2227 = vpack.c.b16 %v2163, %v2163
      %v2228 = vpack.c.b16 %v2164, %v2164
      %v2229 = vpack.c.b16 %v2165, %v2165
      %v2230 = vpack.c.b16 %v2166, %v2166
      %v2231 = vpack.c.b16 %v2167, %v2167
      %v2232 = vpack.c.b16 %v2168, %v2168
      %v2233 = vpack.c.b16 %v2169, %v2169
      %v2234 = vpack.c.b16 %v2170, %v2170
      %v2235 = vpack.c.b16 %v2171, %v2171
      %v2236 = vpack.c.b16 %v2172, %v2172
      %v2237 = vpack.c.b16 %v2173, %v2173
      %v2238 = vpack.c.b16 %v2174, %v2174
      %v2239 = vpack.c.b16 %v2175, %v2175
      %v2240 = vpack.c.b16 %v2176, %v2176
      %v2241 = vpack.c.b16 %v2177, %v2177
      %v2242 = vpack.c.b16 %v2178, %v2178
      %v2243 = vpack.c.b16 %v2179, %v2179
      %v2244 = vpack.c.b16 %v2180, %v2180
      %v2245 = vpack.c.b16 %v2181, %v2181
      %v2246 = vpack.c.b16 %v2182, %v2182
      %v2247 = vpack.c.b16 %v2183, %v2183
      %v2248 = vpack.c.b16 %v2184, %v2184
      %v2249 = vpack.c.b16 %v2185, %v2185
      %v2250 = vpack.c.b16 %v2186, %v2186
      %v2251 = vpack.c.b16 %v2187, %v2187
      %v2252 = vpack.c.b16 %v2188, %v2188
      %v2253 = vpack.c.b16 %v2189, %v2189
      %v2254 = vpack.c.b16 %v2190, %v2190
      %v2255 = vpack.c.b16 %v2191, %v2191
      %v2256 = vpack.c.b16 %v2192, %v2192
      %v2257 = vpack.c.b16 %v2193, %v2193
      %v2258 = vpack.c.b16 %v2194, %v2194
      %v2259 = vpack.c.b16 %v2195, %v2195
      %v2260 = vpack.c.b16 %v2196, %v2196
      %v2261 = vpack.c.b16 %v2197, %v2197
      %v2262 = vpack.c.b16 %v2198, %v2198
      %v2263 = vpack.c.b16 %v2199, %v2199
      %v2264 = vpack.c.b16 %v2200, %v2200
      %v2265 = vpack.c.b16 %v2201, %v2201
      %vm2330 = vcmask 257024
      %2331 = vst.msk [vmem:[%s226] sm:$0xf] %vm2330, %v2202
      %2332 = vst.msk [vmem:[%s226 + $0x4] sm:$0xf] %vm2330, %v2203
      %2333 = vst.msk [vmem:[%s226 + $0x8] sm:$0xf] %vm2330, %v2204
      %2334 = vst.msk [vmem:[%s226 + $0xc] sm:$0xf] %vm2330, %v2205
      %2335 = vst.msk [vmem:[%s226 + $0x10] sm:$0xf] %vm2330, %v2206
      %2336 = vst.msk [vmem:[%s226 + $0x14] sm:$0xf] %vm2330, %v2207
      %2337 = vst.msk [vmem:[%s226 + $0x18] sm:$0xf] %vm2330, %v2208
      %2338 = vst.msk [vmem:[%s226 + $0x1c] sm:$0xf] %vm2330, %v2209
      %2339 = vst.msk [vmem:[%s226 + $0x20] sm:$0xf] %vm2330, %v2210
      %2340 = vst.msk [vmem:[%s226 + $0x24] sm:$0xf] %vm2330, %v2211
      %2341 = vst.msk [vmem:[%s226 + $0x28] sm:$0xf] %vm2330, %v2212
      %2342 = vst.msk [vmem:[%s226 + $0x2c] sm:$0xf] %vm2330, %v2213
      %2343 = vst.msk [vmem:[%s226 + $0x30] sm:$0xf] %vm2330, %v2214
      %2344 = vst.msk [vmem:[%s226 + $0x34] sm:$0xf] %vm2330, %v2215
      %2345 = vst.msk [vmem:[%s226 + $0x38] sm:$0xf] %vm2330, %v2216
      %2346 = vst.msk [vmem:[%s226 + $0x3c] sm:$0xf] %vm2330, %v2217
      %2347 = vst.msk [vmem:[%s226 + $0x40] sm:$0xf] %vm2330, %v2218
      %2348 = vst.msk [vmem:[%s226 + $0x44] sm:$0xf] %vm2330, %v2219
      %2349 = vst.msk [vmem:[%s226 + $0x48] sm:$0xf] %vm2330, %v2220
      %2350 = vst.msk [vmem:[%s226 + $0x4c] sm:$0xf] %vm2330, %v2221
      %2351 = vst.msk [vmem:[%s226 + $0x50] sm:$0xf] %vm2330, %v2222
      %2352 = vst.msk [vmem:[%s226 + $0x54] sm:$0xf] %vm2330, %v2223
      %2353 = vst.msk [vmem:[%s226 + $0x58] sm:$0xf] %vm2330, %v2224
      %2354 = vst.msk [vmem:[%s226 + $0x5c] sm:$0xf] %vm2330, %v2225
      %2355 = vst.msk [vmem:[%s226 + $0x60] sm:$0xf] %vm2330, %v2226
      %2356 = vst.msk [vmem:[%s226 + $0x64] sm:$0xf] %vm2330, %v2227
      %2357 = vst.msk [vmem:[%s226 + $0x68] sm:$0xf] %vm2330, %v2228
      %2358 = vst.msk [vmem:[%s226 + $0x6c] sm:$0xf] %vm2330, %v2229
      %2359 = vst.msk [vmem:[%s226 + $0x70] sm:$0xf] %vm2330, %v2230
      %2360 = vst.msk [vmem:[%s226 + $0x74] sm:$0xf] %vm2330, %v2231
      %2361 = vst.msk [vmem:[%s226 + $0x78] sm:$0xf] %vm2330, %v2232
      %2362 = vst.msk [vmem:[%s226 + $0x7c] sm:$0xf] %vm2330, %v2233
      %2363 = vst.msk [vmem:[%s226 + $0x80] sm:$0xf] %vm2330, %v2234
      %2364 = vst.msk [vmem:[%s226 + $0x84] sm:$0xf] %vm2330, %v2235
      %2365 = vst.msk [vmem:[%s226 + $0x88] sm:$0xf] %vm2330, %v2236
      %2366 = vst.msk [vmem:[%s226 + $0x8c] sm:$0xf] %vm2330, %v2237
      %2367 = vst.msk [vmem:[%s226 + $0x90] sm:$0xf] %vm2330, %v2238
      %2368 = vst.msk [vmem:[%s226 + $0x94] sm:$0xf] %vm2330, %v2239
      %2369 = vst.msk [vmem:[%s226 + $0x98] sm:$0xf] %vm2330, %v2240
      %2370 = vst.msk [vmem:[%s226 + $0x9c] sm:$0xf] %vm2330, %v2241
      %2371 = vst.msk [vmem:[%s226 + $0xa0] sm:$0xf] %vm2330, %v2242
      %2372 = vst.msk [vmem:[%s226 + $0xa4] sm:$0xf] %vm2330, %v2243
      %2373 = vst.msk [vmem:[%s226 + $0xa8] sm:$0xf] %vm2330, %v2244
      %2374 = vst.msk [vmem:[%s226 + $0xac] sm:$0xf] %vm2330, %v2245
      %2375 = vst.msk [vmem:[%s226 + $0xb0] sm:$0xf] %vm2330, %v2246
      %2376 = vst.msk [vmem:[%s226 + $0xb4] sm:$0xf] %vm2330, %v2247
      %2377 = vst.msk [vmem:[%s226 + $0xb8] sm:$0xf] %vm2330, %v2248
      %2378 = vst.msk [vmem:[%s226 + $0xbc] sm:$0xf] %vm2330, %v2249
      %2379 = vst.msk [vmem:[%s226 + $0xc0] sm:$0xf] %vm2330, %v2250
      %2380 = vst.msk [vmem:[%s226 + $0xc4] sm:$0xf] %vm2330, %v2251
      %2381 = vst.msk [vmem:[%s226 + $0xc8] sm:$0xf] %vm2330, %v2252
      %2382 = vst.msk [vmem:[%s226 + $0xcc] sm:$0xf] %vm2330, %v2253
      %2383 = vst.msk [vmem:[%s226 + $0xd0] sm:$0xf] %vm2330, %v2254
      %2384 = vst.msk [vmem:[%s226 + $0xd4] sm:$0xf] %vm2330, %v2255
      %2385 = vst.msk [vmem:[%s226 + $0xd8] sm:$0xf] %vm2330, %v2256
      %2386 = vst.msk [vmem:[%s226 + $0xdc] sm:$0xf] %vm2330, %v2257
      %2387 = vst.msk [vmem:[%s226 + $0xe0] sm:$0xf] %vm2330, %v2258
      %2388 = vst.msk [vmem:[%s226 + $0xe4] sm:$0xf] %vm2330, %v2259
      %2389 = vst.msk [vmem:[%s226 + $0xe8] sm:$0xf] %vm2330, %v2260
      %2390 = vst.msk [vmem:[%s226 + $0xec] sm:$0xf] %vm2330, %v2261
      %2391 = vst.msk [vmem:[%s226 + $0xf0] sm:$0xf] %vm2330, %v2262
      %2392 = vst.msk [vmem:[%s226 + $0xf4] sm:$0xf] %vm2330, %v2263
      %2393 = vst.msk [vmem:[%s226 + $0xf8] sm:$0xf] %vm2330, %v2264
      %2394 = vst.msk [vmem:[%s226 + $0xfc] sm:$0xf] %vm2330, %v2265
      %s2395 = smul.u32 64, %s16
      %p2396 = scmp.lt.s32.totalorder %s2395, 127
      %s2397 = scalar_select %p2396, %s2395, 127
      %s2398 = smul.addr %s2397, 4
      %s2399 = scalar_lea.vmem %s5, %s2398
      // Predicated region
      $region41: #{_lambda_.6} parent=39 // pred_check
        %p2400 = pneg %p144
      $region42: #{_lambda_.6} parent=39 // pred_check_branch
        %2402 = sbr.rel (%p2400) target = $region44
      $region43: #{_lambda_.6} parent=39 // pred_region
        %s2403 = smul.u32 64, %s16
      $region44: #{_lambda_.6} parent=39 // pred_fallthru
        _
    $region40: #{_lambda_.6} parent=5 // pred_fallthru
      _
    %p2404 = scmp.le.s32.totalorder 2, %s11
    // Predicated region
    $region45: #{_lambda_.6} parent=5 // pred_check
      %p2405 = pneg %p2404
    $region46: #{_lambda_.6} parent=5 // pred_check_branch
      %2407 = sbr.rel (%p2405) target = $region48
    $region47: #{_lambda_.6} parent=5 // pred_region
      %s2408 = ssub.s32 %s11, 2
      // Predicated region
      $region49: #{_lambda_.6} parent=47 // pred_check
        %p2409 = pneg %p150
      $region50: #{_lambda_.6} parent=47 // pred_check_branch
        %2411 = sbr.rel (%p2409) target = $region52
      $region51: #{_lambda_.6} parent=47 // pred_region
        %s2412 = smul.u32 64, %s17
        %p2413 = scmp.lt.s32.totalorder %s2412, 127
        %s2414 = scalar_select %p2413, %s2412, 127
        %s2415 = smul.addr %s2414, 4
        %s2416 = scalar_lea.vmem %s5, %s2415
      $region52: #{_lambda_.6} parent=47 // pred_fallthru
        _
    $region48: #{_lambda_.6} parent=5 // pred_fallthru
      _
  $region6: #{_lambda_.6} parent=0 // loop_footer
    %s15 = sadd.s32 1, %s11
  $region7: #{_lambda_.6} parent=0 // loop_footer_branch
    %10 = sbr.rel target = $region3
  $region8: #{_lambda_.6} parent=0 // loop_exit
    _

// kernel: _lambda_.7
$region0: #{_lambda_.7}
  #allocation0 [shape = 'u32[]', space=smem, size = 0x4, offset = 0x4, fixed_abs, tag = 'smem constant byte address 0x4 - core index']
  #allocation1 [shape = 'u32[144,128]{1,0:T(1,128)}', space=vmem, size = 0x12000, scoped, tag = 'internal scratch']
  %s0 = inlined_call_operand.vmem [shape: f32[16,4,128], index: 0, kind: input, shape index: {}]
  %s1 = inlined_call_operand.vmem [shape: bf16[16,128,128], index: 1, kind: input, shape index: {}]
  %s2 = inlined_call_operand.vmem [shape: f32[16,4,128], index: 2, kind: output, shape index: {}]
  %s3 = sld [smem:[#allocation0]]
  $region41: #{_lambda_.7} parent=0
    _
  %s5 = ssub.s32 1, %s3
  %s6 = scalar_select 0, %s5, %s3
  loop: start=0, step=1, limit=4
  $region2: #{_lambda_.7} parent=0 // loop_pre_header
    _
  $region3: #{_lambda_.7} parent=0 // loop_header
    %s8 = sphi 0, %s12
    %p9 = scmp.ge.s32.totalorder %s8, 4
    %s18 = sphi 0, %s20
    %s21 = sphi 0, %s18
    %s22 = sphi 0, %s21
    %s38 = sphi 0, %s22
    %s44 = sphi 0, %s46
    %s47 = sphi 0, %s44
    %s48 = sphi 0, %s47
    %s64 = sphi 0, %s48
    %s70 = sphi 0, %s72
    %s73 = sphi 0, %s70
    %s74 = sphi 0, %s73
    %s90 = sphi 0, %s74
  $region4: #{_lambda_.7} parent=0 // loop_header_branch
    %11 = sbr.rel (%p9) target = $region8
  $region5: #{_lambda_.7} parent=0 // loop_body
    %s13 = ssub.s32 %s8, 1
    %s14 = ssub.s32 %s8, 2
    %s15 = sadd.s32 %s8, 1
    %s16 = ssub.s32 %s8, %s15
    %p17 = scmp.eq.s32.totalorder %s16, 0
    %s19 = sadd.s32 %s18, 1
    %s20 = scalar_select %p17, %s18, %s19
    %p23 = pneg %p17
    %p24 = scmp.eq.s32.totalorder %s8, 1
    %p25 = por %p23, %p24
    %p26 = scmp.ne.s32.totalorder %s18, %s21
    %p27 = scmp.eq.s32.totalorder %s8, 0
    %p28 = por %p26, %p27
    %p29 = scmp.ne.s32.totalorder %s18, %s21
    %p30 = scmp.eq.s32.totalorder %s13, 1
    %p31 = por %p29, %p30
    %p32 = scmp.ne.s32.totalorder %s21, %s22
    %p33 = scmp.eq.s32.totalorder %s13, 0
    %p34 = por %p32, %p33
    %p35 = scmp.ne.s32.totalorder %s21, %s22
    %p36 = scmp.eq.s32.totalorder %s14, 1
    %p37 = por %p35, %p36
    %p39 = scmp.ne.s32.totalorder %s22, %s38
    %p40 = scmp.eq.s32.totalorder %s14, 0
    %p41 = por %p39, %p40
    %s42 = ssub.s32 %s8, %s15
    %p43 = scmp.eq.s32.totalorder %s42, 0
    %s45 = sadd.s32 %s44, 1
    %s46 = scalar_select %p43, %s44, %s45
    %p49 = pneg %p43
    %p50 = scmp.eq.s32.totalorder %s8, 1
    %p51 = por %p49, %p50
    %p52 = scmp.ne.s32.totalorder %s44, %s47
    %p53 = scmp.eq.s32.totalorder %s8, 0
    %p54 = por %p52, %p53
    %p55 = scmp.ne.s32.totalorder %s44, %s47
    %p56 = scmp.eq.s32.totalorder %s13, 1
    %p57 = por %p55, %p56
    %p58 = scmp.ne.s32.totalorder %s47, %s48
    %p59 = scmp.eq.s32.totalorder %s13, 0
    %p60 = por %p58, %p59
    %p61 = scmp.ne.s32.totalorder %s47, %s48
    %p62 = scmp.eq.s32.totalorder %s14, 1
    %p63 = por %p61, %p62
    %p65 = scmp.ne.s32.totalorder %s48, %s64
    %p66 = scmp.eq.s32.totalorder %s14, 0
    %p67 = por %p65, %p66
    %s68 = ssub.s32 %s8, %s15
    %p69 = scmp.eq.s32.totalorder %s68, 0
    %s71 = sadd.s32 %s70, 1
    %s72 = scalar_select %p69, %s70, %s71
    %p75 = pneg %p69
    %p76 = scmp.eq.s32.totalorder %s8, 1
    %p77 = por %p75, %p76
    %p78 = scmp.ne.s32.totalorder %s70, %s73
    %p79 = scmp.eq.s32.totalorder %s8, 0
    %p80 = por %p78, %p79
    %p81 = scmp.ne.s32.totalorder %s70, %s73
    %p82 = scmp.eq.s32.totalorder %s13, 1
    %p83 = por %p81, %p82
    %p84 = scmp.ne.s32.totalorder %s73, %s74
    %p85 = scmp.eq.s32.totalorder %s13, 0
    %p86 = por %p84, %p85
    %p87 = scmp.ne.s32.totalorder %s73, %s74
    %p88 = scmp.eq.s32.totalorder %s14, 1
    %p89 = por %p87, %p88
    %p91 = scmp.ne.s32.totalorder %s74, %s90
    %p92 = scmp.eq.s32.totalorder %s14, 0
    %p93 = por %p91, %p92
    %p94 = scmp.le.s32.totalorder 1, %s8
    %p95 = scmp.lt.s32.totalorder %s8, 3
    %p96 = pnand %p94, %p95
    %p97 = pneg %p96
    // Predicated region
    $region9: #{_lambda_.7} parent=5 // pred_check
      _
    $region10: #{_lambda_.7} parent=5 // pred_check_branch
      %99 = sbr.rel (%p96) target = $region12
    $region11: #{_lambda_.7} parent=5 // pred_region
      %s100 = ssub.s32 %s8, 1
    $region12: #{_lambda_.7} parent=5 // pred_fallthru
      _
    %p101 = scmp.lt.s32.totalorder %s8, 2
    // Predicated region
    $region13: #{_lambda_.7} parent=5 // pred_check
      %p102 = pneg %p101
    $region14: #{_lambda_.7} parent=5 // pred_check_branch
      %104 = sbr.rel (%p102) target = $region16
    $region15: #{_lambda_.7} parent=5 // pred_region
      // Predicated region
      $region17: #{_lambda_.7} parent=15 // pred_check
        %p105 = pneg %p28
      $region18: #{_lambda_.7} parent=15 // pred_check_branch
        %107 = sbr.rel (%p105) target = $region20
      $region19: #{_lambda_.7} parent=15 // pred_region
        %s108 = smul.u32 8, %s8
        %p109 = scmp.lt.s32.totalorder %s108, 15
        %s110 = scalar_select %p109, %s108, 15
        %s111 = smul.addr %s110, 4
        %s112 = scalar_lea.vmem %s0, %s111
        %s113 = smul.u32 8, %s8
      $region20: #{_lambda_.7} parent=15 // pred_fallthru
        _
      // Predicated region
      $region21: #{_lambda_.7} parent=15 // pred_check
        %p114 = pneg %p54
      $region22: #{_lambda_.7} parent=15 // pred_check_branch
        %116 = sbr.rel (%p114) target = $region24
      $region23: #{_lambda_.7} parent=15 // pred_region
        %s117 = smul.u32 8, %s8
        %p118 = scmp.lt.s32.totalorder %s117, 15
        %s119 = scalar_select %p118, %s117, 15
        %s120 = smul.addr %s119, 16
        %s121 = smul.addr %s120, 4
        %s122 = scalar_lea.vmem %s1, %s121
        %s123 = smul.u32 8, %s8
      $region24: #{_lambda_.7} parent=15 // pred_fallthru
        _
    $region16: #{_lambda_.7} parent=5 // pred_fallthru
      _
    %p124 = scmp.le.s32.totalorder 1, %s8
    %p125 = scmp.lt.s32.totalorder %s8, 3
    %p126 = pnand %p124, %p125
    %p127 = pneg %p126
    // Predicated region
    $region25: #{_lambda_.7} parent=5 // pred_check
      _
    $region26: #{_lambda_.7} parent=5 // pred_check_branch
      %129 = sbr.rel (%p126) target = $region28
    $region27: #{_lambda_.7} parent=5 // pred_region
      %s130 = ssub.s32 %s8, 1
      %s131 = smul.u32 8, %s13
      %p132 = scmp.lt.s32.totalorder %s131, 15
      %s133 = scalar_select %p132, %s131, 15
      %s134 = smul.addr %s133, 4
      %s135 = scalar_lea.vmem %s0, %s134
      %p136 = pneg %p34
      %p137 = pneg %p31
      %s138 = smul.u32 8, %s13
      %p139 = scmp.lt.s32.totalorder %s138, 15
      %s140 = scalar_select %p139, %s138, 15
      %s141 = smul.addr %s140, 16
      %s142 = smul.addr %s141, 4
      %s143 = scalar_lea.vmem %s1, %s142
      %p144 = pneg %p60
      %p145 = pneg %p57
      %p146 = pneg %p86
      %p147 = pneg %p83
      %s148 = smul.u32 8, %s13
      %p149 = scmp.lt.s32.totalorder %s148, 15
      %s150 = scalar_select %p149, %s148, 15
      %s151 = smul.addr %s150, 4
      %s152 = scalar_lea.vmem %s2, %s151
      %s153 = smul.u32 8, %s13
      %p154 = scmp.lt.s32.totalorder %s153, 15
      %s155 = scalar_select %p154, %s153, 15
      %s156 = smul.addr %s155, 4
      %s157 = scalar_lea.vmem %s0, %s156
      %s158 = smul.u32 8, %s13
      %s159 = smul.u32 8, %s13
      %p160 = scmp.lt.s32.totalorder %s159, 15
      %s161 = scalar_select %p160, %s159, 15
      %s162 = smul.addr %s161, 16
      %s163 = smul.addr %s162, 4
      %s164 = scalar_lea.vmem %s1, %s163
      %s165 = smul.u32 8, %s13
      %s166 = smul.u32 8, %s13
      %p167 = scmp.lt.s32.totalorder %s166, 15
      %s168 = scalar_select %p167, %s166, 15
      %s169 = smul.addr %s168, 4
      %s170 = scalar_lea.vmem %s2, %s169
      %s171 = smul.u32 8, %s13
      %v173 = vld [vmem:[%s157] sm:$0xf]
      %v174 = vld [vmem:[%s157 + $0x4] sm:$0xf]
      %v175 = vld [vmem:[%s157 + $0x8] sm:$0xf]
      %v176 = vld [vmem:[%s157 + $0xc] sm:$0xf]
      %v177 = vld [vmem:[%s157 + $0x10] sm:$0xf]
      %v178 = vld [vmem:[%s157 + $0x14] sm:$0xf]
      %v179 = vld [vmem:[%s157 + $0x18] sm:$0xf]
      %v180 = vld [vmem:[%s157 + $0x1c] sm:$0xf]
      %v181 = vpack.c.bf16 %v173, %v173
      %v182 = vpack.c.bf16 %v174, %v174
      %v183 = vpack.c.bf16 %v175, %v175
      %v184 = vpack.c.bf16 %v176, %v176
      %v185 = vpack.c.bf16 %v177, %v177
      %v186 = vpack.c.bf16 %v178, %v178
      %v187 = vpack.c.bf16 %v179, %v179
      %v188 = vpack.c.bf16 %v180, %v180
      %v189 = vld [vmem:[%s164] sm:$0xf]
      %v190 = vld [vmem:[%s164 + $0x4] sm:$0xf]
      %v191 = vld [vmem:[%s164 + $0x8] sm:$0xf]
      %v192 = vld [vmem:[%s164 + $0xc] sm:$0xf]
      %v193 = vld [vmem:[%s164 + $0x10] sm:$0xf]
      %v194 = vld [vmem:[%s164 + $0x14] sm:$0xf]
      %v195 = vld [vmem:[%s164 + $0x18] sm:$0xf]
      %v196 = vld [vmem:[%s164 + $0x1c] sm:$0xf]
      %v197 = vld [vmem:[%s164 + $0x20] sm:$0xf]
      %v198 = vld [vmem:[%s164 + $0x24] sm:$0xf]
      %v199 = vld [vmem:[%s164 + $0x28] sm:$0xf]
      %v200 = vld [vmem:[%s164 + $0x2c] sm:$0xf]
      %v201 = vld [vmem:[%s164 + $0x30] sm:$0xf]
      %v202 = vld [vmem:[%s164 + $0x34] sm:$0xf]
      %v203 = vld [vmem:[%s164 + $0x38] sm:$0xf]
      %v204 = vld [vmem:[%s164 + $0x3c] sm:$0xf]
      %v205 = vld [vmem:[%s164 + $0x40] sm:$0xf]
      %v206 = vld [vmem:[%s164 + $0x44] sm:$0xf]
      %v207 = vld [vmem:[%s164 + $0x48] sm:$0xf]
      %v208 = vld [vmem:[%s164 + $0x4c] sm:$0xf]
      %v209 = vld [vmem:[%s164 + $0x50] sm:$0xf]
      %v210 = vld [vmem:[%s164 + $0x54] sm:$0xf]
      %v211 = vld [vmem:[%s164 + $0x58] sm:$0xf]
      %v212 = vld [vmem:[%s164 + $0x5c] sm:$0xf]
      %v213 = vld [vmem:[%s164 + $0x60] sm:$0xf]
      %v214 = vld [vmem:[%s164 + $0x64] sm:$0xf]
      %v215 = vld [vmem:[%s164 + $0x68] sm:$0xf]
      %v216 = vld [vmem:[%s164 + $0x6c] sm:$0xf]
      %v217 = vld [vmem:[%s164 + $0x70] sm:$0xf]
      %v218 = vld [vmem:[%s164 + $0x74] sm:$0xf]
      %v219 = vld [vmem:[%s164 + $0x78] sm:$0xf]
      %v220 = vld [vmem:[%s164 + $0x7c] sm:$0xf]
      %v221 = vld [vmem:[%s164 + $0x80] sm:$0xf]
      %v222 = vld [vmem:[%s164 + $0x84] sm:$0xf]
      %v223 = vld [vmem:[%s164 + $0x88] sm:$0xf]
      %v224 = vld [vmem:[%s164 + $0x8c] sm:$0xf]
      %v225 = vld [vmem:[%s164 + $0x90] sm:$0xf]
      %v226 = vld [vmem:[%s164 + $0x94] sm:$0xf]
      %v227 = vld [vmem:[%s164 + $0x98] sm:$0xf]
      %v228 = vld [vmem:[%s164 + $0x9c] sm:$0xf]
      %v229 = vld [vmem:[%s164 + $0xa0] sm:$0xf]
      %v230 = vld [vmem:[%s164 + $0xa4] sm:$0xf]
      %v231 = vld [vmem:[%s164 + $0xa8] sm:$0xf]
      %v232 = vld [vmem:[%s164 + $0xac] sm:$0xf]
      %v233 = vld [vmem:[%s164 + $0xb0] sm:$0xf]
      %v234 = vld [vmem:[%s164 + $0xb4] sm:$0xf]
      %v235 = vld [vmem:[%s164 + $0xb8] sm:$0xf]
      %v236 = vld [vmem:[%s164 + $0xbc] sm:$0xf]
      %v237 = vld [vmem:[%s164 + $0xc0] sm:$0xf]
      %v238 = vld [vmem:[%s164 + $0xc4] sm:$0xf]
      %v239 = vld [vmem:[%s164 + $0xc8] sm:$0xf]
      %v240 = vld [vmem:[%s164 + $0xcc] sm:$0xf]
      %v241 = vld [vmem:[%s164 + $0xd0] sm:$0xf]
      %v242 = vld [vmem:[%s164 + $0xd4] sm:$0xf]
      %v243 = vld [vmem:[%s164 + $0xd8] sm:$0xf]
      %v244 = vld [vmem:[%s164 + $0xdc] sm:$0xf]
      %v245 = vld [vmem:[%s164 + $0xe0] sm:$0xf]
      %v246 = vld [vmem:[%s164 + $0xe4] sm:$0xf]
      %v247 = vld [vmem:[%s164 + $0xe8] sm:$0xf]
      %v248 = vld [vmem:[%s164 + $0xec] sm:$0xf]
      %v249 = vld [vmem:[%s164 + $0xf0] sm:$0xf]
      %v250 = vld [vmem:[%s164 + $0xf4] sm:$0xf]
      %v251 = vld [vmem:[%s164 + $0xf8] sm:$0xf]
      %v252 = vld [vmem:[%s164 + $0xfc] sm:$0xf]
      %v253 = vld [vmem:[%s164 + $0x100] sm:$0xf]
      %v254 = vld [vmem:[%s164 + $0x104] sm:$0xf]
      %v255 = vld [vmem:[%s164 + $0x108] sm:$0xf]
      %v256 = vld [vmem:[%s164 + $0x10c] sm:$0xf]
      %v257 = vld [vmem:[%s164 + $0x110] sm:$0xf]
      %v258 = vld [vmem:[%s164 + $0x114] sm:$0xf]
      %v259 = vld [vmem:[%s164 + $0x118] sm:$0xf]
      %v260 = vld [vmem:[%s164 + $0x11c] sm:$0xf]
      %v261 = vld [vmem:[%s164 + $0x120] sm:$0xf]
      %v262 = vld [vmem:[%s164 + $0x124] sm:$0xf]
      %v263 = vld [vmem:[%s164 + $0x128] sm:$0xf]
      %v264 = vld [vmem:[%s164 + $0x12c] sm:$0xf]
      %v265 = vld [vmem:[%s164 + $0x130] sm:$0xf]
      %v266 = vld [vmem:[%s164 + $0x134] sm:$0xf]
      %v267 = vld [vmem:[%s164 + $0x138] sm:$0xf]
      %v268 = vld [vmem:[%s164 + $0x13c] sm:$0xf]
      %v269 = vld [vmem:[%s164 + $0x140] sm:$0xf]
      %v270 = vld [vmem:[%s164 + $0x144] sm:$0xf]
      %v271 = vld [vmem:[%s164 + $0x148] sm:$0xf]
      %v272 = vld [vmem:[%s164 + $0x14c] sm:$0xf]
      %v273 = vld [vmem:[%s164 + $0x150] sm:$0xf]
      %v274 = vld [vmem:[%s164 + $0x154] sm:$0xf]
      %v275 = vld [vmem:[%s164 + $0x158] sm:$0xf]
      %v276 = vld [vmem:[%s164 + $0x15c] sm:$0xf]
      %v277 = vld [vmem:[%s164 + $0x160] sm:$0xf]
      %v278 = vld [vmem:[%s164 + $0x164] sm:$0xf]
      %v279 = vld [vmem:[%s164 + $0x168] sm:$0xf]
      %v280 = vld [vmem:[%s164 + $0x16c] sm:$0xf]
      %v281 = vld [vmem:[%s164 + $0x170] sm:$0xf]
      %v282 = vld [vmem:[%s164 + $0x174] sm:$0xf]
      %v283 = vld [vmem:[%s164 + $0x178] sm:$0xf]
      %v284 = vld [vmem:[%s164 + $0x17c] sm:$0xf]
      %v285 = vld [vmem:[%s164 + $0x180] sm:$0xf]
      %v286 = vld [vmem:[%s164 + $0x184] sm:$0xf]
      %v287 = vld [vmem:[%s164 + $0x188] sm:$0xf]
      %v288 = vld [vmem:[%s164 + $0x18c] sm:$0xf]
      %v289 = vld [vmem:[%s164 + $0x190] sm:$0xf]
      %v290 = vld [vmem:[%s164 + $0x194] sm:$0xf]
      %v291 = vld [vmem:[%s164 + $0x198] sm:$0xf]
      %v292 = vld [vmem:[%s164 + $0x19c] sm:$0xf]
      %v293 = vld [vmem:[%s164 + $0x1a0] sm:$0xf]
      %v294 = vld [vmem:[%s164 + $0x1a4] sm:$0xf]
      %v295 = vld [vmem:[%s164 + $0x1a8] sm:$0xf]
      %v296 = vld [vmem:[%s164 + $0x1ac] sm:$0xf]
      %v297 = vld [vmem:[%s164 + $0x1b0] sm:$0xf]
      %v298 = vld [vmem:[%s164 + $0x1b4] sm:$0xf]
      %v299 = vld [vmem:[%s164 + $0x1b8] sm:$0xf]
      %v300 = vld [vmem:[%s164 + $0x1bc] sm:$0xf]
      %v301 = vld [vmem:[%s164 + $0x1c0] sm:$0xf]
      %v302 = vld [vmem:[%s164 + $0x1c4] sm:$0xf]
      %v303 = vld [vmem:[%s164 + $0x1c8] sm:$0xf]
      %v304 = vld [vmem:[%s164 + $0x1cc] sm:$0xf]
      %v305 = vld [vmem:[%s164 + $0x1d0] sm:$0xf]
      %v306 = vld [vmem:[%s164 + $0x1d4] sm:$0xf]
      %v307 = vld [vmem:[%s164 + $0x1d8] sm:$0xf]
      %v308 = vld [vmem:[%s164 + $0x1dc] sm:$0xf]
      %v309 = vld [vmem:[%s164 + $0x1e0] sm:$0xf]
      %v310 = vld [vmem:[%s164 + $0x1e4] sm:$0xf]
      %v311 = vld [vmem:[%s164 + $0x1e8] sm:$0xf]
      %v312 = vld [vmem:[%s164 + $0x1ec] sm:$0xf]
      %v313 = vld [vmem:[%s164 + $0x1f0] sm:$0xf]
      %v314 = vld [vmem:[%s164 + $0x1f4] sm:$0xf]
      %v315 = vld [vmem:[%s164 + $0x1f8] sm:$0xf]
      %v316 = vld [vmem:[%s164 + $0x1fc] sm:$0xf]
      %v333 = vunpack.c.l.b16 %v189
      %v334 = vunpack.c.l.b16 %v190
      %v335 = vunpack.c.l.b16 %v191
      %v336 = vunpack.c.l.b16 %v192
      %v337 = vunpack.c.l.b16 %v193
      %v338 = vunpack.c.l.b16 %v194
      %v339 = vunpack.c.l.b16 %v195
      %v340 = vunpack.c.l.b16 %v196
      %v341 = vunpack.c.l.b16 %v197
      %v342 = vunpack.c.l.b16 %v198
      %v343 = vunpack.c.l.b16 %v199
      %v344 = vunpack.c.l.b16 %v200
      %v345 = vunpack.c.l.b16 %v201
      %v346 = vunpack.c.l.b16 %v202
      %v347 = vunpack.c.l.b16 %v203
      %v348 = vunpack.c.l.b16 %v204
      %v349 = vpack.c.b16 %v334, %v333
      %v350 = vpack.c.b16 %v336, %v335
      %v351 = vpack.c.b16 %v338, %v337
      %v352 = vpack.c.b16 %v340, %v339
      %v353 = vpack.c.b16 %v342, %v341
      %v354 = vpack.c.b16 %v344, %v343
      %v355 = vpack.c.b16 %v346, %v345
      %v356 = vpack.c.b16 %v348, %v347
      %365 = vmatprep.subr.bf16.mxu0 0
      %366 = vmatpush1.bf16.msra.mxu0 %v349
      %367 = vmatprep.subr.bf16.mxu0 0
      %368 = vmatpush1.bf16.msra.mxu0 %v350
      %369 = vmatprep.subr.bf16.mxu0 0
      %370 = vmatpush1.bf16.msra.mxu0 %v351
      %371 = vmatprep.subr.bf16.mxu0 0
      %372 = vmatpush1.bf16.msra.mxu0 %v352
      %373 = vmatprep.subr.bf16.mxu0 0
      %374 = vmatpush1.bf16.msra.mxu0 %v353
      %375 = vmatprep.subr.bf16.mxu0 0
      %376 = vmatpush1.bf16.msra.mxu0 %v354
      %377 = vmatprep.subr.bf16.mxu0 0
      %378 = vmatpush1.bf16.msra.mxu0 %v355
      %379 = vmatprep.subr.bf16.mxu0 0
      %380 = vmatpush1.bf16.msra.mxu0 %v356
      %381 = vmatprep.subr.bf16.mxu0 0
      %382 = vmatpush1.bf16.msra.mxu0 0
      %383 = vmatprep.subr.bf16.mxu0 0
      %384 = vmatpush1.bf16.msra.mxu0 0
      %385 = vmatprep.subr.bf16.mxu0 0
      %386 = vmatpush1.bf16.msra.mxu0 0
      %387 = vmatprep.subr.bf16.mxu0 0
      %388 = vmatpush1.bf16.msra.mxu0 0
      %389 = vmatprep.subr.bf16.mxu0 0
      %390 = vmatpush1.bf16.msra.mxu0 0
      %391 = vmatprep.subr.bf16.mxu0 0
      %392 = vmatpush1.bf16.msra.mxu0 0
      %393 = vmatprep.subr.bf16.mxu0 0
      %394 = vmatpush1.bf16.msra.mxu0 0
      %395 = vmatprep.subr.bf16.mxu0 0
      %396 = vmatpush1.bf16.msra.mxu0 0
      %397 = vmatprep.mubr.bf16.mxu0 0
      %398 = vmatmul.mubr.bf16.gmra.mrb[0].mxu0 %v181
      %v399 = vpop.f32.mrb[0].mxu0
      %v400 = vadd.f32 0.0, %v399
      %v401 = vpop.f32.mrb[0].mxu0
      %v402 = vpop.f32.mrb[0].mxu0
      %v403 = vpop.f32.mrb[0].mxu0
      %404 = vdwg.mxu0
      %v421 = vunpack.c.l.b16 %v205
      %v422 = vunpack.c.l.b16 %v206
      %v423 = vunpack.c.l.b16 %v207
      %v424 = vunpack.c.l.b16 %v208
      %v425 = vunpack.c.l.b16 %v209
      %v426 = vunpack.c.l.b16 %v210
      %v427 = vunpack.c.l.b16 %v211
      %v428 = vunpack.c.l.b16 %v212
      %v429 = vunpack.c.l.b16 %v213
      %v430 = vunpack.c.l.b16 %v214
      %v431 = vunpack.c.l.b16 %v215
      %v432 = vunpack.c.l.b16 %v216
      %v433 = vunpack.c.l.b16 %v217
      %v434 = vunpack.c.l.b16 %v218
      %v435 = vunpack.c.l.b16 %v219
      %v436 = vunpack.c.l.b16 %v220
      %v437 = vpack.c.b16 %v422, %v421
      %v438 = vpack.c.b16 %v424, %v423
      %v439 = vpack.c.b16 %v426, %v425
      %v440 = vpack.c.b16 %v428, %v427
      %v441 = vpack.c.b16 %v430, %v429
      %v442 = vpack.c.b16 %v432, %v431
      %v443 = vpack.c.b16 %v434, %v433
      %v444 = vpack.c.b16 %v436, %v435
      %453 = vmatprep.subr.bf16.mxu0 0
      %454 = vmatpush1.bf16.msra.mxu0 %v437
      %455 = vmatprep.subr.bf16.mxu0 0
      %456 = vmatpush1.bf16.msra.mxu0 %v438
      %457 = vmatprep.subr.bf16.mxu0 0
      %458 = vmatpush1.bf16.msra.mxu0 %v439
      %459 = vmatprep.subr.bf16.mxu0 0
      %460 = vmatpush1.bf16.msra.mxu0 %v440
      %461 = vmatprep.subr.bf16.mxu0 0
      %462 = vmatpush1.bf16.msra.mxu0 %v441
      %463 = vmatprep.subr.bf16.mxu0 0
      %464 = vmatpush1.bf16.msra.mxu0 %v442
      %465 = vmatprep.subr.bf16.mxu0 0
      %466 = vmatpush1.bf16.msra.mxu0 %v443
      %467 = vmatprep.subr.bf16.mxu0 0
      %468 = vmatpush1.bf16.msra.mxu0 %v444
      %469 = vmatprep.subr.bf16.mxu0 0
      %470 = vmatpush1.bf16.msra.mxu0 0
      %471 = vmatprep.subr.bf16.mxu0 0
      %472 = vmatpush1.bf16.msra.mxu0 0
      %473 = vmatprep.subr.bf16.mxu0 0
      %474 = vmatpush1.bf16.msra.mxu0 0
      %475 = vmatprep.subr.bf16.mxu0 0
      %476 = vmatpush1.bf16.msra.mxu0 0
      %477 = vmatprep.subr.bf16.mxu0 0
      %478 = vmatpush1.bf16.msra.mxu0 0
      %479 = vmatprep.subr.bf16.mxu0 0
      %480 = vmatpush1.bf16.msra.mxu0 0
      %481 = vmatprep.subr.bf16.mxu0 0
      %482 = vmatpush1.bf16.msra.mxu0 0
      %483 = vmatprep.subr.bf16.mxu0 0
      %484 = vmatpush1.bf16.msra.mxu0 0
      %485 = vmatprep.mubr.bf16.mxu0 0
      %486 = vmatmul.mubr.bf16.gmra.mrb[0].mxu0 %v182
      %v487 = vpop.f32.mrb[0].mxu0
      %v488 = vadd.f32 0.0, %v487
      %v489 = vpop.f32.mrb[0].mxu0
      %v490 = vpop.f32.mrb[0].mxu0
      %v491 = vpop.f32.mrb[0].mxu0
      %492 = vdwg.mxu0
      %v509 = vunpack.c.l.b16 %v221
      %v510 = vunpack.c.l.b16 %v222
      %v511 = vunpack.c.l.b16 %v223
      %v512 = vunpack.c.l.b16 %v224
      %v513 = vunpack.c.l.b16 %v225
      %v514 = vunpack.c.l.b16 %v226
      %v515 = vunpack.c.l.b16 %v227
      %v516 = vunpack.c.l.b16 %v228
      %v517 = vunpack.c.l.b16 %v229
      %v518 = vunpack.c.l.b16 %v230
      %v519 = vunpack.c.l.b16 %v231
      %v520 = vunpack.c.l.b16 %v232
      %v521 = vunpack.c.l.b16 %v233
      %v522 = vunpack.c.l.b16 %v234
      %v523 = vunpack.c.l.b16 %v235
      %v524 = vunpack.c.l.b16 %v236
      %v525 = vpack.c.b16 %v510, %v509
      %v526 = vpack.c.b16 %v512, %v511
      %v527 = vpack.c.b16 %v514, %v513
      %v528 = vpack.c.b16 %v516, %v515
      %v529 = vpack.c.b16 %v518, %v517
      %v530 = vpack.c.b16 %v520, %v519
      %v531 = vpack.c.b16 %v522, %v521
      %v532 = vpack.c.b16 %v524, %v523
      %541 = vmatprep.subr.bf16.mxu0 0
      %542 = vmatpush1.bf16.msra.mxu0 %v525
      %543 = vmatprep.subr.bf16.mxu0 0
      %544 = vmatpush1.bf16.msra.mxu0 %v526
      %545 = vmatprep.subr.bf16.mxu0 0
      %546 = vmatpush1.bf16.msra.mxu0 %v527
      %547 = vmatprep.subr.bf16.mxu0 0
      %548 = vmatpush1.bf16.msra.mxu0 %v528
      %549 = vmatprep.subr.bf16.mxu0 0
      %550 = vmatpush1.bf16.msra.mxu0 %v529
      %551 = vmatprep.subr.bf16.mxu0 0
      %552 = vmatpush1.bf16.msra.mxu0 %v530
      %553 = vmatprep.subr.bf16.mxu0 0
      %554 = vmatpush1.bf16.msra.mxu0 %v531
      %555 = vmatprep.subr.bf16.mxu0 0
      %556 = vmatpush1.bf16.msra.mxu0 %v532
      %557 = vmatprep.subr.bf16.mxu0 0
      %558 = vmatpush1.bf16.msra.mxu0 0
      %559 = vmatprep.subr.bf16.mxu0 0
      %560 = vmatpush1.bf16.msra.mxu0 0
      %561 = vmatprep.subr.bf16.mxu0 0
      %562 = vmatpush1.bf16.msra.mxu0 0
      %563 = vmatprep.subr.bf16.mxu0 0
      %564 = vmatpush1.bf16.msra.mxu0 0
      %565 = vmatprep.subr.bf16.mxu0 0
      %566 = vmatpush1.bf16.msra.mxu0 0
      %567 = vmatprep.subr.bf16.mxu0 0
      %568 = vmatpush1.bf16.msra.mxu0 0
      %569 = vmatprep.subr.bf16.mxu0 0
      %570 = vmatpush1.bf16.msra.mxu0 0
      %571 = vmatprep.subr.bf16.mxu0 0
      %572 = vmatpush1.bf16.msra.mxu0 0
      %573 = vmatprep.mubr.bf16.mxu0 0
      %574 = vmatmul.mubr.bf16.gmra.mrb[0].mxu0 %v183
      %v575 = vpop.f32.mrb[0].mxu0
      %v576 = vadd.f32 0.0, %v575
      %v577 = vpop.f32.mrb[0].mxu0
      %v578 = vpop.f32.mrb[0].mxu0
      %v579 = vpop.f32.mrb[0].mxu0
      %580 = vdwg.mxu0
      %v597 = vunpack.c.l.b16 %v237
      %v598 = vunpack.c.l.b16 %v238
      %v599 = vunpack.c.l.b16 %v239
      %v600 = vunpack.c.l.b16 %v240
      %v601 = vunpack.c.l.b16 %v241
      %v602 = vunpack.c.l.b16 %v242
      %v603 = vunpack.c.l.b16 %v243
      %v604 = vunpack.c.l.b16 %v244
      %v605 = vunpack.c.l.b16 %v245
      %v606 = vunpack.c.l.b16 %v246
      %v607 = vunpack.c.l.b16 %v247
      %v608 = vunpack.c.l.b16 %v248
      %v609 = vunpack.c.l.b16 %v249
      %v610 = vunpack.c.l.b16 %v250
      %v611 = vunpack.c.l.b16 %v251
      %v612 = vunpack.c.l.b16 %v252
      %v613 = vpack.c.b16 %v598, %v597
      %v614 = vpack.c.b16 %v600, %v599
      %v615 = vpack.c.b16 %v602, %v601
      %v616 = vpack.c.b16 %v604, %v603
      %v617 = vpack.c.b16 %v606, %v605
      %v618 = vpack.c.b16 %v608, %v607
      %v619 = vpack.c.b16 %v610, %v609
      %v620 = vpack.c.b16 %v612, %v611
      %629 = vmatprep.subr.bf16.mxu0 0
      %630 = vmatpush1.bf16.msra.mxu0 %v613
      %631 = vmatprep.subr.bf16.mxu0 0
      %632 = vmatpush1.bf16.msra.mxu0 %v614
      %633 = vmatprep.subr.bf16.mxu0 0
      %634 = vmatpush1.bf16.msra.mxu0 %v615
      %635 = vmatprep.subr.bf16.mxu0 0
      %636 = vmatpush1.bf16.msra.mxu0 %v616
      %637 = vmatprep.subr.bf16.mxu0 0
      %638 = vmatpush1.bf16.msra.mxu0 %v617
      %639 = vmatprep.subr.bf16.mxu0 0
      %640 = vmatpush1.bf16.msra.mxu0 %v618
      %641 = vmatprep.subr.bf16.mxu0 0
      %642 = vmatpush1.bf16.msra.mxu0 %v619
      %643 = vmatprep.subr.bf16.mxu0 0
      %644 = vmatpush1.bf16.msra.mxu0 %v620
      %645 = vmatprep.subr.bf16.mxu0 0
      %646 = vmatpush1.bf16.msra.mxu0 0
      %647 = vmatprep.subr.bf16.mxu0 0
      %648 = vmatpush1.bf16.msra.mxu0 0
      %649 = vmatprep.subr.bf16.mxu0 0
      %650 = vmatpush1.bf16.msra.mxu0 0
      %651 = vmatprep.subr.bf16.mxu0 0
      %652 = vmatpush1.bf16.msra.mxu0 0
      %653 = vmatprep.subr.bf16.mxu0 0
      %654 = vmatpush1.bf16.msra.mxu0 0
      %655 = vmatprep.subr.bf16.mxu0 0
      %656 = vmatpush1.bf16.msra.mxu0 0
      %657 = vmatprep.subr.bf16.mxu0 0
      %658 = vmatpush1.bf16.msra.mxu0 0
      %659 = vmatprep.subr.bf16.mxu0 0
      %660 = vmatpush1.bf16.msra.mxu0 0
      %661 = vmatprep.mubr.bf16.mxu0 0
      %662 = vmatmul.mubr.bf16.gmra.mrb[0].mxu0 %v184
      %v663 = vpop.f32.mrb[0].mxu0
      %v664 = vadd.f32 0.0, %v663
      %v665 = vpop.f32.mrb[0].mxu0
      %v666 = vpop.f32.mrb[0].mxu0
      %v667 = vpop.f32.mrb[0].mxu0
      %668 = vdwg.mxu0
      %v685 = vunpack.c.l.b16 %v253
      %v686 = vunpack.c.l.b16 %v254
      %v687 = vunpack.c.l.b16 %v255
      %v688 = vunpack.c.l.b16 %v256
      %v689 = vunpack.c.l.b16 %v257
      %v690 = vunpack.c.l.b16 %v258
      %v691 = vunpack.c.l.b16 %v259
      %v692 = vunpack.c.l.b16 %v260
      %v693 = vunpack.c.l.b16 %v261
      %v694 = vunpack.c.l.b16 %v262
      %v695 = vunpack.c.l.b16 %v263
      %v696 = vunpack.c.l.b16 %v264
      %v697 = vunpack.c.l.b16 %v265
      %v698 = vunpack.c.l.b16 %v266
      %v699 = vunpack.c.l.b16 %v267
      %v700 = vunpack.c.l.b16 %v268
      %v701 = vpack.c.b16 %v686, %v685
      %v702 = vpack.c.b16 %v688, %v687
      %v703 = vpack.c.b16 %v690, %v689
      %v704 = vpack.c.b16 %v692, %v691
      %v705 = vpack.c.b16 %v694, %v693
      %v706 = vpack.c.b16 %v696, %v695
      %v707 = vpack.c.b16 %v698, %v697
      %v708 = vpack.c.b16 %v700, %v699
      %717 = vmatprep.subr.bf16.mxu0 0
      %718 = vmatpush1.bf16.msra.mxu0 %v701
      %719 = vmatprep.subr.bf16.mxu0 0
      %720 = vmatpush1.bf16.msra.mxu0 %v702
      %721 = vmatprep.subr.bf16.mxu0 0
      %722 = vmatpush1.bf16.msra.mxu0 %v703
      %723 = vmatprep.subr.bf16.mxu0 0
      %724 = vmatpush1.bf16.msra.mxu0 %v704
      %725 = vmatprep.subr.bf16.mxu0 0
      %726 = vmatpush1.bf16.msra.mxu0 %v705
      %727 = vmatprep.subr.bf16.mxu0 0
      %728 = vmatpush1.bf16.msra.mxu0 %v706
      %729 = vmatprep.subr.bf16.mxu0 0
      %730 = vmatpush1.bf16.msra.mxu0 %v707
      %731 = vmatprep.subr.bf16.mxu0 0
      %732 = vmatpush1.bf16.msra.mxu0 %v708
      %733 = vmatprep.subr.bf16.mxu0 0
      %734 = vmatpush1.bf16.msra.mxu0 0
      %735 = vmatprep.subr.bf16.mxu0 0
      %736 = vmatpush1.bf16.msra.mxu0 0
      %737 = vmatprep.subr.bf16.mxu0 0
      %738 = vmatpush1.bf16.msra.mxu0 0
      %739 = vmatprep.subr.bf16.mxu0 0
      %740 = vmatpush1.bf16.msra.mxu0 0
      %741 = vmatprep.subr.bf16.mxu0 0
      %742 = vmatpush1.bf16.msra.mxu0 0
      %743 = vmatprep.subr.bf16.mxu0 0
      %744 = vmatpush1.bf16.msra.mxu0 0
      %745 = vmatprep.subr.bf16.mxu0 0
      %746 = vmatpush1.bf16.msra.mxu0 0
      %747 = vmatprep.subr.bf16.mxu0 0
      %748 = vmatpush1.bf16.msra.mxu0 0
      %749 = vmatprep.mubr.bf16.mxu0 0
      %750 = vmatmul.mubr.bf16.gmra.mrb[0].mxu0 %v185
      %v751 = vpop.f32.mrb[0].mxu0
      %v752 = vadd.f32 0.0, %v751
      %v753 = vpop.f32.mrb[0].mxu0
      %v754 = vpop.f32.mrb[0].mxu0
      %v755 = vpop.f32.mrb[0].mxu0
      %756 = vdwg.mxu0
      %v773 = vunpack.c.l.b16 %v269
      %v774 = vunpack.c.l.b16 %v270
      %v775 = vunpack.c.l.b16 %v271
      %v776 = vunpack.c.l.b16 %v272
      %v777 = vunpack.c.l.b16 %v273
      %v778 = vunpack.c.l.b16 %v274
      %v779 = vunpack.c.l.b16 %v275
      %v780 = vunpack.c.l.b16 %v276
      %v781 = vunpack.c.l.b16 %v277
      %v782 = vunpack.c.l.b16 %v278
      %v783 = vunpack.c.l.b16 %v279
      %v784 = vunpack.c.l.b16 %v280
      %v785 = vunpack.c.l.b16 %v281
      %v786 = vunpack.c.l.b16 %v282
      %v787 = vunpack.c.l.b16 %v283
      %v788 = vunpack.c.l.b16 %v284
      %v789 = vpack.c.b16 %v774, %v773
      %v790 = vpack.c.b16 %v776, %v775
      %v791 = vpack.c.b16 %v778, %v777
      %v792 = vpack.c.b16 %v780, %v779
      %v793 = vpack.c.b16 %v782, %v781
      %v794 = vpack.c.b16 %v784, %v783
      %v795 = vpack.c.b16 %v786, %v785
      %v796 = vpack.c.b16 %v788, %v787
      %805 = vmatprep.subr.bf16.mxu0 0
      %806 = vmatpush1.bf16.msra.mxu0 %v789
      %807 = vmatprep.subr.bf16.mxu0 0
      %808 = vmatpush1.bf16.msra.mxu0 %v790
      %809 = vmatprep.subr.bf16.mxu0 0
      %810 = vmatpush1.bf16.msra.mxu0 %v791
      %811 = vmatprep.subr.bf16.mxu0 0
      %812 = vmatpush1.bf16.msra.mxu0 %v792
      %813 = vmatprep.subr.bf16.mxu0 0
      %814 = vmatpush1.bf16.msra.mxu0 %v793
      %815 = vmatprep.subr.bf16.mxu0 0
      %816 = vmatpush1.bf16.msra.mxu0 %v794
      %817 = vmatprep.subr.bf16.mxu0 0
      %818 = vmatpush1.bf16.msra.mxu0 %v795
      %819 = vmatprep.subr.bf16.mxu0 0
      %820 = vmatpush1.bf16.msra.mxu0 %v796
      %821 = vmatprep.subr.bf16.mxu0 0
      %822 = vmatpush1.bf16.msra.mxu0 0
      %823 = vmatprep.subr.bf16.mxu0 0
      %824 = vmatpush1.bf16.msra.mxu0 0
      %825 = vmatprep.subr.bf16.mxu0 0
      %826 = vmatpush1.bf16.msra.mxu0 0
      %827 = vmatprep.subr.bf16.mxu0 0
      %828 = vmatpush1.bf16.msra.mxu0 0
      %829 = vmatprep.subr.bf16.mxu0 0
      %830 = vmatpush1.bf16.msra.mxu0 0
      %831 = vmatprep.subr.bf16.mxu0 0
      %832 = vmatpush1.bf16.msra.mxu0 0
      %833 = vmatprep.subr.bf16.mxu0 0
      %834 = vmatpush1.bf16.msra.mxu0 0
      %835 = vmatprep.subr.bf16.mxu0 0
      %836 = vmatpush1.bf16.msra.mxu0 0
      %837 = vmatprep.mubr.bf16.mxu0 0
      %838 = vmatmul.mubr.bf16.gmra.mrb[0].mxu0 %v186
      %v839 = vpop.f32.mrb[0].mxu0
      %v840 = vadd.f32 0.0, %v839
      %v841 = vpop.f32.mrb[0].mxu0
      %v842 = vpop.f32.mrb[0].mxu0
      %v843 = vpop.f32.mrb[0].mxu0
      %844 = vdwg.mxu0
      %v861 = vunpack.c.l.b16 %v285
      %v862 = vunpack.c.l.b16 %v286
      %v863 = vunpack.c.l.b16 %v287
      %v864 = vunpack.c.l.b16 %v288
      %v865 = vunpack.c.l.b16 %v289
      %v866 = vunpack.c.l.b16 %v290
      %v867 = vunpack.c.l.b16 %v291
      %v868 = vunpack.c.l.b16 %v292
      %v869 = vunpack.c.l.b16 %v293
      %v870 = vunpack.c.l.b16 %v294
      %v871 = vunpack.c.l.b16 %v295
      %v872 = vunpack.c.l.b16 %v296
      %v873 = vunpack.c.l.b16 %v297
      %v874 = vunpack.c.l.b16 %v298
      %v875 = vunpack.c.l.b16 %v299
      %v876 = vunpack.c.l.b16 %v300
      %v877 = vpack.c.b16 %v862, %v861
      %v878 = vpack.c.b16 %v864, %v863
      %v879 = vpack.c.b16 %v866, %v865
      %v880 = vpack.c.b16 %v868, %v867
      %v881 = vpack.c.b16 %v870, %v869
      %v882 = vpack.c.b16 %v872, %v871
      %v883 = vpack.c.b16 %v874, %v873
      %v884 = vpack.c.b16 %v876, %v875
      %893 = vmatprep.subr.bf16.mxu0 0
      %894 = vmatpush1.bf16.msra.mxu0 %v877
      %895 = vmatprep.subr.bf16.mxu0 0
      %896 = vmatpush1.bf16.msra.mxu0 %v878
      %897 = vmatprep.subr.bf16.mxu0 0
      %898 = vmatpush1.bf16.msra.mxu0 %v879
      %899 = vmatprep.subr.bf16.mxu0 0
      %900 = vmatpush1.bf16.msra.mxu0 %v880
      %901 = vmatprep.subr.bf16.mxu0 0
      %902 = vmatpush1.bf16.msra.mxu0 %v881
      %903 = vmatprep.subr.bf16.mxu0 0
      %904 = vmatpush1.bf16.msra.mxu0 %v882
      %905 = vmatprep.subr.bf16.mxu0 0
      %906 = vmatpush1.bf16.msra.mxu0 %v883
      %907 = vmatprep.subr.bf16.mxu0 0
      %908 = vmatpush1.bf16.msra.mxu0 %v884
      %909 = vmatprep.subr.bf16.mxu0 0
      %910 = vmatpush1.bf16.msra.mxu0 0
      %911 = vmatprep.subr.bf16.mxu0 0
      %912 = vmatpush1.bf16.msra.mxu0 0
      %913 = vmatprep.subr.bf16.mxu0 0
      %914 = vmatpush1.bf16.msra.mxu0 0
      %915 = vmatprep.subr.bf16.mxu0 0
      %916 = vmatpush1.bf16.msra.mxu0 0
      %917 = vmatprep.subr.bf16.mxu0 0
      %918 = vmatpush1.bf16.msra.mxu0 0
      %919 = vmatprep.subr.bf16.mxu0 0
      %920 = vmatpush1.bf16.msra.mxu0 0
      %921 = vmatprep.subr.bf16.mxu0 0
      %922 = vmatpush1.bf16.msra.mxu0 0
      %923 = vmatprep.subr.bf16.mxu0 0
      %924 = vmatpush1.bf16.msra.mxu0 0
      %925 = vmatprep.mubr.bf16.mxu0 0
      %926 = vmatmul.mubr.bf16.gmra.mrb[0].mxu0 %v187
      %v927 = vpop.f32.mrb[0].mxu0
      %v928 = vadd.f32 0.0, %v927
      %v929 = vpop.f32.mrb[0].mxu0
      %v930 = vpop.f32.mrb[0].mxu0
      %v931 = vpop.f32.mrb[0].mxu0
      %932 = vdwg.mxu0
      %v949 = vunpack.c.l.b16 %v301
      %v950 = vunpack.c.l.b16 %v302
      %v951 = vunpack.c.l.b16 %v303
      %v952 = vunpack.c.l.b16 %v304
      %v953 = vunpack.c.l.b16 %v305
      %v954 = vunpack.c.l.b16 %v306
      %v955 = vunpack.c.l.b16 %v307
      %v956 = vunpack.c.l.b16 %v308
      %v957 = vunpack.c.l.b16 %v309
      %v958 = vunpack.c.l.b16 %v310
      %v959 = vunpack.c.l.b16 %v311
      %v960 = vunpack.c.l.b16 %v312
      %v961 = vunpack.c.l.b16 %v313
      %v962 = vunpack.c.l.b16 %v314
      %v963 = vunpack.c.l.b16 %v315
      %v964 = vunpack.c.l.b16 %v316
      %v965 = vpack.c.b16 %v950, %v949
      %v966 = vpack.c.b16 %v952, %v951
      %v967 = vpack.c.b16 %v954, %v953
      %v968 = vpack.c.b16 %v956, %v955
      %v969 = vpack.c.b16 %v958, %v957
      %v970 = vpack.c.b16 %v960, %v959
      %v971 = vpack.c.b16 %v962, %v961
      %v972 = vpack.c.b16 %v964, %v963
      %981 = vmatprep.subr.bf16.mxu0 0
      %982 = vmatpush1.bf16.msra.mxu0 %v965
      %983 = vmatprep.subr.bf16.mxu0 0
      %984 = vmatpush1.bf16.msra.mxu0 %v966
      %985 = vmatprep.subr.bf16.mxu0 0
      %986 = vmatpush1.bf16.msra.mxu0 %v967
      %987 = vmatprep.subr.bf16.mxu0 0
      %988 = vmatpush1.bf16.msra.mxu0 %v968
      %989 = vmatprep.subr.bf16.mxu0 0
      %990 = vmatpush1.bf16.msra.mxu0 %v969
      %991 = vmatprep.subr.bf16.mxu0 0
      %992 = vmatpush1.bf16.msra.mxu0 %v970
      %993 = vmatprep.subr.bf16.mxu0 0
      %994 = vmatpush1.bf16.msra.mxu0 %v971
      %995 = vmatprep.subr.bf16.mxu0 0
      %996 = vmatpush1.bf16.msra.mxu0 %v972
      %997 = vmatprep.subr.bf16.mxu0 0
      %998 = vmatpush1.bf16.msra.mxu0 0
      %999 = vmatprep.subr.bf16.mxu0 0
      %1000 = vmatpush1.bf16.msra.mxu0 0
      %1001 = vmatprep.subr.bf16.mxu0 0
      %1002 = vmatpush1.bf16.msra.mxu0 0
      %1003 = vmatprep.subr.bf16.mxu0 0
      %1004 = vmatpush1.bf16.msra.mxu0 0
      %1005 = vmatprep.subr.bf16.mxu0 0
      %1006 = vmatpush1.bf16.msra.mxu0 0
      %1007 = vmatprep.subr.bf16.mxu0 0
      %1008 = vmatpush1.bf16.msra.mxu0 0
      %1009 = vmatprep.subr.bf16.mxu0 0
      %1010 = vmatpush1.bf16.msra.mxu0 0
      %1011 = vmatprep.subr.bf16.mxu0 0
      %1012 = vmatpush1.bf16.msra.mxu0 0
      %1013 = vmatprep.mubr.bf16.mxu0 0
      %1014 = vmatmul.mubr.bf16.gmra.mrb[0].mxu0 %v188
      %v1015 = vpop.f32.mrb[0].mxu0
      %v1016 = vadd.f32 0.0, %v1015
      %v1017 = vpop.f32.mrb[0].mxu0
      %v1018 = vpop.f32.mrb[0].mxu0
      %v1019 = vpop.f32.mrb[0].mxu0
      %1020 = vdwg.mxu0
      %1021 = vst [vmem:[%s170] sm:$0xf] %v400
      %1022 = vst [vmem:[%s170 + $0x4] sm:$0xf] %v488
      %1023 = vst [vmem:[%s170 + $0x8] sm:$0xf] %v576
      %1024 = vst [vmem:[%s170 + $0xc] sm:$0xf] %v664
      %1025 = vst [vmem:[%s170 + $0x10] sm:$0xf] %v752
      %1026 = vst [vmem:[%s170 + $0x14] sm:$0xf] %v840
      %1027 = vst [vmem:[%s170 + $0x18] sm:$0xf] %v928
      %1028 = vst [vmem:[%s170 + $0x1c] sm:$0xf] %v1016
      %s1029 = smul.u32 8, %s13
      %p1030 = scmp.lt.s32.totalorder %s1029, 15
      %s1031 = scalar_select %p1030, %s1029, 15
      %s1032 = smul.addr %s1031, 4
      %s1033 = scalar_lea.vmem %s2, %s1032
      // Predicated region
      $region29: #{_lambda_.7} parent=27 // pred_check
        %p1034 = pneg %p83
      $region30: #{_lambda_.7} parent=27 // pred_check_branch
        %1036 = sbr.rel (%p1034) target = $region32
      $region31: #{_lambda_.7} parent=27 // pred_region
        %s1037 = smul.u32 8, %s13
      $region32: #{_lambda_.7} parent=27 // pred_fallthru
        _
    $region28: #{_lambda_.7} parent=5 // pred_fallthru
      _
    %p1038 = scmp.le.s32.totalorder 2, %s8
    // Predicated region
    $region33: #{_lambda_.7} parent=5 // pred_check
      %p1039 = pneg %p1038
    $region34: #{_lambda_.7} parent=5 // pred_check_branch
      %1041 = sbr.rel (%p1039) target = $region36
    $region35: #{_lambda_.7} parent=5 // pred_region
      %s1042 = ssub.s32 %s8, 2
      // Predicated region
      $region37: #{_lambda_.7} parent=35 // pred_check
        %p1043 = pneg %p89
      $region38: #{_lambda_.7} parent=35 // pred_check_branch
        %1045 = sbr.rel (%p1043) target = $region40
      $region39: #{_lambda_.7} parent=35 // pred_region
        %s1046 = smul.u32 8, %s14
        %p1047 = scmp.lt.s32.totalorder %s1046, 15
        %s1048 = scalar_select %p1047, %s1046, 15
        %s1049 = smul.addr %s1048, 4
        %s1050 = scalar_lea.vmem %s2, %s1049
      $region40: #{_lambda_.7} parent=35 // pred_fallthru
        _
    $region36: #{_lambda_.7} parent=5 // pred_fallthru
      _
  $region6: #{_lambda_.7} parent=0 // loop_footer
    %s12 = sadd.s32 1, %s8
  $region7: #{_lambda_.7} parent=0 // loop_footer_branch
    %7 = sbr.rel target = $region3
  $region8: #{_lambda_.7} parent=0 // loop_exit
    _

// kernel: reverse.4
$region0: #{reverse.4}
  #allocation0 [shape = 's32[1]{0}', space=sflag, size = 0x4, scoped, tag = 'scoped memory for reverse.4']
  %s0 = inlined_call_operand.vmem [shape: f32[4,32,16,7], index: 0, kind: input, shape index: {}]
  %s1 = inlined_call_operand.vmem [shape: f32[4,32,16,7], index: 1, kind: output, shape index: {}]
  %s2 = scalar_lea.vmem %s0, 96
  %v3 = vld [vmem:[%s2] sm:$0xff]
  %4 = vst [vmem:[%s1] sm:$0xff] %v3
  %s5 = scalar_lea.vmem %s0, 208
  %v6 = vld [vmem:[%s5] sm:$0xff]
  %s7 = scalar_lea.vmem %s1, 112
  %8 = vst [vmem:[%s7] sm:$0xff] %v6
  %s9 = scalar_lea.vmem %s0, 320
  %v10 = vld [vmem:[%s9] sm:$0xff]
  %s11 = scalar_lea.vmem %s1, 224
  %12 = vst [vmem:[%s11] sm:$0xff] %v10
  %s13 = scalar_lea.vmem %s0, 432
  %v14 = vld [vmem:[%s13] sm:$0xff]
  %s15 = scalar_lea.vmem %s1, 336
  %16 = vst [vmem:[%s15] sm:$0xff] %v14
  %s17 = scalar_lea.vmem %s0, 80
  %v18 = vld [vmem:[%s17] sm:$0xff]
  %s19 = scalar_lea.vmem %s1, 16
  %20 = vst [vmem:[%s19] sm:$0xff] %v18
  %s21 = scalar_lea.vmem %s0, 192
  %v22 = vld [vmem:[%s21] sm:$0xff]
  %s23 = scalar_lea.vmem %s1, 128
  %24 = vst [vmem:[%s23] sm:$0xff] %v22
  %s25 = scalar_lea.vmem %s0, 304
  %v26 = vld [vmem:[%s25] sm:$0xff]
  %s27 = scalar_lea.vmem %s1, 240
  %28 = vst [vmem:[%s27] sm:$0xff] %v26
  %s29 = scalar_lea.vmem %s0, 416
  %v30 = vld [vmem:[%s29] sm:$0xff]
  %s31 = scalar_lea.vmem %s1, 352
  %32 = vst [vmem:[%s31] sm:$0xff] %v30
  %s33 = scalar_lea.vmem %s0, 64
  %v34 = vld [vmem:[%s33] sm:$0xff]
  %s35 = scalar_lea.vmem %s1, 32
  %36 = vst [vmem:[%s35] sm:$0xff] %v34
  %s37 = scalar_lea.vmem %s0, 176
  %v38 = vld [vmem:[%s37] sm:$0xff]
  %s39 = scalar_lea.vmem %s1, 144
  %40 = vst [vmem:[%s39] sm:$0xff] %v38
  %s41 = scalar_lea.vmem %s0, 288
  %v42 = vld [vmem:[%s41] sm:$0xff]
  %s43 = scalar_lea.vmem %s1, 256
  %44 = vst [vmem:[%s43] sm:$0xff] %v42
  %s45 = scalar_lea.vmem %s0, 400
  %v46 = vld [vmem:[%s45] sm:$0xff]
  %s47 = scalar_lea.vmem %s1, 368
  %48 = vst [vmem:[%s47] sm:$0xff] %v46
  %s49 = scalar_lea.vmem %s0, 48
  %v50 = vld [vmem:[%s49] sm:$0xff]
  %s51 = scalar_lea.vmem %s1, 48
  %52 = vst [vmem:[%s51] sm:$0xff] %v50
  %s53 = scalar_lea.vmem %s0, 160
  %v54 = vld [vmem:[%s53] sm:$0xff]
  %s55 = scalar_lea.vmem %s1, 160
  %56 = vst [vmem:[%s55] sm:$0xff] %v54
  %s57 = scalar_lea.vmem %s0, 272
  %v58 = vld [vmem:[%s57] sm:$0xff]
  %s59 = scalar_lea.vmem %s1, 272
  %60 = vst [vmem:[%s59] sm:$0xff] %v58
  %s61 = scalar_lea.vmem %s0, 384
  %v62 = vld [vmem:[%s61] sm:$0xff]
  %s63 = scalar_lea.vmem %s1, 384
  %64 = vst [vmem:[%s63] sm:$0xff] %v62
  %s65 = scalar_lea.vmem %s0, 32
  %v66 = vld [vmem:[%s65] sm:$0xff]
  %s67 = scalar_lea.vmem %s1, 64
  %68 = vst [vmem:[%s67] sm:$0xff] %v66
  %s69 = scalar_lea.vmem %s0, 144
  %v70 = vld [vmem:[%s69] sm:$0xff]
  %s71 = scalar_lea.vmem %s1, 176
  %72 = vst [vmem:[%s71] sm:$0xff] %v70
  %s73 = scalar_lea.vmem %s0, 256
  %v74 = vld [vmem:[%s73] sm:$0xff]
  %s75 = scalar_lea.vmem %s1, 288
  %76 = vst [vmem:[%s75] sm:$0xff] %v74
  %s77 = scalar_lea.vmem %s0, 368
  %v78 = vld [vmem:[%s77] sm:$0xff]
  %s79 = scalar_lea.vmem %s1, 400
  %80 = vst [vmem:[%s79] sm:$0xff] %v78
  %s81 = scalar_lea.vmem %s0, 16
  %v82 = vld [vmem:[%s81] sm:$0xff]
  %s83 = scalar_lea.vmem %s1, 80
  %84 = vst [vmem:[%s83] sm:$0xff] %v82
  %s85 = scalar_lea.vmem %s0, 128
  %v86 = vld [vmem:[%s85] sm:$0xff]
  %s87 = scalar_lea.vmem %s1, 192
  %88 = vst [vmem:[%s87] sm:$0xff] %v86
  %s89 = scalar_lea.vmem %s0, 240
  %v90 = vld [vmem:[%s89] sm:$0xff]
  %s91 = scalar_lea.vmem %s1, 304
  %92 = vst [vmem:[%s91] sm:$0xff] %v90
  %s93 = scalar_lea.vmem %s0, 352
  %v94 = vld [vmem:[%s93] sm:$0xff]
  %s95 = scalar_lea.vmem %s1, 416
  %96 = vst [vmem:[%s95] sm:$0xff] %v94
  %v97 = vld [vmem:[%s0] sm:$0xff]
  %s98 = scalar_lea.vmem %s1, 96
  %99 = vst [vmem:[%s98] sm:$0xff] %v97
  %s100 = scalar_lea.vmem %s0, 112
  %v101 = vld [vmem:[%s100] sm:$0xff]
  %s102 = scalar_lea.vmem %s1, 208
  %103 = vst [vmem:[%s102] sm:$0xff] %v101
  %s104 = scalar_lea.vmem %s0, 224
  %v105 = vld [vmem:[%s104] sm:$0xff]
  %s106 = scalar_lea.vmem %s1, 320
  %107 = vst [vmem:[%s106] sm:$0xff] %v105
  %s108 = scalar_lea.vmem %s0, 336
  %v109 = vld [vmem:[%s108] sm:$0xff]
  %s110 = scalar_lea.vmem %s1, 432
  %111 = vst [vmem:[%s110] sm:$0xff] %v109
  %s112 = scalar_lea.vmem %s0, 104
  %v113 = vld [vmem:[%s112] sm:$0xff]
  %s114 = scalar_lea.vmem %s1, 8
  %115 = vst [vmem:[%s114] sm:$0xff] %v113
  %s116 = scalar_lea.vmem %s0, 216
  %v117 = vld [vmem:[%s116] sm:$0xff]
  %s118 = scalar_lea.vmem %s1, 120
  %119 = vst [vmem:[%s118] sm:$0xff] %v117
  %s120 = scalar_lea.vmem %s0, 328
  %v121 = vld [vmem:[%s120] sm:$0xff]
  %s122 = scalar_lea.vmem %s1, 232
  %123 = vst [vmem:[%s122] sm:$0xff] %v121
  %s124 = scalar_lea.vmem %s0, 440
  %v125 = vld [vmem:[%s124] sm:$0xff]
  %s126 = scalar_lea.vmem %s1, 344
  %127 = vst [vmem:[%s126] sm:$0xff] %v125
  %s128 = scalar_lea.vmem %s0, 88
  %v129 = vld [vmem:[%s128] sm:$0xff]
  %s130 = scalar_lea.vmem %s1, 24
  %131 = vst [vmem:[%s130] sm:$0xff] %v129
  %s132 = scalar_lea.vmem %s0, 200
  %v133 = vld [vmem:[%s132] sm:$0xff]
  %s134 = scalar_lea.vmem %s1, 136
  %135 = vst [vmem:[%s134] sm:$0xff] %v133
  %s136 = scalar_lea.vmem %s0, 312
  %v137 = vld [vmem:[%s136] sm:$0xff]
  %s138 = scalar_lea.vmem %s1, 248
  %139 = vst [vmem:[%s138] sm:$0xff] %v137
  %s140 = scalar_lea.vmem %s0, 424
  %v141 = vld [vmem:[%s140] sm:$0xff]
  %s142 = scalar_lea.vmem %s1, 360
  %143 = vst [vmem:[%s142] sm:$0xff] %v141
  %s144 = scalar_lea.vmem %s0, 72
  %v145 = vld [vmem:[%s144] sm:$0xff]
  %s146 = scalar_lea.vmem %s1, 40
  %147 = vst [vmem:[%s146] sm:$0xff] %v145
  %s148 = scalar_lea.vmem %s0, 184
  %v149 = vld [vmem:[%s148] sm:$0xff]
  %s150 = scalar_lea.vmem %s1, 152
  %151 = vst [vmem:[%s150] sm:$0xff] %v149
  %s152 = scalar_lea.vmem %s0, 296
  %v153 = vld [vmem:[%s152] sm:$0xff]
  %s154 = scalar_lea.vmem %s1, 264
  %155 = vst [vmem:[%s154] sm:$0xff] %v153
  %s156 = scalar_lea.vmem %s0, 408
  %v157 = vld [vmem:[%s156] sm:$0xff]
  %s158 = scalar_lea.vmem %s1, 376
  %159 = vst [vmem:[%s158] sm:$0xff] %v157
  %s160 = scalar_lea.vmem %s0, 56
  %v161 = vld [vmem:[%s160] sm:$0xff]
  %s162 = scalar_lea.vmem %s1, 56
  %163 = vst [vmem:[%s162] sm:$0xff] %v161
  %s164 = scalar_lea.vmem %s0, 168
  %v165 = vld [vmem:[%s164] sm:$0xff]
  %s166 = scalar_lea.vmem %s1, 168
  %167 = vst [vmem:[%s166] sm:$0xff] %v165
  %s168 = scalar_lea.vmem %s0, 280
  %v169 = vld [vmem:[%s168] sm:$0xff]
  %s170 = scalar_lea.vmem %s1, 280
  %171 = vst [vmem:[%s170] sm:$0xff] %v169
  %s172 = scalar_lea.vmem %s0, 392
  %v173 = vld [vmem:[%s172] sm:$0xff]
  %s174 = scalar_lea.vmem %s1, 392
  %175 = vst [vmem:[%s174] sm:$0xff] %v173
  %s176 = scalar_lea.vmem %s0, 40
  %v177 = vld [vmem:[%s176] sm:$0xff]
  %s178 = scalar_lea.vmem %s1, 72
  %179 = vst [vmem:[%s178] sm:$0xff] %v177
  %s180 = scalar_lea.vmem %s0, 152
  %v181 = vld [vmem:[%s180] sm:$0xff]
  %s182 = scalar_lea.vmem %s1, 184
  %183 = vst [vmem:[%s182] sm:$0xff] %v181
  %s184 = scalar_lea.vmem %s0, 264
  %v185 = vld [vmem:[%s184] sm:$0xff]
  %s186 = scalar_lea.vmem %s1, 296
  %187 = vst [vmem:[%s186] sm:$0xff] %v185
  %s188 = scalar_lea.vmem %s0, 376
  %v189 = vld [vmem:[%s188] sm:$0xff]
  %s190 = scalar_lea.vmem %s1, 408
  %191 = vst [vmem:[%s190] sm:$0xff] %v189
  %s192 = scalar_lea.vmem %s0, 24
  %v193 = vld [vmem:[%s192] sm:$0xff]
  %s194 = scalar_lea.vmem %s1, 88
  %195 = vst [vmem:[%s194] sm:$0xff] %v193
  %s196 = scalar_lea.vmem %s0, 136
  %v197 = vld [vmem:[%s196] sm:$0xff]
  %s198 = scalar_lea.vmem %s1, 200
  %199 = vst [vmem:[%s198] sm:$0xff] %v197
  %s200 = scalar_lea.vmem %s0, 248
  %v201 = vld [vmem:[%s200] sm:$0xff]
  %s202 = scalar_lea.vmem %s1, 312
  %203 = vst [vmem:[%s202] sm:$0xff] %v201
  %s204 = scalar_lea.vmem %s0, 360
  %v205 = vld [vmem:[%s204] sm:$0xff]
  %s206 = scalar_lea.vmem %s1, 424
  %207 = vst [vmem:[%s206] sm:$0xff] %v205
  %s208 = scalar_lea.vmem %s0, 8
  %v209 = vld [vmem:[%s208] sm:$0xff]
  %s210 = scalar_lea.vmem %s1, 104
  %211 = vst [vmem:[%s210] sm:$0xff] %v209
  %s212 = scalar_lea.vmem %s0, 120
  %v213 = vld [vmem:[%s212] sm:$0xff]
  %s214 = scalar_lea.vmem %s1, 216
  %215 = vst [vmem:[%s214] sm:$0xff] %v213
  %s216 = scalar_lea.vmem %s0, 232
  %v217 = vld [vmem:[%s216] sm:$0xff]
  %s218 = scalar_lea.vmem %s1, 328
  %219 = vst [vmem:[%s218] sm:$0xff] %v217
  %s220 = scalar_lea.vmem %s0, 344
  %v221 = vld [vmem:[%s220] sm:$0xff]
  %s222 = scalar_lea.vmem %s1, 440
  %223 = vst [vmem:[%s222] sm:$0xff] %v221

// kernel: _lambda_.8
$region0: #{_lambda_.8}
  #allocation0 [shape = 'u32[]', space=smem, size = 0x4, offset = 0x4, fixed_abs, tag = 'smem constant byte address 0x4 - core index']
  #allocation1 [shape = 'u32[144,128]{1,0:T(1,128)}', space=vmem, size = 0x12000, scoped, tag = 'internal scratch']
  %s0 = inlined_call_operand.vmem [shape: bf16[256,128], index: 0, kind: input, shape index: {}]
  %s1 = inlined_call_operand.vmem [shape: bf16[128,128], index: 1, kind: input, shape index: {}]
  %s2 = inlined_call_operand.vmem [shape: f32[1,128], index: 2, kind: input, shape index: {}]
  %s3 = inlined_call_operand.vmem [shape: f32[256,128], index: 3, kind: input, shape index: {}]
  %s4 = inlined_call_operand.vmem [shape: bf16[256,128], index: 4, kind: output, shape index: {}]
  %s5 = sld [smem:[#allocation0]]
  $region49: #{_lambda_.8} parent=0
    _
  %s7 = ssub.s32 1, %s5
  %s8 = scalar_select 0, %s7, %s5
  loop: start=0, step=1, limit=4
  $region2: #{_lambda_.8} parent=0 // loop_pre_header
    _
  $region3: #{_lambda_.8} parent=0 // loop_header
    %s10 = sphi 0, %s14
    %p11 = scmp.ge.s32.totalorder %s10, 4
    %s20 = sphi 0, %s22
    %s23 = sphi 0, %s20
    %s24 = sphi 0, %s23
    %s40 = sphi 0, %s24
    %s44 = sphi 0, %s44
    %s46 = sphi 0, %s44
    %s47 = sphi 0, %s46
    %s61 = sphi 0, %s47
    %s65 = sphi 0, %s65
    %s67 = sphi 0, %s65
    %s68 = sphi 0, %s67
    %s82 = sphi 0, %s68
    %s88 = sphi 0, %s90
    %s91 = sphi 0, %s88
    %s92 = sphi 0, %s91
    %s108 = sphi 0, %s92
    %s114 = sphi 0, %s116
    %s117 = sphi 0, %s114
    %s118 = sphi 0, %s117
    %s134 = sphi 0, %s118
  $region4: #{_lambda_.8} parent=0 // loop_header_branch
    %13 = sbr.rel (%p11) target = $region8
  $region5: #{_lambda_.8} parent=0 // loop_body
    %s15 = ssub.s32 %s10, 1
    %s16 = ssub.s32 %s10, 2
    %s17 = sadd.s32 %s10, 1
    %s18 = ssub.s32 %s10, %s17
    %p19 = scmp.eq.s32.totalorder %s18, 0
    %s21 = sadd.s32 %s20, 1
    %s22 = scalar_select %p19, %s20, %s21
    %p25 = pneg %p19
    %p26 = scmp.eq.s32.totalorder %s10, 1
    %p27 = por %p25, %p26
    %p28 = scmp.ne.s32.totalorder %s20, %s23
    %p29 = scmp.eq.s32.totalorder %s10, 0
    %p30 = por %p28, %p29
    %p31 = scmp.ne.s32.totalorder %s20, %s23
    %p32 = scmp.eq.s32.totalorder %s15, 1
    %p33 = por %p31, %p32
    %p34 = scmp.ne.s32.totalorder %s23, %s24
    %p35 = scmp.eq.s32.totalorder %s15, 0
    %p36 = por %p34, %p35
    %p37 = scmp.ne.s32.totalorder %s23, %s24
    %p38 = scmp.eq.s32.totalorder %s16, 1
    %p39 = por %p37, %p38
    %p41 = scmp.ne.s32.totalorder %s24, %s40
    %p42 = scmp.eq.s32.totalorder %s16, 0
    %p43 = por %p41, %p42
    %s45 = sadd.s32 %s44, 1
    %p48 = scmp.eq.s32.totalorder %s10, 1
    %p49 = scmp.ne.s32.totalorder %s44, %s46
    %p50 = scmp.eq.s32.totalorder %s10, 0
    %p51 = por %p49, %p50
    %p52 = scmp.ne.s32.totalorder %s44, %s46
    %p53 = scmp.eq.s32.totalorder %s15, 1
    %p54 = por %p52, %p53
    %p55 = scmp.ne.s32.totalorder %s46, %s47
    %p56 = scmp.eq.s32.totalorder %s15, 0
    %p57 = por %p55, %p56
    %p58 = scmp.ne.s32.totalorder %s46, %s47
    %p59 = scmp.eq.s32.totalorder %s16, 1
    %p60 = por %p58, %p59
    %p62 = scmp.ne.s32.totalorder %s47, %s61
    %p63 = scmp.eq.s32.totalorder %s16, 0
    %p64 = por %p62, %p63
    %s66 = sadd.s32 %s65, 1
    %p69 = scmp.eq.s32.totalorder %s10, 1
    %p70 = scmp.ne.s32.totalorder %s65, %s67
    %p71 = scmp.eq.s32.totalorder %s10, 0
    %p72 = por %p70, %p71
    %p73 = scmp.ne.s32.totalorder %s65, %s67
    %p74 = scmp.eq.s32.totalorder %s15, 1
    %p75 = por %p73, %p74
    %p76 = scmp.ne.s32.totalorder %s67, %s68
    %p77 = scmp.eq.s32.totalorder %s15, 0
    %p78 = por %p76, %p77
    %p79 = scmp.ne.s32.totalorder %s67, %s68
    %p80 = scmp.eq.s32.totalorder %s16, 1
    %p81 = por %p79, %p80
    %p83 = scmp.ne.s32.totalorder %s68, %s82
    %p84 = scmp.eq.s32.totalorder %s16, 0
    %p85 = por %p83, %p84
    %s86 = ssub.s32 %s10, %s17
    %p87 = scmp.eq.s32.totalorder %s86, 0
    %s89 = sadd.s32 %s88, 1
    %s90 = scalar_select %p87, %s88, %s89
    %p93 = pneg %p87
    %p94 = scmp.eq.s32.totalorder %s10, 1
    %p95 = por %p93, %p94
    %p96 = scmp.ne.s32.totalorder %s88, %s91
    %p97 = scmp.eq.s32.totalorder %s10, 0
    %p98 = por %p96, %p97
    %p99 = scmp.ne.s32.totalorder %s88, %s91
    %p100 = scmp.eq.s32.totalorder %s15, 1
    %p101 = por %p99, %p100
    %p102 = scmp.ne.s32.totalorder %s91, %s92
    %p103 = scmp.eq.s32.totalorder %s15, 0
    %p104 = por %p102, %p103
    %p105 = scmp.ne.s32.totalorder %s91, %s92
    %p106 = scmp.eq.s32.totalorder %s16, 1
    %p107 = por %p105, %p106
    %p109 = scmp.ne.s32.totalorder %s92, %s108
    %p110 = scmp.eq.s32.totalorder %s16, 0
    %p111 = por %p109, %p110
    %s112 = ssub.s32 %s10, %s17
    %p113 = scmp.eq.s32.totalorder %s112, 0
    %s115 = sadd.s32 %s114, 1
    %s116 = scalar_select %p113, %s114, %s115
    %p119 = pneg %p113
    %p120 = scmp.eq.s32.totalorder %s10, 1
    %p121 = por %p119, %p120
    %p122 = scmp.ne.s32.totalorder %s114, %s117
    %p123 = scmp.eq.s32.totalorder %s10, 0
    %p124 = por %p122, %p123
    %p125 = scmp.ne.s32.totalorder %s114, %s117
    %p126 = scmp.eq.s32.totalorder %s15, 1
    %p127 = por %p125, %p126
    %p128 = scmp.ne.s32.totalorder %s117, %s118
    %p129 = scmp.eq.s32.totalorder %s15, 0
    %p130 = por %p128, %p129
    %p131 = scmp.ne.s32.totalorder %s117, %s118
    %p132 = scmp.eq.s32.totalorder %s16, 1
    %p133 = por %p131, %p132
    %p135 = scmp.ne.s32.totalorder %s118, %s134
    %p136 = scmp.eq.s32.totalorder %s16, 0
    %p137 = por %p135, %p136
    %p138 = scmp.le.s32.totalorder 1, %s10
    %p139 = scmp.lt.s32.totalorder %s10, 3
    %p140 = pnand %p138, %p139
    %p141 = pneg %p140
    // Predicated region
    $region9: #{_lambda_.8} parent=5 // pred_check
      _
    $region10: #{_lambda_.8} parent=5 // pred_check_branch
      %143 = sbr.rel (%p140) target = $region12
    $region11: #{_lambda_.8} parent=5 // pred_region
      %s144 = ssub.s32 %s10, 1
      // Predicated region
      $region13: #{_lambda_.8} parent=11 // pred_check
        %p145 = pneg %p57
      $region14: #{_lambda_.8} parent=11 // pred_check_branch
        %147 = sbr.rel (%p145) target = $region16
      $region15: #{_lambda_.8} parent=11 // pred_region
        _
      $region16: #{_lambda_.8} parent=11 // pred_fallthru
        _
      // Predicated region
      $region17: #{_lambda_.8} parent=11 // pred_check
        %p148 = pneg %p78
      $region18: #{_lambda_.8} parent=11 // pred_check_branch
        %150 = sbr.rel (%p148) target = $region20
      $region19: #{_lambda_.8} parent=11 // pred_region
        _
      $region20: #{_lambda_.8} parent=11 // pred_fallthru
        _
    $region12: #{_lambda_.8} parent=5 // pred_fallthru
      _
    %p151 = scmp.lt.s32.totalorder %s10, 2
    // Predicated region
    $region21: #{_lambda_.8} parent=5 // pred_check
      %p152 = pneg %p151
    $region22: #{_lambda_.8} parent=5 // pred_check_branch
      %154 = sbr.rel (%p152) target = $region24
    $region23: #{_lambda_.8} parent=5 // pred_region
      // Predicated region
      $region25: #{_lambda_.8} parent=23 // pred_check
        %p155 = pneg %p30
      $region26: #{_lambda_.8} parent=23 // pred_check_branch
        %157 = sbr.rel (%p155) target = $region28
      $region27: #{_lambda_.8} parent=23 // pred_region
        %s158 = smul.u32 16, %s10
        %p159 = scmp.lt.s32.totalorder %s158, 31
        %s160 = scalar_select %p159, %s158, 31
        %s161 = smul.addr %s160, 4
        %s162 = scalar_lea.vmem %s0, %s161
        %s163 = smul.u32 16, %s10
      $region28: #{_lambda_.8} parent=23 // pred_fallthru
        _
      // Predicated region
      $region29: #{_lambda_.8} parent=23 // pred_check
        %p164 = pneg %p98
      $region30: #{_lambda_.8} parent=23 // pred_check_branch
        %166 = sbr.rel (%p164) target = $region32
      $region31: #{_lambda_.8} parent=23 // pred_region
        %s167 = smul.u32 16, %s10
        %p168 = scmp.lt.s32.totalorder %s167, 31
        %s169 = scalar_select %p168, %s167, 31
        %s170 = smul.addr %s169, 8
        %s171 = scalar_lea.vmem %s3, %s170
        %s172 = smul.u32 16, %s10
      $region32: #{_lambda_.8} parent=23 // pred_fallthru
        _
    $region24: #{_lambda_.8} parent=5 // pred_fallthru
      _
    %p173 = scmp.le.s32.totalorder 1, %s10
    %p174 = scmp.lt.s32.totalorder %s10, 3
    %p175 = pnand %p173, %p174
    %p176 = pneg %p175
    // Predicated region
    $region33: #{_lambda_.8} parent=5 // pred_check
      _
    $region34: #{_lambda_.8} parent=5 // pred_check_branch
      %178 = sbr.rel (%p175) target = $region36
    $region35: #{_lambda_.8} parent=5 // pred_region
      %s179 = ssub.s32 %s10, 1
      %s180 = smul.u32 16, %s15
      %p181 = scmp.lt.s32.totalorder %s180, 31
      %s182 = scalar_select %p181, %s180, 31
      %s183 = smul.addr %s182, 4
      %s184 = scalar_lea.vmem %s0, %s183
      %p185 = pneg %p36
      %p186 = pneg %p33
      %p187 = pneg %p57
      %p188 = pneg %p54
      %p189 = pneg %p78
      %p190 = pneg %p75
      %s191 = smul.u32 16, %s15
      %p192 = scmp.lt.s32.totalorder %s191, 31
      %s193 = scalar_select %p192, %s191, 31
      %s194 = smul.addr %s193, 8
      %s195 = scalar_lea.vmem %s3, %s194
      %p196 = pneg %p104
      %p197 = pneg %p101
      %p198 = pneg %p130
      %p199 = pneg %p127
      %s200 = smul.u32 16, %s15
      %p201 = scmp.lt.s32.totalorder %s200, 31
      %s202 = scalar_select %p201, %s200, 31
      %s203 = smul.addr %s202, 4
      %s204 = scalar_lea.vmem %s4, %s203
      %s205 = smul.u32 16, %s15
      %p206 = scmp.lt.s32.totalorder %s205, 31
      %s207 = scalar_select %p206, %s205, 31
      %s208 = smul.addr %s207, 4
      %s209 = scalar_lea.vmem %s0, %s208
      %s210 = smul.u32 16, %s15
      %s211 = smul.u32 16, %s15
      %p212 = scmp.lt.s32.totalorder %s211, 31
      %s213 = scalar_select %p212, %s211, 31
      %s214 = smul.addr %s213, 8
      %s215 = scalar_lea.vmem %s3, %s214
      %s216 = smul.u32 16, %s15
      %s217 = smul.u32 16, %s15
      %p218 = scmp.lt.s32.totalorder %s217, 31
      %s219 = scalar_select %p218, %s217, 31
      %s220 = smul.addr %s219, 4
      %s221 = scalar_lea.vmem %s4, %s220
      %s222 = smul.u32 16, %s15
      %v224 = vld [vmem:[%s209] sm:$0xf]
      %v225 = vld [vmem:[%s209 + $0x4] sm:$0xf]
      %v226 = vld [vmem:[%s209 + $0x8] sm:$0xf]
      %v227 = vld [vmem:[%s209 + $0xc] sm:$0xf]
      %v228 = vld [vmem:[%s209 + $0x10] sm:$0xf]
      %v229 = vld [vmem:[%s209 + $0x14] sm:$0xf]
      %v230 = vld [vmem:[%s209 + $0x18] sm:$0xf]
      %v231 = vld [vmem:[%s209 + $0x1c] sm:$0xf]
      %v232 = vld [vmem:[%s209 + $0x20] sm:$0xf]
      %v233 = vld [vmem:[%s209 + $0x24] sm:$0xf]
      %v234 = vld [vmem:[%s209 + $0x28] sm:$0xf]
      %v235 = vld [vmem:[%s209 + $0x2c] sm:$0xf]
      %v236 = vld [vmem:[%s209 + $0x30] sm:$0xf]
      %v237 = vld [vmem:[%s209 + $0x34] sm:$0xf]
      %v238 = vld [vmem:[%s209 + $0x38] sm:$0xf]
      %v239 = vld [vmem:[%s209 + $0x3c] sm:$0xf]
      %v240 = vld [vmem:[%s1] sm:$0xf]
      %v241 = vld [vmem:[%s1 + $0x4] sm:$0xf]
      %v242 = vld [vmem:[%s1 + $0x8] sm:$0xf]
      %v243 = vld [vmem:[%s1 + $0xc] sm:$0xf]
      %v244 = vld [vmem:[%s1 + $0x10] sm:$0xf]
      %v245 = vld [vmem:[%s1 + $0x14] sm:$0xf]
      %v246 = vld [vmem:[%s1 + $0x18] sm:$0xf]
      %v247 = vld [vmem:[%s1 + $0x1c] sm:$0xf]
      %v248 = vld [vmem:[%s1 + $0x20] sm:$0xf]
      %v249 = vld [vmem:[%s1 + $0x24] sm:$0xf]
      %v250 = vld [vmem:[%s1 + $0x28] sm:$0xf]
      %v251 = vld [vmem:[%s1 + $0x2c] sm:$0xf]
      %v252 = vld [vmem:[%s1 + $0x30] sm:$0xf]
      %v253 = vld [vmem:[%s1 + $0x34] sm:$0xf]
      %v254 = vld [vmem:[%s1 + $0x38] sm:$0xf]
      %v255 = vld [vmem:[%s1 + $0x3c] sm:$0xf]
      %v256 = vld [vmem:[%s2] sm:$0x1]
      %v258 = vlaneseq
      %v259 = vshrl.u32 %v258, 7
      %v260 = vsub.s32 0, %v259
      %v261 = vrot.slane %v256, %v260
      %v279 = vunpack.c.l.b16 %v224
      %v280 = vunpack.c.l.b16 %v225
      %v281 = vunpack.c.l.b16 %v226
      %v282 = vunpack.c.l.b16 %v227
      %v283 = vunpack.c.l.b16 %v228
      %v284 = vunpack.c.l.b16 %v229
      %v285 = vunpack.c.l.b16 %v230
      %v286 = vunpack.c.l.b16 %v231
      %v287 = vunpack.c.l.b16 %v232
      %v288 = vunpack.c.l.b16 %v233
      %v289 = vunpack.c.l.b16 %v234
      %v290 = vunpack.c.l.b16 %v235
      %v291 = vunpack.c.l.b16 %v236
      %v292 = vunpack.c.l.b16 %v237
      %v293 = vunpack.c.l.b16 %v238
      %v294 = vunpack.c.l.b16 %v239
      %v295 = vpack.c.b16 %v280, %v279
      %v296 = vpack.c.b16 %v282, %v281
      %v297 = vpack.c.b16 %v284, %v283
      %v298 = vpack.c.b16 %v286, %v285
      %v299 = vpack.c.b16 %v288, %v287
      %v300 = vpack.c.b16 %v290, %v289
      %v301 = vpack.c.b16 %v292, %v291
      %v302 = vpack.c.b16 %v294, %v293
      %v327 = vunpack.c.l.b16 %v240
      %v328 = vunpack.c.l.b16 %v241
      %v329 = vunpack.c.l.b16 %v242
      %v330 = vunpack.c.l.b16 %v243
      %v331 = vunpack.c.l.b16 %v244
      %v332 = vunpack.c.l.b16 %v245
      %v333 = vunpack.c.l.b16 %v246
      %v334 = vunpack.c.l.b16 %v247
      %v335 = vunpack.c.l.b16 %v248
      %v336 = vunpack.c.l.b16 %v249
      %v337 = vunpack.c.l.b16 %v250
      %v338 = vunpack.c.l.b16 %v251
      %v339 = vunpack.c.l.b16 %v252
      %v340 = vunpack.c.l.b16 %v253
      %v341 = vunpack.c.l.b16 %v254
      %v342 = vunpack.c.l.b16 %v255
      %v343 = vpack.c.b16 %v328, %v327
      %v344 = vpack.c.b16 %v330, %v329
      %v345 = vpack.c.b16 %v332, %v331
      %v346 = vpack.c.b16 %v334, %v333
      %v347 = vpack.c.b16 %v336, %v335
      %v348 = vpack.c.b16 %v338, %v337
      %v349 = vpack.c.b16 %v340, %v339
      %v350 = vpack.c.b16 %v342, %v341
      %359 = vmatprep.subr.bf16.mxu0 0
      %360 = vmatpush1.bf16.msra.mxu0 %v343
      %361 = vmatprep.subr.bf16.mxu0 0
      %362 = vmatpush1.bf16.msra.mxu0 %v344
      %363 = vmatprep.subr.bf16.mxu0 0
      %364 = vmatpush1.bf16.msra.mxu0 %v345
      %365 = vmatprep.subr.bf16.mxu0 0
      %366 = vmatpush1.bf16.msra.mxu0 %v346
      %367 = vmatprep.subr.bf16.mxu0 0
      %368 = vmatpush1.bf16.msra.mxu0 %v347
      %369 = vmatprep.subr.bf16.mxu0 0
      %370 = vmatpush1.bf16.msra.mxu0 %v348
      %371 = vmatprep.subr.bf16.mxu0 0
      %372 = vmatpush1.bf16.msra.mxu0 %v349
      %373 = vmatprep.subr.bf16.mxu0 0
      %374 = vmatpush1.bf16.msra.mxu0 %v350
      %375 = vmatprep.subr.bf16.mxu0 0
      %376 = vmatpush1.bf16.msra.mxu0 0
      %377 = vmatprep.subr.bf16.mxu0 0
      %378 = vmatpush1.bf16.msra.mxu0 0
      %379 = vmatprep.subr.bf16.mxu0 0
      %380 = vmatpush1.bf16.msra.mxu0 0
      %381 = vmatprep.subr.bf16.mxu0 0
      %382 = vmatpush1.bf16.msra.mxu0 0
      %383 = vmatprep.subr.bf16.mxu0 0
      %384 = vmatpush1.bf16.msra.mxu0 0
      %385 = vmatprep.subr.bf16.mxu0 0
      %386 = vmatpush1.bf16.msra.mxu0 0
      %387 = vmatprep.subr.bf16.mxu0 0
      %388 = vmatpush1.bf16.msra.mxu0 0
      %389 = vmatprep.subr.bf16.mxu0 0
      %390 = vmatpush1.bf16.msra.mxu0 0
      %391 = vmatprep.mubr.bf16.mxu0 0
      %392 = vmatmul.mubr.bf16.gmra.mrb[0].mxu0 %v295
      %v393 = vpop.f32.mrb[0].mxu0
      %v394 = vadd.f32 %v261, %v393
      %v395 = vpop.f32.mrb[0].mxu0
      %v396 = vpop.f32.mrb[0].mxu0
      %v397 = vadd.f32 %v261, %v396
      %v398 = vpop.f32.mrb[0].mxu0
      %399 = vmatprep.mubr.bf16.mxu0 0
      %400 = vmatmul.mubr.bf16.gmra.mrb[0].mxu0 %v296
      %v401 = vpop.f32.mrb[0].mxu0
      %v402 = vadd.f32 %v261, %v401
      %v403 = vpop.f32.mrb[0].mxu0
      %v404 = vpop.f32.mrb[0].mxu0
      %v405 = vadd.f32 %v261, %v404
      %v406 = vpop.f32.mrb[0].mxu0
      %407 = vmatprep.mubr.bf16.mxu0 0
      %408 = vmatmul.mubr.bf16.gmra.mrb[0].mxu0 %v297
      %v409 = vpop.f32.mrb[0].mxu0
      %v410 = vadd.f32 %v261, %v409
      %v411 = vpop.f32.mrb[0].mxu0
      %v412 = vpop.f32.mrb[0].mxu0
      %v413 = vadd.f32 %v261, %v412
      %v414 = vpop.f32.mrb[0].mxu0
      %415 = vmatprep.mubr.bf16.mxu0 0
      %416 = vmatmul.mubr.bf16.gmra.mrb[0].mxu0 %v298
      %v417 = vpop.f32.mrb[0].mxu0
      %v418 = vadd.f32 %v261, %v417
      %v419 = vpop.f32.mrb[0].mxu0
      %v420 = vpop.f32.mrb[0].mxu0
      %v421 = vadd.f32 %v261, %v420
      %v422 = vpop.f32.mrb[0].mxu0
      %423 = vmatprep.mubr.bf16.mxu0 0
      %424 = vmatmul.mubr.bf16.gmra.mrb[0].mxu0 %v299
      %v425 = vpop.f32.mrb[0].mxu0
      %v426 = vadd.f32 %v261, %v425
      %v427 = vpop.f32.mrb[0].mxu0
      %v428 = vpop.f32.mrb[0].mxu0
      %v429 = vadd.f32 %v261, %v428
      %v430 = vpop.f32.mrb[0].mxu0
      %431 = vmatprep.mubr.bf16.mxu0 0
      %432 = vmatmul.mubr.bf16.gmra.mrb[0].mxu0 %v300
      %v433 = vpop.f32.mrb[0].mxu0
      %v434 = vadd.f32 %v261, %v433
      %v435 = vpop.f32.mrb[0].mxu0
      %v436 = vpop.f32.mrb[0].mxu0
      %v437 = vadd.f32 %v261, %v436
      %v438 = vpop.f32.mrb[0].mxu0
      %439 = vmatprep.mubr.bf16.mxu0 0
      %440 = vmatmul.mubr.bf16.gmra.mrb[0].mxu0 %v301
      %v441 = vpop.f32.mrb[0].mxu0
      %v442 = vadd.f32 %v261, %v441
      %v443 = vpop.f32.mrb[0].mxu0
      %v444 = vpop.f32.mrb[0].mxu0
      %v445 = vadd.f32 %v261, %v444
      %v446 = vpop.f32.mrb[0].mxu0
      %447 = vmatprep.mubr.bf16.mxu0 0
      %448 = vmatmul.mubr.bf16.gmra.mrb[0].mxu0 %v302
      %v449 = vpop.f32.mrb[0].mxu0
      %v450 = vadd.f32 %v261, %v449
      %v451 = vpop.f32.mrb[0].mxu0
      %v452 = vpop.f32.mrb[0].mxu0
      %v453 = vadd.f32 %v261, %v452
      %v454 = vpop.f32.mrb[0].mxu0
      %455 = vdwg.mxu0
      %v456 = vld [vmem:[%s215] sm:$0xff]
      %v457 = vld [vmem:[%s215 + $0x8] sm:$0xff]
      %v458 = vld [vmem:[%s215 + $0x10] sm:$0xff]
      %v459 = vld [vmem:[%s215 + $0x18] sm:$0xff]
      %v460 = vld [vmem:[%s215 + $0x20] sm:$0xff]
      %v461 = vld [vmem:[%s215 + $0x28] sm:$0xff]
      %v462 = vld [vmem:[%s215 + $0x30] sm:$0xff]
      %v463 = vld [vmem:[%s215 + $0x38] sm:$0xff]
      %v464 = vld [vmem:[%s215 + $0x40] sm:$0xff]
      %v465 = vld [vmem:[%s215 + $0x48] sm:$0xff]
      %v466 = vld [vmem:[%s215 + $0x50] sm:$0xff]
      %v467 = vld [vmem:[%s215 + $0x58] sm:$0xff]
      %v468 = vld [vmem:[%s215 + $0x60] sm:$0xff]
      %v469 = vld [vmem:[%s215 + $0x68] sm:$0xff]
      %v470 = vld [vmem:[%s215 + $0x70] sm:$0xff]
      %v471 = vld [vmem:[%s215 + $0x78] sm:$0xff]
      %v472 = vadd.f32 %v394, %v456
      %v473 = vadd.f32 %v397, %v457
      %v474 = vadd.f32 %v402, %v458
      %v475 = vadd.f32 %v405, %v459
      %v476 = vadd.f32 %v410, %v460
      %v477 = vadd.f32 %v413, %v461
      %v478 = vadd.f32 %v418, %v462
      %v479 = vadd.f32 %v421, %v463
      %v480 = vadd.f32 %v426, %v464
      %v481 = vadd.f32 %v429, %v465
      %v482 = vadd.f32 %v434, %v466
      %v483 = vadd.f32 %v437, %v467
      %v484 = vadd.f32 %v442, %v468
      %v485 = vadd.f32 %v445, %v469
      %v486 = vadd.f32 %v450, %v470
      %v487 = vadd.f32 %v453, %v471
      %v488 = vmul.f32 %v472, 0.5
      %v489 = vmul.f32 %v473, 0.5
      %v490 = vmul.f32 %v474, 0.5
      %v491 = vmul.f32 %v475, 0.5
      %v492 = vmul.f32 %v476, 0.5
      %v493 = vmul.f32 %v477, 0.5
      %v494 = vmul.f32 %v478, 0.5
      %v495 = vmul.f32 %v479, 0.5
      %v496 = vmul.f32 %v480, 0.5
      %v497 = vmul.f32 %v481, 0.5
      %v498 = vmul.f32 %v482, 0.5
      %v499 = vmul.f32 %v483, 0.5
      %v500 = vmul.f32 %v484, 0.5
      %v501 = vmul.f32 %v485, 0.5
      %v502 = vmul.f32 %v486, 0.5
      %v503 = vmul.f32 %v487, 0.5
      %v504 = vmul.f32 %v472, 0.70710677
      %v505 = vmul.f32 %v473, 0.70710677
      %v506 = vmul.f32 %v474, 0.70710677
      %v507 = vmul.f32 %v475, 0.70710677
      %v508 = vmul.f32 %v476, 0.70710677
      %v509 = vmul.f32 %v477, 0.70710677
      %v510 = vmul.f32 %v478, 0.70710677
      %v511 = vmul.f32 %v479, 0.70710677
      %v512 = vmul.f32 %v480, 0.70710677
      %v513 = vmul.f32 %v481, 0.70710677
      %v514 = vmul.f32 %v482, 0.70710677
      %v515 = vmul.f32 %v483, 0.70710677
      %v516 = vmul.f32 %v484, 0.70710677
      %v517 = vmul.f32 %v485, 0.70710677
      %v518 = vmul.f32 %v486, 0.70710677
      %v519 = vmul.f32 %v487, 0.70710677
      %v520 = verf.f32.pop %v504
      %v521 = verf.f32.pop %v505
      %v522 = verf.f32.pop %v506
      %v523 = verf.f32.pop %v507
      %v524 = verf.f32.pop %v508
      %v525 = verf.f32.pop %v509
      %v526 = verf.f32.pop %v510
      %v527 = verf.f32.pop %v511
      %v528 = verf.f32.pop %v512
      %v529 = verf.f32.pop %v513
      %v530 = verf.f32.pop %v514
      %v531 = verf.f32.pop %v515
      %v532 = verf.f32.pop %v516
      %v533 = verf.f32.pop %v517
      %v534 = verf.f32.pop %v518
      %v535 = verf.f32.pop %v519
      %v536 = vadd.f32 %v520, 1.0
      %v537 = vadd.f32 %v521, 1.0
      %v538 = vadd.f32 %v522, 1.0
      %v539 = vadd.f32 %v523, 1.0
      %v540 = vadd.f32 %v524, 1.0
      %v541 = vadd.f32 %v525, 1.0
      %v542 = vadd.f32 %v526, 1.0
      %v543 = vadd.f32 %v527, 1.0
      %v544 = vadd.f32 %v528, 1.0
      %v545 = vadd.f32 %v529, 1.0
      %v546 = vadd.f32 %v530, 1.0
      %v547 = vadd.f32 %v531, 1.0
      %v548 = vadd.f32 %v532, 1.0
      %v549 = vadd.f32 %v533, 1.0
      %v550 = vadd.f32 %v534, 1.0
      %v551 = vadd.f32 %v535, 1.0
      %v552 = vmul.f32 %v488, %v536
      %v553 = vmul.f32 %v489, %v537
      %v554 = vmul.f32 %v490, %v538
      %v555 = vmul.f32 %v491, %v539
      %v556 = vmul.f32 %v492, %v540
      %v557 = vmul.f32 %v493, %v541
      %v558 = vmul.f32 %v494, %v542
      %v559 = vmul.f32 %v495, %v543
      %v560 = vmul.f32 %v496, %v544
      %v561 = vmul.f32 %v497, %v545
      %v562 = vmul.f32 %v498, %v546
      %v563 = vmul.f32 %v499, %v547
      %v564 = vmul.f32 %v500, %v548
      %v565 = vmul.f32 %v501, %v549
      %v566 = vmul.f32 %v502, %v550
      %v567 = vmul.f32 %v503, %v551
      %v568 = vpack.c.bf16 %v553, %v552
      %v569 = vpack.c.bf16 %v555, %v554
      %v570 = vpack.c.bf16 %v557, %v556
      %v571 = vpack.c.bf16 %v559, %v558
      %v572 = vpack.c.bf16 %v561, %v560
      %v573 = vpack.c.bf16 %v563, %v562
      %v574 = vpack.c.bf16 %v565, %v564
      %v575 = vpack.c.bf16 %v567, %v566
      %v584 = vunpack.c.l.b16 %v568
      %v585 = vunpack.c.h.b16 %v568
      %v586 = vunpack.c.l.b16 %v569
      %v587 = vunpack.c.h.b16 %v569
      %v588 = vunpack.c.l.b16 %v570
      %v589 = vunpack.c.h.b16 %v570
      %v590 = vunpack.c.l.b16 %v571
      %v591 = vunpack.c.h.b16 %v571
      %v592 = vunpack.c.l.b16 %v572
      %v593 = vunpack.c.h.b16 %v572
      %v594 = vunpack.c.l.b16 %v573
      %v595 = vunpack.c.h.b16 %v573
      %v596 = vunpack.c.l.b16 %v574
      %v597 = vunpack.c.h.b16 %v574
      %v598 = vunpack.c.l.b16 %v575
      %v599 = vunpack.c.h.b16 %v575
      %v600 = vpack.c.b16 %v584, %v584
      %v601 = vpack.c.b16 %v585, %v585
      %v602 = vpack.c.b16 %v586, %v586
      %v603 = vpack.c.b16 %v587, %v587
      %v604 = vpack.c.b16 %v588, %v588
      %v605 = vpack.c.b16 %v589, %v589
      %v606 = vpack.c.b16 %v590, %v590
      %v607 = vpack.c.b16 %v591, %v591
      %v608 = vpack.c.b16 %v592, %v592
      %v609 = vpack.c.b16 %v593, %v593
      %v610 = vpack.c.b16 %v594, %v594
      %v611 = vpack.c.b16 %v595, %v595
      %v612 = vpack.c.b16 %v596, %v596
      %v613 = vpack.c.b16 %v597, %v597
      %v614 = vpack.c.b16 %v598, %v598
      %v615 = vpack.c.b16 %v599, %v599
      %632 = vst [vmem:[%s221] sm:$0xf] %v600
      %633 = vst [vmem:[%s221 + $0x4] sm:$0xf] %v601
      %634 = vst [vmem:[%s221 + $0x8] sm:$0xf] %v602
      %635 = vst [vmem:[%s221 + $0xc] sm:$0xf] %v603
      %636 = vst [vmem:[%s221 + $0x10] sm:$0xf] %v604
      %637 = vst [vmem:[%s221 + $0x14] sm:$0xf] %v605
      %638 = vst [vmem:[%s221 + $0x18] sm:$0xf] %v606
      %639 = vst [vmem:[%s221 + $0x1c] sm:$0xf] %v607
      %640 = vst [vmem:[%s221 + $0x20] sm:$0xf] %v608
      %641 = vst [vmem:[%s221 + $0x24] sm:$0xf] %v609
      %642 = vst [vmem:[%s221 + $0x28] sm:$0xf] %v610
      %643 = vst [vmem:[%s221 + $0x2c] sm:$0xf] %v611
      %644 = vst [vmem:[%s221 + $0x30] sm:$0xf] %v612
      %645 = vst [vmem:[%s221 + $0x34] sm:$0xf] %v613
      %646 = vst [vmem:[%s221 + $0x38] sm:$0xf] %v614
      %647 = vst [vmem:[%s221 + $0x3c] sm:$0xf] %v615
      %s648 = smul.u32 16, %s15
      %p649 = scmp.lt.s32.totalorder %s648, 31
      %s650 = scalar_select %p649, %s648, 31
      %s651 = smul.addr %s650, 4
      %s652 = scalar_lea.vmem %s4, %s651
      // Predicated region
      $region37: #{_lambda_.8} parent=35 // pred_check
        %p653 = pneg %p127
      $region38: #{_lambda_.8} parent=35 // pred_check_branch
        %655 = sbr.rel (%p653) target = $region40
      $region39: #{_lambda_.8} parent=35 // pred_region
        %s656 = smul.u32 16, %s15
      $region40: #{_lambda_.8} parent=35 // pred_fallthru
        _
    $region36: #{_lambda_.8} parent=5 // pred_fallthru
      _
    %p657 = scmp.le.s32.totalorder 2, %s10
    // Predicated region
    $region41: #{_lambda_.8} parent=5 // pred_check
      %p658 = pneg %p657
    $region42: #{_lambda_.8} parent=5 // pred_check_branch
      %660 = sbr.rel (%p658) target = $region44
    $region43: #{_lambda_.8} parent=5 // pred_region
      %s661 = ssub.s32 %s10, 2
      // Predicated region
      $region45: #{_lambda_.8} parent=43 // pred_check
        %p662 = pneg %p133
      $region46: #{_lambda_.8} parent=43 // pred_check_branch
        %664 = sbr.rel (%p662) target = $region48
      $region47: #{_lambda_.8} parent=43 // pred_region
        %s665 = smul.u32 16, %s16
        %p666 = scmp.lt.s32.totalorder %s665, 31
        %s667 = scalar_select %p666, %s665, 31
        %s668 = smul.addr %s667, 4
        %s669 = scalar_lea.vmem %s4, %s668
      $region48: #{_lambda_.8} parent=43 // pred_fallthru
        _
    $region44: #{_lambda_.8} parent=5 // pred_fallthru
      _
  $region6: #{_lambda_.8} parent=0 // loop_footer
    %s14 = sadd.s32 1, %s10
  $region7: #{_lambda_.8} parent=0 // loop_footer_branch
    %9 = sbr.rel target = $region3
  $region8: #{_lambda_.8} parent=0 // loop_exit
    _

// kernel: _lambda_.10
$region0: #{_lambda_.10}
  #allocation0 [shape = 'u32[]', space=smem, size = 0x4, offset = 0x4, fixed_abs, tag = 'smem constant byte address 0x4 - core index']
  #allocation1 [shape = 'u32[144,128]{1,0:T(1,128)}', space=vmem, size = 0x12000, scoped, tag = 'internal scratch']
  %s0 = inlined_call_operand.vmem [shape: bf16[256,128], index: 0, kind: input, shape index: {}]
  %s1 = inlined_call_operand.vmem [shape: bf16[128,128], index: 1, kind: input, shape index: {}]
  %s2 = inlined_call_operand.vmem [shape: f32[1,128], index: 2, kind: input, shape index: {}]
  %s3 = inlined_call_operand.vmem [shape: f32[256,128], index: 3, kind: input, shape index: {}]
  %s4 = inlined_call_operand.vmem [shape: bf16[256,128], index: 4, kind: output, shape index: {}]
  %s5 = sld [smem:[#allocation0]]
  $region49: #{_lambda_.10} parent=0
    _
  %s7 = ssub.s32 1, %s5
  %s8 = scalar_select 0, %s7, %s5
  loop: start=0, step=1, limit=4
  $region2: #{_lambda_.10} parent=0 // loop_pre_header
    _
  $region3: #{_lambda_.10} parent=0 // loop_header
    %s10 = sphi 0, %s14
    %p11 = scmp.ge.s32.totalorder %s10, 4
    %s20 = sphi 0, %s22
    %s23 = sphi 0, %s20
    %s24 = sphi 0, %s23
    %s40 = sphi 0, %s24
    %s44 = sphi 0, %s44
    %s46 = sphi 0, %s44
    %s47 = sphi 0, %s46
    %s61 = sphi 0, %s47
    %s65 = sphi 0, %s65
    %s67 = sphi 0, %s65
    %s68 = sphi 0, %s67
    %s82 = sphi 0, %s68
    %s88 = sphi 0, %s90
    %s91 = sphi 0, %s88
    %s92 = sphi 0, %s91
    %s108 = sphi 0, %s92
    %s114 = sphi 0, %s116
    %s117 = sphi 0, %s114
    %s118 = sphi 0, %s117
    %s134 = sphi 0, %s118
  $region4: #{_lambda_.10} parent=0 // loop_header_branch
    %13 = sbr.rel (%p11) target = $region8
  $region5: #{_lambda_.10} parent=0 // loop_body
    %s15 = ssub.s32 %s10, 1
    %s16 = ssub.s32 %s10, 2
    %s17 = sadd.s32 %s10, 1
    %s18 = ssub.s32 %s10, %s17
    %p19 = scmp.eq.s32.totalorder %s18, 0
    %s21 = sadd.s32 %s20, 1
    %s22 = scalar_select %p19, %s20, %s21
    %p25 = pneg %p19
    %p26 = scmp.eq.s32.totalorder %s10, 1
    %p27 = por %p25, %p26
    %p28 = scmp.ne.s32.totalorder %s20, %s23
    %p29 = scmp.eq.s32.totalorder %s10, 0
    %p30 = por %p28, %p29
    %p31 = scmp.ne.s32.totalorder %s20, %s23
    %p32 = scmp.eq.s32.totalorder %s15, 1
    %p33 = por %p31, %p32
    %p34 = scmp.ne.s32.totalorder %s23, %s24
    %p35 = scmp.eq.s32.totalorder %s15, 0
    %p36 = por %p34, %p35
    %p37 = scmp.ne.s32.totalorder %s23, %s24
    %p38 = scmp.eq.s32.totalorder %s16, 1
    %p39 = por %p37, %p38
    %p41 = scmp.ne.s32.totalorder %s24, %s40
    %p42 = scmp.eq.s32.totalorder %s16, 0
    %p43 = por %p41, %p42
    %s45 = sadd.s32 %s44, 1
    %p48 = scmp.eq.s32.totalorder %s10, 1
    %p49 = scmp.ne.s32.totalorder %s44, %s46
    %p50 = scmp.eq.s32.totalorder %s10, 0
    %p51 = por %p49, %p50
    %p52 = scmp.ne.s32.totalorder %s44, %s46
    %p53 = scmp.eq.s32.totalorder %s15, 1
    %p54 = por %p52, %p53
    %p55 = scmp.ne.s32.totalorder %s46, %s47
    %p56 = scmp.eq.s32.totalorder %s15, 0
    %p57 = por %p55, %p56
    %p58 = scmp.ne.s32.totalorder %s46, %s47
    %p59 = scmp.eq.s32.totalorder %s16, 1
    %p60 = por %p58, %p59
    %p62 = scmp.ne.s32.totalorder %s47, %s61
    %p63 = scmp.eq.s32.totalorder %s16, 0
    %p64 = por %p62, %p63
    %s66 = sadd.s32 %s65, 1
    %p69 = scmp.eq.s32.totalorder %s10, 1
    %p70 = scmp.ne.s32.totalorder %s65, %s67
    %p71 = scmp.eq.s32.totalorder %s10, 0
    %p72 = por %p70, %p71
    %p73 = scmp.ne.s32.totalorder %s65, %s67
    %p74 = scmp.eq.s32.totalorder %s15, 1
    %p75 = por %p73, %p74
    %p76 = scmp.ne.s32.totalorder %s67, %s68
    %p77 = scmp.eq.s32.totalorder %s15, 0
    %p78 = por %p76, %p77
    %p79 = scmp.ne.s32.totalorder %s67, %s68
    %p80 = scmp.eq.s32.totalorder %s16, 1
    %p81 = por %p79, %p80
    %p83 = scmp.ne.s32.totalorder %s68, %s82
    %p84 = scmp.eq.s32.totalorder %s16, 0
    %p85 = por %p83, %p84
    %s86 = ssub.s32 %s10, %s17
    %p87 = scmp.eq.s32.totalorder %s86, 0
    %s89 = sadd.s32 %s88, 1
    %s90 = scalar_select %p87, %s88, %s89
    %p93 = pneg %p87
    %p94 = scmp.eq.s32.totalorder %s10, 1
    %p95 = por %p93, %p94
    %p96 = scmp.ne.s32.totalorder %s88, %s91
    %p97 = scmp.eq.s32.totalorder %s10, 0
    %p98 = por %p96, %p97
    %p99 = scmp.ne.s32.totalorder %s88, %s91
    %p100 = scmp.eq.s32.totalorder %s15, 1
    %p101 = por %p99, %p100
    %p102 = scmp.ne.s32.totalorder %s91, %s92
    %p103 = scmp.eq.s32.totalorder %s15, 0
    %p104 = por %p102, %p103
    %p105 = scmp.ne.s32.totalorder %s91, %s92
    %p106 = scmp.eq.s32.totalorder %s16, 1
    %p107 = por %p105, %p106
    %p109 = scmp.ne.s32.totalorder %s92, %s108
    %p110 = scmp.eq.s32.totalorder %s16, 0
    %p111 = por %p109, %p110
    %s112 = ssub.s32 %s10, %s17
    %p113 = scmp.eq.s32.totalorder %s112, 0
    %s115 = sadd.s32 %s114, 1
    %s116 = scalar_select %p113, %s114, %s115
    %p119 = pneg %p113
    %p120 = scmp.eq.s32.totalorder %s10, 1
    %p121 = por %p119, %p120
    %p122 = scmp.ne.s32.totalorder %s114, %s117
    %p123 = scmp.eq.s32.totalorder %s10, 0
    %p124 = por %p122, %p123
    %p125 = scmp.ne.s32.totalorder %s114, %s117
    %p126 = scmp.eq.s32.totalorder %s15, 1
    %p127 = por %p125, %p126
    %p128 = scmp.ne.s32.totalorder %s117, %s118
    %p129 = scmp.eq.s32.totalorder %s15, 0
    %p130 = por %p128, %p129
    %p131 = scmp.ne.s32.totalorder %s117, %s118
    %p132 = scmp.eq.s32.totalorder %s16, 1
    %p133 = por %p131, %p132
    %p135 = scmp.ne.s32.totalorder %s118, %s134
    %p136 = scmp.eq.s32.totalorder %s16, 0
    %p137 = por %p135, %p136
    %p138 = scmp.le.s32.totalorder 1, %s10
    %p139 = scmp.lt.s32.totalorder %s10, 3
    %p140 = pnand %p138, %p139
    %p141 = pneg %p140
    // Predicated region
    $region9: #{_lambda_.10} parent=5 // pred_check
      _
    $region10: #{_lambda_.10} parent=5 // pred_check_branch
      %143 = sbr.rel (%p140) target = $region12
    $region11: #{_lambda_.10} parent=5 // pred_region
      %s144 = ssub.s32 %s10, 1
      // Predicated region
      $region13: #{_lambda_.10} parent=11 // pred_check
        %p145 = pneg %p57
      $region14: #{_lambda_.10} parent=11 // pred_check_branch
        %147 = sbr.rel (%p145) target = $region16
      $region15: #{_lambda_.10} parent=11 // pred_region
        _
      $region16: #{_lambda_.10} parent=11 // pred_fallthru
        _
      // Predicated region
      $region17: #{_lambda_.10} parent=11 // pred_check
        %p148 = pneg %p78
      $region18: #{_lambda_.10} parent=11 // pred_check_branch
        %150 = sbr.rel (%p148) target = $region20
      $region19: #{_lambda_.10} parent=11 // pred_region
        _
      $region20: #{_lambda_.10} parent=11 // pred_fallthru
        _
    $region12: #{_lambda_.10} parent=5 // pred_fallthru
      _
    %p151 = scmp.lt.s32.totalorder %s10, 2
    // Predicated region
    $region21: #{_lambda_.10} parent=5 // pred_check
      %p152 = pneg %p151
    $region22: #{_lambda_.10} parent=5 // pred_check_branch
      %154 = sbr.rel (%p152) target = $region24
    $region23: #{_lambda_.10} parent=5 // pred_region
      // Predicated region
      $region25: #{_lambda_.10} parent=23 // pred_check
        %p155 = pneg %p30
      $region26: #{_lambda_.10} parent=23 // pred_check_branch
        %157 = sbr.rel (%p155) target = $region28
      $region27: #{_lambda_.10} parent=23 // pred_region
        %s158 = smul.u32 16, %s10
        %p159 = scmp.lt.s32.totalorder %s158, 31
        %s160 = scalar_select %p159, %s158, 31
        %s161 = smul.addr %s160, 4
        %s162 = scalar_lea.vmem %s0, %s161
        %s163 = smul.u32 16, %s10
      $region28: #{_lambda_.10} parent=23 // pred_fallthru
        _
      // Predicated region
      $region29: #{_lambda_.10} parent=23 // pred_check
        %p164 = pneg %p98
      $region30: #{_lambda_.10} parent=23 // pred_check_branch
        %166 = sbr.rel (%p164) target = $region32
      $region31: #{_lambda_.10} parent=23 // pred_region
        %s167 = smul.u32 16, %s10
        %p168 = scmp.lt.s32.totalorder %s167, 31
        %s169 = scalar_select %p168, %s167, 31
        %s170 = smul.addr %s169, 8
        %s171 = scalar_lea.vmem %s3, %s170
        %s172 = smul.u32 16, %s10
      $region32: #{_lambda_.10} parent=23 // pred_fallthru
        _
    $region24: #{_lambda_.10} parent=5 // pred_fallthru
      _
    %p173 = scmp.le.s32.totalorder 1, %s10
    %p174 = scmp.lt.s32.totalorder %s10, 3
    %p175 = pnand %p173, %p174
    %p176 = pneg %p175
    // Predicated region
    $region33: #{_lambda_.10} parent=5 // pred_check
      _
    $region34: #{_lambda_.10} parent=5 // pred_check_branch
      %178 = sbr.rel (%p175) target = $region36
    $region35: #{_lambda_.10} parent=5 // pred_region
      %s179 = ssub.s32 %s10, 1
      %s180 = smul.u32 16, %s15
      %p181 = scmp.lt.s32.totalorder %s180, 31
      %s182 = scalar_select %p181, %s180, 31
      %s183 = smul.addr %s182, 4
      %s184 = scalar_lea.vmem %s0, %s183
      %p185 = pneg %p36
      %p186 = pneg %p33
      %p187 = pneg %p57
      %p188 = pneg %p54
      %p189 = pneg %p78
      %p190 = pneg %p75
      %s191 = smul.u32 16, %s15
      %p192 = scmp.lt.s32.totalorder %s191, 31
      %s193 = scalar_select %p192, %s191, 31
      %s194 = smul.addr %s193, 8
      %s195 = scalar_lea.vmem %s3, %s194
      %p196 = pneg %p104
      %p197 = pneg %p101
      %p198 = pneg %p130
      %p199 = pneg %p127
      %s200 = smul.u32 16, %s15
      %p201 = scmp.lt.s32.totalorder %s200, 31
      %s202 = scalar_select %p201, %s200, 31
      %s203 = smul.addr %s202, 4
      %s204 = scalar_lea.vmem %s4, %s203
      %s205 = smul.u32 16, %s15
      %p206 = scmp.lt.s32.totalorder %s205, 31
      %s207 = scalar_select %p206, %s205, 31
      %s208 = smul.addr %s207, 4
      %s209 = scalar_lea.vmem %s0, %s208
      %s210 = smul.u32 16, %s15
      %s211 = smul.u32 16, %s15
      %p212 = scmp.lt.s32.totalorder %s211, 31
      %s213 = scalar_select %p212, %s211, 31
      %s214 = smul.addr %s213, 8
      %s215 = scalar_lea.vmem %s3, %s214
      %s216 = smul.u32 16, %s15
      %s217 = smul.u32 16, %s15
      %p218 = scmp.lt.s32.totalorder %s217, 31
      %s219 = scalar_select %p218, %s217, 31
      %s220 = smul.addr %s219, 4
      %s221 = scalar_lea.vmem %s4, %s220
      %s222 = smul.u32 16, %s15
      %v224 = vld [vmem:[%s209] sm:$0xf]
      %v225 = vld [vmem:[%s209 + $0x4] sm:$0xf]
      %v226 = vld [vmem:[%s209 + $0x8] sm:$0xf]
      %v227 = vld [vmem:[%s209 + $0xc] sm:$0xf]
      %v228 = vld [vmem:[%s209 + $0x10] sm:$0xf]
      %v229 = vld [vmem:[%s209 + $0x14] sm:$0xf]
      %v230 = vld [vmem:[%s209 + $0x18] sm:$0xf]
      %v231 = vld [vmem:[%s209 + $0x1c] sm:$0xf]
      %v232 = vld [vmem:[%s209 + $0x20] sm:$0xf]
      %v233 = vld [vmem:[%s209 + $0x24] sm:$0xf]
      %v234 = vld [vmem:[%s209 + $0x28] sm:$0xf]
      %v235 = vld [vmem:[%s209 + $0x2c] sm:$0xf]
      %v236 = vld [vmem:[%s209 + $0x30] sm:$0xf]
      %v237 = vld [vmem:[%s209 + $0x34] sm:$0xf]
      %v238 = vld [vmem:[%s209 + $0x38] sm:$0xf]
      %v239 = vld [vmem:[%s209 + $0x3c] sm:$0xf]
      %v240 = vld [vmem:[%s1] sm:$0xf]
      %v241 = vld [vmem:[%s1 + $0x4] sm:$0xf]
      %v242 = vld [vmem:[%s1 + $0x8] sm:$0xf]
      %v243 = vld [vmem:[%s1 + $0xc] sm:$0xf]
      %v244 = vld [vmem:[%s1 + $0x10] sm:$0xf]
      %v245 = vld [vmem:[%s1 + $0x14] sm:$0xf]
      %v246 = vld [vmem:[%s1 + $0x18] sm:$0xf]
      %v247 = vld [vmem:[%s1 + $0x1c] sm:$0xf]
      %v248 = vld [vmem:[%s1 + $0x20] sm:$0xf]
      %v249 = vld [vmem:[%s1 + $0x24] sm:$0xf]
      %v250 = vld [vmem:[%s1 + $0x28] sm:$0xf]
      %v251 = vld [vmem:[%s1 + $0x2c] sm:$0xf]
      %v252 = vld [vmem:[%s1 + $0x30] sm:$0xf]
      %v253 = vld [vmem:[%s1 + $0x34] sm:$0xf]
      %v254 = vld [vmem:[%s1 + $0x38] sm:$0xf]
      %v255 = vld [vmem:[%s1 + $0x3c] sm:$0xf]
      %v256 = vld [vmem:[%s2] sm:$0x1]
      %v258 = vlaneseq
      %v259 = vshrl.u32 %v258, 7
      %v260 = vsub.s32 0, %v259
      %v261 = vrot.slane %v256, %v260
      %v279 = vunpack.c.l.b16 %v224
      %v280 = vunpack.c.l.b16 %v225
      %v281 = vunpack.c.l.b16 %v226
      %v282 = vunpack.c.l.b16 %v227
      %v283 = vunpack.c.l.b16 %v228
      %v284 = vunpack.c.l.b16 %v229
      %v285 = vunpack.c.l.b16 %v230
      %v286 = vunpack.c.l.b16 %v231
      %v287 = vunpack.c.l.b16 %v232
      %v288 = vunpack.c.l.b16 %v233
      %v289 = vunpack.c.l.b16 %v234
      %v290 = vunpack.c.l.b16 %v235
      %v291 = vunpack.c.l.b16 %v236
      %v292 = vunpack.c.l.b16 %v237
      %v293 = vunpack.c.l.b16 %v238
      %v294 = vunpack.c.l.b16 %v239
      %v295 = vpack.c.b16 %v280, %v279
      %v296 = vpack.c.b16 %v282, %v281
      %v297 = vpack.c.b16 %v284, %v283
      %v298 = vpack.c.b16 %v286, %v285
      %v299 = vpack.c.b16 %v288, %v287
      %v300 = vpack.c.b16 %v290, %v289
      %v301 = vpack.c.b16 %v292, %v291
      %v302 = vpack.c.b16 %v294, %v293
      %v327 = vunpack.c.l.b16 %v240
      %v328 = vunpack.c.l.b16 %v241
      %v329 = vunpack.c.l.b16 %v242
      %v330 = vunpack.c.l.b16 %v243
      %v331 = vunpack.c.l.b16 %v244
      %v332 = vunpack.c.l.b16 %v245
      %v333 = vunpack.c.l.b16 %v246
      %v334 = vunpack.c.l.b16 %v247
      %v335 = vunpack.c.l.b16 %v248
      %v336 = vunpack.c.l.b16 %v249
      %v337 = vunpack.c.l.b16 %v250
      %v338 = vunpack.c.l.b16 %v251
      %v339 = vunpack.c.l.b16 %v252
      %v340 = vunpack.c.l.b16 %v253
      %v341 = vunpack.c.l.b16 %v254
      %v342 = vunpack.c.l.b16 %v255
      %v343 = vpack.c.b16 %v328, %v327
      %v344 = vpack.c.b16 %v330, %v329
      %v345 = vpack.c.b16 %v332, %v331
      %v346 = vpack.c.b16 %v334, %v333
      %v347 = vpack.c.b16 %v336, %v335
      %v348 = vpack.c.b16 %v338, %v337
      %v349 = vpack.c.b16 %v340, %v339
      %v350 = vpack.c.b16 %v342, %v341
      %359 = vmatprep.subr.bf16.mxu0 0
      %360 = vmatpush1.bf16.msra.mxu0 %v343
      %361 = vmatprep.subr.bf16.mxu0 0
      %362 = vmatpush1.bf16.msra.mxu0 %v344
      %363 = vmatprep.subr.bf16.mxu0 0
      %364 = vmatpush1.bf16.msra.mxu0 %v345
      %365 = vmatprep.subr.bf16.mxu0 0
      %366 = vmatpush1.bf16.msra.mxu0 %v346
      %367 = vmatprep.subr.bf16.mxu0 0
      %368 = vmatpush1.bf16.msra.mxu0 %v347
      %369 = vmatprep.subr.bf16.mxu0 0
      %370 = vmatpush1.bf16.msra.mxu0 %v348
      %371 = vmatprep.subr.bf16.mxu0 0
      %372 = vmatpush1.bf16.msra.mxu0 %v349
      %373 = vmatprep.subr.bf16.mxu0 0
      %374 = vmatpush1.bf16.msra.mxu0 %v350
      %375 = vmatprep.subr.bf16.mxu0 0
      %376 = vmatpush1.bf16.msra.mxu0 0
      %377 = vmatprep.subr.bf16.mxu0 0
      %378 = vmatpush1.bf16.msra.mxu0 0
      %379 = vmatprep.subr.bf16.mxu0 0
      %380 = vmatpush1.bf16.msra.mxu0 0
      %381 = vmatprep.subr.bf16.mxu0 0
      %382 = vmatpush1.bf16.msra.mxu0 0
      %383 = vmatprep.subr.bf16.mxu0 0
      %384 = vmatpush1.bf16.msra.mxu0 0
      %385 = vmatprep.subr.bf16.mxu0 0
      %386 = vmatpush1.bf16.msra.mxu0 0
      %387 = vmatprep.subr.bf16.mxu0 0
      %388 = vmatpush1.bf16.msra.mxu0 0
      %389 = vmatprep.subr.bf16.mxu0 0
      %390 = vmatpush1.bf16.msra.mxu0 0
      %391 = vmatprep.mubr.bf16.mxu0 0
      %392 = vmatmul.mubr.bf16.gmra.mrb[0].mxu0 %v295
      %v393 = vpop.f32.mrb[0].mxu0
      %v394 = vadd.f32 %v261, %v393
      %v395 = vpop.f32.mrb[0].mxu0
      %v396 = vpop.f32.mrb[0].mxu0
      %v397 = vadd.f32 %v261, %v396
      %v398 = vpop.f32.mrb[0].mxu0
      %399 = vmatprep.mubr.bf16.mxu0 0
      %400 = vmatmul.mubr.bf16.gmra.mrb[0].mxu0 %v296
      %v401 = vpop.f32.mrb[0].mxu0
      %v402 = vadd.f32 %v261, %v401
      %v403 = vpop.f32.mrb[0].mxu0
      %v404 = vpop.f32.mrb[0].mxu0
      %v405 = vadd.f32 %v261, %v404
      %v406 = vpop.f32.mrb[0].mxu0
      %407 = vmatprep.mubr.bf16.mxu0 0
      %408 = vmatmul.mubr.bf16.gmra.mrb[0].mxu0 %v297
      %v409 = vpop.f32.mrb[0].mxu0
      %v410 = vadd.f32 %v261, %v409
      %v411 = vpop.f32.mrb[0].mxu0
      %v412 = vpop.f32.mrb[0].mxu0
      %v413 = vadd.f32 %v261, %v412
      %v414 = vpop.f32.mrb[0].mxu0
      %415 = vmatprep.mubr.bf16.mxu0 0
      %416 = vmatmul.mubr.bf16.gmra.mrb[0].mxu0 %v298
      %v417 = vpop.f32.mrb[0].mxu0
      %v418 = vadd.f32 %v261, %v417
      %v419 = vpop.f32.mrb[0].mxu0
      %v420 = vpop.f32.mrb[0].mxu0
      %v421 = vadd.f32 %v261, %v420
      %v422 = vpop.f32.mrb[0].mxu0
      %423 = vmatprep.mubr.bf16.mxu0 0
      %424 = vmatmul.mubr.bf16.gmra.mrb[0].mxu0 %v299
      %v425 = vpop.f32.mrb[0].mxu0
      %v426 = vadd.f32 %v261, %v425
      %v427 = vpop.f32.mrb[0].mxu0
      %v428 = vpop.f32.mrb[0].mxu0
      %v429 = vadd.f32 %v261, %v428
      %v430 = vpop.f32.mrb[0].mxu0
      %431 = vmatprep.mubr.bf16.mxu0 0
      %432 = vmatmul.mubr.bf16.gmra.mrb[0].mxu0 %v300
      %v433 = vpop.f32.mrb[0].mxu0
      %v434 = vadd.f32 %v261, %v433
      %v435 = vpop.f32.mrb[0].mxu0
      %v436 = vpop.f32.mrb[0].mxu0
      %v437 = vadd.f32 %v261, %v436
      %v438 = vpop.f32.mrb[0].mxu0
      %439 = vmatprep.mubr.bf16.mxu0 0
      %440 = vmatmul.mubr.bf16.gmra.mrb[0].mxu0 %v301
      %v441 = vpop.f32.mrb[0].mxu0
      %v442 = vadd.f32 %v261, %v441
      %v443 = vpop.f32.mrb[0].mxu0
      %v444 = vpop.f32.mrb[0].mxu0
      %v445 = vadd.f32 %v261, %v444
      %v446 = vpop.f32.mrb[0].mxu0
      %447 = vmatprep.mubr.bf16.mxu0 0
      %448 = vmatmul.mubr.bf16.gmra.mrb[0].mxu0 %v302
      %v449 = vpop.f32.mrb[0].mxu0
      %v450 = vadd.f32 %v261, %v449
      %v451 = vpop.f32.mrb[0].mxu0
      %v452 = vpop.f32.mrb[0].mxu0
      %v453 = vadd.f32 %v261, %v452
      %v454 = vpop.f32.mrb[0].mxu0
      %455 = vdwg.mxu0
      %v456 = vld [vmem:[%s215] sm:$0xff]
      %v457 = vld [vmem:[%s215 + $0x8] sm:$0xff]
      %v458 = vld [vmem:[%s215 + $0x10] sm:$0xff]
      %v459 = vld [vmem:[%s215 + $0x18] sm:$0xff]
      %v460 = vld [vmem:[%s215 + $0x20] sm:$0xff]
      %v461 = vld [vmem:[%s215 + $0x28] sm:$0xff]
      %v462 = vld [vmem:[%s215 + $0x30] sm:$0xff]
      %v463 = vld [vmem:[%s215 + $0x38] sm:$0xff]
      %v464 = vld [vmem:[%s215 + $0x40] sm:$0xff]
      %v465 = vld [vmem:[%s215 + $0x48] sm:$0xff]
      %v466 = vld [vmem:[%s215 + $0x50] sm:$0xff]
      %v467 = vld [vmem:[%s215 + $0x58] sm:$0xff]
      %v468 = vld [vmem:[%s215 + $0x60] sm:$0xff]
      %v469 = vld [vmem:[%s215 + $0x68] sm:$0xff]
      %v470 = vld [vmem:[%s215 + $0x70] sm:$0xff]
      %v471 = vld [vmem:[%s215 + $0x78] sm:$0xff]
      %v472 = vadd.f32 %v394, %v456
      %v473 = vadd.f32 %v397, %v457
      %v474 = vadd.f32 %v402, %v458
      %v475 = vadd.f32 %v405, %v459
      %v476 = vadd.f32 %v410, %v460
      %v477 = vadd.f32 %v413, %v461
      %v478 = vadd.f32 %v418, %v462
      %v479 = vadd.f32 %v421, %v463
      %v480 = vadd.f32 %v426, %v464
      %v481 = vadd.f32 %v429, %v465
      %v482 = vadd.f32 %v434, %v466
      %v483 = vadd.f32 %v437, %v467
      %v484 = vadd.f32 %v442, %v468
      %v485 = vadd.f32 %v445, %v469
      %v486 = vadd.f32 %v450, %v470
      %v487 = vadd.f32 %v453, %v471
      %v488 = vpack.c.bf16 %v473, %v472
      %v489 = vpack.c.bf16 %v475, %v474
      %v490 = vpack.c.bf16 %v477, %v476
      %v491 = vpack.c.bf16 %v479, %v478
      %v492 = vpack.c.bf16 %v481, %v480
      %v493 = vpack.c.bf16 %v483, %v482
      %v494 = vpack.c.bf16 %v485, %v484
      %v495 = vpack.c.bf16 %v487, %v486
      %v504 = vunpack.c.l.b16 %v488
      %v505 = vunpack.c.h.b16 %v488
      %v506 = vunpack.c.l.b16 %v489
      %v507 = vunpack.c.h.b16 %v489
      %v508 = vunpack.c.l.b16 %v490
      %v509 = vunpack.c.h.b16 %v490
      %v510 = vunpack.c.l.b16 %v491
      %v511 = vunpack.c.h.b16 %v491
      %v512 = vunpack.c.l.b16 %v492
      %v513 = vunpack.c.h.b16 %v492
      %v514 = vunpack.c.l.b16 %v493
      %v515 = vunpack.c.h.b16 %v493
      %v516 = vunpack.c.l.b16 %v494
      %v517 = vunpack.c.h.b16 %v494
      %v518 = vunpack.c.l.b16 %v495
      %v519 = vunpack.c.h.b16 %v495
      %v520 = vpack.c.b16 %v504, %v504
      %v521 = vpack.c.b16 %v505, %v505
      %v522 = vpack.c.b16 %v506, %v506
      %v523 = vpack.c.b16 %v507, %v507
      %v524 = vpack.c.b16 %v508, %v508
      %v525 = vpack.c.b16 %v509, %v509
      %v526 = vpack.c.b16 %v510, %v510
      %v527 = vpack.c.b16 %v511, %v511
      %v528 = vpack.c.b16 %v512, %v512
      %v529 = vpack.c.b16 %v513, %v513
      %v530 = vpack.c.b16 %v514, %v514
      %v531 = vpack.c.b16 %v515, %v515
      %v532 = vpack.c.b16 %v516, %v516
      %v533 = vpack.c.b16 %v517, %v517
      %v534 = vpack.c.b16 %v518, %v518
      %v535 = vpack.c.b16 %v519, %v519
      %552 = vst [vmem:[%s221] sm:$0xf] %v520
      %553 = vst [vmem:[%s221 + $0x4] sm:$0xf] %v521
      %554 = vst [vmem:[%s221 + $0x8] sm:$0xf] %v522
      %555 = vst [vmem:[%s221 + $0xc] sm:$0xf] %v523
      %556 = vst [vmem:[%s221 + $0x10] sm:$0xf] %v524
      %557 = vst [vmem:[%s221 + $0x14] sm:$0xf] %v525
      %558 = vst [vmem:[%s221 + $0x18] sm:$0xf] %v526
      %559 = vst [vmem:[%s221 + $0x1c] sm:$0xf] %v527
      %560 = vst [vmem:[%s221 + $0x20] sm:$0xf] %v528
      %561 = vst [vmem:[%s221 + $0x24] sm:$0xf] %v529
      %562 = vst [vmem:[%s221 + $0x28] sm:$0xf] %v530
      %563 = vst [vmem:[%s221 + $0x2c] sm:$0xf] %v531
      %564 = vst [vmem:[%s221 + $0x30] sm:$0xf] %v532
      %565 = vst [vmem:[%s221 + $0x34] sm:$0xf] %v533
      %566 = vst [vmem:[%s221 + $0x38] sm:$0xf] %v534
      %567 = vst [vmem:[%s221 + $0x3c] sm:$0xf] %v535
      %s568 = smul.u32 16, %s15
      %p569 = scmp.lt.s32.totalorder %s568, 31
      %s570 = scalar_select %p569, %s568, 31
      %s571 = smul.addr %s570, 4
      %s572 = scalar_lea.vmem %s4, %s571
      // Predicated region
      $region37: #{_lambda_.10} parent=35 // pred_check
        %p573 = pneg %p127
      $region38: #{_lambda_.10} parent=35 // pred_check_branch
        %575 = sbr.rel (%p573) target = $region40
      $region39: #{_lambda_.10} parent=35 // pred_region
        %s576 = smul.u32 16, %s15
      $region40: #{_lambda_.10} parent=35 // pred_fallthru
        _
    $region36: #{_lambda_.10} parent=5 // pred_fallthru
      _
    %p577 = scmp.le.s32.totalorder 2, %s10
    // Predicated region
    $region41: #{_lambda_.10} parent=5 // pred_check
      %p578 = pneg %p577
    $region42: #{_lambda_.10} parent=5 // pred_check_branch
      %580 = sbr.rel (%p578) target = $region44
    $region43: #{_lambda_.10} parent=5 // pred_region
      %s581 = ssub.s32 %s10, 2
      // Predicated region
      $region45: #{_lambda_.10} parent=43 // pred_check
        %p582 = pneg %p133
      $region46: #{_lambda_.10} parent=43 // pred_check_branch
        %584 = sbr.rel (%p582) target = $region48
      $region47: #{_lambda_.10} parent=43 // pred_region
        %s585 = smul.u32 16, %s16
        %p586 = scmp.lt.s32.totalorder %s585, 31
        %s587 = scalar_select %p586, %s585, 31
        %s588 = smul.addr %s587, 4
        %s589 = scalar_lea.vmem %s4, %s588
      $region48: #{_lambda_.10} parent=43 // pred_fallthru
        _
    $region44: #{_lambda_.10} parent=5 // pred_fallthru
      _
  $region6: #{_lambda_.10} parent=0 // loop_footer
    %s14 = sadd.s32 1, %s10
  $region7: #{_lambda_.10} parent=0 // loop_footer_branch
    %9 = sbr.rel target = $region3
  $region8: #{_lambda_.10} parent=0 // loop_exit
    _

// kernel: _lambda_.11
$region0: #{_lambda_.11}
  #allocation0 [shape = 'u32[]', space=smem, size = 0x4, offset = 0x4, fixed_abs, tag = 'smem constant byte address 0x4 - core index']
  #allocation1 [shape = 'u32[144,128]{1,0:T(1,128)}', space=vmem, size = 0x12000, scoped, tag = 'internal scratch']
  %s0 = inlined_call_operand.vmem [shape: bf16[1024,32], index: 0, kind: input, shape index: {}]
  %s1 = inlined_call_operand.vmem [shape: bf16[32,128], index: 1, kind: input, shape index: {}]
  %s2 = inlined_call_operand.vmem [shape: f32[1,128], index: 2, kind: input, shape index: {}]
  %s3 = inlined_call_operand.vmem [shape: bf16[128,128], index: 3, kind: input, shape index: {}]
  %s4 = inlined_call_operand.vmem [shape: f32[1,128], index: 4, kind: input, shape index: {}]
  %s5 = inlined_call_operand.vmem [shape: bf16[128,4], index: 5, kind: input, shape index: {}]
  %s6 = inlined_call_operand.vmem [shape: f32[1,4], index: 6, kind: input, shape index: {}]
  %s7 = inlined_call_operand.vmem [shape: f32[1024,4], index: 7, kind: output, shape index: {}]
  %s8 = sld [smem:[#allocation0]]
  $region61: #{_lambda_.11} parent=0
    _
  %s10 = ssub.s32 1, %s8
  %s11 = scalar_select 0, %s10, %s8
  loop: start=0, step=1, limit=4
  $region2: #{_lambda_.11} parent=0 // loop_pre_header
    _
  $region3: #{_lambda_.11} parent=0 // loop_header
    %s13 = sphi 0, %s17
    %p14 = scmp.ge.s32.totalorder %s13, 4
    %s23 = sphi 0, %s25
    %s26 = sphi 0, %s23
    %s27 = sphi 0, %s26
    %s43 = sphi 0, %s27
    %s47 = sphi 0, %s47
    %s49 = sphi 0, %s47
    %s50 = sphi 0, %s49
    %s64 = sphi 0, %s50
    %s68 = sphi 0, %s68
    %s70 = sphi 0, %s68
    %s71 = sphi 0, %s70
    %s85 = sphi 0, %s71
    %s89 = sphi 0, %s89
    %s91 = sphi 0, %s89
    %s92 = sphi 0, %s91
    %s106 = sphi 0, %s92
    %s110 = sphi 0, %s110
    %s112 = sphi 0, %s110
    %s113 = sphi 0, %s112
    %s127 = sphi 0, %s113
    %s131 = sphi 0, %s131
    %s133 = sphi 0, %s131
    %s134 = sphi 0, %s133
    %s148 = sphi 0, %s134
    %s152 = sphi 0, %s152
    %s154 = sphi 0, %s152
    %s155 = sphi 0, %s154
    %s169 = sphi 0, %s155
    %s175 = sphi 0, %s177
    %s178 = sphi 0, %s175
    %s179 = sphi 0, %s178
    %s195 = sphi 0, %s179
  $region4: #{_lambda_.11} parent=0 // loop_header_branch
    %16 = sbr.rel (%p14) target = $region8
  $region5: #{_lambda_.11} parent=0 // loop_body
    %s18 = ssub.s32 %s13, 1
    %s19 = ssub.s32 %s13, 2
    %s20 = sadd.s32 %s13, 1
    %s21 = ssub.s32 %s13, %s20
    %p22 = scmp.eq.s32.totalorder %s21, 0
    %s24 = sadd.s32 %s23, 1
    %s25 = scalar_select %p22, %s23, %s24
    %p28 = pneg %p22
    %p29 = scmp.eq.s32.totalorder %s13, 1
    %p30 = por %p28, %p29
    %p31 = scmp.ne.s32.totalorder %s23, %s26
    %p32 = scmp.eq.s32.totalorder %s13, 0
    %p33 = por %p31, %p32
    %p34 = scmp.ne.s32.totalorder %s23, %s26
    %p35 = scmp.eq.s32.totalorder %s18, 1
    %p36 = por %p34, %p35
    %p37 = scmp.ne.s32.totalorder %s26, %s27
    %p38 = scmp.eq.s32.totalorder %s18, 0
    %p39 = por %p37, %p38
    %p40 = scmp.ne.s32.totalorder %s26, %s27
    %p41 = scmp.eq.s32.totalorder %s19, 1
    %p42 = por %p40, %p41
    %p44 = scmp.ne.s32.totalorder %s27, %s43
    %p45 = scmp.eq.s32.totalorder %s19, 0
    %p46 = por %p44, %p45
    %s48 = sadd.s32 %s47, 1
    %p51 = scmp.eq.s32.totalorder %s13, 1
    %p52 = scmp.ne.s32.totalorder %s47, %s49
    %p53 = scmp.eq.s32.totalorder %s13, 0
    %p54 = por %p52, %p53
    %p55 = scmp.ne.s32.totalorder %s47, %s49
    %p56 = scmp.eq.s32.totalorder %s18, 1
    %p57 = por %p55, %p56
    %p58 = scmp.ne.s32.totalorder %s49, %s50
    %p59 = scmp.eq.s32.totalorder %s18, 0
    %p60 = por %p58, %p59
    %p61 = scmp.ne.s32.totalorder %s49, %s50
    %p62 = scmp.eq.s32.totalorder %s19, 1
    %p63 = por %p61, %p62
    %p65 = scmp.ne.s32.totalorder %s50, %s64
    %p66 = scmp.eq.s32.totalorder %s19, 0
    %p67 = por %p65, %p66
    %s69 = sadd.s32 %s68, 1
    %p72 = scmp.eq.s32.totalorder %s13, 1
    %p73 = scmp.ne.s32.totalorder %s68, %s70
    %p74 = scmp.eq.s32.totalorder %s13, 0
    %p75 = por %p73, %p74
    %p76 = scmp.ne.s32.totalorder %s68, %s70
    %p77 = scmp.eq.s32.totalorder %s18, 1
    %p78 = por %p76, %p77
    %p79 = scmp.ne.s32.totalorder %s70, %s71
    %p80 = scmp.eq.s32.totalorder %s18, 0
    %p81 = por %p79, %p80
    %p82 = scmp.ne.s32.totalorder %s70, %s71
    %p83 = scmp.eq.s32.totalorder %s19, 1
    %p84 = por %p82, %p83
    %p86 = scmp.ne.s32.totalorder %s71, %s85
    %p87 = scmp.eq.s32.totalorder %s19, 0
    %p88 = por %p86, %p87
    %s90 = sadd.s32 %s89, 1
    %p93 = scmp.eq.s32.totalorder %s13, 1
    %p94 = scmp.ne.s32.totalorder %s89, %s91
    %p95 = scmp.eq.s32.totalorder %s13, 0
    %p96 = por %p94, %p95
    %p97 = scmp.ne.s32.totalorder %s89, %s91
    %p98 = scmp.eq.s32.totalorder %s18, 1
    %p99 = por %p97, %p98
    %p100 = scmp.ne.s32.totalorder %s91, %s92
    %p101 = scmp.eq.s32.totalorder %s18, 0
    %p102 = por %p100, %p101
    %p103 = scmp.ne.s32.totalorder %s91, %s92
    %p104 = scmp.eq.s32.totalorder %s19, 1
    %p105 = por %p103, %p104
    %p107 = scmp.ne.s32.totalorder %s92, %s106
    %p108 = scmp.eq.s32.totalorder %s19, 0
    %p109 = por %p107, %p108
    %s111 = sadd.s32 %s110, 1
    %p114 = scmp.eq.s32.totalorder %s13, 1
    %p115 = scmp.ne.s32.totalorder %s110, %s112
    %p116 = scmp.eq.s32.totalorder %s13, 0
    %p117 = por %p115, %p116
    %p118 = scmp.ne.s32.totalorder %s110, %s112
    %p119 = scmp.eq.s32.totalorder %s18, 1
    %p120 = por %p118, %p119
    %p121 = scmp.ne.s32.totalorder %s112, %s113
    %p122 = scmp.eq.s32.totalorder %s18, 0
    %p123 = por %p121, %p122
    %p124 = scmp.ne.s32.totalorder %s112, %s113
    %p125 = scmp.eq.s32.totalorder %s19, 1
    %p126 = por %p124, %p125
    %p128 = scmp.ne.s32.totalorder %s113, %s127
    %p129 = scmp.eq.s32.totalorder %s19, 0
    %p130 = por %p128, %p129
    %s132 = sadd.s32 %s131, 1
    %p135 = scmp.eq.s32.totalorder %s13, 1
    %p136 = scmp.ne.s32.totalorder %s131, %s133
    %p137 = scmp.eq.s32.totalorder %s13, 0
    %p138 = por %p136, %p137
    %p139 = scmp.ne.s32.totalorder %s131, %s133
    %p140 = scmp.eq.s32.totalorder %s18, 1
    %p141 = por %p139, %p140
    %p142 = scmp.ne.s32.totalorder %s133, %s134
    %p143 = scmp.eq.s32.totalorder %s18, 0
    %p144 = por %p142, %p143
    %p145 = scmp.ne.s32.totalorder %s133, %s134
    %p146 = scmp.eq.s32.totalorder %s19, 1
    %p147 = por %p145, %p146
    %p149 = scmp.ne.s32.totalorder %s134, %s148
    %p150 = scmp.eq.s32.totalorder %s19, 0
    %p151 = por %p149, %p150
    %s153 = sadd.s32 %s152, 1
    %p156 = scmp.eq.s32.totalorder %s13, 1
    %p157 = scmp.ne.s32.totalorder %s152, %s154
    %p158 = scmp.eq.s32.totalorder %s13, 0
    %p159 = por %p157, %p158
    %p160 = scmp.ne.s32.totalorder %s152, %s154
    %p161 = scmp.eq.s32.totalorder %s18, 1
    %p162 = por %p160, %p161
    %p163 = scmp.ne.s32.totalorder %s154, %s155
    %p164 = scmp.eq.s32.totalorder %s18, 0
    %p165 = por %p163, %p164
    %p166 = scmp.ne.s32.totalorder %s154, %s155
    %p167 = scmp.eq.s32.totalorder %s19, 1
    %p168 = por %p166, %p167
    %p170 = scmp.ne.s32.totalorder %s155, %s169
    %p171 = scmp.eq.s32.totalorder %s19, 0
    %p172 = por %p170, %p171
    %s173 = ssub.s32 %s13, %s20
    %p174 = scmp.eq.s32.totalorder %s173, 0
    %s176 = sadd.s32 %s175, 1
    %s177 = scalar_select %p174, %s175, %s176
    %p180 = pneg %p174
    %p181 = scmp.eq.s32.totalorder %s13, 1
    %p182 = por %p180, %p181
    %p183 = scmp.ne.s32.totalorder %s175, %s178
    %p184 = scmp.eq.s32.totalorder %s13, 0
    %p185 = por %p183, %p184
    %p186 = scmp.ne.s32.totalorder %s175, %s178
    %p187 = scmp.eq.s32.totalorder %s18, 1
    %p188 = por %p186, %p187
    %p189 = scmp.ne.s32.totalorder %s178, %s179
    %p190 = scmp.eq.s32.totalorder %s18, 0
    %p191 = por %p189, %p190
    %p192 = scmp.ne.s32.totalorder %s178, %s179
    %p193 = scmp.eq.s32.totalorder %s19, 1
    %p194 = por %p192, %p193
    %p196 = scmp.ne.s32.totalorder %s179, %s195
    %p197 = scmp.eq.s32.totalorder %s19, 0
    %p198 = por %p196, %p197
    %p199 = scmp.le.s32.totalorder 1, %s13
    %p200 = scmp.lt.s32.totalorder %s13, 3
    %p201 = pnand %p199, %p200
    %p202 = pneg %p201
    // Predicated region
    $region9: #{_lambda_.11} parent=5 // pred_check
      _
    $region10: #{_lambda_.11} parent=5 // pred_check_branch
      %204 = sbr.rel (%p201) target = $region12
    $region11: #{_lambda_.11} parent=5 // pred_region
      %s205 = ssub.s32 %s13, 1
      // Predicated region
      $region13: #{_lambda_.11} parent=11 // pred_check
        %p206 = pneg %p60
      $region14: #{_lambda_.11} parent=11 // pred_check_branch
        %208 = sbr.rel (%p206) target = $region16
      $region15: #{_lambda_.11} parent=11 // pred_region
        _
      $region16: #{_lambda_.11} parent=11 // pred_fallthru
        _
      // Predicated region
      $region17: #{_lambda_.11} parent=11 // pred_check
        %p209 = pneg %p81
      $region18: #{_lambda_.11} parent=11 // pred_check_branch
        %211 = sbr.rel (%p209) target = $region20
      $region19: #{_lambda_.11} parent=11 // pred_region
        _
      $region20: #{_lambda_.11} parent=11 // pred_fallthru
        _
      // Predicated region
      $region21: #{_lambda_.11} parent=11 // pred_check
        %p212 = pneg %p102
      $region22: #{_lambda_.11} parent=11 // pred_check_branch
        %214 = sbr.rel (%p212) target = $region24
      $region23: #{_lambda_.11} parent=11 // pred_region
        _
      $region24: #{_lambda_.11} parent=11 // pred_fallthru
        _
      // Predicated region
      $region25: #{_lambda_.11} parent=11 // pred_check
        %p215 = pneg %p123
      $region26: #{_lambda_.11} parent=11 // pred_check_branch
        %217 = sbr.rel (%p215) target = $region28
      $region27: #{_lambda_.11} parent=11 // pred_region
        _
      $region28: #{_lambda_.11} parent=11 // pred_fallthru
        _
      // Predicated region
      $region29: #{_lambda_.11} parent=11 // pred_check
        %p218 = pneg %p144
      $region30: #{_lambda_.11} parent=11 // pred_check_branch
        %220 = sbr.rel (%p218) target = $region32
      $region31: #{_lambda_.11} parent=11 // pred_region
        _
      $region32: #{_lambda_.11} parent=11 // pred_fallthru
        _
      // Predicated region
      $region33: #{_lambda_.11} parent=11 // pred_check
        %p221 = pneg %p165
      $region34: #{_lambda_.11} parent=11 // pred_check_branch
        %223 = sbr.rel (%p221) target = $region36
      $region35: #{_lambda_.11} parent=11 // pred_region
        _
      $region36: #{_lambda_.11} parent=11 // pred_fallthru
        _
    $region12: #{_lambda_.11} parent=5 // pred_fallthru
      _
    %p224 = scmp.lt.s32.totalorder %s13, 2
    // Predicated region
    $region37: #{_lambda_.11} parent=5 // pred_check
      %p225 = pneg %p224
    $region38: #{_lambda_.11} parent=5 // pred_check_branch
      %227 = sbr.rel (%p225) target = $region40
    $region39: #{_lambda_.11} parent=5 // pred_region
      // Predicated region
      $region41: #{_lambda_.11} parent=39 // pred_check
        %p228 = pneg %p33
      $region42: #{_lambda_.11} parent=39 // pred_check_branch
        %230 = sbr.rel (%p228) target = $region44
      $region43: #{_lambda_.11} parent=39 // pred_region
        %s231 = smul.u32 64, %s13
        %p232 = scmp.lt.s32.totalorder %s231, 127
        %s233 = scalar_select %p232, %s231, 127
        %s234 = smul.addr %s233, 4
        %s235 = scalar_lea.vmem %s0, %s234
        %s236 = smul.u32 64, %s13
      $region44: #{_lambda_.11} parent=39 // pred_fallthru
        _
    $region40: #{_lambda_.11} parent=5 // pred_fallthru
      _
    %p237 = scmp.le.s32.totalorder 1, %s13
    %p238 = scmp.lt.s32.totalorder %s13, 3
    %p239 = pnand %p237, %p238
    %p240 = pneg %p239
    // Predicated region
    $region45: #{_lambda_.11} parent=5 // pred_check
      _
    $region46: #{_lambda_.11} parent=5 // pred_check_branch
      %242 = sbr.rel (%p239) target = $region48
    $region47: #{_lambda_.11} parent=5 // pred_region
      %s243 = ssub.s32 %s13, 1
      %s244 = smul.u32 64, %s18
      %p245 = scmp.lt.s32.totalorder %s244, 127
      %s246 = scalar_select %p245, %s244, 127
      %s247 = smul.addr %s246, 4
      %s248 = scalar_lea.vmem %s0, %s247
      %p249 = pneg %p39
      %p250 = pneg %p36
      %p251 = pneg %p60
      %p252 = pneg %p57
      %p253 = pneg %p81
      %p254 = pneg %p78
      %p255 = pneg %p102
      %p256 = pneg %p99
      %p257 = pneg %p123
      %p258 = pneg %p120
      %p259 = pneg %p144
      %p260 = pneg %p141
      %p261 = pneg %p165
      %p262 = pneg %p162
      %p263 = pneg %p191
      %p264 = pneg %p188
      %s265 = smul.u32 64, %s18
      %p266 = scmp.lt.s32.totalorder %s265, 127
      %s267 = scalar_select %p266, %s265, 127
      %s268 = smul.addr %s267, 8
      %s269 = scalar_lea.vmem %s7, %s268
      %s270 = smul.u32 64, %s18
      %p271 = scmp.lt.s32.totalorder %s270, 127
      %s272 = scalar_select %p271, %s270, 127
      %s273 = smul.addr %s272, 4
      %s274 = scalar_lea.vmem %s0, %s273
      %s275 = smul.u32 64, %s18
      %s276 = smul.u32 64, %s18
      %p277 = scmp.lt.s32.totalorder %s276, 127
      %s278 = scalar_select %p277, %s276, 127
      %s279 = smul.addr %s278, 8
      %s280 = scalar_lea.vmem %s7, %s279
      %s281 = smul.u32 64, %s18
      %v283 = vld [vmem:[%s274] sm:$0xf]
      %v284 = vld [vmem:[%s274 + $0x4] sm:$0xf]
      %v285 = vld [vmem:[%s274 + $0x8] sm:$0xf]
      %v286 = vld [vmem:[%s274 + $0xc] sm:$0xf]
      %v287 = vld [vmem:[%s274 + $0x10] sm:$0xf]
      %v288 = vld [vmem:[%s274 + $0x14] sm:$0xf]
      %v289 = vld [vmem:[%s274 + $0x18] sm:$0xf]
      %v290 = vld [vmem:[%s274 + $0x1c] sm:$0xf]
      %v291 = vld [vmem:[%s274 + $0x20] sm:$0xf]
      %v292 = vld [vmem:[%s274 + $0x24] sm:$0xf]
      %v293 = vld [vmem:[%s274 + $0x28] sm:$0xf]
      %v294 = vld [vmem:[%s274 + $0x2c] sm:$0xf]
      %v295 = vld [vmem:[%s274 + $0x30] sm:$0xf]
      %v296 = vld [vmem:[%s274 + $0x34] sm:$0xf]
      %v297 = vld [vmem:[%s274 + $0x38] sm:$0xf]
      %v298 = vld [vmem:[%s274 + $0x3c] sm:$0xf]
      %v299 = vld [vmem:[%s274 + $0x40] sm:$0xf]
      %v300 = vld [vmem:[%s274 + $0x44] sm:$0xf]
      %v301 = vld [vmem:[%s274 + $0x48] sm:$0xf]
      %v302 = vld [vmem:[%s274 + $0x4c] sm:$0xf]
      %v303 = vld [vmem:[%s274 + $0x50] sm:$0xf]
      %v304 = vld [vmem:[%s274 + $0x54] sm:$0xf]
      %v305 = vld [vmem:[%s274 + $0x58] sm:$0xf]
      %v306 = vld [vmem:[%s274 + $0x5c] sm:$0xf]
      %v307 = vld [vmem:[%s274 + $0x60] sm:$0xf]
      %v308 = vld [vmem:[%s274 + $0x64] sm:$0xf]
      %v309 = vld [vmem:[%s274 + $0x68] sm:$0xf]
      %v310 = vld [vmem:[%s274 + $0x6c] sm:$0xf]
      %v311 = vld [vmem:[%s274 + $0x70] sm:$0xf]
      %v312 = vld [vmem:[%s274 + $0x74] sm:$0xf]
      %v313 = vld [vmem:[%s274 + $0x78] sm:$0xf]
      %v314 = vld [vmem:[%s274 + $0x7c] sm:$0xf]
      %v315 = vld [vmem:[%s274 + $0x80] sm:$0xf]
      %v316 = vld [vmem:[%s274 + $0x84] sm:$0xf]
      %v317 = vld [vmem:[%s274 + $0x88] sm:$0xf]
      %v318 = vld [vmem:[%s274 + $0x8c] sm:$0xf]
      %v319 = vld [vmem:[%s274 + $0x90] sm:$0xf]
      %v320 = vld [vmem:[%s274 + $0x94] sm:$0xf]
      %v321 = vld [vmem:[%s274 + $0x98] sm:$0xf]
      %v322 = vld [vmem:[%s274 + $0x9c] sm:$0xf]
      %v323 = vld [vmem:[%s274 + $0xa0] sm:$0xf]
      %v324 = vld [vmem:[%s274 + $0xa4] sm:$0xf]
      %v325 = vld [vmem:[%s274 + $0xa8] sm:$0xf]
      %v326 = vld [vmem:[%s274 + $0xac] sm:$0xf]
      %v327 = vld [vmem:[%s274 + $0xb0] sm:$0xf]
      %v328 = vld [vmem:[%s274 + $0xb4] sm:$0xf]
      %v329 = vld [vmem:[%s274 + $0xb8] sm:$0xf]
      %v330 = vld [vmem:[%s274 + $0xbc] sm:$0xf]
      %v331 = vld [vmem:[%s274 + $0xc0] sm:$0xf]
      %v332 = vld [vmem:[%s274 + $0xc4] sm:$0xf]
      %v333 = vld [vmem:[%s274 + $0xc8] sm:$0xf]
      %v334 = vld [vmem:[%s274 + $0xcc] sm:$0xf]
      %v335 = vld [vmem:[%s274 + $0xd0] sm:$0xf]
      %v336 = vld [vmem:[%s274 + $0xd4] sm:$0xf]
      %v337 = vld [vmem:[%s274 + $0xd8] sm:$0xf]
      %v338 = vld [vmem:[%s274 + $0xdc] sm:$0xf]
      %v339 = vld [vmem:[%s274 + $0xe0] sm:$0xf]
      %v340 = vld [vmem:[%s274 + $0xe4] sm:$0xf]
      %v341 = vld [vmem:[%s274 + $0xe8] sm:$0xf]
      %v342 = vld [vmem:[%s274 + $0xec] sm:$0xf]
      %v343 = vld [vmem:[%s274 + $0xf0] sm:$0xf]
      %v344 = vld [vmem:[%s274 + $0xf4] sm:$0xf]
      %v345 = vld [vmem:[%s274 + $0xf8] sm:$0xf]
      %v346 = vld [vmem:[%s274 + $0xfc] sm:$0xf]
      %v347 = vld [vmem:[%s1] sm:$0xf]
      %v348 = vld [vmem:[%s1 + $0x4] sm:$0xf]
      %v349 = vld [vmem:[%s1 + $0x8] sm:$0xf]
      %v350 = vld [vmem:[%s1 + $0xc] sm:$0xf]
      %v351 = vld [vmem:[%s2] sm:$0x1]
      %v353 = vlaneseq
      %v354 = vshrl.u32 %v353, 7
      %v355 = vsub.s32 0, %v354
      %v356 = vrot.slane %v351, %v355
      %v422 = vunpack.c.l.b16 %v283
      %v423 = vunpack.c.l.b16 %v284
      %v424 = vunpack.c.l.b16 %v285
      %v425 = vunpack.c.l.b16 %v286
      %v426 = vunpack.c.l.b16 %v287
      %v427 = vunpack.c.l.b16 %v288
      %v428 = vunpack.c.l.b16 %v289
      %v429 = vunpack.c.l.b16 %v290
      %v430 = vunpack.c.l.b16 %v291
      %v431 = vunpack.c.l.b16 %v292
      %v432 = vunpack.c.l.b16 %v293
      %v433 = vunpack.c.l.b16 %v294
      %v434 = vunpack.c.l.b16 %v295
      %v435 = vunpack.c.l.b16 %v296
      %v436 = vunpack.c.l.b16 %v297
      %v437 = vunpack.c.l.b16 %v298
      %v438 = vunpack.c.l.b16 %v299
      %v439 = vunpack.c.l.b16 %v300
      %v440 = vunpack.c.l.b16 %v301
      %v441 = vunpack.c.l.b16 %v302
      %v442 = vunpack.c.l.b16 %v303
      %v443 = vunpack.c.l.b16 %v304
      %v444 = vunpack.c.l.b16 %v305
      %v445 = vunpack.c.l.b16 %v306
      %v446 = vunpack.c.l.b16 %v307
      %v447 = vunpack.c.l.b16 %v308
      %v448 = vunpack.c.l.b16 %v309
      %v449 = vunpack.c.l.b16 %v310
      %v450 = vunpack.c.l.b16 %v311
      %v451 = vunpack.c.l.b16 %v312
      %v452 = vunpack.c.l.b16 %v313
      %v453 = vunpack.c.l.b16 %v314
      %v454 = vunpack.c.l.b16 %v315
      %v455 = vunpack.c.l.b16 %v316
      %v456 = vunpack.c.l.b16 %v317
      %v457 = vunpack.c.l.b16 %v318
      %v458 = vunpack.c.l.b16 %v319
      %v459 = vunpack.c.l.b16 %v320
      %v460 = vunpack.c.l.b16 %v321
      %v461 = vunpack.c.l.b16 %v322
      %v462 = vunpack.c.l.b16 %v323
      %v463 = vunpack.c.l.b16 %v324
      %v464 = vunpack.c.l.b16 %v325
      %v465 = vunpack.c.l.b16 %v326
      %v466 = vunpack.c.l.b16 %v327
      %v467 = vunpack.c.l.b16 %v328
      %v468 = vunpack.c.l.b16 %v329
      %v469 = vunpack.c.l.b16 %v330
      %v470 = vunpack.c.l.b16 %v331
      %v471 = vunpack.c.l.b16 %v332
      %v472 = vunpack.c.l.b16 %v333
      %v473 = vunpack.c.l.b16 %v334
      %v474 = vunpack.c.l.b16 %v335
      %v475 = vunpack.c.l.b16 %v336
      %v476 = vunpack.c.l.b16 %v337
      %v477 = vunpack.c.l.b16 %v338
      %v478 = vunpack.c.l.b16 %v339
      %v479 = vunpack.c.l.b16 %v340
      %v480 = vunpack.c.l.b16 %v341
      %v481 = vunpack.c.l.b16 %v342
      %v482 = vunpack.c.l.b16 %v343
      %v483 = vunpack.c.l.b16 %v344
      %v484 = vunpack.c.l.b16 %v345
      %v485 = vunpack.c.l.b16 %v346
      %v486 = vpack.c.b16 %v423, %v422
      %v487 = vpack.c.b16 %v425, %v424
      %v488 = vpack.c.b16 %v427, %v426
      %v489 = vpack.c.b16 %v429, %v428
      %v490 = vpack.c.b16 %v431, %v430
      %v491 = vpack.c.b16 %v433, %v432
      %v492 = vpack.c.b16 %v435, %v434
      %v493 = vpack.c.b16 %v437, %v436
      %v494 = vpack.c.b16 %v439, %v438
      %v495 = vpack.c.b16 %v441, %v440
      %v496 = vpack.c.b16 %v443, %v442
      %v497 = vpack.c.b16 %v445, %v444
      %v498 = vpack.c.b16 %v447, %v446
      %v499 = vpack.c.b16 %v449, %v448
      %v500 = vpack.c.b16 %v451, %v450
      %v501 = vpack.c.b16 %v453, %v452
      %v502 = vpack.c.b16 %v455, %v454
      %v503 = vpack.c.b16 %v457, %v456
      %v504 = vpack.c.b16 %v459, %v458
      %v505 = vpack.c.b16 %v461, %v460
      %v506 = vpack.c.b16 %v463, %v462
      %v507 = vpack.c.b16 %v465, %v464
      %v508 = vpack.c.b16 %v467, %v466
      %v509 = vpack.c.b16 %v469, %v468
      %v510 = vpack.c.b16 %v471, %v470
      %v511 = vpack.c.b16 %v473, %v472
      %v512 = vpack.c.b16 %v475, %v474
      %v513 = vpack.c.b16 %v477, %v476
      %v514 = vpack.c.b16 %v479, %v478
      %v515 = vpack.c.b16 %v481, %v480
      %v516 = vpack.c.b16 %v483, %v482
      %v517 = vpack.c.b16 %v485, %v484
      %v522 = vunpack.c.l.b16 %v347
      %v523 = vunpack.c.l.b16 %v348
      %v524 = vunpack.c.l.b16 %v349
      %v525 = vunpack.c.l.b16 %v350
      %v526 = vpack.c.b16 %v523, %v522
      %v527 = vpack.c.b16 %v525, %v524
      %vm530 = vcmask 261120
      %v532 = vsel %vm530, %v486, 0
      %v535 = vsel %vm530, %v487, 0
      %v538 = vsel %vm530, %v488, 0
      %v541 = vsel %vm530, %v489, 0
      %v544 = vsel %vm530, %v490, 0
      %v547 = vsel %vm530, %v491, 0
      %v550 = vsel %vm530, %v492, 0
      %v553 = vsel %vm530, %v493, 0
      %v556 = vsel %vm530, %v494, 0
      %v559 = vsel %vm530, %v495, 0
      %v562 = vsel %vm530, %v496, 0
      %v565 = vsel %vm530, %v497, 0
      %v568 = vsel %vm530, %v498, 0
      %v571 = vsel %vm530, %v499, 0
      %v574 = vsel %vm530, %v500, 0
      %v577 = vsel %vm530, %v501, 0
      %v580 = vsel %vm530, %v502, 0
      %v583 = vsel %vm530, %v503, 0
      %v586 = vsel %vm530, %v504, 0
      %v589 = vsel %vm530, %v505, 0
      %v592 = vsel %vm530, %v506, 0
      %v595 = vsel %vm530, %v507, 0
      %v598 = vsel %vm530, %v508, 0
      %v601 = vsel %vm530, %v509, 0
      %v604 = vsel %vm530, %v510, 0
      %v607 = vsel %vm530, %v511, 0
      %v610 = vsel %vm530, %v512, 0
      %v613 = vsel %vm530, %v513, 0
      %v616 = vsel %vm530, %v514, 0
      %v619 = vsel %vm530, %v515, 0
      %v622 = vsel %vm530, %v516, 0
      %v625 = vsel %vm530, %v517, 0
      %627 = vmatprep.subr.bf16.mxu0 0
      %628 = vmatpush1.bf16.msra.mxu0 %v526
      %629 = vmatprep.subr.bf16.mxu0 0
      %630 = vmatpush1.bf16.msra.mxu0 %v527
      %631 = vmatprep.subr.bf16.mxu0 0
      %632 = vmatpush1.bf16.msra.mxu0 0
      %633 = vmatprep.subr.bf16.mxu0 0
      %634 = vmatpush1.bf16.msra.mxu0 0
      %635 = vmatprep.subr.bf16.mxu0 0
      %636 = vmatpush1.bf16.msra.mxu0 0
      %637 = vmatprep.subr.bf16.mxu0 0
      %638 = vmatpush1.bf16.msra.mxu0 0
      %639 = vmatprep.subr.bf16.mxu0 0
      %640 = vmatpush1.bf16.msra.mxu0 0
      %641 = vmatprep.subr.bf16.mxu0 0
      %642 = vmatpush1.bf16.msra.mxu0 0
      %643 = vmatprep.subr.bf16.mxu0 0
      %644 = vmatpush1.bf16.msra.mxu0 0
      %645 = vmatprep.subr.bf16.mxu0 0
      %646 = vmatpush1.bf16.msra.mxu0 0
      %647 = vmatprep.subr.bf16.mxu0 0
      %648 = vmatpush1.bf16.msra.mxu0 0
      %649 = vmatprep.subr.bf16.mxu0 0
      %650 = vmatpush1.bf16.msra.mxu0 0
      %651 = vmatprep.subr.bf16.mxu0 0
      %652 = vmatpush1.bf16.msra.mxu0 0
      %653 = vmatprep.subr.bf16.mxu0 0
      %654 = vmatpush1.bf16.msra.mxu0 0
      %655 = vmatprep.subr.bf16.mxu0 0
      %656 = vmatpush1.bf16.msra.mxu0 0
      %657 = vmatprep.subr.bf16.mxu0 0
      %658 = vmatpush1.bf16.msra.mxu0 0
      %659 = vmatprep.mubr.bf16.mxu0 0
      %660 = vmatmul.mubr.bf16.gmra.mrb[0].mxu0 %v532
      %v661 = vpop.f32.mrb[0].mxu0
      %v662 = vadd.f32 %v356, %v661
      %v663 = vpop.f32.mrb[0].mxu0
      %v664 = vpop.f32.mrb[0].mxu0
      %v665 = vadd.f32 %v356, %v664
      %v666 = vpop.f32.mrb[0].mxu0
      %667 = vmatprep.mubr.bf16.mxu0 0
      %668 = vmatmul.mubr.bf16.gmra.mrb[0].mxu0 %v535
      %v669 = vpop.f32.mrb[0].mxu0
      %v670 = vadd.f32 %v356, %v669
      %v671 = vpop.f32.mrb[0].mxu0
      %v672 = vpop.f32.mrb[0].mxu0
      %v673 = vadd.f32 %v356, %v672
      %v674 = vpop.f32.mrb[0].mxu0
      %675 = vmatprep.mubr.bf16.mxu0 0
      %676 = vmatmul.mubr.bf16.gmra.mrb[0].mxu0 %v538
      %v677 = vpop.f32.mrb[0].mxu0
      %v678 = vadd.f32 %v356, %v677
      %v679 = vpop.f32.mrb[0].mxu0
      %v680 = vpop.f32.mrb[0].mxu0
      %v681 = vadd.f32 %v356, %v680
      %v682 = vpop.f32.mrb[0].mxu0
      %683 = vmatprep.mubr.bf16.mxu0 0
      %684 = vmatmul.mubr.bf16.gmra.mrb[0].mxu0 %v541
      %v685 = vpop.f32.mrb[0].mxu0
      %v686 = vadd.f32 %v356, %v685
      %v687 = vpop.f32.mrb[0].mxu0
      %v688 = vpop.f32.mrb[0].mxu0
      %v689 = vadd.f32 %v356, %v688
      %v690 = vpop.f32.mrb[0].mxu0
      %691 = vmatprep.mubr.bf16.mxu0 0
      %692 = vmatmul.mubr.bf16.gmra.mrb[0].mxu0 %v544
      %v693 = vpop.f32.mrb[0].mxu0
      %v694 = vadd.f32 %v356, %v693
      %v695 = vpop.f32.mrb[0].mxu0
      %v696 = vpop.f32.mrb[0].mxu0
      %v697 = vadd.f32 %v356, %v696
      %v698 = vpop.f32.mrb[0].mxu0
      %699 = vmatprep.mubr.bf16.mxu0 0
      %700 = vmatmul.mubr.bf16.gmra.mrb[0].mxu0 %v547
      %v701 = vpop.f32.mrb[0].mxu0
      %v702 = vadd.f32 %v356, %v701
      %v703 = vpop.f32.mrb[0].mxu0
      %v704 = vpop.f32.mrb[0].mxu0
      %v705 = vadd.f32 %v356, %v704
      %v706 = vpop.f32.mrb[0].mxu0
      %707 = vmatprep.mubr.bf16.mxu0 0
      %708 = vmatmul.mubr.bf16.gmra.mrb[0].mxu0 %v550
      %v709 = vpop.f32.mrb[0].mxu0
      %v710 = vadd.f32 %v356, %v709
      %v711 = vpop.f32.mrb[0].mxu0
      %v712 = vpop.f32.mrb[0].mxu0
      %v713 = vadd.f32 %v356, %v712
      %v714 = vpop.f32.mrb[0].mxu0
      %715 = vmatprep.mubr.bf16.mxu0 0
      %716 = vmatmul.mubr.bf16.gmra.mrb[0].mxu0 %v553
      %v717 = vpop.f32.mrb[0].mxu0
      %v718 = vadd.f32 %v356, %v717
      %v719 = vpop.f32.mrb[0].mxu0
      %v720 = vpop.f32.mrb[0].mxu0
      %v721 = vadd.f32 %v356, %v720
      %v722 = vpop.f32.mrb[0].mxu0
      %723 = vmatprep.mubr.bf16.mxu0 0
      %724 = vmatmul.mubr.bf16.gmra.mrb[0].mxu0 %v556
      %v725 = vpop.f32.mrb[0].mxu0
      %v726 = vadd.f32 %v356, %v725
      %v727 = vpop.f32.mrb[0].mxu0
      %v728 = vpop.f32.mrb[0].mxu0
      %v729 = vadd.f32 %v356, %v728
      %v730 = vpop.f32.mrb[0].mxu0
      %731 = vmatprep.mubr.bf16.mxu0 0
      %732 = vmatmul.mubr.bf16.gmra.mrb[0].mxu0 %v559
      %v733 = vpop.f32.mrb[0].mxu0
      %v734 = vadd.f32 %v356, %v733
      %v735 = vpop.f32.mrb[0].mxu0
      %v736 = vpop.f32.mrb[0].mxu0
      %v737 = vadd.f32 %v356, %v736
      %v738 = vpop.f32.mrb[0].mxu0
      %739 = vmatprep.mubr.bf16.mxu0 0
      %740 = vmatmul.mubr.bf16.gmra.mrb[0].mxu0 %v562
      %v741 = vpop.f32.mrb[0].mxu0
      %v742 = vadd.f32 %v356, %v741
      %v743 = vpop.f32.mrb[0].mxu0
      %v744 = vpop.f32.mrb[0].mxu0
      %v745 = vadd.f32 %v356, %v744
      %v746 = vpop.f32.mrb[0].mxu0
      %747 = vmatprep.mubr.bf16.mxu0 0
      %748 = vmatmul.mubr.bf16.gmra.mrb[0].mxu0 %v565
      %v749 = vpop.f32.mrb[0].mxu0
      %v750 = vadd.f32 %v356, %v749
      %v751 = vpop.f32.mrb[0].mxu0
      %v752 = vpop.f32.mrb[0].mxu0
      %v753 = vadd.f32 %v356, %v752
      %v754 = vpop.f32.mrb[0].mxu0
      %755 = vmatprep.mubr.bf16.mxu0 0
      %756 = vmatmul.mubr.bf16.gmra.mrb[0].mxu0 %v568
      %v757 = vpop.f32.mrb[0].mxu0
      %v758 = vadd.f32 %v356, %v757
      %v759 = vpop.f32.mrb[0].mxu0
      %v760 = vpop.f32.mrb[0].mxu0
      %v761 = vadd.f32 %v356, %v760
      %v762 = vpop.f32.mrb[0].mxu0
      %763 = vmatprep.mubr.bf16.mxu0 0
      %764 = vmatmul.mubr.bf16.gmra.mrb[0].mxu0 %v571
      %v765 = vpop.f32.mrb[0].mxu0
      %v766 = vadd.f32 %v356, %v765
      %v767 = vpop.f32.mrb[0].mxu0
      %v768 = vpop.f32.mrb[0].mxu0
      %v769 = vadd.f32 %v356, %v768
      %v770 = vpop.f32.mrb[0].mxu0
      %771 = vmatprep.mubr.bf16.mxu0 0
      %772 = vmatmul.mubr.bf16.gmra.mrb[0].mxu0 %v574
      %v773 = vpop.f32.mrb[0].mxu0
      %v774 = vadd.f32 %v356, %v773
      %v775 = vpop.f32.mrb[0].mxu0
      %v776 = vpop.f32.mrb[0].mxu0
      %v777 = vadd.f32 %v356, %v776
      %v778 = vpop.f32.mrb[0].mxu0
      %779 = vmatprep.mubr.bf16.mxu0 0
      %780 = vmatmul.mubr.bf16.gmra.mrb[0].mxu0 %v577
      %v781 = vpop.f32.mrb[0].mxu0
      %v782 = vadd.f32 %v356, %v781
      %v783 = vpop.f32.mrb[0].mxu0
      %v784 = vpop.f32.mrb[0].mxu0
      %v785 = vadd.f32 %v356, %v784
      %v786 = vpop.f32.mrb[0].mxu0
      %787 = vmatprep.mubr.bf16.mxu0 0
      %788 = vmatmul.mubr.bf16.gmra.mrb[0].mxu0 %v580
      %v789 = vpop.f32.mrb[0].mxu0
      %v790 = vadd.f32 %v356, %v789
      %v791 = vpop.f32.mrb[0].mxu0
      %v792 = vpop.f32.mrb[0].mxu0
      %v793 = vadd.f32 %v356, %v792
      %v794 = vpop.f32.mrb[0].mxu0
      %795 = vmatprep.mubr.bf16.mxu0 0
      %796 = vmatmul.mubr.bf16.gmra.mrb[0].mxu0 %v583
      %v797 = vpop.f32.mrb[0].mxu0
      %v798 = vadd.f32 %v356, %v797
      %v799 = vpop.f32.mrb[0].mxu0
      %v800 = vpop.f32.mrb[0].mxu0
      %v801 = vadd.f32 %v356, %v800
      %v802 = vpop.f32.mrb[0].mxu0
      %803 = vmatprep.mubr.bf16.mxu0 0
      %804 = vmatmul.mubr.bf16.gmra.mrb[0].mxu0 %v586
      %v805 = vpop.f32.mrb[0].mxu0
      %v806 = vadd.f32 %v356, %v805
      %v807 = vpop.f32.mrb[0].mxu0
      %v808 = vpop.f32.mrb[0].mxu0
      %v809 = vadd.f32 %v356, %v808
      %v810 = vpop.f32.mrb[0].mxu0
      %811 = vmatprep.mubr.bf16.mxu0 0
      %812 = vmatmul.mubr.bf16.gmra.mrb[0].mxu0 %v589
      %v813 = vpop.f32.mrb[0].mxu0
      %v814 = vadd.f32 %v356, %v813
      %v815 = vpop.f32.mrb[0].mxu0
      %v816 = vpop.f32.mrb[0].mxu0
      %v817 = vadd.f32 %v356, %v816
      %v818 = vpop.f32.mrb[0].mxu0
      %819 = vmatprep.mubr.bf16.mxu0 0
      %820 = vmatmul.mubr.bf16.gmra.mrb[0].mxu0 %v592
      %v821 = vpop.f32.mrb[0].mxu0
      %v822 = vadd.f32 %v356, %v821
      %v823 = vpop.f32.mrb[0].mxu0
      %v824 = vpop.f32.mrb[0].mxu0
      %v825 = vadd.f32 %v356, %v824
      %v826 = vpop.f32.mrb[0].mxu0
      %827 = vmatprep.mubr.bf16.mxu0 0
      %828 = vmatmul.mubr.bf16.gmra.mrb[0].mxu0 %v595
      %v829 = vpop.f32.mrb[0].mxu0
      %v830 = vadd.f32 %v356, %v829
      %v831 = vpop.f32.mrb[0].mxu0
      %v832 = vpop.f32.mrb[0].mxu0
      %v833 = vadd.f32 %v356, %v832
      %v834 = vpop.f32.mrb[0].mxu0
      %835 = vmatprep.mubr.bf16.mxu0 0
      %836 = vmatmul.mubr.bf16.gmra.mrb[0].mxu0 %v598
      %v837 = vpop.f32.mrb[0].mxu0
      %v838 = vadd.f32 %v356, %v837
      %v839 = vpop.f32.mrb[0].mxu0
      %v840 = vpop.f32.mrb[0].mxu0
      %v841 = vadd.f32 %v356, %v840
      %v842 = vpop.f32.mrb[0].mxu0
      %843 = vmatprep.mubr.bf16.mxu0 0
      %844 = vmatmul.mubr.bf16.gmra.mrb[0].mxu0 %v601
      %v845 = vpop.f32.mrb[0].mxu0
      %v846 = vadd.f32 %v356, %v845
      %v847 = vpop.f32.mrb[0].mxu0
      %v848 = vpop.f32.mrb[0].mxu0
      %v849 = vadd.f32 %v356, %v848
      %v850 = vpop.f32.mrb[0].mxu0
      %851 = vmatprep.mubr.bf16.mxu0 0
      %852 = vmatmul.mubr.bf16.gmra.mrb[0].mxu0 %v604
      %v853 = vpop.f32.mrb[0].mxu0
      %v854 = vadd.f32 %v356, %v853
      %v855 = vpop.f32.mrb[0].mxu0
      %v856 = vpop.f32.mrb[0].mxu0
      %v857 = vadd.f32 %v356, %v856
      %v858 = vpop.f32.mrb[0].mxu0
      %859 = vmatprep.mubr.bf16.mxu0 0
      %860 = vmatmul.mubr.bf16.gmra.mrb[0].mxu0 %v607
      %v861 = vpop.f32.mrb[0].mxu0
      %v862 = vadd.f32 %v356, %v861
      %v863 = vpop.f32.mrb[0].mxu0
      %v864 = vpop.f32.mrb[0].mxu0
      %v865 = vadd.f32 %v356, %v864
      %v866 = vpop.f32.mrb[0].mxu0
      %867 = vmatprep.mubr.bf16.mxu0 0
      %868 = vmatmul.mubr.bf16.gmra.mrb[0].mxu0 %v610
      %v869 = vpop.f32.mrb[0].mxu0
      %v870 = vadd.f32 %v356, %v869
      %v871 = vpop.f32.mrb[0].mxu0
      %v872 = vpop.f32.mrb[0].mxu0
      %v873 = vadd.f32 %v356, %v872
      %v874 = vpop.f32.mrb[0].mxu0
      %875 = vmatprep.mubr.bf16.mxu0 0
      %876 = vmatmul.mubr.bf16.gmra.mrb[0].mxu0 %v613
      %v877 = vpop.f32.mrb[0].mxu0
      %v878 = vadd.f32 %v356, %v877
      %v879 = vpop.f32.mrb[0].mxu0
      %v880 = vpop.f32.mrb[0].mxu0
      %v881 = vadd.f32 %v356, %v880
      %v882 = vpop.f32.mrb[0].mxu0
      %883 = vmatprep.mubr.bf16.mxu0 0
      %884 = vmatmul.mubr.bf16.gmra.mrb[0].mxu0 %v616
      %v885 = vpop.f32.mrb[0].mxu0
      %v886 = vadd.f32 %v356, %v885
      %v887 = vpop.f32.mrb[0].mxu0
      %v888 = vpop.f32.mrb[0].mxu0
      %v889 = vadd.f32 %v356, %v888
      %v890 = vpop.f32.mrb[0].mxu0
      %891 = vmatprep.mubr.bf16.mxu0 0
      %892 = vmatmul.mubr.bf16.gmra.mrb[0].mxu0 %v619
      %v893 = vpop.f32.mrb[0].mxu0
      %v894 = vadd.f32 %v356, %v893
      %v895 = vpop.f32.mrb[0].mxu0
      %v896 = vpop.f32.mrb[0].mxu0
      %v897 = vadd.f32 %v356, %v896
      %v898 = vpop.f32.mrb[0].mxu0
      %899 = vmatprep.mubr.bf16.mxu0 0
      %900 = vmatmul.mubr.bf16.gmra.mrb[0].mxu0 %v622
      %v901 = vpop.f32.mrb[0].mxu0
      %v902 = vadd.f32 %v356, %v901
      %v903 = vpop.f32.mrb[0].mxu0
      %v904 = vpop.f32.mrb[0].mxu0
      %v905 = vadd.f32 %v356, %v904
      %v906 = vpop.f32.mrb[0].mxu0
      %907 = vmatprep.mubr.bf16.mxu0 0
      %908 = vmatmul.mubr.bf16.gmra.mrb[0].mxu0 %v625
      %v909 = vpop.f32.mrb[0].mxu0
      %v910 = vadd.f32 %v356, %v909
      %v911 = vpop.f32.mrb[0].mxu0
      %v912 = vpop.f32.mrb[0].mxu0
      %v913 = vadd.f32 %v356, %v912
      %v914 = vpop.f32.mrb[0].mxu0
      %915 = vdwg.mxu0
      %v916 = vmul.f32 %v662, 0.5
      %v917 = vmul.f32 %v665, 0.5
      %v918 = vmul.f32 %v670, 0.5
      %v919 = vmul.f32 %v673, 0.5
      %v920 = vmul.f32 %v678, 0.5
      %v921 = vmul.f32 %v681, 0.5
      %v922 = vmul.f32 %v686, 0.5
      %v923 = vmul.f32 %v689, 0.5
      %v924 = vmul.f32 %v694, 0.5
      %v925 = vmul.f32 %v697, 0.5
      %v926 = vmul.f32 %v702, 0.5
      %v927 = vmul.f32 %v705, 0.5
      %v928 = vmul.f32 %v710, 0.5
      %v929 = vmul.f32 %v713, 0.5
      %v930 = vmul.f32 %v718, 0.5
      %v931 = vmul.f32 %v721, 0.5
      %v932 = vmul.f32 %v726, 0.5
      %v933 = vmul.f32 %v729, 0.5
      %v934 = vmul.f32 %v734, 0.5
      %v935 = vmul.f32 %v737, 0.5
      %v936 = vmul.f32 %v742, 0.5
      %v937 = vmul.f32 %v745, 0.5
      %v938 = vmul.f32 %v750, 0.5
      %v939 = vmul.f32 %v753, 0.5
      %v940 = vmul.f32 %v758, 0.5
      %v941 = vmul.f32 %v761, 0.5
      %v942 = vmul.f32 %v766, 0.5
      %v943 = vmul.f32 %v769, 0.5
      %v944 = vmul.f32 %v774, 0.5
      %v945 = vmul.f32 %v777, 0.5
      %v946 = vmul.f32 %v782, 0.5
      %v947 = vmul.f32 %v785, 0.5
      %v948 = vmul.f32 %v790, 0.5
      %v949 = vmul.f32 %v793, 0.5
      %v950 = vmul.f32 %v798, 0.5
      %v951 = vmul.f32 %v801, 0.5
      %v952 = vmul.f32 %v806, 0.5
      %v953 = vmul.f32 %v809, 0.5
      %v954 = vmul.f32 %v814, 0.5
      %v955 = vmul.f32 %v817, 0.5
      %v956 = vmul.f32 %v822, 0.5
      %v957 = vmul.f32 %v825, 0.5
      %v958 = vmul.f32 %v830, 0.5
      %v959 = vmul.f32 %v833, 0.5
      %v960 = vmul.f32 %v838, 0.5
      %v961 = vmul.f32 %v841, 0.5
      %v962 = vmul.f32 %v846, 0.5
      %v963 = vmul.f32 %v849, 0.5
      %v964 = vmul.f32 %v854, 0.5
      %v965 = vmul.f32 %v857, 0.5
      %v966 = vmul.f32 %v862, 0.5
      %v967 = vmul.f32 %v865, 0.5
      %v968 = vmul.f32 %v870, 0.5
      %v969 = vmul.f32 %v873, 0.5
      %v970 = vmul.f32 %v878, 0.5
      %v971 = vmul.f32 %v881, 0.5
      %v972 = vmul.f32 %v886, 0.5
      %v973 = vmul.f32 %v889, 0.5
      %v974 = vmul.f32 %v894, 0.5
      %v975 = vmul.f32 %v897, 0.5
      %v976 = vmul.f32 %v902, 0.5
      %v977 = vmul.f32 %v905, 0.5
      %v978 = vmul.f32 %v910, 0.5
      %v979 = vmul.f32 %v913, 0.5
      %v980 = vmul.f32 %v662, 0.70710677
      %v981 = vmul.f32 %v665, 0.70710677
      %v982 = vmul.f32 %v670, 0.70710677
      %v983 = vmul.f32 %v673, 0.70710677
      %v984 = vmul.f32 %v678, 0.70710677
      %v985 = vmul.f32 %v681, 0.70710677
      %v986 = vmul.f32 %v686, 0.70710677
      %v987 = vmul.f32 %v689, 0.70710677
      %v988 = vmul.f32 %v694, 0.70710677
      %v989 = vmul.f32 %v697, 0.70710677
      %v990 = vmul.f32 %v702, 0.70710677
      %v991 = vmul.f32 %v705, 0.70710677
      %v992 = vmul.f32 %v710, 0.70710677
      %v993 = vmul.f32 %v713, 0.70710677
      %v994 = vmul.f32 %v718, 0.70710677
      %v995 = vmul.f32 %v721, 0.70710677
      %v996 = vmul.f32 %v726, 0.70710677
      %v997 = vmul.f32 %v729, 0.70710677
      %v998 = vmul.f32 %v734, 0.70710677
      %v999 = vmul.f32 %v737, 0.70710677
      %v1000 = vmul.f32 %v742, 0.70710677
      %v1001 = vmul.f32 %v745, 0.70710677
      %v1002 = vmul.f32 %v750, 0.70710677
      %v1003 = vmul.f32 %v753, 0.70710677
      %v1004 = vmul.f32 %v758, 0.70710677
      %v1005 = vmul.f32 %v761, 0.70710677
      %v1006 = vmul.f32 %v766, 0.70710677
      %v1007 = vmul.f32 %v769, 0.70710677
      %v1008 = vmul.f32 %v774, 0.70710677
      %v1009 = vmul.f32 %v777, 0.70710677
      %v1010 = vmul.f32 %v782, 0.70710677
      %v1011 = vmul.f32 %v785, 0.70710677
      %v1012 = vmul.f32 %v790, 0.70710677
      %v1013 = vmul.f32 %v793, 0.70710677
      %v1014 = vmul.f32 %v798, 0.70710677
      %v1015 = vmul.f32 %v801, 0.70710677
      %v1016 = vmul.f32 %v806, 0.70710677
      %v1017 = vmul.f32 %v809, 0.70710677
      %v1018 = vmul.f32 %v814, 0.70710677
      %v1019 = vmul.f32 %v817, 0.70710677
      %v1020 = vmul.f32 %v822, 0.70710677
      %v1021 = vmul.f32 %v825, 0.70710677
      %v1022 = vmul.f32 %v830, 0.70710677
      %v1023 = vmul.f32 %v833, 0.70710677
      %v1024 = vmul.f32 %v838, 0.70710677
      %v1025 = vmul.f32 %v841, 0.70710677
      %v1026 = vmul.f32 %v846, 0.70710677
      %v1027 = vmul.f32 %v849, 0.70710677
      %v1028 = vmul.f32 %v854, 0.70710677
      %v1029 = vmul.f32 %v857, 0.70710677
      %v1030 = vmul.f32 %v862, 0.70710677
      %v1031 = vmul.f32 %v865, 0.70710677
      %v1032 = vmul.f32 %v870, 0.70710677
      %v1033 = vmul.f32 %v873, 0.70710677
      %v1034 = vmul.f32 %v878, 0.70710677
      %v1035 = vmul.f32 %v881, 0.70710677
      %v1036 = vmul.f32 %v886, 0.70710677
      %v1037 = vmul.f32 %v889, 0.70710677
      %v1038 = vmul.f32 %v894, 0.70710677
      %v1039 = vmul.f32 %v897, 0.70710677
      %v1040 = vmul.f32 %v902, 0.70710677
      %v1041 = vmul.f32 %v905, 0.70710677
      %v1042 = vmul.f32 %v910, 0.70710677
      %v1043 = vmul.f32 %v913, 0.70710677
      %v1044 = verf.f32.pop %v980
      %v1045 = verf.f32.pop %v981
      %v1046 = verf.f32.pop %v982
      %v1047 = verf.f32.pop %v983
      %v1048 = verf.f32.pop %v984
      %v1049 = verf.f32.pop %v985
      %v1050 = verf.f32.pop %v986
      %v1051 = verf.f32.pop %v987
      %v1052 = verf.f32.pop %v988
      %v1053 = verf.f32.pop %v989
      %v1054 = verf.f32.pop %v990
      %v1055 = verf.f32.pop %v991
      %v1056 = verf.f32.pop %v992
      %v1057 = verf.f32.pop %v993
      %v1058 = verf.f32.pop %v994
      %v1059 = verf.f32.pop %v995
      %v1060 = verf.f32.pop %v996
      %v1061 = verf.f32.pop %v997
      %v1062 = verf.f32.pop %v998
      %v1063 = verf.f32.pop %v999
      %v1064 = verf.f32.pop %v1000
      %v1065 = verf.f32.pop %v1001
      %v1066 = verf.f32.pop %v1002
      %v1067 = verf.f32.pop %v1003
      %v1068 = verf.f32.pop %v1004
      %v1069 = verf.f32.pop %v1005
      %v1070 = verf.f32.pop %v1006
      %v1071 = verf.f32.pop %v1007
      %v1072 = verf.f32.pop %v1008
      %v1073 = verf.f32.pop %v1009
      %v1074 = verf.f32.pop %v1010
      %v1075 = verf.f32.pop %v1011
      %v1076 = verf.f32.pop %v1012
      %v1077 = verf.f32.pop %v1013
      %v1078 = verf.f32.pop %v1014
      %v1079 = verf.f32.pop %v1015
      %v1080 = verf.f32.pop %v1016
      %v1081 = verf.f32.pop %v1017
      %v1082 = verf.f32.pop %v1018
      %v1083 = verf.f32.pop %v1019
      %v1084 = verf.f32.pop %v1020
      %v1085 = verf.f32.pop %v1021
      %v1086 = verf.f32.pop %v1022
      %v1087 = verf.f32.pop %v1023
      %v1088 = verf.f32.pop %v1024
      %v1089 = verf.f32.pop %v1025
      %v1090 = verf.f32.pop %v1026
      %v1091 = verf.f32.pop %v1027
      %v1092 = verf.f32.pop %v1028
      %v1093 = verf.f32.pop %v1029
      %v1094 = verf.f32.pop %v1030
      %v1095 = verf.f32.pop %v1031
      %v1096 = verf.f32.pop %v1032
      %v1097 = verf.f32.pop %v1033
      %v1098 = verf.f32.pop %v1034
      %v1099 = verf.f32.pop %v1035
      %v1100 = verf.f32.pop %v1036
      %v1101 = verf.f32.pop %v1037
      %v1102 = verf.f32.pop %v1038
      %v1103 = verf.f32.pop %v1039
      %v1104 = verf.f32.pop %v1040
      %v1105 = verf.f32.pop %v1041
      %v1106 = verf.f32.pop %v1042
      %v1107 = verf.f32.pop %v1043
      %v1108 = vadd.f32 %v1044, 1.0
      %v1109 = vadd.f32 %v1045, 1.0
      %v1110 = vadd.f32 %v1046, 1.0
      %v1111 = vadd.f32 %v1047, 1.0
      %v1112 = vadd.f32 %v1048, 1.0
      %v1113 = vadd.f32 %v1049, 1.0
      %v1114 = vadd.f32 %v1050, 1.0
      %v1115 = vadd.f32 %v1051, 1.0
      %v1116 = vadd.f32 %v1052, 1.0
      %v1117 = vadd.f32 %v1053, 1.0
      %v1118 = vadd.f32 %v1054, 1.0
      %v1119 = vadd.f32 %v1055, 1.0
      %v1120 = vadd.f32 %v1056, 1.0
      %v1121 = vadd.f32 %v1057, 1.0
      %v1122 = vadd.f32 %v1058, 1.0
      %v1123 = vadd.f32 %v1059, 1.0
      %v1124 = vadd.f32 %v1060, 1.0
      %v1125 = vadd.f32 %v1061, 1.0
      %v1126 = vadd.f32 %v1062, 1.0
      %v1127 = vadd.f32 %v1063, 1.0
      %v1128 = vadd.f32 %v1064, 1.0
      %v1129 = vadd.f32 %v1065, 1.0
      %v1130 = vadd.f32 %v1066, 1.0
      %v1131 = vadd.f32 %v1067, 1.0
      %v1132 = vadd.f32 %v1068, 1.0
      %v1133 = vadd.f32 %v1069, 1.0
      %v1134 = vadd.f32 %v1070, 1.0
      %v1135 = vadd.f32 %v1071, 1.0
      %v1136 = vadd.f32 %v1072, 1.0
      %v1137 = vadd.f32 %v1073, 1.0
      %v1138 = vadd.f32 %v1074, 1.0
      %v1139 = vadd.f32 %v1075, 1.0
      %v1140 = vadd.f32 %v1076, 1.0
      %v1141 = vadd.f32 %v1077, 1.0
      %v1142 = vadd.f32 %v1078, 1.0
      %v1143 = vadd.f32 %v1079, 1.0
      %v1144 = vadd.f32 %v1080, 1.0
      %v1145 = vadd.f32 %v1081, 1.0
      %v1146 = vadd.f32 %v1082, 1.0
      %v1147 = vadd.f32 %v1083, 1.0
      %v1148 = vadd.f32 %v1084, 1.0
      %v1149 = vadd.f32 %v1085, 1.0
      %v1150 = vadd.f32 %v1086, 1.0
      %v1151 = vadd.f32 %v1087, 1.0
      %v1152 = vadd.f32 %v1088, 1.0
      %v1153 = vadd.f32 %v1089, 1.0
      %v1154 = vadd.f32 %v1090, 1.0
      %v1155 = vadd.f32 %v1091, 1.0
      %v1156 = vadd.f32 %v1092, 1.0
      %v1157 = vadd.f32 %v1093, 1.0
      %v1158 = vadd.f32 %v1094, 1.0
      %v1159 = vadd.f32 %v1095, 1.0
      %v1160 = vadd.f32 %v1096, 1.0
      %v1161 = vadd.f32 %v1097, 1.0
      %v1162 = vadd.f32 %v1098, 1.0
      %v1163 = vadd.f32 %v1099, 1.0
      %v1164 = vadd.f32 %v1100, 1.0
      %v1165 = vadd.f32 %v1101, 1.0
      %v1166 = vadd.f32 %v1102, 1.0
      %v1167 = vadd.f32 %v1103, 1.0
      %v1168 = vadd.f32 %v1104, 1.0
      %v1169 = vadd.f32 %v1105, 1.0
      %v1170 = vadd.f32 %v1106, 1.0
      %v1171 = vadd.f32 %v1107, 1.0
      %v1172 = vmul.f32 %v916, %v1108
      %v1173 = vmul.f32 %v917, %v1109
      %v1174 = vmul.f32 %v918, %v1110
      %v1175 = vmul.f32 %v919, %v1111
      %v1176 = vmul.f32 %v920, %v1112
      %v1177 = vmul.f32 %v921, %v1113
      %v1178 = vmul.f32 %v922, %v1114
      %v1179 = vmul.f32 %v923, %v1115
      %v1180 = vmul.f32 %v924, %v1116
      %v1181 = vmul.f32 %v925, %v1117
      %v1182 = vmul.f32 %v926, %v1118
      %v1183 = vmul.f32 %v927, %v1119
      %v1184 = vmul.f32 %v928, %v1120
      %v1185 = vmul.f32 %v929, %v1121
      %v1186 = vmul.f32 %v930, %v1122
      %v1187 = vmul.f32 %v931, %v1123
      %v1188 = vmul.f32 %v932, %v1124
      %v1189 = vmul.f32 %v933, %v1125
      %v1190 = vmul.f32 %v934, %v1126
      %v1191 = vmul.f32 %v935, %v1127
      %v1192 = vmul.f32 %v936, %v1128
      %v1193 = vmul.f32 %v937, %v1129
      %v1194 = vmul.f32 %v938, %v1130
      %v1195 = vmul.f32 %v939, %v1131
      %v1196 = vmul.f32 %v940, %v1132
      %v1197 = vmul.f32 %v941, %v1133
      %v1198 = vmul.f32 %v942, %v1134
      %v1199 = vmul.f32 %v943, %v1135
      %v1200 = vmul.f32 %v944, %v1136
      %v1201 = vmul.f32 %v945, %v1137
      %v1202 = vmul.f32 %v946, %v1138
      %v1203 = vmul.f32 %v947, %v1139
      %v1204 = vmul.f32 %v948, %v1140
      %v1205 = vmul.f32 %v949, %v1141
      %v1206 = vmul.f32 %v950, %v1142
      %v1207 = vmul.f32 %v951, %v1143
      %v1208 = vmul.f32 %v952, %v1144
      %v1209 = vmul.f32 %v953, %v1145
      %v1210 = vmul.f32 %v954, %v1146
      %v1211 = vmul.f32 %v955, %v1147
      %v1212 = vmul.f32 %v956, %v1148
      %v1213 = vmul.f32 %v957, %v1149
      %v1214 = vmul.f32 %v958, %v1150
      %v1215 = vmul.f32 %v959, %v1151
      %v1216 = vmul.f32 %v960, %v1152
      %v1217 = vmul.f32 %v961, %v1153
      %v1218 = vmul.f32 %v962, %v1154
      %v1219 = vmul.f32 %v963, %v1155
      %v1220 = vmul.f32 %v964, %v1156
      %v1221 = vmul.f32 %v965, %v1157
      %v1222 = vmul.f32 %v966, %v1158
      %v1223 = vmul.f32 %v967, %v1159
      %v1224 = vmul.f32 %v968, %v1160
      %v1225 = vmul.f32 %v969, %v1161
      %v1226 = vmul.f32 %v970, %v1162
      %v1227 = vmul.f32 %v971, %v1163
      %v1228 = vmul.f32 %v972, %v1164
      %v1229 = vmul.f32 %v973, %v1165
      %v1230 = vmul.f32 %v974, %v1166
      %v1231 = vmul.f32 %v975, %v1167
      %v1232 = vmul.f32 %v976, %v1168
      %v1233 = vmul.f32 %v977, %v1169
      %v1234 = vmul.f32 %v978, %v1170
      %v1235 = vmul.f32 %v979, %v1171
      %v1236 = vpack.c.bf16 %v1173, %v1172
      %v1237 = vpack.c.bf16 %v1175, %v1174
      %v1238 = vpack.c.bf16 %v1177, %v1176
      %v1239 = vpack.c.bf16 %v1179, %v1178
      %v1240 = vpack.c.bf16 %v1181, %v1180
      %v1241 = vpack.c.bf16 %v1183, %v1182
      %v1242 = vpack.c.bf16 %v1185, %v1184
      %v1243 = vpack.c.bf16 %v1187, %v1186
      %v1244 = vpack.c.bf16 %v1189, %v1188
      %v1245 = vpack.c.bf16 %v1191, %v1190
      %v1246 = vpack.c.bf16 %v1193, %v1192
      %v1247 = vpack.c.bf16 %v1195, %v1194
      %v1248 = vpack.c.bf16 %v1197, %v1196
      %v1249 = vpack.c.bf16 %v1199, %v1198
      %v1250 = vpack.c.bf16 %v1201, %v1200
      %v1251 = vpack.c.bf16 %v1203, %v1202
      %v1252 = vpack.c.bf16 %v1205, %v1204
      %v1253 = vpack.c.bf16 %v1207, %v1206
      %v1254 = vpack.c.bf16 %v1209, %v1208
      %v1255 = vpack.c.bf16 %v1211, %v1210
      %v1256 = vpack.c.bf16 %v1213, %v1212
      %v1257 = vpack.c.bf16 %v1215, %v1214
      %v1258 = vpack.c.bf16 %v1217, %v1216
      %v1259 = vpack.c.bf16 %v1219, %v1218
      %v1260 = vpack.c.bf16 %v1221, %v1220
      %v1261 = vpack.c.bf16 %v1223, %v1222
      %v1262 = vpack.c.bf16 %v1225, %v1224
      %v1263 = vpack.c.bf16 %v1227, %v1226
      %v1264 = vpack.c.bf16 %v1229, %v1228
      %v1265 = vpack.c.bf16 %v1231, %v1230
      %v1266 = vpack.c.bf16 %v1233, %v1232
      %v1267 = vpack.c.bf16 %v1235, %v1234
      %v1268 = vld [vmem:[%s3] sm:$0xf]
      %v1269 = vld [vmem:[%s3 + $0x4] sm:$0xf]
      %v1270 = vld [vmem:[%s3 + $0x8] sm:$0xf]
      %v1271 = vld [vmem:[%s3 + $0xc] sm:$0xf]
      %v1272 = vld [vmem:[%s3 + $0x10] sm:$0xf]
      %v1273 = vld [vmem:[%s3 + $0x14] sm:$0xf]
      %v1274 = vld [vmem:[%s3 + $0x18] sm:$0xf]
      %v1275 = vld [vmem:[%s3 + $0x1c] sm:$0xf]
      %v1276 = vld [vmem:[%s3 + $0x20] sm:$0xf]
      %v1277 = vld [vmem:[%s3 + $0x24] sm:$0xf]
      %v1278 = vld [vmem:[%s3 + $0x28] sm:$0xf]
      %v1279 = vld [vmem:[%s3 + $0x2c] sm:$0xf]
      %v1280 = vld [vmem:[%s3 + $0x30] sm:$0xf]
      %v1281 = vld [vmem:[%s3 + $0x34] sm:$0xf]
      %v1282 = vld [vmem:[%s3 + $0x38] sm:$0xf]
      %v1283 = vld [vmem:[%s3 + $0x3c] sm:$0xf]
      %v1284 = vld [vmem:[%s4] sm:$0x1]
      %v1286 = vlaneseq
      %v1287 = vshrl.u32 %v1286, 7
      %v1288 = vsub.s32 0, %v1287
      %v1289 = vrot.slane %v1284, %v1288
      %v1307 = vunpack.c.l.b16 %v1268
      %v1308 = vunpack.c.l.b16 %v1269
      %v1309 = vunpack.c.l.b16 %v1270
      %v1310 = vunpack.c.l.b16 %v1271
      %v1311 = vunpack.c.l.b16 %v1272
      %v1312 = vunpack.c.l.b16 %v1273
      %v1313 = vunpack.c.l.b16 %v1274
      %v1314 = vunpack.c.l.b16 %v1275
      %v1315 = vunpack.c.l.b16 %v1276
      %v1316 = vunpack.c.l.b16 %v1277
      %v1317 = vunpack.c.l.b16 %v1278
      %v1318 = vunpack.c.l.b16 %v1279
      %v1319 = vunpack.c.l.b16 %v1280
      %v1320 = vunpack.c.l.b16 %v1281
      %v1321 = vunpack.c.l.b16 %v1282
      %v1322 = vunpack.c.l.b16 %v1283
      %v1323 = vpack.c.b16 %v1308, %v1307
      %v1324 = vpack.c.b16 %v1310, %v1309
      %v1325 = vpack.c.b16 %v1312, %v1311
      %v1326 = vpack.c.b16 %v1314, %v1313
      %v1327 = vpack.c.b16 %v1316, %v1315
      %v1328 = vpack.c.b16 %v1318, %v1317
      %v1329 = vpack.c.b16 %v1320, %v1319
      %v1330 = vpack.c.b16 %v1322, %v1321
      %1339 = vmatprep.subr.bf16.mxu0 0
      %1340 = vmatpush1.bf16.msra.mxu0 %v1323
      %1341 = vmatprep.subr.bf16.mxu0 0
      %1342 = vmatpush1.bf16.msra.mxu0 %v1324
      %1343 = vmatprep.subr.bf16.mxu0 0
      %1344 = vmatpush1.bf16.msra.mxu0 %v1325
      %1345 = vmatprep.subr.bf16.mxu0 0
      %1346 = vmatpush1.bf16.msra.mxu0 %v1326
      %1347 = vmatprep.subr.bf16.mxu0 0
      %1348 = vmatpush1.bf16.msra.mxu0 %v1327
      %1349 = vmatprep.subr.bf16.mxu0 0
      %1350 = vmatpush1.bf16.msra.mxu0 %v1328
      %1351 = vmatprep.subr.bf16.mxu0 0
      %1352 = vmatpush1.bf16.msra.mxu0 %v1329
      %1353 = vmatprep.subr.bf16.mxu0 0
      %1354 = vmatpush1.bf16.msra.mxu0 %v1330
      %1355 = vmatprep.subr.bf16.mxu0 0
      %1356 = vmatpush1.bf16.msra.mxu0 0
      %1357 = vmatprep.subr.bf16.mxu0 0
      %1358 = vmatpush1.bf16.msra.mxu0 0
      %1359 = vmatprep.subr.bf16.mxu0 0
      %1360 = vmatpush1.bf16.msra.mxu0 0
      %1361 = vmatprep.subr.bf16.mxu0 0
      %1362 = vmatpush1.bf16.msra.mxu0 0
      %1363 = vmatprep.subr.bf16.mxu0 0
      %1364 = vmatpush1.bf16.msra.mxu0 0
      %1365 = vmatprep.subr.bf16.mxu0 0
      %1366 = vmatpush1.bf16.msra.mxu0 0
      %1367 = vmatprep.subr.bf16.mxu0 0
      %1368 = vmatpush1.bf16.msra.mxu0 0
      %1369 = vmatprep.subr.bf16.mxu0 0
      %1370 = vmatpush1.bf16.msra.mxu0 0
      %1371 = vmatprep.mubr.bf16.mxu0 0
      %1372 = vmatmul.mubr.bf16.gmra.mrb[0].mxu0 %v1236
      %v1373 = vpop.f32.mrb[0].mxu0
      %v1374 = vadd.f32 %v1289, %v1373
      %v1375 = vpop.f32.mrb[0].mxu0
      %v1376 = vpop.f32.mrb[0].mxu0
      %v1377 = vadd.f32 %v1289, %v1376
      %v1378 = vpop.f32.mrb[0].mxu0
      %1379 = vmatprep.mubr.bf16.mxu0 0
      %1380 = vmatmul.mubr.bf16.gmra.mrb[0].mxu0 %v1237
      %v1381 = vpop.f32.mrb[0].mxu0
      %v1382 = vadd.f32 %v1289, %v1381
      %v1383 = vpop.f32.mrb[0].mxu0
      %v1384 = vpop.f32.mrb[0].mxu0
      %v1385 = vadd.f32 %v1289, %v1384
      %v1386 = vpop.f32.mrb[0].mxu0
      %1387 = vmatprep.mubr.bf16.mxu0 0
      %1388 = vmatmul.mubr.bf16.gmra.mrb[0].mxu0 %v1238
      %v1389 = vpop.f32.mrb[0].mxu0
      %v1390 = vadd.f32 %v1289, %v1389
      %v1391 = vpop.f32.mrb[0].mxu0
      %v1392 = vpop.f32.mrb[0].mxu0
      %v1393 = vadd.f32 %v1289, %v1392
      %v1394 = vpop.f32.mrb[0].mxu0
      %1395 = vmatprep.mubr.bf16.mxu0 0
      %1396 = vmatmul.mubr.bf16.gmra.mrb[0].mxu0 %v1239
      %v1397 = vpop.f32.mrb[0].mxu0
      %v1398 = vadd.f32 %v1289, %v1397
      %v1399 = vpop.f32.mrb[0].mxu0
      %v1400 = vpop.f32.mrb[0].mxu0
      %v1401 = vadd.f32 %v1289, %v1400
      %v1402 = vpop.f32.mrb[0].mxu0
      %1403 = vmatprep.mubr.bf16.mxu0 0
      %1404 = vmatmul.mubr.bf16.gmra.mrb[0].mxu0 %v1240
      %v1405 = vpop.f32.mrb[0].mxu0
      %v1406 = vadd.f32 %v1289, %v1405
      %v1407 = vpop.f32.mrb[0].mxu0
      %v1408 = vpop.f32.mrb[0].mxu0
      %v1409 = vadd.f32 %v1289, %v1408
      %v1410 = vpop.f32.mrb[0].mxu0
      %1411 = vmatprep.mubr.bf16.mxu0 0
      %1412 = vmatmul.mubr.bf16.gmra.mrb[0].mxu0 %v1241
      %v1413 = vpop.f32.mrb[0].mxu0
      %v1414 = vadd.f32 %v1289, %v1413
      %v1415 = vpop.f32.mrb[0].mxu0
      %v1416 = vpop.f32.mrb[0].mxu0
      %v1417 = vadd.f32 %v1289, %v1416
      %v1418 = vpop.f32.mrb[0].mxu0
      %1419 = vmatprep.mubr.bf16.mxu0 0
      %1420 = vmatmul.mubr.bf16.gmra.mrb[0].mxu0 %v1242
      %v1421 = vpop.f32.mrb[0].mxu0
      %v1422 = vadd.f32 %v1289, %v1421
      %v1423 = vpop.f32.mrb[0].mxu0
      %v1424 = vpop.f32.mrb[0].mxu0
      %v1425 = vadd.f32 %v1289, %v1424
      %v1426 = vpop.f32.mrb[0].mxu0
      %1427 = vmatprep.mubr.bf16.mxu0 0
      %1428 = vmatmul.mubr.bf16.gmra.mrb[0].mxu0 %v1243
      %v1429 = vpop.f32.mrb[0].mxu0
      %v1430 = vadd.f32 %v1289, %v1429
      %v1431 = vpop.f32.mrb[0].mxu0
      %v1432 = vpop.f32.mrb[0].mxu0
      %v1433 = vadd.f32 %v1289, %v1432
      %v1434 = vpop.f32.mrb[0].mxu0
      %1435 = vmatprep.mubr.bf16.mxu0 0
      %1436 = vmatmul.mubr.bf16.gmra.mrb[0].mxu0 %v1244
      %v1437 = vpop.f32.mrb[0].mxu0
      %v1438 = vadd.f32 %v1289, %v1437
      %v1439 = vpop.f32.mrb[0].mxu0
      %v1440 = vpop.f32.mrb[0].mxu0
      %v1441 = vadd.f32 %v1289, %v1440
      %v1442 = vpop.f32.mrb[0].mxu0
      %1443 = vmatprep.mubr.bf16.mxu0 0
      %1444 = vmatmul.mubr.bf16.gmra.mrb[0].mxu0 %v1245
      %v1445 = vpop.f32.mrb[0].mxu0
      %v1446 = vadd.f32 %v1289, %v1445
      %v1447 = vpop.f32.mrb[0].mxu0
      %v1448 = vpop.f32.mrb[0].mxu0
      %v1449 = vadd.f32 %v1289, %v1448
      %v1450 = vpop.f32.mrb[0].mxu0
      %1451 = vmatprep.mubr.bf16.mxu0 0
      %1452 = vmatmul.mubr.bf16.gmra.mrb[0].mxu0 %v1246
      %v1453 = vpop.f32.mrb[0].mxu0
      %v1454 = vadd.f32 %v1289, %v1453
      %v1455 = vpop.f32.mrb[0].mxu0
      %v1456 = vpop.f32.mrb[0].mxu0
      %v1457 = vadd.f32 %v1289, %v1456
      %v1458 = vpop.f32.mrb[0].mxu0
      %1459 = vmatprep.mubr.bf16.mxu0 0
      %1460 = vmatmul.mubr.bf16.gmra.mrb[0].mxu0 %v1247
      %v1461 = vpop.f32.mrb[0].mxu0
      %v1462 = vadd.f32 %v1289, %v1461
      %v1463 = vpop.f32.mrb[0].mxu0
      %v1464 = vpop.f32.mrb[0].mxu0
      %v1465 = vadd.f32 %v1289, %v1464
      %v1466 = vpop.f32.mrb[0].mxu0
      %1467 = vmatprep.mubr.bf16.mxu0 0
      %1468 = vmatmul.mubr.bf16.gmra.mrb[0].mxu0 %v1248
      %v1469 = vpop.f32.mrb[0].mxu0
      %v1470 = vadd.f32 %v1289, %v1469
      %v1471 = vpop.f32.mrb[0].mxu0
      %v1472 = vpop.f32.mrb[0].mxu0
      %v1473 = vadd.f32 %v1289, %v1472
      %v1474 = vpop.f32.mrb[0].mxu0
      %1475 = vmatprep.mubr.bf16.mxu0 0
      %1476 = vmatmul.mubr.bf16.gmra.mrb[0].mxu0 %v1249
      %v1477 = vpop.f32.mrb[0].mxu0
      %v1478 = vadd.f32 %v1289, %v1477
      %v1479 = vpop.f32.mrb[0].mxu0
      %v1480 = vpop.f32.mrb[0].mxu0
      %v1481 = vadd.f32 %v1289, %v1480
      %v1482 = vpop.f32.mrb[0].mxu0
      %1483 = vmatprep.mubr.bf16.mxu0 0
      %1484 = vmatmul.mubr.bf16.gmra.mrb[0].mxu0 %v1250
      %v1485 = vpop.f32.mrb[0].mxu0
      %v1486 = vadd.f32 %v1289, %v1485
      %v1487 = vpop.f32.mrb[0].mxu0
      %v1488 = vpop.f32.mrb[0].mxu0
      %v1489 = vadd.f32 %v1289, %v1488
      %v1490 = vpop.f32.mrb[0].mxu0
      %1491 = vmatprep.mubr.bf16.mxu0 0
      %1492 = vmatmul.mubr.bf16.gmra.mrb[0].mxu0 %v1251
      %v1493 = vpop.f32.mrb[0].mxu0
      %v1494 = vadd.f32 %v1289, %v1493
      %v1495 = vpop.f32.mrb[0].mxu0
      %v1496 = vpop.f32.mrb[0].mxu0
      %v1497 = vadd.f32 %v1289, %v1496
      %v1498 = vpop.f32.mrb[0].mxu0
      %1499 = vmatprep.mubr.bf16.mxu0 0
      %1500 = vmatmul.mubr.bf16.gmra.mrb[0].mxu0 %v1252
      %v1501 = vpop.f32.mrb[0].mxu0
      %v1502 = vadd.f32 %v1289, %v1501
      %v1503 = vpop.f32.mrb[0].mxu0
      %v1504 = vpop.f32.mrb[0].mxu0
      %v1505 = vadd.f32 %v1289, %v1504
      %v1506 = vpop.f32.mrb[0].mxu0
      %1507 = vmatprep.mubr.bf16.mxu0 0
      %1508 = vmatmul.mubr.bf16.gmra.mrb[0].mxu0 %v1253
      %v1509 = vpop.f32.mrb[0].mxu0
      %v1510 = vadd.f32 %v1289, %v1509
      %v1511 = vpop.f32.mrb[0].mxu0
      %v1512 = vpop.f32.mrb[0].mxu0
      %v1513 = vadd.f32 %v1289, %v1512
      %v1514 = vpop.f32.mrb[0].mxu0
      %1515 = vmatprep.mubr.bf16.mxu0 0
      %1516 = vmatmul.mubr.bf16.gmra.mrb[0].mxu0 %v1254
      %v1517 = vpop.f32.mrb[0].mxu0
      %v1518 = vadd.f32 %v1289, %v1517
      %v1519 = vpop.f32.mrb[0].mxu0
      %v1520 = vpop.f32.mrb[0].mxu0
      %v1521 = vadd.f32 %v1289, %v1520
      %v1522 = vpop.f32.mrb[0].mxu0
      %1523 = vmatprep.mubr.bf16.mxu0 0
      %1524 = vmatmul.mubr.bf16.gmra.mrb[0].mxu0 %v1255
      %v1525 = vpop.f32.mrb[0].mxu0
      %v1526 = vadd.f32 %v1289, %v1525
      %v1527 = vpop.f32.mrb[0].mxu0
      %v1528 = vpop.f32.mrb[0].mxu0
      %v1529 = vadd.f32 %v1289, %v1528
      %v1530 = vpop.f32.mrb[0].mxu0
      %1531 = vmatprep.mubr.bf16.mxu0 0
      %1532 = vmatmul.mubr.bf16.gmra.mrb[0].mxu0 %v1256
      %v1533 = vpop.f32.mrb[0].mxu0
      %v1534 = vadd.f32 %v1289, %v1533
      %v1535 = vpop.f32.mrb[0].mxu0
      %v1536 = vpop.f32.mrb[0].mxu0
      %v1537 = vadd.f32 %v1289, %v1536
      %v1538 = vpop.f32.mrb[0].mxu0
      %1539 = vmatprep.mubr.bf16.mxu0 0
      %1540 = vmatmul.mubr.bf16.gmra.mrb[0].mxu0 %v1257
      %v1541 = vpop.f32.mrb[0].mxu0
      %v1542 = vadd.f32 %v1289, %v1541
      %v1543 = vpop.f32.mrb[0].mxu0
      %v1544 = vpop.f32.mrb[0].mxu0
      %v1545 = vadd.f32 %v1289, %v1544
      %v1546 = vpop.f32.mrb[0].mxu0
      %1547 = vmatprep.mubr.bf16.mxu0 0
      %1548 = vmatmul.mubr.bf16.gmra.mrb[0].mxu0 %v1258
      %v1549 = vpop.f32.mrb[0].mxu0
      %v1550 = vadd.f32 %v1289, %v1549
      %v1551 = vpop.f32.mrb[0].mxu0
      %v1552 = vpop.f32.mrb[0].mxu0
      %v1553 = vadd.f32 %v1289, %v1552
      %v1554 = vpop.f32.mrb[0].mxu0
      %1555 = vmatprep.mubr.bf16.mxu0 0
      %1556 = vmatmul.mubr.bf16.gmra.mrb[0].mxu0 %v1259
      %v1557 = vpop.f32.mrb[0].mxu0
      %v1558 = vadd.f32 %v1289, %v1557
      %v1559 = vpop.f32.mrb[0].mxu0
      %v1560 = vpop.f32.mrb[0].mxu0
      %v1561 = vadd.f32 %v1289, %v1560
      %v1562 = vpop.f32.mrb[0].mxu0
      %1563 = vmatprep.mubr.bf16.mxu0 0
      %1564 = vmatmul.mubr.bf16.gmra.mrb[0].mxu0 %v1260
      %v1565 = vpop.f32.mrb[0].mxu0
      %v1566 = vadd.f32 %v1289, %v1565
      %v1567 = vpop.f32.mrb[0].mxu0
      %v1568 = vpop.f32.mrb[0].mxu0
      %v1569 = vadd.f32 %v1289, %v1568
      %v1570 = vpop.f32.mrb[0].mxu0
      %1571 = vmatprep.mubr.bf16.mxu0 0
      %1572 = vmatmul.mubr.bf16.gmra.mrb[0].mxu0 %v1261
      %v1573 = vpop.f32.mrb[0].mxu0
      %v1574 = vadd.f32 %v1289, %v1573
      %v1575 = vpop.f32.mrb[0].mxu0
      %v1576 = vpop.f32.mrb[0].mxu0
      %v1577 = vadd.f32 %v1289, %v1576
      %v1578 = vpop.f32.mrb[0].mxu0
      %1579 = vmatprep.mubr.bf16.mxu0 0
      %1580 = vmatmul.mubr.bf16.gmra.mrb[0].mxu0 %v1262
      %v1581 = vpop.f32.mrb[0].mxu0
      %v1582 = vadd.f32 %v1289, %v1581
      %v1583 = vpop.f32.mrb[0].mxu0
      %v1584 = vpop.f32.mrb[0].mxu0
      %v1585 = vadd.f32 %v1289, %v1584
      %v1586 = vpop.f32.mrb[0].mxu0
      %1587 = vmatprep.mubr.bf16.mxu0 0
      %1588 = vmatmul.mubr.bf16.gmra.mrb[0].mxu0 %v1263
      %v1589 = vpop.f32.mrb[0].mxu0
      %v1590 = vadd.f32 %v1289, %v1589
      %v1591 = vpop.f32.mrb[0].mxu0
      %v1592 = vpop.f32.mrb[0].mxu0
      %v1593 = vadd.f32 %v1289, %v1592
      %v1594 = vpop.f32.mrb[0].mxu0
      %1595 = vmatprep.mubr.bf16.mxu0 0
      %1596 = vmatmul.mubr.bf16.gmra.mrb[0].mxu0 %v1264
      %v1597 = vpop.f32.mrb[0].mxu0
      %v1598 = vadd.f32 %v1289, %v1597
      %v1599 = vpop.f32.mrb[0].mxu0
      %v1600 = vpop.f32.mrb[0].mxu0
      %v1601 = vadd.f32 %v1289, %v1600
      %v1602 = vpop.f32.mrb[0].mxu0
      %1603 = vmatprep.mubr.bf16.mxu0 0
      %1604 = vmatmul.mubr.bf16.gmra.mrb[0].mxu0 %v1265
      %v1605 = vpop.f32.mrb[0].mxu0
      %v1606 = vadd.f32 %v1289, %v1605
      %v1607 = vpop.f32.mrb[0].mxu0
      %v1608 = vpop.f32.mrb[0].mxu0
      %v1609 = vadd.f32 %v1289, %v1608
      %v1610 = vpop.f32.mrb[0].mxu0
      %1611 = vmatprep.mubr.bf16.mxu0 0
      %1612 = vmatmul.mubr.bf16.gmra.mrb[0].mxu0 %v1266
      %v1613 = vpop.f32.mrb[0].mxu0
      %v1614 = vadd.f32 %v1289, %v1613
      %v1615 = vpop.f32.mrb[0].mxu0
      %v1616 = vpop.f32.mrb[0].mxu0
      %v1617 = vadd.f32 %v1289, %v1616
      %v1618 = vpop.f32.mrb[0].mxu0
      %1619 = vmatprep.mubr.bf16.mxu0 0
      %1620 = vmatmul.mubr.bf16.gmra.mrb[0].mxu0 %v1267
      %v1621 = vpop.f32.mrb[0].mxu0
      %v1622 = vadd.f32 %v1289, %v1621
      %v1623 = vpop.f32.mrb[0].mxu0
      %v1624 = vpop.f32.mrb[0].mxu0
      %v1625 = vadd.f32 %v1289, %v1624
      %v1626 = vpop.f32.mrb[0].mxu0
      %1627 = vdwg.mxu0
      %v1628 = vmul.f32 %v1374, 0.5
      %v1629 = vmul.f32 %v1377, 0.5
      %v1630 = vmul.f32 %v1382, 0.5
      %v1631 = vmul.f32 %v1385, 0.5
      %v1632 = vmul.f32 %v1390, 0.5
      %v1633 = vmul.f32 %v1393, 0.5
      %v1634 = vmul.f32 %v1398, 0.5
      %v1635 = vmul.f32 %v1401, 0.5
      %v1636 = vmul.f32 %v1406, 0.5
      %v1637 = vmul.f32 %v1409, 0.5
      %v1638 = vmul.f32 %v1414, 0.5
      %v1639 = vmul.f32 %v1417, 0.5
      %v1640 = vmul.f32 %v1422, 0.5
      %v1641 = vmul.f32 %v1425, 0.5
      %v1642 = vmul.f32 %v1430, 0.5
      %v1643 = vmul.f32 %v1433, 0.5
      %v1644 = vmul.f32 %v1438, 0.5
      %v1645 = vmul.f32 %v1441, 0.5
      %v1646 = vmul.f32 %v1446, 0.5
      %v1647 = vmul.f32 %v1449, 0.5
      %v1648 = vmul.f32 %v1454, 0.5
      %v1649 = vmul.f32 %v1457, 0.5
      %v1650 = vmul.f32 %v1462, 0.5
      %v1651 = vmul.f32 %v1465, 0.5
      %v1652 = vmul.f32 %v1470, 0.5
      %v1653 = vmul.f32 %v1473, 0.5
      %v1654 = vmul.f32 %v1478, 0.5
      %v1655 = vmul.f32 %v1481, 0.5
      %v1656 = vmul.f32 %v1486, 0.5
      %v1657 = vmul.f32 %v1489, 0.5
      %v1658 = vmul.f32 %v1494, 0.5
      %v1659 = vmul.f32 %v1497, 0.5
      %v1660 = vmul.f32 %v1502, 0.5
      %v1661 = vmul.f32 %v1505, 0.5
      %v1662 = vmul.f32 %v1510, 0.5
      %v1663 = vmul.f32 %v1513, 0.5
      %v1664 = vmul.f32 %v1518, 0.5
      %v1665 = vmul.f32 %v1521, 0.5
      %v1666 = vmul.f32 %v1526, 0.5
      %v1667 = vmul.f32 %v1529, 0.5
      %v1668 = vmul.f32 %v1534, 0.5
      %v1669 = vmul.f32 %v1537, 0.5
      %v1670 = vmul.f32 %v1542, 0.5
      %v1671 = vmul.f32 %v1545, 0.5
      %v1672 = vmul.f32 %v1550, 0.5
      %v1673 = vmul.f32 %v1553, 0.5
      %v1674 = vmul.f32 %v1558, 0.5
      %v1675 = vmul.f32 %v1561, 0.5
      %v1676 = vmul.f32 %v1566, 0.5
      %v1677 = vmul.f32 %v1569, 0.5
      %v1678 = vmul.f32 %v1574, 0.5
      %v1679 = vmul.f32 %v1577, 0.5
      %v1680 = vmul.f32 %v1582, 0.5
      %v1681 = vmul.f32 %v1585, 0.5
      %v1682 = vmul.f32 %v1590, 0.5
      %v1683 = vmul.f32 %v1593, 0.5
      %v1684 = vmul.f32 %v1598, 0.5
      %v1685 = vmul.f32 %v1601, 0.5
      %v1686 = vmul.f32 %v1606, 0.5
      %v1687 = vmul.f32 %v1609, 0.5
      %v1688 = vmul.f32 %v1614, 0.5
      %v1689 = vmul.f32 %v1617, 0.5
      %v1690 = vmul.f32 %v1622, 0.5
      %v1691 = vmul.f32 %v1625, 0.5
      %v1692 = vmul.f32 %v1374, 0.70710677
      %v1693 = vmul.f32 %v1377, 0.70710677
      %v1694 = vmul.f32 %v1382, 0.70710677
      %v1695 = vmul.f32 %v1385, 0.70710677
      %v1696 = vmul.f32 %v1390, 0.70710677
      %v1697 = vmul.f32 %v1393, 0.70710677
      %v1698 = vmul.f32 %v1398, 0.70710677
      %v1699 = vmul.f32 %v1401, 0.70710677
      %v1700 = vmul.f32 %v1406, 0.70710677
      %v1701 = vmul.f32 %v1409, 0.70710677
      %v1702 = vmul.f32 %v1414, 0.70710677
      %v1703 = vmul.f32 %v1417, 0.70710677
      %v1704 = vmul.f32 %v1422, 0.70710677
      %v1705 = vmul.f32 %v1425, 0.70710677
      %v1706 = vmul.f32 %v1430, 0.70710677
      %v1707 = vmul.f32 %v1433, 0.70710677
      %v1708 = vmul.f32 %v1438, 0.70710677
      %v1709 = vmul.f32 %v1441, 0.70710677
      %v1710 = vmul.f32 %v1446, 0.70710677
      %v1711 = vmul.f32 %v1449, 0.70710677
      %v1712 = vmul.f32 %v1454, 0.70710677
      %v1713 = vmul.f32 %v1457, 0.70710677
      %v1714 = vmul.f32 %v1462, 0.70710677
      %v1715 = vmul.f32 %v1465, 0.70710677
      %v1716 = vmul.f32 %v1470, 0.70710677
      %v1717 = vmul.f32 %v1473, 0.70710677
      %v1718 = vmul.f32 %v1478, 0.70710677
      %v1719 = vmul.f32 %v1481, 0.70710677
      %v1720 = vmul.f32 %v1486, 0.70710677
      %v1721 = vmul.f32 %v1489, 0.70710677
      %v1722 = vmul.f32 %v1494, 0.70710677
      %v1723 = vmul.f32 %v1497, 0.70710677
      %v1724 = vmul.f32 %v1502, 0.70710677
      %v1725 = vmul.f32 %v1505, 0.70710677
      %v1726 = vmul.f32 %v1510, 0.70710677
      %v1727 = vmul.f32 %v1513, 0.70710677
      %v1728 = vmul.f32 %v1518, 0.70710677
      %v1729 = vmul.f32 %v1521, 0.70710677
      %v1730 = vmul.f32 %v1526, 0.70710677
      %v1731 = vmul.f32 %v1529, 0.70710677
      %v1732 = vmul.f32 %v1534, 0.70710677
      %v1733 = vmul.f32 %v1537, 0.70710677
      %v1734 = vmul.f32 %v1542, 0.70710677
      %v1735 = vmul.f32 %v1545, 0.70710677
      %v1736 = vmul.f32 %v1550, 0.70710677
      %v1737 = vmul.f32 %v1553, 0.70710677
      %v1738 = vmul.f32 %v1558, 0.70710677
      %v1739 = vmul.f32 %v1561, 0.70710677
      %v1740 = vmul.f32 %v1566, 0.70710677
      %v1741 = vmul.f32 %v1569, 0.70710677
      %v1742 = vmul.f32 %v1574, 0.70710677
      %v1743 = vmul.f32 %v1577, 0.70710677
      %v1744 = vmul.f32 %v1582, 0.70710677
      %v1745 = vmul.f32 %v1585, 0.70710677
      %v1746 = vmul.f32 %v1590, 0.70710677
      %v1747 = vmul.f32 %v1593, 0.70710677
      %v1748 = vmul.f32 %v1598, 0.70710677
      %v1749 = vmul.f32 %v1601, 0.70710677
      %v1750 = vmul.f32 %v1606, 0.70710677
      %v1751 = vmul.f32 %v1609, 0.70710677
      %v1752 = vmul.f32 %v1614, 0.70710677
      %v1753 = vmul.f32 %v1617, 0.70710677
      %v1754 = vmul.f32 %v1622, 0.70710677
      %v1755 = vmul.f32 %v1625, 0.70710677
      %v1756 = verf.f32.pop %v1692
      %v1757 = verf.f32.pop %v1693
      %v1758 = verf.f32.pop %v1694
      %v1759 = verf.f32.pop %v1695
      %v1760 = verf.f32.pop %v1696
      %v1761 = verf.f32.pop %v1697
      %v1762 = verf.f32.pop %v1698
      %v1763 = verf.f32.pop %v1699
      %v1764 = verf.f32.pop %v1700
      %v1765 = verf.f32.pop %v1701
      %v1766 = verf.f32.pop %v1702
      %v1767 = verf.f32.pop %v1703
      %v1768 = verf.f32.pop %v1704
      %v1769 = verf.f32.pop %v1705
      %v1770 = verf.f32.pop %v1706
      %v1771 = verf.f32.pop %v1707
      %v1772 = verf.f32.pop %v1708
      %v1773 = verf.f32.pop %v1709
      %v1774 = verf.f32.pop %v1710
      %v1775 = verf.f32.pop %v1711
      %v1776 = verf.f32.pop %v1712
      %v1777 = verf.f32.pop %v1713
      %v1778 = verf.f32.pop %v1714
      %v1779 = verf.f32.pop %v1715
      %v1780 = verf.f32.pop %v1716
      %v1781 = verf.f32.pop %v1717
      %v1782 = verf.f32.pop %v1718
      %v1783 = verf.f32.pop %v1719
      %v1784 = verf.f32.pop %v1720
      %v1785 = verf.f32.pop %v1721
      %v1786 = verf.f32.pop %v1722
      %v1787 = verf.f32.pop %v1723
      %v1788 = verf.f32.pop %v1724
      %v1789 = verf.f32.pop %v1725
      %v1790 = verf.f32.pop %v1726
      %v1791 = verf.f32.pop %v1727
      %v1792 = verf.f32.pop %v1728
      %v1793 = verf.f32.pop %v1729
      %v1794 = verf.f32.pop %v1730
      %v1795 = verf.f32.pop %v1731
      %v1796 = verf.f32.pop %v1732
      %v1797 = verf.f32.pop %v1733
      %v1798 = verf.f32.pop %v1734
      %v1799 = verf.f32.pop %v1735
      %v1800 = verf.f32.pop %v1736
      %v1801 = verf.f32.pop %v1737
      %v1802 = verf.f32.pop %v1738
      %v1803 = verf.f32.pop %v1739
      %v1804 = verf.f32.pop %v1740
      %v1805 = verf.f32.pop %v1741
      %v1806 = verf.f32.pop %v1742
      %v1807 = verf.f32.pop %v1743
      %v1808 = verf.f32.pop %v1744
      %v1809 = verf.f32.pop %v1745
      %v1810 = verf.f32.pop %v1746
      %v1811 = verf.f32.pop %v1747
      %v1812 = verf.f32.pop %v1748
      %v1813 = verf.f32.pop %v1749
      %v1814 = verf.f32.pop %v1750
      %v1815 = verf.f32.pop %v1751
      %v1816 = verf.f32.pop %v1752
      %v1817 = verf.f32.pop %v1753
      %v1818 = verf.f32.pop %v1754
      %v1819 = verf.f32.pop %v1755
      %v1820 = vadd.f32 %v1756, 1.0
      %v1821 = vadd.f32 %v1757, 1.0
      %v1822 = vadd.f32 %v1758, 1.0
      %v1823 = vadd.f32 %v1759, 1.0
      %v1824 = vadd.f32 %v1760, 1.0
      %v1825 = vadd.f32 %v1761, 1.0
      %v1826 = vadd.f32 %v1762, 1.0
      %v1827 = vadd.f32 %v1763, 1.0
      %v1828 = vadd.f32 %v1764, 1.0
      %v1829 = vadd.f32 %v1765, 1.0
      %v1830 = vadd.f32 %v1766, 1.0
      %v1831 = vadd.f32 %v1767, 1.0
      %v1832 = vadd.f32 %v1768, 1.0
      %v1833 = vadd.f32 %v1769, 1.0
      %v1834 = vadd.f32 %v1770, 1.0
      %v1835 = vadd.f32 %v1771, 1.0
      %v1836 = vadd.f32 %v1772, 1.0
      %v1837 = vadd.f32 %v1773, 1.0
      %v1838 = vadd.f32 %v1774, 1.0
      %v1839 = vadd.f32 %v1775, 1.0
      %v1840 = vadd.f32 %v1776, 1.0
      %v1841 = vadd.f32 %v1777, 1.0
      %v1842 = vadd.f32 %v1778, 1.0
      %v1843 = vadd.f32 %v1779, 1.0
      %v1844 = vadd.f32 %v1780, 1.0
      %v1845 = vadd.f32 %v1781, 1.0
      %v1846 = vadd.f32 %v1782, 1.0
      %v1847 = vadd.f32 %v1783, 1.0
      %v1848 = vadd.f32 %v1784, 1.0
      %v1849 = vadd.f32 %v1785, 1.0
      %v1850 = vadd.f32 %v1786, 1.0
      %v1851 = vadd.f32 %v1787, 1.0
      %v1852 = vadd.f32 %v1788, 1.0
      %v1853 = vadd.f32 %v1789, 1.0
      %v1854 = vadd.f32 %v1790, 1.0
      %v1855 = vadd.f32 %v1791, 1.0
      %v1856 = vadd.f32 %v1792, 1.0
      %v1857 = vadd.f32 %v1793, 1.0
      %v1858 = vadd.f32 %v1794, 1.0
      %v1859 = vadd.f32 %v1795, 1.0
      %v1860 = vadd.f32 %v1796, 1.0
      %v1861 = vadd.f32 %v1797, 1.0
      %v1862 = vadd.f32 %v1798, 1.0
      %v1863 = vadd.f32 %v1799, 1.0
      %v1864 = vadd.f32 %v1800, 1.0
      %v1865 = vadd.f32 %v1801, 1.0
      %v1866 = vadd.f32 %v1802, 1.0
      %v1867 = vadd.f32 %v1803, 1.0
      %v1868 = vadd.f32 %v1804, 1.0
      %v1869 = vadd.f32 %v1805, 1.0
      %v1870 = vadd.f32 %v1806, 1.0
      %v1871 = vadd.f32 %v1807, 1.0
      %v1872 = vadd.f32 %v1808, 1.0
      %v1873 = vadd.f32 %v1809, 1.0
      %v1874 = vadd.f32 %v1810, 1.0
      %v1875 = vadd.f32 %v1811, 1.0
      %v1876 = vadd.f32 %v1812, 1.0
      %v1877 = vadd.f32 %v1813, 1.0
      %v1878 = vadd.f32 %v1814, 1.0
      %v1879 = vadd.f32 %v1815, 1.0
      %v1880 = vadd.f32 %v1816, 1.0
      %v1881 = vadd.f32 %v1817, 1.0
      %v1882 = vadd.f32 %v1818, 1.0
      %v1883 = vadd.f32 %v1819, 1.0
      %v1884 = vmul.f32 %v1628, %v1820
      %v1885 = vmul.f32 %v1629, %v1821
      %v1886 = vmul.f32 %v1630, %v1822
      %v1887 = vmul.f32 %v1631, %v1823
      %v1888 = vmul.f32 %v1632, %v1824
      %v1889 = vmul.f32 %v1633, %v1825
      %v1890 = vmul.f32 %v1634, %v1826
      %v1891 = vmul.f32 %v1635, %v1827
      %v1892 = vmul.f32 %v1636, %v1828
      %v1893 = vmul.f32 %v1637, %v1829
      %v1894 = vmul.f32 %v1638, %v1830
      %v1895 = vmul.f32 %v1639, %v1831
      %v1896 = vmul.f32 %v1640, %v1832
      %v1897 = vmul.f32 %v1641, %v1833
      %v1898 = vmul.f32 %v1642, %v1834
      %v1899 = vmul.f32 %v1643, %v1835
      %v1900 = vmul.f32 %v1644, %v1836
      %v1901 = vmul.f32 %v1645, %v1837
      %v1902 = vmul.f32 %v1646, %v1838
      %v1903 = vmul.f32 %v1647, %v1839
      %v1904 = vmul.f32 %v1648, %v1840
      %v1905 = vmul.f32 %v1649, %v1841
      %v1906 = vmul.f32 %v1650, %v1842
      %v1907 = vmul.f32 %v1651, %v1843
      %v1908 = vmul.f32 %v1652, %v1844
      %v1909 = vmul.f32 %v1653, %v1845
      %v1910 = vmul.f32 %v1654, %v1846
      %v1911 = vmul.f32 %v1655, %v1847
      %v1912 = vmul.f32 %v1656, %v1848
      %v1913 = vmul.f32 %v1657, %v1849
      %v1914 = vmul.f32 %v1658, %v1850
      %v1915 = vmul.f32 %v1659, %v1851
      %v1916 = vmul.f32 %v1660, %v1852
      %v1917 = vmul.f32 %v1661, %v1853
      %v1918 = vmul.f32 %v1662, %v1854
      %v1919 = vmul.f32 %v1663, %v1855
      %v1920 = vmul.f32 %v1664, %v1856
      %v1921 = vmul.f32 %v1665, %v1857
      %v1922 = vmul.f32 %v1666, %v1858
      %v1923 = vmul.f32 %v1667, %v1859
      %v1924 = vmul.f32 %v1668, %v1860
      %v1925 = vmul.f32 %v1669, %v1861
      %v1926 = vmul.f32 %v1670, %v1862
      %v1927 = vmul.f32 %v1671, %v1863
      %v1928 = vmul.f32 %v1672, %v1864
      %v1929 = vmul.f32 %v1673, %v1865
      %v1930 = vmul.f32 %v1674, %v1866
      %v1931 = vmul.f32 %v1675, %v1867
      %v1932 = vmul.f32 %v1676, %v1868
      %v1933 = vmul.f32 %v1677, %v1869
      %v1934 = vmul.f32 %v1678, %v1870
      %v1935 = vmul.f32 %v1679, %v1871
      %v1936 = vmul.f32 %v1680, %v1872
      %v1937 = vmul.f32 %v1681, %v1873
      %v1938 = vmul.f32 %v1682, %v1874
      %v1939 = vmul.f32 %v1683, %v1875
      %v1940 = vmul.f32 %v1684, %v1876
      %v1941 = vmul.f32 %v1685, %v1877
      %v1942 = vmul.f32 %v1686, %v1878
      %v1943 = vmul.f32 %v1687, %v1879
      %v1944 = vmul.f32 %v1688, %v1880
      %v1945 = vmul.f32 %v1689, %v1881
      %v1946 = vmul.f32 %v1690, %v1882
      %v1947 = vmul.f32 %v1691, %v1883
      %v1948 = vpack.c.bf16 %v1885, %v1884
      %v1949 = vpack.c.bf16 %v1887, %v1886
      %v1950 = vpack.c.bf16 %v1889, %v1888
      %v1951 = vpack.c.bf16 %v1891, %v1890
      %v1952 = vpack.c.bf16 %v1893, %v1892
      %v1953 = vpack.c.bf16 %v1895, %v1894
      %v1954 = vpack.c.bf16 %v1897, %v1896
      %v1955 = vpack.c.bf16 %v1899, %v1898
      %v1956 = vpack.c.bf16 %v1901, %v1900
      %v1957 = vpack.c.bf16 %v1903, %v1902
      %v1958 = vpack.c.bf16 %v1905, %v1904
      %v1959 = vpack.c.bf16 %v1907, %v1906
      %v1960 = vpack.c.bf16 %v1909, %v1908
      %v1961 = vpack.c.bf16 %v1911, %v1910
      %v1962 = vpack.c.bf16 %v1913, %v1912
      %v1963 = vpack.c.bf16 %v1915, %v1914
      %v1964 = vpack.c.bf16 %v1917, %v1916
      %v1965 = vpack.c.bf16 %v1919, %v1918
      %v1966 = vpack.c.bf16 %v1921, %v1920
      %v1967 = vpack.c.bf16 %v1923, %v1922
      %v1968 = vpack.c.bf16 %v1925, %v1924
      %v1969 = vpack.c.bf16 %v1927, %v1926
      %v1970 = vpack.c.bf16 %v1929, %v1928
      %v1971 = vpack.c.bf16 %v1931, %v1930
      %v1972 = vpack.c.bf16 %v1933, %v1932
      %v1973 = vpack.c.bf16 %v1935, %v1934
      %v1974 = vpack.c.bf16 %v1937, %v1936
      %v1975 = vpack.c.bf16 %v1939, %v1938
      %v1976 = vpack.c.bf16 %v1941, %v1940
      %v1977 = vpack.c.bf16 %v1943, %v1942
      %v1978 = vpack.c.bf16 %v1945, %v1944
      %v1979 = vpack.c.bf16 %v1947, %v1946
      %v1980 = vld [vmem:[%s5] sm:$0xf]
      %v1981 = vld [vmem:[%s5 + $0x4] sm:$0xf]
      %v1982 = vld [vmem:[%s5 + $0x8] sm:$0xf]
      %v1983 = vld [vmem:[%s5 + $0xc] sm:$0xf]
      %v1984 = vld [vmem:[%s5 + $0x10] sm:$0xf]
      %v1985 = vld [vmem:[%s5 + $0x14] sm:$0xf]
      %v1986 = vld [vmem:[%s5 + $0x18] sm:$0xf]
      %v1987 = vld [vmem:[%s5 + $0x1c] sm:$0xf]
      %v1988 = vld [vmem:[%s5 + $0x20] sm:$0xf]
      %v1989 = vld [vmem:[%s5 + $0x24] sm:$0xf]
      %v1990 = vld [vmem:[%s5 + $0x28] sm:$0xf]
      %v1991 = vld [vmem:[%s5 + $0x2c] sm:$0xf]
      %v1992 = vld [vmem:[%s5 + $0x30] sm:$0xf]
      %v1993 = vld [vmem:[%s5 + $0x34] sm:$0xf]
      %v1994 = vld [vmem:[%s5 + $0x38] sm:$0xf]
      %v1995 = vld [vmem:[%s5 + $0x3c] sm:$0xf]
      %v1996 = vld [vmem:[%s6] sm:$0x1]
      %v1998 = vlaneseq
      %v1999 = vshrl.u32 %v1998, 7
      %v2000 = vsub.s32 0, %v1999
      %v2001 = vrot.slane %v1996, %v2000
      %v2019 = vunpack.c.l.b16 %v1980
      %v2020 = vunpack.c.l.b16 %v1981
      %v2021 = vunpack.c.l.b16 %v1982
      %v2022 = vunpack.c.l.b16 %v1983
      %v2023 = vunpack.c.l.b16 %v1984
      %v2024 = vunpack.c.l.b16 %v1985
      %v2025 = vunpack.c.l.b16 %v1986
      %v2026 = vunpack.c.l.b16 %v1987
      %v2027 = vunpack.c.l.b16 %v1988
      %v2028 = vunpack.c.l.b16 %v1989
      %v2029 = vunpack.c.l.b16 %v1990
      %v2030 = vunpack.c.l.b16 %v1991
      %v2031 = vunpack.c.l.b16 %v1992
      %v2032 = vunpack.c.l.b16 %v1993
      %v2033 = vunpack.c.l.b16 %v1994
      %v2034 = vunpack.c.l.b16 %v1995
      %v2035 = vpack.c.b16 %v2020, %v2019
      %v2036 = vpack.c.b16 %v2022, %v2021
      %v2037 = vpack.c.b16 %v2024, %v2023
      %v2038 = vpack.c.b16 %v2026, %v2025
      %v2039 = vpack.c.b16 %v2028, %v2027
      %v2040 = vpack.c.b16 %v2030, %v2029
      %v2041 = vpack.c.b16 %v2032, %v2031
      %v2042 = vpack.c.b16 %v2034, %v2033
      %2051 = vmatprep.subr.bf16.mxu0 0
      %2052 = vmatpush1.bf16.msra.mxu0 %v2035
      %2053 = vmatprep.subr.bf16.mxu0 0
      %2054 = vmatpush1.bf16.msra.mxu0 %v2036
      %2055 = vmatprep.subr.bf16.mxu0 0
      %2056 = vmatpush1.bf16.msra.mxu0 %v2037
      %2057 = vmatprep.subr.bf16.mxu0 0
      %2058 = vmatpush1.bf16.msra.mxu0 %v2038
      %2059 = vmatprep.subr.bf16.mxu0 0
      %2060 = vmatpush1.bf16.msra.mxu0 %v2039
      %2061 = vmatprep.subr.bf16.mxu0 0
      %2062 = vmatpush1.bf16.msra.mxu0 %v2040
      %2063 = vmatprep.subr.bf16.mxu0 0
      %2064 = vmatpush1.bf16.msra.mxu0 %v2041
      %2065 = vmatprep.subr.bf16.mxu0 0
      %2066 = vmatpush1.bf16.msra.mxu0 %v2042
      %2067 = vmatprep.subr.bf16.mxu0 0
      %2068 = vmatpush1.bf16.msra.mxu0 0
      %2069 = vmatprep.subr.bf16.mxu0 0
      %2070 = vmatpush1.bf16.msra.mxu0 0
      %2071 = vmatprep.subr.bf16.mxu0 0
      %2072 = vmatpush1.bf16.msra.mxu0 0
      %2073 = vmatprep.subr.bf16.mxu0 0
      %2074 = vmatpush1.bf16.msra.mxu0 0
      %2075 = vmatprep.subr.bf16.mxu0 0
      %2076 = vmatpush1.bf16.msra.mxu0 0
      %2077 = vmatprep.subr.bf16.mxu0 0
      %2078 = vmatpush1.bf16.msra.mxu0 0
      %2079 = vmatprep.subr.bf16.mxu0 0
      %2080 = vmatpush1.bf16.msra.mxu0 0
      %2081 = vmatprep.subr.bf16.mxu0 0
      %2082 = vmatpush1.bf16.msra.mxu0 0
      %2083 = vmatprep.mubr.bf16.mxu0 0
      %2084 = vmatmul.mubr.bf16.gmra.mrb[0].mxu0 %v1948
      %v2085 = vpop.f32.mrb[0].mxu0
      %v2086 = vadd.f32 %v2001, %v2085
      %v2087 = vpop.f32.mrb[0].mxu0
      %v2088 = vpop.f32.mrb[0].mxu0
      %v2089 = vadd.f32 %v2001, %v2088
      %v2090 = vpop.f32.mrb[0].mxu0
      %2091 = vmatprep.mubr.bf16.mxu0 0
      %2092 = vmatmul.mubr.bf16.gmra.mrb[0].mxu0 %v1949
      %v2093 = vpop.f32.mrb[0].mxu0
      %v2094 = vadd.f32 %v2001, %v2093
      %v2095 = vpop.f32.mrb[0].mxu0
      %v2096 = vpop.f32.mrb[0].mxu0
      %v2097 = vadd.f32 %v2001, %v2096
      %v2098 = vpop.f32.mrb[0].mxu0
      %2099 = vmatprep.mubr.bf16.mxu0 0
      %2100 = vmatmul.mubr.bf16.gmra.mrb[0].mxu0 %v1950
      %v2101 = vpop.f32.mrb[0].mxu0
      %v2102 = vadd.f32 %v2001, %v2101
      %v2103 = vpop.f32.mrb[0].mxu0
      %v2104 = vpop.f32.mrb[0].mxu0
      %v2105 = vadd.f32 %v2001, %v2104
      %v2106 = vpop.f32.mrb[0].mxu0
      %2107 = vmatprep.mubr.bf16.mxu0 0
      %2108 = vmatmul.mubr.bf16.gmra.mrb[0].mxu0 %v1951
      %v2109 = vpop.f32.mrb[0].mxu0
      %v2110 = vadd.f32 %v2001, %v2109
      %v2111 = vpop.f32.mrb[0].mxu0
      %v2112 = vpop.f32.mrb[0].mxu0
      %v2113 = vadd.f32 %v2001, %v2112
      %v2114 = vpop.f32.mrb[0].mxu0
      %2115 = vmatprep.mubr.bf16.mxu0 0
      %2116 = vmatmul.mubr.bf16.gmra.mrb[0].mxu0 %v1952
      %v2117 = vpop.f32.mrb[0].mxu0
      %v2118 = vadd.f32 %v2001, %v2117
      %v2119 = vpop.f32.mrb[0].mxu0
      %v2120 = vpop.f32.mrb[0].mxu0
      %v2121 = vadd.f32 %v2001, %v2120
      %v2122 = vpop.f32.mrb[0].mxu0
      %2123 = vmatprep.mubr.bf16.mxu0 0
      %2124 = vmatmul.mubr.bf16.gmra.mrb[0].mxu0 %v1953
      %v2125 = vpop.f32.mrb[0].mxu0
      %v2126 = vadd.f32 %v2001, %v2125
      %v2127 = vpop.f32.mrb[0].mxu0
      %v2128 = vpop.f32.mrb[0].mxu0
      %v2129 = vadd.f32 %v2001, %v2128
      %v2130 = vpop.f32.mrb[0].mxu0
      %2131 = vmatprep.mubr.bf16.mxu0 0
      %2132 = vmatmul.mubr.bf16.gmra.mrb[0].mxu0 %v1954
      %v2133 = vpop.f32.mrb[0].mxu0
      %v2134 = vadd.f32 %v2001, %v2133
      %v2135 = vpop.f32.mrb[0].mxu0
      %v2136 = vpop.f32.mrb[0].mxu0
      %v2137 = vadd.f32 %v2001, %v2136
      %v2138 = vpop.f32.mrb[0].mxu0
      %2139 = vmatprep.mubr.bf16.mxu0 0
      %2140 = vmatmul.mubr.bf16.gmra.mrb[0].mxu0 %v1955
      %v2141 = vpop.f32.mrb[0].mxu0
      %v2142 = vadd.f32 %v2001, %v2141
      %v2143 = vpop.f32.mrb[0].mxu0
      %v2144 = vpop.f32.mrb[0].mxu0
      %v2145 = vadd.f32 %v2001, %v2144
      %v2146 = vpop.f32.mrb[0].mxu0
      %2147 = vmatprep.mubr.bf16.mxu0 0
      %2148 = vmatmul.mubr.bf16.gmra.mrb[0].mxu0 %v1956
      %v2149 = vpop.f32.mrb[0].mxu0
      %v2150 = vadd.f32 %v2001, %v2149
      %v2151 = vpop.f32.mrb[0].mxu0
      %v2152 = vpop.f32.mrb[0].mxu0
      %v2153 = vadd.f32 %v2001, %v2152
      %v2154 = vpop.f32.mrb[0].mxu0
      %2155 = vmatprep.mubr.bf16.mxu0 0
      %2156 = vmatmul.mubr.bf16.gmra.mrb[0].mxu0 %v1957
      %v2157 = vpop.f32.mrb[0].mxu0
      %v2158 = vadd.f32 %v2001, %v2157
      %v2159 = vpop.f32.mrb[0].mxu0
      %v2160 = vpop.f32.mrb[0].mxu0
      %v2161 = vadd.f32 %v2001, %v2160
      %v2162 = vpop.f32.mrb[0].mxu0
      %2163 = vmatprep.mubr.bf16.mxu0 0
      %2164 = vmatmul.mubr.bf16.gmra.mrb[0].mxu0 %v1958
      %v2165 = vpop.f32.mrb[0].mxu0
      %v2166 = vadd.f32 %v2001, %v2165
      %v2167 = vpop.f32.mrb[0].mxu0
      %v2168 = vpop.f32.mrb[0].mxu0
      %v2169 = vadd.f32 %v2001, %v2168
      %v2170 = vpop.f32.mrb[0].mxu0
      %2171 = vmatprep.mubr.bf16.mxu0 0
      %2172 = vmatmul.mubr.bf16.gmra.mrb[0].mxu0 %v1959
      %v2173 = vpop.f32.mrb[0].mxu0
      %v2174 = vadd.f32 %v2001, %v2173
      %v2175 = vpop.f32.mrb[0].mxu0
      %v2176 = vpop.f32.mrb[0].mxu0
      %v2177 = vadd.f32 %v2001, %v2176
      %v2178 = vpop.f32.mrb[0].mxu0
      %2179 = vmatprep.mubr.bf16.mxu0 0
      %2180 = vmatmul.mubr.bf16.gmra.mrb[0].mxu0 %v1960
      %v2181 = vpop.f32.mrb[0].mxu0
      %v2182 = vadd.f32 %v2001, %v2181
      %v2183 = vpop.f32.mrb[0].mxu0
      %v2184 = vpop.f32.mrb[0].mxu0
      %v2185 = vadd.f32 %v2001, %v2184
      %v2186 = vpop.f32.mrb[0].mxu0
      %2187 = vmatprep.mubr.bf16.mxu0 0
      %2188 = vmatmul.mubr.bf16.gmra.mrb[0].mxu0 %v1961
      %v2189 = vpop.f32.mrb[0].mxu0
      %v2190 = vadd.f32 %v2001, %v2189
      %v2191 = vpop.f32.mrb[0].mxu0
      %v2192 = vpop.f32.mrb[0].mxu0
      %v2193 = vadd.f32 %v2001, %v2192
      %v2194 = vpop.f32.mrb[0].mxu0
      %2195 = vmatprep.mubr.bf16.mxu0 0
      %2196 = vmatmul.mubr.bf16.gmra.mrb[0].mxu0 %v1962
      %v2197 = vpop.f32.mrb[0].mxu0
      %v2198 = vadd.f32 %v2001, %v2197
      %v2199 = vpop.f32.mrb[0].mxu0
      %v2200 = vpop.f32.mrb[0].mxu0
      %v2201 = vadd.f32 %v2001, %v2200
      %v2202 = vpop.f32.mrb[0].mxu0
      %2203 = vmatprep.mubr.bf16.mxu0 0
      %2204 = vmatmul.mubr.bf16.gmra.mrb[0].mxu0 %v1963
      %v2205 = vpop.f32.mrb[0].mxu0
      %v2206 = vadd.f32 %v2001, %v2205
      %v2207 = vpop.f32.mrb[0].mxu0
      %v2208 = vpop.f32.mrb[0].mxu0
      %v2209 = vadd.f32 %v2001, %v2208
      %v2210 = vpop.f32.mrb[0].mxu0
      %2211 = vmatprep.mubr.bf16.mxu0 0
      %2212 = vmatmul.mubr.bf16.gmra.mrb[0].mxu0 %v1964
      %v2213 = vpop.f32.mrb[0].mxu0
      %v2214 = vadd.f32 %v2001, %v2213
      %v2215 = vpop.f32.mrb[0].mxu0
      %v2216 = vpop.f32.mrb[0].mxu0
      %v2217 = vadd.f32 %v2001, %v2216
      %v2218 = vpop.f32.mrb[0].mxu0
      %2219 = vmatprep.mubr.bf16.mxu0 0
      %2220 = vmatmul.mubr.bf16.gmra.mrb[0].mxu0 %v1965
      %v2221 = vpop.f32.mrb[0].mxu0
      %v2222 = vadd.f32 %v2001, %v2221
      %v2223 = vpop.f32.mrb[0].mxu0
      %v2224 = vpop.f32.mrb[0].mxu0
      %v2225 = vadd.f32 %v2001, %v2224
      %v2226 = vpop.f32.mrb[0].mxu0
      %2227 = vmatprep.mubr.bf16.mxu0 0
      %2228 = vmatmul.mubr.bf16.gmra.mrb[0].mxu0 %v1966
      %v2229 = vpop.f32.mrb[0].mxu0
      %v2230 = vadd.f32 %v2001, %v2229
      %v2231 = vpop.f32.mrb[0].mxu0
      %v2232 = vpop.f32.mrb[0].mxu0
      %v2233 = vadd.f32 %v2001, %v2232
      %v2234 = vpop.f32.mrb[0].mxu0
      %2235 = vmatprep.mubr.bf16.mxu0 0
      %2236 = vmatmul.mubr.bf16.gmra.mrb[0].mxu0 %v1967
      %v2237 = vpop.f32.mrb[0].mxu0
      %v2238 = vadd.f32 %v2001, %v2237
      %v2239 = vpop.f32.mrb[0].mxu0
      %v2240 = vpop.f32.mrb[0].mxu0
      %v2241 = vadd.f32 %v2001, %v2240
      %v2242 = vpop.f32.mrb[0].mxu0
      %2243 = vmatprep.mubr.bf16.mxu0 0
      %2244 = vmatmul.mubr.bf16.gmra.mrb[0].mxu0 %v1968
      %v2245 = vpop.f32.mrb[0].mxu0
      %v2246 = vadd.f32 %v2001, %v2245
      %v2247 = vpop.f32.mrb[0].mxu0
      %v2248 = vpop.f32.mrb[0].mxu0
      %v2249 = vadd.f32 %v2001, %v2248
      %v2250 = vpop.f32.mrb[0].mxu0
      %2251 = vmatprep.mubr.bf16.mxu0 0
      %2252 = vmatmul.mubr.bf16.gmra.mrb[0].mxu0 %v1969
      %v2253 = vpop.f32.mrb[0].mxu0
      %v2254 = vadd.f32 %v2001, %v2253
      %v2255 = vpop.f32.mrb[0].mxu0
      %v2256 = vpop.f32.mrb[0].mxu0
      %v2257 = vadd.f32 %v2001, %v2256
      %v2258 = vpop.f32.mrb[0].mxu0
      %2259 = vmatprep.mubr.bf16.mxu0 0
      %2260 = vmatmul.mubr.bf16.gmra.mrb[0].mxu0 %v1970
      %v2261 = vpop.f32.mrb[0].mxu0
      %v2262 = vadd.f32 %v2001, %v2261
      %v2263 = vpop.f32.mrb[0].mxu0
      %v2264 = vpop.f32.mrb[0].mxu0
      %v2265 = vadd.f32 %v2001, %v2264
      %v2266 = vpop.f32.mrb[0].mxu0
      %2267 = vmatprep.mubr.bf16.mxu0 0
      %2268 = vmatmul.mubr.bf16.gmra.mrb[0].mxu0 %v1971
      %v2269 = vpop.f32.mrb[0].mxu0
      %v2270 = vadd.f32 %v2001, %v2269
      %v2271 = vpop.f32.mrb[0].mxu0
      %v2272 = vpop.f32.mrb[0].mxu0
      %v2273 = vadd.f32 %v2001, %v2272
      %v2274 = vpop.f32.mrb[0].mxu0
      %2275 = vmatprep.mubr.bf16.mxu0 0
      %2276 = vmatmul.mubr.bf16.gmra.mrb[0].mxu0 %v1972
      %v2277 = vpop.f32.mrb[0].mxu0
      %v2278 = vadd.f32 %v2001, %v2277
      %v2279 = vpop.f32.mrb[0].mxu0
      %v2280 = vpop.f32.mrb[0].mxu0
      %v2281 = vadd.f32 %v2001, %v2280
      %v2282 = vpop.f32.mrb[0].mxu0
      %2283 = vmatprep.mubr.bf16.mxu0 0
      %2284 = vmatmul.mubr.bf16.gmra.mrb[0].mxu0 %v1973
      %v2285 = vpop.f32.mrb[0].mxu0
      %v2286 = vadd.f32 %v2001, %v2285
      %v2287 = vpop.f32.mrb[0].mxu0
      %v2288 = vpop.f32.mrb[0].mxu0
      %v2289 = vadd.f32 %v2001, %v2288
      %v2290 = vpop.f32.mrb[0].mxu0
      %2291 = vmatprep.mubr.bf16.mxu0 0
      %2292 = vmatmul.mubr.bf16.gmra.mrb[0].mxu0 %v1974
      %v2293 = vpop.f32.mrb[0].mxu0
      %v2294 = vadd.f32 %v2001, %v2293
      %v2295 = vpop.f32.mrb[0].mxu0
      %v2296 = vpop.f32.mrb[0].mxu0
      %v2297 = vadd.f32 %v2001, %v2296
      %v2298 = vpop.f32.mrb[0].mxu0
      %2299 = vmatprep.mubr.bf16.mxu0 0
      %2300 = vmatmul.mubr.bf16.gmra.mrb[0].mxu0 %v1975
      %v2301 = vpop.f32.mrb[0].mxu0
      %v2302 = vadd.f32 %v2001, %v2301
      %v2303 = vpop.f32.mrb[0].mxu0
      %v2304 = vpop.f32.mrb[0].mxu0
      %v2305 = vadd.f32 %v2001, %v2304
      %v2306 = vpop.f32.mrb[0].mxu0
      %2307 = vmatprep.mubr.bf16.mxu0 0
      %2308 = vmatmul.mubr.bf16.gmra.mrb[0].mxu0 %v1976
      %v2309 = vpop.f32.mrb[0].mxu0
      %v2310 = vadd.f32 %v2001, %v2309
      %v2311 = vpop.f32.mrb[0].mxu0
      %v2312 = vpop.f32.mrb[0].mxu0
      %v2313 = vadd.f32 %v2001, %v2312
      %v2314 = vpop.f32.mrb[0].mxu0
      %2315 = vmatprep.mubr.bf16.mxu0 0
      %2316 = vmatmul.mubr.bf16.gmra.mrb[0].mxu0 %v1977
      %v2317 = vpop.f32.mrb[0].mxu0
      %v2318 = vadd.f32 %v2001, %v2317
      %v2319 = vpop.f32.mrb[0].mxu0
      %v2320 = vpop.f32.mrb[0].mxu0
      %v2321 = vadd.f32 %v2001, %v2320
      %v2322 = vpop.f32.mrb[0].mxu0
      %2323 = vmatprep.mubr.bf16.mxu0 0
      %2324 = vmatmul.mubr.bf16.gmra.mrb[0].mxu0 %v1978
      %v2325 = vpop.f32.mrb[0].mxu0
      %v2326 = vadd.f32 %v2001, %v2325
      %v2327 = vpop.f32.mrb[0].mxu0
      %v2328 = vpop.f32.mrb[0].mxu0
      %v2329 = vadd.f32 %v2001, %v2328
      %v2330 = vpop.f32.mrb[0].mxu0
      %2331 = vmatprep.mubr.bf16.mxu0 0
      %2332 = vmatmul.mubr.bf16.gmra.mrb[0].mxu0 %v1979
      %v2333 = vpop.f32.mrb[0].mxu0
      %v2334 = vadd.f32 %v2001, %v2333
      %v2335 = vpop.f32.mrb[0].mxu0
      %v2336 = vpop.f32.mrb[0].mxu0
      %v2337 = vadd.f32 %v2001, %v2336
      %v2338 = vpop.f32.mrb[0].mxu0
      %2339 = vdwg.mxu0
      %vm2340 = vcmask 31744
      %2341 = vst.msk [vmem:[%s280] sm:$0xff] %vm2340, %v2086
      %2342 = vst.msk [vmem:[%s280 + $0x8] sm:$0xff] %vm2340, %v2089
      %2343 = vst.msk [vmem:[%s280 + $0x10] sm:$0xff] %vm2340, %v2094
      %2344 = vst.msk [vmem:[%s280 + $0x18] sm:$0xff] %vm2340, %v2097
      %2345 = vst.msk [vmem:[%s280 + $0x20] sm:$0xff] %vm2340, %v2102
      %2346 = vst.msk [vmem:[%s280 + $0x28] sm:$0xff] %vm2340, %v2105
      %2347 = vst.msk [vmem:[%s280 + $0x30] sm:$0xff] %vm2340, %v2110
      %2348 = vst.msk [vmem:[%s280 + $0x38] sm:$0xff] %vm2340, %v2113
      %2349 = vst.msk [vmem:[%s280 + $0x40] sm:$0xff] %vm2340, %v2118
      %2350 = vst.msk [vmem:[%s280 + $0x48] sm:$0xff] %vm2340, %v2121
      %2351 = vst.msk [vmem:[%s280 + $0x50] sm:$0xff] %vm2340, %v2126
      %2352 = vst.msk [vmem:[%s280 + $0x58] sm:$0xff] %vm2340, %v2129
      %2353 = vst.msk [vmem:[%s280 + $0x60] sm:$0xff] %vm2340, %v2134
      %2354 = vst.msk [vmem:[%s280 + $0x68] sm:$0xff] %vm2340, %v2137
      %2355 = vst.msk [vmem:[%s280 + $0x70] sm:$0xff] %vm2340, %v2142
      %2356 = vst.msk [vmem:[%s280 + $0x78] sm:$0xff] %vm2340, %v2145
      %2357 = vst.msk [vmem:[%s280 + $0x80] sm:$0xff] %vm2340, %v2150
      %2358 = vst.msk [vmem:[%s280 + $0x88] sm:$0xff] %vm2340, %v2153
      %2359 = vst.msk [vmem:[%s280 + $0x90] sm:$0xff] %vm2340, %v2158
      %2360 = vst.msk [vmem:[%s280 + $0x98] sm:$0xff] %vm2340, %v2161
      %2361 = vst.msk [vmem:[%s280 + $0xa0] sm:$0xff] %vm2340, %v2166
      %2362 = vst.msk [vmem:[%s280 + $0xa8] sm:$0xff] %vm2340, %v2169
      %2363 = vst.msk [vmem:[%s280 + $0xb0] sm:$0xff] %vm2340, %v2174
      %2364 = vst.msk [vmem:[%s280 + $0xb8] sm:$0xff] %vm2340, %v2177
      %2365 = vst.msk [vmem:[%s280 + $0xc0] sm:$0xff] %vm2340, %v2182
      %2366 = vst.msk [vmem:[%s280 + $0xc8] sm:$0xff] %vm2340, %v2185
      %2367 = vst.msk [vmem:[%s280 + $0xd0] sm:$0xff] %vm2340, %v2190
      %2368 = vst.msk [vmem:[%s280 + $0xd8] sm:$0xff] %vm2340, %v2193
      %2369 = vst.msk [vmem:[%s280 + $0xe0] sm:$0xff] %vm2340, %v2198
      %2370 = vst.msk [vmem:[%s280 + $0xe8] sm:$0xff] %vm2340, %v2201
      %2371 = vst.msk [vmem:[%s280 + $0xf0] sm:$0xff] %vm2340, %v2206
      %2372 = vst.msk [vmem:[%s280 + $0xf8] sm:$0xff] %vm2340, %v2209
      %2373 = vst.msk [vmem:[%s280 + $0x100] sm:$0xff] %vm2340, %v2214
      %2374 = vst.msk [vmem:[%s280 + $0x108] sm:$0xff] %vm2340, %v2217
      %2375 = vst.msk [vmem:[%s280 + $0x110] sm:$0xff] %vm2340, %v2222
      %2376 = vst.msk [vmem:[%s280 + $0x118] sm:$0xff] %vm2340, %v2225
      %2377 = vst.msk [vmem:[%s280 + $0x120] sm:$0xff] %vm2340, %v2230
      %2378 = vst.msk [vmem:[%s280 + $0x128] sm:$0xff] %vm2340, %v2233
      %2379 = vst.msk [vmem:[%s280 + $0x130] sm:$0xff] %vm2340, %v2238
      %2380 = vst.msk [vmem:[%s280 + $0x138] sm:$0xff] %vm2340, %v2241
      %2381 = vst.msk [vmem:[%s280 + $0x140] sm:$0xff] %vm2340, %v2246
      %2382 = vst.msk [vmem:[%s280 + $0x148] sm:$0xff] %vm2340, %v2249
      %2383 = vst.msk [vmem:[%s280 + $0x150] sm:$0xff] %vm2340, %v2254
      %2384 = vst.msk [vmem:[%s280 + $0x158] sm:$0xff] %vm2340, %v2257
      %2385 = vst.msk [vmem:[%s280 + $0x160] sm:$0xff] %vm2340, %v2262
      %2386 = vst.msk [vmem:[%s280 + $0x168] sm:$0xff] %vm2340, %v2265
      %2387 = vst.msk [vmem:[%s280 + $0x170] sm:$0xff] %vm2340, %v2270
      %2388 = vst.msk [vmem:[%s280 + $0x178] sm:$0xff] %vm2340, %v2273
      %2389 = vst.msk [vmem:[%s280 + $0x180] sm:$0xff] %vm2340, %v2278
      %2390 = vst.msk [vmem:[%s280 + $0x188] sm:$0xff] %vm2340, %v2281
      %2391 = vst.msk [vmem:[%s280 + $0x190] sm:$0xff] %vm2340, %v2286
      %2392 = vst.msk [vmem:[%s280 + $0x198] sm:$0xff] %vm2340, %v2289
      %2393 = vst.msk [vmem:[%s280 + $0x1a0] sm:$0xff] %vm2340, %v2294
      %2394 = vst.msk [vmem:[%s280 + $0x1a8] sm:$0xff] %vm2340, %v2297
      %2395 = vst.msk [vmem:[%s280 + $0x1b0] sm:$0xff] %vm2340, %v2302
      %2396 = vst.msk [vmem:[%s280 + $0x1b8] sm:$0xff] %vm2340, %v2305
      %2397 = vst.msk [vmem:[%s280 + $0x1c0] sm:$0xff] %vm2340, %v2310
      %2398 = vst.msk [vmem:[%s280 + $0x1c8] sm:$0xff] %vm2340, %v2313
      %2399 = vst.msk [vmem:[%s280 + $0x1d0] sm:$0xff] %vm2340, %v2318
      %2400 = vst.msk [vmem:[%s280 + $0x1d8] sm:$0xff] %vm2340, %v2321
      %2401 = vst.msk [vmem:[%s280 + $0x1e0] sm:$0xff] %vm2340, %v2326
      %2402 = vst.msk [vmem:[%s280 + $0x1e8] sm:$0xff] %vm2340, %v2329
      %2403 = vst.msk [vmem:[%s280 + $0x1f0] sm:$0xff] %vm2340, %v2334
      %2404 = vst.msk [vmem:[%s280 + $0x1f8] sm:$0xff] %vm2340, %v2337
      %s2405 = smul.u32 64, %s18
      %p2406 = scmp.lt.s32.totalorder %s2405, 127
      %s2407 = scalar_select %p2406, %s2405, 127
      %s2408 = smul.addr %s2407, 8
      %s2409 = scalar_lea.vmem %s7, %s2408
      // Predicated region
      $region49: #{_lambda_.11} parent=47 // pred_check
        %p2410 = pneg %p188
      $region50: #{_lambda_.11} parent=47 // pred_check_branch
        %2412 = sbr.rel (%p2410) target = $region52
      $region51: #{_lambda_.11} parent=47 // pred_region
        %s2413 = smul.u32 64, %s18
      $region52: #{_lambda_.11} parent=47 // pred_fallthru
        _
    $region48: #{_lambda_.11} parent=5 // pred_fallthru
      _
    %p2414 = scmp.le.s32.totalorder 2, %s13
    // Predicated region
    $region53: #{_lambda_.11} parent=5 // pred_check
      %p2415 = pneg %p2414
    $region54: #{_lambda_.11} parent=5 // pred_check_branch
      %2417 = sbr.rel (%p2415) target = $region56
    $region55: #{_lambda_.11} parent=5 // pred_region
      %s2418 = ssub.s32 %s13, 2
      // Predicated region
      $region57: #{_lambda_.11} parent=55 // pred_check
        %p2419 = pneg %p194
      $region58: #{_lambda_.11} parent=55 // pred_check_branch
        %2421 = sbr.rel (%p2419) target = $region60
      $region59: #{_lambda_.11} parent=55 // pred_region
        %s2422 = smul.u32 64, %s19
        %p2423 = scmp.lt.s32.totalorder %s2422, 127
        %s2424 = scalar_select %p2423, %s2422, 127
        %s2425 = smul.addr %s2424, 8
        %s2426 = scalar_lea.vmem %s7, %s2425
      $region60: #{_lambda_.11} parent=55 // pred_fallthru
        _
    $region56: #{_lambda_.11} parent=5 // pred_fallthru
      _
  $region6: #{_lambda_.11} parent=0 // loop_footer
    %s17 = sadd.s32 1, %s13
  $region7: #{_lambda_.11} parent=0 // loop_footer_branch
    %12 = sbr.rel target = $region3
  $region8: #{_lambda_.11} parent=0 // loop_exit
    _

</llo_original>
